<compile_context>
chip_gen: v7x
topology: tpu7x:2x2x1
jax: 0.10.0
libtpu: 0.0.40
codegen_flags: <defaults>
</compile_context>

<pallas_src>
import math
from functools import partial

import jax
import jax.numpy as jnp
from jax.experimental import pallas as pl
from jax.experimental.pallas import tpu as pltpu
from jax.scipy.linalg import block_diag

# ----------------------------------------------------------------------------
# DBLP metadata (node types / edge types of the real dataset).
# ----------------------------------------------------------------------------
NODE_TYPES = ["author", "paper", "term", "conference"]
EDGE_TYPES = [
    ("author", "to", "paper"),
    ("paper", "to", "author"),
    ("paper", "to", "term"),
    ("paper", "to", "conference"),
    ("term", "to", "paper"),
    ("conference", "to", "paper"),
]
EDGE_SRC = tuple(NODE_TYPES.index(et[0]) for et in EDGE_TYPES)
EDGE_DST = tuple(NODE_TYPES.index(et[2]) for et in EDGE_TYPES)
NEG_BIG = -1e30
LANE = 128


# ----------------------------------------------------------------------------
# Pallas plumbing: tiny shapes -> single grid step, whole-array blocks in VMEM.
# ----------------------------------------------------------------------------
def _full_spec(shape):
    nd = len(shape)
    return pl.BlockSpec(shape, lambda i, _nd=nd: (0,) * _nd)


def _pallas(kernel, out_shape, *args):
    return pl.pallas_call(
        kernel,
        out_shape=out_shape,
        grid=(1,),
        in_specs=[_full_spec(a.shape) for a in args],
        out_specs=_full_spec(out_shape.shape),
        compiler_params=pltpu.CompilerParams(
            dimension_semantics=("arbitrary",)),
    )(*args)


# ----------------------------------------------------------------------------
# The single fused kernel: input proj -> L x HGTConv -> author classifier.
#
#   x_ref    : (Np, sum(in_dims))            lane-packed raw features
#   bias_ref : (NE, Np, Np)                  additive attn bias (0 / -1e30)
#   w_in/b_in: block-diagonal input projection (all node types)
#   wqkv_ref : (L, NT*C, (NT+2*NE)*C)        [Wq_bd | Wk_eff | Wv_eff] per layer
#              (a_rel/m_rel and p_rel/sqrt(D) already folded in)
#   wa/ba    : (L, NT*C, NT*C) / (L, 1, NT*C) block-diag output linear
#   skip_ref : (L, 1, NT*C)                  raw skip params (pre-sigmoid)
#   wout/bout: (C, 128) / (1, 128)           zero-padded author classifier
# ----------------------------------------------------------------------------
def _hgt_fused_kernel(x_ref, bias_ref, w_in_ref, b_in_ref,
                      wqkv_ref, bqkv_ref, wa_ref, ba_ref, skip_ref,
                      wout_ref, bout_ref, o_ref,
                      *, heads, head_dim, edge_dst, n_types, num_layers):
    C = heads * head_dim
    ne = len(edge_dst)

    # ---- packed input projection + ReLU (one block-diagonal MXU matmul) ----
    h = jnp.dot(x_ref[...], w_in_ref[...], preferred_element_type=jnp.float32)
    h = jnp.maximum(h + b_in_ref[...], 0.0)                      # (Np, NT*C)

    # Per-edge-type destination-row validity (rows with >=1 incoming edge of
    # that edge type contribute, others must contribute exactly zero).
    # Computed once, reused by every layer.
    row_valid = []
    for e in range(ne):
        rv = (jnp.max(bias_ref[e], axis=-1, keepdims=True) > -1e20)
        row_valid.append(rv.astype(jnp.float32))

    # group='mean' divisor: number of edge types targeting each node type.
    cnt = [0] * n_types
    for e in range(ne):
        cnt[edge_dst[e]] += 1
    inv_cnt = [1.0 / max(c, 1) for c in cnt]

    c0 = math.sqrt(2.0 / math.pi)

    for layer in range(num_layers):
        # One wide MXU matmul for q of every node type and (relation-folded)
        # k/v of every edge type.
        qkv = jnp.dot(h, wqkv_ref[layer],
                      preferred_element_type=jnp.float32) + bqkv_ref[layer]
        q_all = qkv[:, : n_types * C]                            # (Np, NT*C)
        k_all = qkv[:, n_types * C:(n_types + ne) * C]           # (Np, NE*C)
        v_all = qkv[:, (n_types + ne) * C:]                      # (Np, NE*C)

        acc = [None] * n_types
        for e in range(ne):
            dt = edge_dst[e]
            bias = bias_ref[e]                                   # (Np, Np)
            head_out = []
            for hh in range(heads):
                lo = hh * head_dim
                qh = q_all[:, dt * C + lo: dt * C + lo + head_dim]  # (Np, D)
                kh = k_all[:, e * C + lo: e * C + lo + head_dim]    # (Np, D)
                vh = v_all[:, e * C + lo: e * C + lo + head_dim]    # (Np, D)
                # p_rel / sqrt(D) are already folded into kh.
                sc = jax.lax.dot_general(
                    qh, kh, (((1,), (1,)), ((), ())),
                    preferred_element_type=jnp.float32) + bias      # (Np, Np)
                mmax = jnp.max(sc, axis=-1, keepdims=True)
                ex = jnp.exp(sc - mmax)
                denom = jnp.sum(ex, axis=-1, keepdims=True)
                attn = ex * pl.reciprocal(denom, approx=True)
                head_out.append(
                    jnp.dot(attn, vh, preferred_element_type=jnp.float32))
            msg = jnp.concatenate(head_out, axis=-1) * row_valid[e]  # (Np, C)
            acc[dt] = msg if acc[dt] is None else acc[dt] + msg

        cols = []
        for t in range(n_types):
            if acc[t] is None:       # node type with no incoming edge type
                cols.append(jnp.zeros((h.shape[0], C), jnp.float32))
            else:
                cols.append(acc[t] * inv_cnt[t])
        agg = jnp.concatenate(cols, axis=-1)                     # (Np, NT*C)

        # TODO(synk): PyTorch F.gelu default is exact erf GELU; using the tanh
        # approximation (~1e-3 difference) to stay on ops guaranteed in Mosaic.
        g = 0.5 * agg * (1.0 + jnp.tanh(c0 * (agg + 0.044715 * agg * agg * agg)))

        y = jnp.dot(g, wa_ref[layer],
                    preferred_element_type=jnp.float32) + ba_ref[layer]
        alpha = jax.nn.sigmoid(skip_ref[layer])                  # (1, NT*C)
        h = alpha * y + (1.0 - alpha) * h

    # ---- author classifier, lane-dense padded store (Np, 128) ----
    author = h[:, :C]                                            # author block
    out = jnp.dot(author, wout_ref[...],
                  preferred_element_type=jnp.float32) + bout_ref[...]
    o_ref[...] = out.astype(o_ref.dtype)


# ----------------------------------------------------------------------------
# Parameter folding / packing (plain JAX glue, runs inside jit, tiny shapes).
# ----------------------------------------------------------------------------
def pack_conv_params(lp, heads, head_dim):
    C = heads * head_dim
    nt, ne = len(NODE_TYPES), len(EDGE_TYPES)
    scale = 1.0 / math.sqrt(head_dim)

    wq = block_diag(*[lp["q_lin"][n]["w"] for n in NODE_TYPES])      # (NT*C, NT*C)
    bq = jnp.concatenate([lp["q_lin"][n]["b"] for n in NODE_TYPES])  # (NT*C,)

    wk = jnp.zeros((nt * C, ne * C), jnp.float32)
    wv = jnp.zeros((nt * C, ne * C), jnp.float32)
    bk = jnp.zeros((ne * C,), jnp.float32)
    bv = jnp.zeros((ne * C,), jnp.float32)
    for e, et in enumerate(EDGE_TYPES):
        name = "__".join(et)
        st = EDGE_SRC[e]
        src_nt = NODE_TYPES[st]
        # fold relation matrices (and p_rel / sqrt(D)) into the k/v weights.
        a_blk = block_diag(*[lp["a_rel"][name][h] * (lp["p_rel"][name][h] * scale)
                             for h in range(heads)])                 # (C, C)
        m_blk = block_diag(*[lp["m_rel"][name][h] for h in range(heads)])
        wk = wk.at[st * C:(st + 1) * C, e * C:(e + 1) * C].set(
            lp["k_lin"][src_nt]["w"] @ a_blk)
        wv = wv.at[st * C:(st + 1) * C, e * C:(e + 1) * C].set(
            lp["v_lin"][src_nt]["w"] @ m_blk)
        bk = bk.at[e * C:(e + 1) * C].set(lp["k_lin"][src_nt]["b"] @ a_blk)
        bv = bv.at[e * C:(e + 1) * C].set(lp["v_lin"][src_nt]["b"] @ m_blk)

    w_qkv = jnp.concatenate([wq, wk, wv], axis=1)        # (NT*C, (NT+2NE)*C)
    b_qkv = jnp.concatenate([bq, bk, bv]).reshape(1, -1)

    wa = block_diag(*[lp["a_lin"][n]["w"] for n in NODE_TYPES])
    ba = jnp.concatenate([lp["a_lin"][n]["b"] for n in NODE_TYPES]).reshape(1, -1)
    skip = jnp.concatenate(
        [jnp.broadcast_to(lp["skip"][n], (C,)) for n in NODE_TYPES]).reshape(1, -1)
    return w_qkv, b_qkv, wa, ba, skip


def pack_node_features(x_dict, num_nodes, in_dims, n_pad):
    total_in = sum(in_dims[n] for n in NODE_TYPES)
    x = jnp.zeros((n_pad, total_in), jnp.float32)
    off = 0
    for n in NODE_TYPES:
        x = x.at[: num_nodes[n], off: off + in_dims[n]].set(x_dict[n])
        off += in_dims[n]
    return x


def pack_edge_bias(masks, num_nodes, n_pad):
    bias = jnp.full((len(EDGE_TYPES), n_pad, n_pad), NEG_BIG, jnp.float32)
    for e, et in enumerate(EDGE_TYPES):
        name = "__".join(et)
        nd, ns = num_nodes[et[2]], num_nodes[et[0]]
        b = jnp.where(masks[name] > 0.5, 0.0, NEG_BIG)
        bias = bias.at[e, :nd, :ns].set(b)
    return bias


# ----------------------------------------------------------------------------
# Model: parameter init (deterministic) + forward pass.
# ----------------------------------------------------------------------------
def _glorot(key, shape):
    fan_in, fan_out = shape[-2], shape[-1]
    lim = math.sqrt(6.0 / (fan_in + fan_out))
    return jax.random.uniform(key, shape, jnp.float32, -lim, lim)


def init_params(key, in_dims, hidden, out_channels, heads, num_layers):
    d = hidden // heads
    keys = iter(jax.random.split(key, 128))

    def lin_p(fi, fo):
        return {"w": _glorot(next(keys), (fi, fo)), "b": jnp.zeros((fo,), jnp.float32)}

    params = {"lin_dict": {n: lin_p(in_dims[n], hidden) for n in NODE_TYPES}}
    convs = []
    for _ in range(num_layers):
        layer = {
            "k_lin": {n: lin_p(hidden, hidden) for n in NODE_TYPES},
            "q_lin": {n: lin_p(hidden, hidden) for n in NODE_TYPES},
            "v_lin": {n: lin_p(hidden, hidden) for n in NODE_TYPES},
            "a_lin": {n: lin_p(hidden, hidden) for n in NODE_TYPES},
            "skip": {n: jnp.float32(1.0) for n in NODE_TYPES},
            "a_rel": {}, "m_rel": {}, "p_rel": {},
        }
        for et in EDGE_TYPES:
            name = "__".join(et)
            layer["a_rel"][name] = _glorot(next(keys), (heads, d, d))
            layer["m_rel"][name] = _glorot(next(keys), (heads, d, d))
            layer["p_rel"][name] = jnp.ones((heads,), jnp.float32)
        convs.append(layer)
    params["convs"] = convs
    params["lin"] = lin_p(hidden, out_channels)
    return params


def hgt_forward(params, x_packed, bias_all, *, hidden, heads):
    head_dim = hidden // heads
    num_layers = len(params["convs"])

    # packed (block-diagonal) input projection for all node types at once
    w_in = block_diag(*[params["lin_dict"][n]["w"] for n in NODE_TYPES])
    b_in = jnp.concatenate(
        [params["lin_dict"][n]["b"] for n in NODE_TYPES]).reshape(1, -1)

    # stack per-layer packed conv params -> single VMEM-resident tensors
    packed = [pack_conv_params(lp, heads, head_dim) for lp in params["convs"]]
    wqkv = jnp.stack([p[0] for p in packed])     # (L, NT*C, (NT+2NE)*C)
    bqkv = jnp.stack([p[1] for p in packed])     # (L, 1, (NT+2NE)*C)
    wa = jnp.stack([p[2] for p in packed])       # (L, NT*C, NT*C)
    ba = jnp.stack([p[3] for p in packed])       # (L, 1, NT*C)
    skip = jnp.stack([p[4] for p in packed])     # (L, 1, NT*C)

    # author classifier, zero-padded to 128 lanes for a lane-dense output store
    out_c = params["lin"]["w"].shape[1]
    wout = jnp.zeros((hidden, LANE), jnp.float32).at[:, :out_c].set(
        params["lin"]["w"])
    bout = jnp.zeros((1, LANE), jnp.float32).at[:, :out_c].set(params["lin"]["b"])

    out_shape = jax.ShapeDtypeStruct((x_packed.shape[0], LANE), jnp.float32)
    return _pallas(
        partial(_hgt_fused_kernel, heads=heads, head_dim=head_dim,
                edge_dst=EDGE_DST, n_types=len(NODE_TYPES),
                num_layers=num_layers),
        out_shape,
        x_packed, bias_all, w_in, b_in, wqkv, bqkv, wa, ba, skip, wout, bout)


# ----------------------------------------------------------------------------
# Synthetic graph construction (deterministic).
# ----------------------------------------------------------------------------
def build_edges(n_src, n_dst, offset, deg=3):
    src = jnp.repeat(jnp.arange(n_src), deg)
    dst = ((jnp.arange(n_src)[:, None] * 3 + offset + jnp.arange(deg)[None, :]) % n_dst)
    return jnp.stack([src, dst.reshape(-1)], axis=0)  # (2, E)


def edge_mask(edge_index, n_src, n_dst):
    src, dst = edge_index
    mask = jnp.zeros((n_dst, n_src), jnp.float32)
    return mask.at[dst, src].set(1.0)


if __name__ == "__main__":
    key = jax.random.PRNGKey(0)

    num_nodes = {"author": 12, "paper": 16, "term": 10, "conference": 6}
    in_dims = {"author": 12, "paper": 10, "term": 6, "conference": 4}
    hidden_channels, out_channels, num_heads, num_layers = 32, 4, 2, 2

    # node features
    x_dict = {}
    for i, nt in enumerate(NODE_TYPES):
        x_dict[nt] = jax.random.normal(
            jax.random.fold_in(key, 100 + i), (num_nodes[nt], in_dims[nt]), jnp.float32
        )

    # heterogeneous edge index dict -> dense per-relation adjacency masks
    masks = {}
    for j, et in enumerate(EDGE_TYPES):
        src_t, _, dst_t = et
        ei = build_edges(num_nodes[src_t], num_nodes[dst_t], offset=j, deg=3)
        masks["__".join(et)] = edge_mask(ei, num_nodes[src_t], num_nodes[dst_t])

    params = init_params(key, in_dims, hidden_channels, out_channels,
                         num_heads, num_layers)

    n_pad = ((max(num_nodes.values()) + 7) // 8) * 8      # 16 (sublane multiple)
    x_packed = pack_node_features(x_dict, num_nodes, in_dims, n_pad)
    bias_all = pack_edge_bias(masks, num_nodes, n_pad)

    fwd = jax.jit(partial(hgt_forward, hidden=hidden_channels, heads=num_heads))
    out_padded = jax.block_until_ready(fwd(params, x_packed, bias_all))
    out = out_padded[:num_nodes["author"], :out_channels]
    assert out.shape == (num_nodes["author"], out_channels)
    assert bool(jnp.all(jnp.isfinite(out)))
    print("KERNEL_OK")
</pallas_src>

<mosaic_0001>
module attributes {stable_mosaic.version = 11 : i64} {
  func.func @_hgt_fused_kernel(%arg0: i32, %arg1: memref<16x32xf32, #tpu.memory_space<vmem>>, %arg2: memref<6x16x16xf32, #tpu.memory_space<vmem>>, %arg3: memref<32x128xf32, #tpu.memory_space<vmem>>, %arg4: memref<1x128xf32, #tpu.memory_space<vmem>>, %arg5: memref<2x128x512xf32, #tpu.memory_space<vmem>>, %arg6: memref<2x1x512xf32, #tpu.memory_space<vmem>>, %arg7: memref<2x128x128xf32, #tpu.memory_space<vmem>>, %arg8: memref<2x1x128xf32, #tpu.memory_space<vmem>>, %arg9: memref<2x1x128xf32, #tpu.memory_space<vmem>>, %arg10: memref<32x128xf32, #tpu.memory_space<vmem>>, %arg11: memref<1x128xf32, #tpu.memory_space<vmem>>, %arg12: memref<16x128xf32, #tpu.memory_space<vmem>>) attributes {dimension_semantics = [#tpu.dimension_semantics<arbitrary>], iteration_bounds = array<i64: 1>, scalar_prefetch = 0 : i64, scratch_operands = 0 : i64, tpu.core_type = #tpu.core_type<tc>, window_params = [{pipeline_mode = #tpu.pipeline_mode<synchronous>, transform_indices = @transform_0, window_bounds = array<i64: 16, 32>}, {pipeline_mode = #tpu.pipeline_mode<synchronous>, transform_indices = @transform_1, window_bounds = array<i64: 6, 16, 16>}, {pipeline_mode = #tpu.pipeline_mode<synchronous>, transform_indices = @transform_2, window_bounds = array<i64: 32, 128>}, {pipeline_mode = #tpu.pipeline_mode<synchronous>, transform_indices = @transform_3, window_bounds = array<i64: 1, 128>}, {pipeline_mode = #tpu.pipeline_mode<synchronous>, transform_indices = @transform_4, window_bounds = array<i64: 2, 128, 512>}, {pipeline_mode = #tpu.pipeline_mode<synchronous>, transform_indices = @transform_5, window_bounds = array<i64: 2, 1, 512>}, {pipeline_mode = #tpu.pipeline_mode<synchronous>, transform_indices = @transform_6, window_bounds = array<i64: 2, 128, 128>}, {pipeline_mode = #tpu.pipeline_mode<synchronous>, transform_indices = @transform_7, window_bounds = array<i64: 2, 1, 128>}, {pipeline_mode = #tpu.pipeline_mode<synchronous>, transform_indices = @transform_8, window_bounds = array<i64: 2, 1, 128>}, {pipeline_mode = #tpu.pipeline_mode<synchronous>, transform_indices = @transform_9, window_bounds = array<i64: 32, 128>}, {pipeline_mode = #tpu.pipeline_mode<synchronous>, transform_indices = @transform_10, window_bounds = array<i64: 1, 128>}, {pipeline_mode = #tpu.pipeline_mode<synchronous>, transform_indices = @transform_11, window_bounds = array<i64: 16, 128>}]} {
    %c0 = arith.constant 0 : index
    %c0_0 = arith.constant 0 : index
    %0 = vector.load %arg1[%c0, %c0_0] : memref<16x32xf32, #tpu.memory_space<vmem>>, vector<16x32xf32>
    %c0_1 = arith.constant 0 : index
    %c0_2 = arith.constant 0 : index
    %1 = vector.load %arg3[%c0_1, %c0_2] : memref<32x128xf32, #tpu.memory_space<vmem>>, vector<32x128xf32>
    %cst = arith.constant dense<0.000000e+00> : vector<16x128xf32>
    %2 = tpu.matmul %0, %1, %cst {dimension_numbers = #tpu.dot_dimension_numbers<[1], [0], [0], [1], [0, 0, 1, 1], [], []>} : vector<16x32xf32>, vector<32x128xf32>, vector<16x128xf32> -> vector<16x128xf32>
    %c0_3 = arith.constant 0 : index
    %c0_4 = arith.constant 0 : index
    %3 = vector.load %arg4[%c0_3, %c0_4] : memref<1x128xf32, #tpu.memory_space<vmem>>, vector<1x128xf32>
    %4 = vector.broadcast %3 : vector<1x128xf32> to vector<16x128xf32>
    %5 = arith.addf %2, %4 : vector<16x128xf32>
    %cst_5 = arith.constant 0.000000e+00 : f32
    %6 = vector.broadcast %cst_5 : f32 to vector<16x128xf32>
    %7 = arith.maximumf %5, %6 : vector<16x128xf32>
    %c0_6 = arith.constant 0 : index
    %c0_7 = arith.constant 0 : index
    %c0_8 = arith.constant 0 : index
    %8 = vector.load %arg2[%c0_6, %c0_7, %c0_8] : memref<6x16x16xf32, #tpu.memory_space<vmem>>, vector<1x16x16xf32>
    %9 = vector.shape_cast %8 : vector<1x16x16xf32> to vector<16x16xf32>
    %cst_9 = arith.constant dense<0xFF800000> : vector<16xf32>
    %10 = vector.multi_reduction <maximumf>, %9, %cst_9 [1] : vector<16x16xf32> to vector<16xf32>
    %11 = vector.shape_cast %10 : vector<16xf32> to vector<16x1xf32>
    %cst_10 = arith.constant -1.000000e+20 : f32
    %12 = vector.broadcast %cst_10 : f32 to vector<16x1xf32>
    %13 = arith.cmpf ogt, %11, %12 : vector<16x1xf32>
    %14 = arith.extui %13 : vector<16x1xi1> to vector<16x1xi32>
    %15 = arith.sitofp %14 : vector<16x1xi32> to vector<16x1xf32>
    %c1 = arith.constant 1 : index
    %c0_11 = arith.constant 0 : index
    %c0_12 = arith.constant 0 : index
    %16 = vector.load %arg2[%c1, %c0_11, %c0_12] : memref<6x16x16xf32, #tpu.memory_space<vmem>>, vector<1x16x16xf32>
    %17 = vector.shape_cast %16 : vector<1x16x16xf32> to vector<16x16xf32>
    %cst_13 = arith.constant dense<0xFF800000> : vector<16xf32>
    %18 = vector.multi_reduction <maximumf>, %17, %cst_13 [1] : vector<16x16xf32> to vector<16xf32>
    %19 = vector.shape_cast %18 : vector<16xf32> to vector<16x1xf32>
    %cst_14 = arith.constant -1.000000e+20 : f32
    %20 = vector.broadcast %cst_14 : f32 to vector<16x1xf32>
    %21 = arith.cmpf ogt, %19, %20 : vector<16x1xf32>
    %22 = arith.extui %21 : vector<16x1xi1> to vector<16x1xi32>
    %23 = arith.sitofp %22 : vector<16x1xi32> to vector<16x1xf32>
    %c2 = arith.constant 2 : index
    %c0_15 = arith.constant 0 : index
    %c0_16 = arith.constant 0 : index
    %24 = vector.load %arg2[%c2, %c0_15, %c0_16] : memref<6x16x16xf32, #tpu.memory_space<vmem>>, vector<1x16x16xf32>
    %25 = vector.shape_cast %24 : vector<1x16x16xf32> to vector<16x16xf32>
    %cst_17 = arith.constant dense<0xFF800000> : vector<16xf32>
    %26 = vector.multi_reduction <maximumf>, %25, %cst_17 [1] : vector<16x16xf32> to vector<16xf32>
    %27 = vector.shape_cast %26 : vector<16xf32> to vector<16x1xf32>
    %cst_18 = arith.constant -1.000000e+20 : f32
    %28 = vector.broadcast %cst_18 : f32 to vector<16x1xf32>
    %29 = arith.cmpf ogt, %27, %28 : vector<16x1xf32>
    %30 = arith.extui %29 : vector<16x1xi1> to vector<16x1xi32>
    %31 = arith.sitofp %30 : vector<16x1xi32> to vector<16x1xf32>
    %c3 = arith.constant 3 : index
    %c0_19 = arith.constant 0 : index
    %c0_20 = arith.constant 0 : index
    %32 = vector.load %arg2[%c3, %c0_19, %c0_20] : memref<6x16x16xf32, #tpu.memory_space<vmem>>, vector<1x16x16xf32>
    %33 = vector.shape_cast %32 : vector<1x16x16xf32> to vector<16x16xf32>
    %cst_21 = arith.constant dense<0xFF800000> : vector<16xf32>
    %34 = vector.multi_reduction <maximumf>, %33, %cst_21 [1] : vector<16x16xf32> to vector<16xf32>
    %35 = vector.shape_cast %34 : vector<16xf32> to vector<16x1xf32>
    %cst_22 = arith.constant -1.000000e+20 : f32
    %36 = vector.broadcast %cst_22 : f32 to vector<16x1xf32>
    %37 = arith.cmpf ogt, %35, %36 : vector<16x1xf32>
    %38 = arith.extui %37 : vector<16x1xi1> to vector<16x1xi32>
    %39 = arith.sitofp %38 : vector<16x1xi32> to vector<16x1xf32>
    %c4 = arith.constant 4 : index
    %c0_23 = arith.constant 0 : index
    %c0_24 = arith.constant 0 : index
    %40 = vector.load %arg2[%c4, %c0_23, %c0_24] : memref<6x16x16xf32, #tpu.memory_space<vmem>>, vector<1x16x16xf32>
    %41 = vector.shape_cast %40 : vector<1x16x16xf32> to vector<16x16xf32>
    %cst_25 = arith.constant dense<0xFF800000> : vector<16xf32>
    %42 = vector.multi_reduction <maximumf>, %41, %cst_25 [1] : vector<16x16xf32> to vector<16xf32>
    %43 = vector.shape_cast %42 : vector<16xf32> to vector<16x1xf32>
    %cst_26 = arith.constant -1.000000e+20 : f32
    %44 = vector.broadcast %cst_26 : f32 to vector<16x1xf32>
    %45 = arith.cmpf ogt, %43, %44 : vector<16x1xf32>
    %46 = arith.extui %45 : vector<16x1xi1> to vector<16x1xi32>
    %47 = arith.sitofp %46 : vector<16x1xi32> to vector<16x1xf32>
    %c5 = arith.constant 5 : index
    %c0_27 = arith.constant 0 : index
    %c0_28 = arith.constant 0 : index
    %48 = vector.load %arg2[%c5, %c0_27, %c0_28] : memref<6x16x16xf32, #tpu.memory_space<vmem>>, vector<1x16x16xf32>
    %49 = vector.shape_cast %48 : vector<1x16x16xf32> to vector<16x16xf32>
    %cst_29 = arith.constant dense<0xFF800000> : vector<16xf32>
    %50 = vector.multi_reduction <maximumf>, %49, %cst_29 [1] : vector<16x16xf32> to vector<16xf32>
    %51 = vector.shape_cast %50 : vector<16xf32> to vector<16x1xf32>
    %cst_30 = arith.constant -1.000000e+20 : f32
    %52 = vector.broadcast %cst_30 : f32 to vector<16x1xf32>
    %53 = arith.cmpf ogt, %51, %52 : vector<16x1xf32>
    %54 = arith.extui %53 : vector<16x1xi1> to vector<16x1xi32>
    %55 = arith.sitofp %54 : vector<16x1xi32> to vector<16x1xf32>
    %c0_31 = arith.constant 0 : index
    %c0_32 = arith.constant 0 : index
    %c0_33 = arith.constant 0 : index
    %56 = vector.load %arg5[%c0_31, %c0_32, %c0_33] : memref<2x128x512xf32, #tpu.memory_space<vmem>>, vector<1x128x512xf32>
    %57 = vector.shape_cast %56 : vector<1x128x512xf32> to vector<128x512xf32>
    %cst_34 = arith.constant dense<0.000000e+00> : vector<16x512xf32>
    %58 = tpu.matmul %7, %57, %cst_34 {dimension_numbers = #tpu.dot_dimension_numbers<[1], [0], [0], [1], [0, 0, 1, 1], [], []>} : vector<16x128xf32>, vector<128x512xf32>, vector<16x512xf32> -> vector<16x512xf32>
    %c0_35 = arith.constant 0 : index
    %c0_36 = arith.constant 0 : index
    %c0_37 = arith.constant 0 : index
    %59 = vector.load %arg6[%c0_35, %c0_36, %c0_37] : memref<2x1x512xf32, #tpu.memory_space<vmem>>, vector<1x1x512xf32>
    %60 = vector.shape_cast %59 : vector<1x1x512xf32> to vector<1x512xf32>
    %61 = vector.broadcast %60 : vector<1x512xf32> to vector<16x512xf32>
    %62 = arith.addf %58, %61 : vector<16x512xf32>
    %63 = vector.extract_strided_slice %62 {offsets = [0, 0], sizes = [16, 128], strides = [1, 1]} : vector<16x512xf32> to vector<16x128xf32>
    %64 = vector.extract_strided_slice %62 {offsets = [0, 128], sizes = [16, 192], strides = [1, 1]} : vector<16x512xf32> to vector<16x192xf32>
    %65 = vector.extract_strided_slice %62 {offsets = [0, 320], sizes = [16, 192], strides = [1, 1]} : vector<16x512xf32> to vector<16x192xf32>
    %c0_38 = arith.constant 0 : index
    %c0_39 = arith.constant 0 : index
    %c0_40 = arith.constant 0 : index
    %66 = vector.load %arg2[%c0_38, %c0_39, %c0_40] : memref<6x16x16xf32, #tpu.memory_space<vmem>>, vector<1x16x16xf32>
    %67 = vector.shape_cast %66 : vector<1x16x16xf32> to vector<16x16xf32>
    %68 = vector.extract_strided_slice %63 {offsets = [0, 32], sizes = [16, 16], strides = [1, 1]} : vector<16x128xf32> to vector<16x16xf32>
    %69 = vector.extract_strided_slice %64 {offsets = [0, 0], sizes = [16, 16], strides = [1, 1]} : vector<16x192xf32> to vector<16x16xf32>
    %70 = vector.extract_strided_slice %65 {offsets = [0, 0], sizes = [16, 16], strides = [1, 1]} : vector<16x192xf32> to vector<16x16xf32>
    %cst_41 = arith.constant dense<0.000000e+00> : vector<16x16xf32>
    %71 = tpu.matmul %68, %69, %cst_41 {dimension_numbers = #tpu.dot_dimension_numbers<[1], [1], [0], [0], [0, 0, 1, 0], [], []>} : vector<16x16xf32>, vector<16x16xf32>, vector<16x16xf32> -> vector<16x16xf32>
    %72 = arith.addf %71, %67 : vector<16x16xf32>
    %cst_42 = arith.constant dense<0xFF800000> : vector<16xf32>
    %73 = vector.multi_reduction <maximumf>, %72, %cst_42 [1] : vector<16x16xf32> to vector<16xf32>
    %74 = vector.shape_cast %73 : vector<16xf32> to vector<16x1xf32>
    %75 = vector.broadcast %74 : vector<16x1xf32> to vector<16x16xf32>
    %76 = arith.subf %72, %75 : vector<16x16xf32>
    %77 = math.exp %76 : vector<16x16xf32>
    %cst_43 = arith.constant dense<0.000000e+00> : vector<16xf32>
    %78 = vector.multi_reduction <add>, %77, %cst_43 [1] : vector<16x16xf32> to vector<16xf32>
    %79 = vector.shape_cast %78 : vector<16xf32> to vector<16x1xf32>
    %80 = tpu.reciprocal %79 {approx = true} : vector<16x1xf32> -> vector<16x1xf32>
    %81 = vector.broadcast %80 : vector<16x1xf32> to vector<16x16xf32>
    %82 = arith.mulf %77, %81 : vector<16x16xf32>
    %cst_44 = arith.constant dense<0.000000e+00> : vector<16x16xf32>
    %83 = tpu.matmul %82, %70, %cst_44 {dimension_numbers = #tpu.dot_dimension_numbers<[1], [0], [0], [1], [0, 0, 1, 1], [], []>} : vector<16x16xf32>, vector<16x16xf32>, vector<16x16xf32> -> vector<16x16xf32>
    %84 = vector.extract_strided_slice %63 {offsets = [0, 48], sizes = [16, 16], strides = [1, 1]} : vector<16x128xf32> to vector<16x16xf32>
    %85 = vector.extract_strided_slice %64 {offsets = [0, 16], sizes = [16, 16], strides = [1, 1]} : vector<16x192xf32> to vector<16x16xf32>
    %86 = vector.extract_strided_slice %65 {offsets = [0, 16], sizes = [16, 16], strides = [1, 1]} : vector<16x192xf32> to vector<16x16xf32>
    %cst_45 = arith.constant dense<0.000000e+00> : vector<16x16xf32>
    %87 = tpu.matmul %84, %85, %cst_45 {dimension_numbers = #tpu.dot_dimension_numbers<[1], [1], [0], [0], [0, 0, 1, 0], [], []>} : vector<16x16xf32>, vector<16x16xf32>, vector<16x16xf32> -> vector<16x16xf32>
    %88 = arith.addf %87, %67 : vector<16x16xf32>
    %cst_46 = arith.constant dense<0xFF800000> : vector<16xf32>
    %89 = vector.multi_reduction <maximumf>, %88, %cst_46 [1] : vector<16x16xf32> to vector<16xf32>
    %90 = vector.shape_cast %89 : vector<16xf32> to vector<16x1xf32>
    %91 = vector.broadcast %90 : vector<16x1xf32> to vector<16x16xf32>
    %92 = arith.subf %88, %91 : vector<16x16xf32>
    %93 = math.exp %92 : vector<16x16xf32>
    %cst_47 = arith.constant dense<0.000000e+00> : vector<16xf32>
    %94 = vector.multi_reduction <add>, %93, %cst_47 [1] : vector<16x16xf32> to vector<16xf32>
    %95 = vector.shape_cast %94 : vector<16xf32> to vector<16x1xf32>
    %96 = tpu.reciprocal %95 {approx = true} : vector<16x1xf32> -> vector<16x1xf32>
    %97 = vector.broadcast %96 : vector<16x1xf32> to vector<16x16xf32>
    %98 = arith.mulf %93, %97 : vector<16x16xf32>
    %cst_48 = arith.constant dense<0.000000e+00> : vector<16x16xf32>
    %99 = tpu.matmul %98, %86, %cst_48 {dimension_numbers = #tpu.dot_dimension_numbers<[1], [0], [0], [1], [0, 0, 1, 1], [], []>} : vector<16x16xf32>, vector<16x16xf32>, vector<16x16xf32> -> vector<16x16xf32>
    %100 = tpu.concatenate %83, %99 in 1 : vector<16x16xf32>, vector<16x16xf32> -> vector<16x32xf32>
    %101 = vector.broadcast %15 : vector<16x1xf32> to vector<16x32xf32>
    %102 = arith.mulf %100, %101 : vector<16x32xf32>
    %c1_49 = arith.constant 1 : index
    %c0_50 = arith.constant 0 : index
    %c0_51 = arith.constant 0 : index
    %103 = vector.load %arg2[%c1_49, %c0_50, %c0_51] : memref<6x16x16xf32, #tpu.memory_space<vmem>>, vector<1x16x16xf32>
    %104 = vector.shape_cast %103 : vector<1x16x16xf32> to vector<16x16xf32>
    %105 = vector.extract_strided_slice %63 {offsets = [0, 0], sizes = [16, 16], strides = [1, 1]} : vector<16x128xf32> to vector<16x16xf32>
    %106 = vector.extract_strided_slice %64 {offsets = [0, 32], sizes = [16, 16], strides = [1, 1]} : vector<16x192xf32> to vector<16x16xf32>
    %107 = vector.extract_strided_slice %65 {offsets = [0, 32], sizes = [16, 16], strides = [1, 1]} : vector<16x192xf32> to vector<16x16xf32>
    %cst_52 = arith.constant dense<0.000000e+00> : vector<16x16xf32>
    %108 = tpu.matmul %105, %106, %cst_52 {dimension_numbers = #tpu.dot_dimension_numbers<[1], [1], [0], [0], [0, 0, 1, 0], [], []>} : vector<16x16xf32>, vector<16x16xf32>, vector<16x16xf32> -> vector<16x16xf32>
    %109 = arith.addf %108, %104 : vector<16x16xf32>
    %cst_53 = arith.constant dense<0xFF800000> : vector<16xf32>
    %110 = vector.multi_reduction <maximumf>, %109, %cst_53 [1] : vector<16x16xf32> to vector<16xf32>
    %111 = vector.shape_cast %110 : vector<16xf32> to vector<16x1xf32>
    %112 = vector.broadcast %111 : vector<16x1xf32> to vector<16x16xf32>
    %113 = arith.subf %109, %112 : vector<16x16xf32>
    %114 = math.exp %113 : vector<16x16xf32>
    %cst_54 = arith.constant dense<0.000000e+00> : vector<16xf32>
    %115 = vector.multi_reduction <add>, %114, %cst_54 [1] : vector<16x16xf32> to vector<16xf32>
    %116 = vector.shape_cast %115 : vector<16xf32> to vector<16x1xf32>
    %117 = tpu.reciprocal %116 {approx = true} : vector<16x1xf32> -> vector<16x1xf32>
    %118 = vector.broadcast %117 : vector<16x1xf32> to vector<16x16xf32>
    %119 = arith.mulf %114, %118 : vector<16x16xf32>
    %cst_55 = arith.constant dense<0.000000e+00> : vector<16x16xf32>
    %120 = tpu.matmul %119, %107, %cst_55 {dimension_numbers = #tpu.dot_dimension_numbers<[1], [0], [0], [1], [0, 0, 1, 1], [], []>} : vector<16x16xf32>, vector<16x16xf32>, vector<16x16xf32> -> vector<16x16xf32>
    %121 = vector.extract_strided_slice %63 {offsets = [0, 16], sizes = [16, 16], strides = [1, 1]} : vector<16x128xf32> to vector<16x16xf32>
    %122 = vector.extract_strided_slice %64 {offsets = [0, 48], sizes = [16, 16], strides = [1, 1]} : vector<16x192xf32> to vector<16x16xf32>
    %123 = vector.extract_strided_slice %65 {offsets = [0, 48], sizes = [16, 16], strides = [1, 1]} : vector<16x192xf32> to vector<16x16xf32>
    %cst_56 = arith.constant dense<0.000000e+00> : vector<16x16xf32>
    %124 = tpu.matmul %121, %122, %cst_56 {dimension_numbers = #tpu.dot_dimension_numbers<[1], [1], [0], [0], [0, 0, 1, 0], [], []>} : vector<16x16xf32>, vector<16x16xf32>, vector<16x16xf32> -> vector<16x16xf32>
    %125 = arith.addf %124, %104 : vector<16x16xf32>
    %cst_57 = arith.constant dense<0xFF800000> : vector<16xf32>
    %126 = vector.multi_reduction <maximumf>, %125, %cst_57 [1] : vector<16x16xf32> to vector<16xf32>
    %127 = vector.shape_cast %126 : vector<16xf32> to vector<16x1xf32>
    %128 = vector.broadcast %127 : vector<16x1xf32> to vector<16x16xf32>
    %129 = arith.subf %125, %128 : vector<16x16xf32>
    %130 = math.exp %129 : vector<16x16xf32>
    %cst_58 = arith.constant dense<0.000000e+00> : vector<16xf32>
    %131 = vector.multi_reduction <add>, %130, %cst_58 [1] : vector<16x16xf32> to vector<16xf32>
    %132 = vector.shape_cast %131 : vector<16xf32> to vector<16x1xf32>
    %133 = tpu.reciprocal %132 {approx = true} : vector<16x1xf32> -> vector<16x1xf32>
    %134 = vector.broadcast %133 : vector<16x1xf32> to vector<16x16xf32>
    %135 = arith.mulf %130, %134 : vector<16x16xf32>
    %cst_59 = arith.constant dense<0.000000e+00> : vector<16x16xf32>
    %136 = tpu.matmul %135, %123, %cst_59 {dimension_numbers = #tpu.dot_dimension_numbers<[1], [0], [0], [1], [0, 0, 1, 1], [], []>} : vector<16x16xf32>, vector<16x16xf32>, vector<16x16xf32> -> vector<16x16xf32>
    %137 = tpu.concatenate %120, %136 in 1 : vector<16x16xf32>, vector<16x16xf32> -> vector<16x32xf32>
    %138 = vector.broadcast %23 : vector<16x1xf32> to vector<16x32xf32>
    %139 = arith.mulf %137, %138 : vector<16x32xf32>
    %c2_60 = arith.constant 2 : index
    %c0_61 = arith.constant 0 : index
    %c0_62 = arith.constant 0 : index
    %140 = vector.load %arg2[%c2_60, %c0_61, %c0_62] : memref<6x16x16xf32, #tpu.memory_space<vmem>>, vector<1x16x16xf32>
    %141 = vector.shape_cast %140 : vector<1x16x16xf32> to vector<16x16xf32>
    %142 = vector.extract_strided_slice %63 {offsets = [0, 64], sizes = [16, 16], strides = [1, 1]} : vector<16x128xf32> to vector<16x16xf32>
    %143 = vector.extract_strided_slice %64 {offsets = [0, 64], sizes = [16, 16], strides = [1, 1]} : vector<16x192xf32> to vector<16x16xf32>
    %144 = vector.extract_strided_slice %65 {offsets = [0, 64], sizes = [16, 16], strides = [1, 1]} : vector<16x192xf32> to vector<16x16xf32>
    %cst_63 = arith.constant dense<0.000000e+00> : vector<16x16xf32>
    %145 = tpu.matmul %142, %143, %cst_63 {dimension_numbers = #tpu.dot_dimension_numbers<[1], [1], [0], [0], [0, 0, 1, 0], [], []>} : vector<16x16xf32>, vector<16x16xf32>, vector<16x16xf32> -> vector<16x16xf32>
    %146 = arith.addf %145, %141 : vector<16x16xf32>
    %cst_64 = arith.constant dense<0xFF800000> : vector<16xf32>
    %147 = vector.multi_reduction <maximumf>, %146, %cst_64 [1] : vector<16x16xf32> to vector<16xf32>
    %148 = vector.shape_cast %147 : vector<16xf32> to vector<16x1xf32>
    %149 = vector.broadcast %148 : vector<16x1xf32> to vector<16x16xf32>
    %150 = arith.subf %146, %149 : vector<16x16xf32>
    %151 = math.exp %150 : vector<16x16xf32>
    %cst_65 = arith.constant dense<0.000000e+00> : vector<16xf32>
    %152 = vector.multi_reduction <add>, %151, %cst_65 [1] : vector<16x16xf32> to vector<16xf32>
    %153 = vector.shape_cast %152 : vector<16xf32> to vector<16x1xf32>
    %154 = tpu.reciprocal %153 {approx = true} : vector<16x1xf32> -> vector<16x1xf32>
    %155 = vector.broadcast %154 : vector<16x1xf32> to vector<16x16xf32>
    %156 = arith.mulf %151, %155 : vector<16x16xf32>
    %cst_66 = arith.constant dense<0.000000e+00> : vector<16x16xf32>
    %157 = tpu.matmul %156, %144, %cst_66 {dimension_numbers = #tpu.dot_dimension_numbers<[1], [0], [0], [1], [0, 0, 1, 1], [], []>} : vector<16x16xf32>, vector<16x16xf32>, vector<16x16xf32> -> vector<16x16xf32>
    %158 = vector.extract_strided_slice %63 {offsets = [0, 80], sizes = [16, 16], strides = [1, 1]} : vector<16x128xf32> to vector<16x16xf32>
    %159 = vector.extract_strided_slice %64 {offsets = [0, 80], sizes = [16, 16], strides = [1, 1]} : vector<16x192xf32> to vector<16x16xf32>
    %160 = vector.extract_strided_slice %65 {offsets = [0, 80], sizes = [16, 16], strides = [1, 1]} : vector<16x192xf32> to vector<16x16xf32>
    %cst_67 = arith.constant dense<0.000000e+00> : vector<16x16xf32>
    %161 = tpu.matmul %158, %159, %cst_67 {dimension_numbers = #tpu.dot_dimension_numbers<[1], [1], [0], [0], [0, 0, 1, 0], [], []>} : vector<16x16xf32>, vector<16x16xf32>, vector<16x16xf32> -> vector<16x16xf32>
    %162 = arith.addf %161, %141 : vector<16x16xf32>
    %cst_68 = arith.constant dense<0xFF800000> : vector<16xf32>
    %163 = vector.multi_reduction <maximumf>, %162, %cst_68 [1] : vector<16x16xf32> to vector<16xf32>
    %164 = vector.shape_cast %163 : vector<16xf32> to vector<16x1xf32>
    %165 = vector.broadcast %164 : vector<16x1xf32> to vector<16x16xf32>
    %166 = arith.subf %162, %165 : vector<16x16xf32>
    %167 = math.exp %166 : vector<16x16xf32>
    %cst_69 = arith.constant dense<0.000000e+00> : vector<16xf32>
    %168 = vector.multi_reduction <add>, %167, %cst_69 [1] : vector<16x16xf32> to vector<16xf32>
    %169 = vector.shape_cast %168 : vector<16xf32> to vector<16x1xf32>
    %170 = tpu.reciprocal %169 {approx = true} : vector<16x1xf32> -> vector<16x1xf32>
    %171 = vector.broadcast %170 : vector<16x1xf32> to vector<16x16xf32>
    %172 = arith.mulf %167, %171 : vector<16x16xf32>
    %cst_70 = arith.constant dense<0.000000e+00> : vector<16x16xf32>
    %173 = tpu.matmul %172, %160, %cst_70 {dimension_numbers = #tpu.dot_dimension_numbers<[1], [0], [0], [1], [0, 0, 1, 1], [], []>} : vector<16x16xf32>, vector<16x16xf32>, vector<16x16xf32> -> vector<16x16xf32>
    %174 = tpu.concatenate %157, %173 in 1 : vector<16x16xf32>, vector<16x16xf32> -> vector<16x32xf32>
    %175 = vector.broadcast %31 : vector<16x1xf32> to vector<16x32xf32>
    %176 = arith.mulf %174, %175 : vector<16x32xf32>
    %c3_71 = arith.constant 3 : index
    %c0_72 = arith.constant 0 : index
    %c0_73 = arith.constant 0 : index
    %177 = vector.load %arg2[%c3_71, %c0_72, %c0_73] : memref<6x16x16xf32, #tpu.memory_space<vmem>>, vector<1x16x16xf32>
    %178 = vector.shape_cast %177 : vector<1x16x16xf32> to vector<16x16xf32>
    %179 = vector.extract_strided_slice %63 {offsets = [0, 96], sizes = [16, 16], strides = [1, 1]} : vector<16x128xf32> to vector<16x16xf32>
    %180 = vector.extract_strided_slice %64 {offsets = [0, 96], sizes = [16, 16], strides = [1, 1]} : vector<16x192xf32> to vector<16x16xf32>
    %181 = vector.extract_strided_slice %65 {offsets = [0, 96], sizes = [16, 16], strides = [1, 1]} : vector<16x192xf32> to vector<16x16xf32>
    %cst_74 = arith.constant dense<0.000000e+00> : vector<16x16xf32>
    %182 = tpu.matmul %179, %180, %cst_74 {dimension_numbers = #tpu.dot_dimension_numbers<[1], [1], [0], [0], [0, 0, 1, 0], [], []>} : vector<16x16xf32>, vector<16x16xf32>, vector<16x16xf32> -> vector<16x16xf32>
    %183 = arith.addf %182, %178 : vector<16x16xf32>
    %cst_75 = arith.constant dense<0xFF800000> : vector<16xf32>
    %184 = vector.multi_reduction <maximumf>, %183, %cst_75 [1] : vector<16x16xf32> to vector<16xf32>
    %185 = vector.shape_cast %184 : vector<16xf32> to vector<16x1xf32>
    %186 = vector.broadcast %185 : vector<16x1xf32> to vector<16x16xf32>
    %187 = arith.subf %183, %186 : vector<16x16xf32>
    %188 = math.exp %187 : vector<16x16xf32>
    %cst_76 = arith.constant dense<0.000000e+00> : vector<16xf32>
    %189 = vector.multi_reduction <add>, %188, %cst_76 [1] : vector<16x16xf32> to vector<16xf32>
    %190 = vector.shape_cast %189 : vector<16xf32> to vector<16x1xf32>
    %191 = tpu.reciprocal %190 {approx = true} : vector<16x1xf32> -> vector<16x1xf32>
    %192 = vector.broadcast %191 : vector<16x1xf32> to vector<16x16xf32>
    %193 = arith.mulf %188, %192 : vector<16x16xf32>
    %cst_77 = arith.constant dense<0.000000e+00> : vector<16x16xf32>
    %194 = tpu.matmul %193, %181, %cst_77 {dimension_numbers = #tpu.dot_dimension_numbers<[1], [0], [0], [1], [0, 0, 1, 1], [], []>} : vector<16x16xf32>, vector<16x16xf32>, vector<16x16xf32> -> vector<16x16xf32>
    %195 = vector.extract_strided_slice %63 {offsets = [0, 112], sizes = [16, 16], strides = [1, 1]} : vector<16x128xf32> to vector<16x16xf32>
    %196 = vector.extract_strided_slice %64 {offsets = [0, 112], sizes = [16, 16], strides = [1, 1]} : vector<16x192xf32> to vector<16x16xf32>
    %197 = vector.extract_strided_slice %65 {offsets = [0, 112], sizes = [16, 16], strides = [1, 1]} : vector<16x192xf32> to vector<16x16xf32>
    %cst_78 = arith.constant dense<0.000000e+00> : vector<16x16xf32>
    %198 = tpu.matmul %195, %196, %cst_78 {dimension_numbers = #tpu.dot_dimension_numbers<[1], [1], [0], [0], [0, 0, 1, 0], [], []>} : vector<16x16xf32>, vector<16x16xf32>, vector<16x16xf32> -> vector<16x16xf32>
    %199 = arith.addf %198, %178 : vector<16x16xf32>
    %cst_79 = arith.constant dense<0xFF800000> : vector<16xf32>
    %200 = vector.multi_reduction <maximumf>, %199, %cst_79 [1] : vector<16x16xf32> to vector<16xf32>
    %201 = vector.shape_cast %200 : vector<16xf32> to vector<16x1xf32>
    %202 = vector.broadcast %201 : vector<16x1xf32> to vector<16x16xf32>
    %203 = arith.subf %199, %202 : vector<16x16xf32>
    %204 = math.exp %203 : vector<16x16xf32>
    %cst_80 = arith.constant dense<0.000000e+00> : vector<16xf32>
    %205 = vector.multi_reduction <add>, %204, %cst_80 [1] : vector<16x16xf32> to vector<16xf32>
    %206 = vector.shape_cast %205 : vector<16xf32> to vector<16x1xf32>
    %207 = tpu.reciprocal %206 {approx = true} : vector<16x1xf32> -> vector<16x1xf32>
    %208 = vector.broadcast %207 : vector<16x1xf32> to vector<16x16xf32>
    %209 = arith.mulf %204, %208 : vector<16x16xf32>
    %cst_81 = arith.constant dense<0.000000e+00> : vector<16x16xf32>
    %210 = tpu.matmul %209, %197, %cst_81 {dimension_numbers = #tpu.dot_dimension_numbers<[1], [0], [0], [1], [0, 0, 1, 1], [], []>} : vector<16x16xf32>, vector<16x16xf32>, vector<16x16xf32> -> vector<16x16xf32>
    %211 = tpu.concatenate %194, %210 in 1 : vector<16x16xf32>, vector<16x16xf32> -> vector<16x32xf32>
    %212 = vector.broadcast %39 : vector<16x1xf32> to vector<16x32xf32>
    %213 = arith.mulf %211, %212 : vector<16x32xf32>
    %c4_82 = arith.constant 4 : index
    %c0_83 = arith.constant 0 : index
    %c0_84 = arith.constant 0 : index
    %214 = vector.load %arg2[%c4_82, %c0_83, %c0_84] : memref<6x16x16xf32, #tpu.memory_space<vmem>>, vector<1x16x16xf32>
    %215 = vector.shape_cast %214 : vector<1x16x16xf32> to vector<16x16xf32>
    %216 = vector.extract_strided_slice %63 {offsets = [0, 32], sizes = [16, 16], strides = [1, 1]} : vector<16x128xf32> to vector<16x16xf32>
    %217 = vector.extract_strided_slice %64 {offsets = [0, 128], sizes = [16, 16], strides = [1, 1]} : vector<16x192xf32> to vector<16x16xf32>
    %218 = vector.extract_strided_slice %65 {offsets = [0, 128], sizes = [16, 16], strides = [1, 1]} : vector<16x192xf32> to vector<16x16xf32>
    %cst_85 = arith.constant dense<0.000000e+00> : vector<16x16xf32>
    %219 = tpu.matmul %216, %217, %cst_85 {dimension_numbers = #tpu.dot_dimension_numbers<[1], [1], [0], [0], [0, 0, 1, 0], [], []>} : vector<16x16xf32>, vector<16x16xf32>, vector<16x16xf32> -> vector<16x16xf32>
    %220 = arith.addf %219, %215 : vector<16x16xf32>
    %cst_86 = arith.constant dense<0xFF800000> : vector<16xf32>
    %221 = vector.multi_reduction <maximumf>, %220, %cst_86 [1] : vector<16x16xf32> to vector<16xf32>
    %222 = vector.shape_cast %221 : vector<16xf32> to vector<16x1xf32>
    %223 = vector.broadcast %222 : vector<16x1xf32> to vector<16x16xf32>
    %224 = arith.subf %220, %223 : vector<16x16xf32>
    %225 = math.exp %224 : vector<16x16xf32>
    %cst_87 = arith.constant dense<0.000000e+00> : vector<16xf32>
    %226 = vector.multi_reduction <add>, %225, %cst_87 [1] : vector<16x16xf32> to vector<16xf32>
    %227 = vector.shape_cast %226 : vector<16xf32> to vector<16x1xf32>
    %228 = tpu.reciprocal %227 {approx = true} : vector<16x1xf32> -> vector<16x1xf32>
    %229 = vector.broadcast %228 : vector<16x1xf32> to vector<16x16xf32>
    %230 = arith.mulf %225, %229 : vector<16x16xf32>
    %cst_88 = arith.constant dense<0.000000e+00> : vector<16x16xf32>
    %231 = tpu.matmul %230, %218, %cst_88 {dimension_numbers = #tpu.dot_dimension_numbers<[1], [0], [0], [1], [0, 0, 1, 1], [], []>} : vector<16x16xf32>, vector<16x16xf32>, vector<16x16xf32> -> vector<16x16xf32>
    %232 = vector.extract_strided_slice %63 {offsets = [0, 48], sizes = [16, 16], strides = [1, 1]} : vector<16x128xf32> to vector<16x16xf32>
    %233 = vector.extract_strided_slice %64 {offsets = [0, 144], sizes = [16, 16], strides = [1, 1]} : vector<16x192xf32> to vector<16x16xf32>
    %234 = vector.extract_strided_slice %65 {offsets = [0, 144], sizes = [16, 16], strides = [1, 1]} : vector<16x192xf32> to vector<16x16xf32>
    %cst_89 = arith.constant dense<0.000000e+00> : vector<16x16xf32>
    %235 = tpu.matmul %232, %233, %cst_89 {dimension_numbers = #tpu.dot_dimension_numbers<[1], [1], [0], [0], [0, 0, 1, 0], [], []>} : vector<16x16xf32>, vector<16x16xf32>, vector<16x16xf32> -> vector<16x16xf32>
    %236 = arith.addf %235, %215 : vector<16x16xf32>
    %cst_90 = arith.constant dense<0xFF800000> : vector<16xf32>
    %237 = vector.multi_reduction <maximumf>, %236, %cst_90 [1] : vector<16x16xf32> to vector<16xf32>
    %238 = vector.shape_cast %237 : vector<16xf32> to vector<16x1xf32>
    %239 = vector.broadcast %238 : vector<16x1xf32> to vector<16x16xf32>
    %240 = arith.subf %236, %239 : vector<16x16xf32>
    %241 = math.exp %240 : vector<16x16xf32>
    %cst_91 = arith.constant dense<0.000000e+00> : vector<16xf32>
    %242 = vector.multi_reduction <add>, %241, %cst_91 [1] : vector<16x16xf32> to vector<16xf32>
    %243 = vector.shape_cast %242 : vector<16xf32> to vector<16x1xf32>
    %244 = tpu.reciprocal %243 {approx = true} : vector<16x1xf32> -> vector<16x1xf32>
    %245 = vector.broadcast %244 : vector<16x1xf32> to vector<16x16xf32>
    %246 = arith.mulf %241, %245 : vector<16x16xf32>
    %cst_92 = arith.constant dense<0.000000e+00> : vector<16x16xf32>
    %247 = tpu.matmul %246, %234, %cst_92 {dimension_numbers = #tpu.dot_dimension_numbers<[1], [0], [0], [1], [0, 0, 1, 1], [], []>} : vector<16x16xf32>, vector<16x16xf32>, vector<16x16xf32> -> vector<16x16xf32>
    %248 = tpu.concatenate %231, %247 in 1 : vector<16x16xf32>, vector<16x16xf32> -> vector<16x32xf32>
    %249 = vector.broadcast %47 : vector<16x1xf32> to vector<16x32xf32>
    %250 = arith.mulf %248, %249 : vector<16x32xf32>
    %251 = arith.addf %102, %250 : vector<16x32xf32>
    %c5_93 = arith.constant 5 : index
    %c0_94 = arith.constant 0 : index
    %c0_95 = arith.constant 0 : index
    %252 = vector.load %arg2[%c5_93, %c0_94, %c0_95] : memref<6x16x16xf32, #tpu.memory_space<vmem>>, vector<1x16x16xf32>
    %253 = vector.shape_cast %252 : vector<1x16x16xf32> to vector<16x16xf32>
    %254 = vector.extract_strided_slice %63 {offsets = [0, 32], sizes = [16, 16], strides = [1, 1]} : vector<16x128xf32> to vector<16x16xf32>
    %255 = vector.extract_strided_slice %64 {offsets = [0, 160], sizes = [16, 16], strides = [1, 1]} : vector<16x192xf32> to vector<16x16xf32>
    %256 = vector.extract_strided_slice %65 {offsets = [0, 160], sizes = [16, 16], strides = [1, 1]} : vector<16x192xf32> to vector<16x16xf32>
    %cst_96 = arith.constant dense<0.000000e+00> : vector<16x16xf32>
    %257 = tpu.matmul %254, %255, %cst_96 {dimension_numbers = #tpu.dot_dimension_numbers<[1], [1], [0], [0], [0, 0, 1, 0], [], []>} : vector<16x16xf32>, vector<16x16xf32>, vector<16x16xf32> -> vector<16x16xf32>
    %258 = arith.addf %257, %253 : vector<16x16xf32>
    %cst_97 = arith.constant dense<0xFF800000> : vector<16xf32>
    %259 = vector.multi_reduction <maximumf>, %258, %cst_97 [1] : vector<16x16xf32> to vector<16xf32>
    %260 = vector.shape_cast %259 : vector<16xf32> to vector<16x1xf32>
    %261 = vector.broadcast %260 : vector<16x1xf32> to vector<16x16xf32>
    %262 = arith.subf %258, %261 : vector<16x16xf32>
    %263 = math.exp %262 : vector<16x16xf32>
    %cst_98 = arith.constant dense<0.000000e+00> : vector<16xf32>
    %264 = vector.multi_reduction <add>, %263, %cst_98 [1] : vector<16x16xf32> to vector<16xf32>
    %265 = vector.shape_cast %264 : vector<16xf32> to vector<16x1xf32>
    %266 = tpu.reciprocal %265 {approx = true} : vector<16x1xf32> -> vector<16x1xf32>
    %267 = vector.broadcast %266 : vector<16x1xf32> to vector<16x16xf32>
    %268 = arith.mulf %263, %267 : vector<16x16xf32>
    %cst_99 = arith.constant dense<0.000000e+00> : vector<16x16xf32>
    %269 = tpu.matmul %268, %256, %cst_99 {dimension_numbers = #tpu.dot_dimension_numbers<[1], [0], [0], [1], [0, 0, 1, 1], [], []>} : vector<16x16xf32>, vector<16x16xf32>, vector<16x16xf32> -> vector<16x16xf32>
    %270 = vector.extract_strided_slice %63 {offsets = [0, 48], sizes = [16, 16], strides = [1, 1]} : vector<16x128xf32> to vector<16x16xf32>
    %271 = vector.extract_strided_slice %64 {offsets = [0, 176], sizes = [16, 16], strides = [1, 1]} : vector<16x192xf32> to vector<16x16xf32>
    %272 = vector.extract_strided_slice %65 {offsets = [0, 176], sizes = [16, 16], strides = [1, 1]} : vector<16x192xf32> to vector<16x16xf32>
    %cst_100 = arith.constant dense<0.000000e+00> : vector<16x16xf32>
    %273 = tpu.matmul %270, %271, %cst_100 {dimension_numbers = #tpu.dot_dimension_numbers<[1], [1], [0], [0], [0, 0, 1, 0], [], []>} : vector<16x16xf32>, vector<16x16xf32>, vector<16x16xf32> -> vector<16x16xf32>
    %274 = arith.addf %273, %253 : vector<16x16xf32>
    %cst_101 = arith.constant dense<0xFF800000> : vector<16xf32>
    %275 = vector.multi_reduction <maximumf>, %274, %cst_101 [1] : vector<16x16xf32> to vector<16xf32>
    %276 = vector.shape_cast %275 : vector<16xf32> to vector<16x1xf32>
    %277 = vector.broadcast %276 : vector<16x1xf32> to vector<16x16xf32>
    %278 = arith.subf %274, %277 : vector<16x16xf32>
    %279 = math.exp %278 : vector<16x16xf32>
    %cst_102 = arith.constant dense<0.000000e+00> : vector<16xf32>
    %280 = vector.multi_reduction <add>, %279, %cst_102 [1] : vector<16x16xf32> to vector<16xf32>
    %281 = vector.shape_cast %280 : vector<16xf32> to vector<16x1xf32>
    %282 = tpu.reciprocal %281 {approx = true} : vector<16x1xf32> -> vector<16x1xf32>
    %283 = vector.broadcast %282 : vector<16x1xf32> to vector<16x16xf32>
    %284 = arith.mulf %279, %283 : vector<16x16xf32>
    %cst_103 = arith.constant dense<0.000000e+00> : vector<16x16xf32>
    %285 = tpu.matmul %284, %272, %cst_103 {dimension_numbers = #tpu.dot_dimension_numbers<[1], [0], [0], [1], [0, 0, 1, 1], [], []>} : vector<16x16xf32>, vector<16x16xf32>, vector<16x16xf32> -> vector<16x16xf32>
    %286 = tpu.concatenate %269, %285 in 1 : vector<16x16xf32>, vector<16x16xf32> -> vector<16x32xf32>
    %287 = vector.broadcast %55 : vector<16x1xf32> to vector<16x32xf32>
    %288 = arith.mulf %286, %287 : vector<16x32xf32>
    %289 = arith.addf %251, %288 : vector<16x32xf32>
    %cst_104 = arith.constant 1.000000e+00 : f32
    %290 = vector.broadcast %cst_104 : f32 to vector<16x32xf32>
    %291 = arith.mulf %139, %290 : vector<16x32xf32>
    %cst_105 = arith.constant 0.333333343 : f32
    %292 = vector.broadcast %cst_105 : f32 to vector<16x32xf32>
    %293 = arith.mulf %289, %292 : vector<16x32xf32>
    %cst_106 = arith.constant 1.000000e+00 : f32
    %294 = vector.broadcast %cst_106 : f32 to vector<16x32xf32>
    %295 = arith.mulf %176, %294 : vector<16x32xf32>
    %cst_107 = arith.constant 1.000000e+00 : f32
    %296 = vector.broadcast %cst_107 : f32 to vector<16x32xf32>
    %297 = arith.mulf %213, %296 : vector<16x32xf32>
    %298 = tpu.concatenate %291, %293, %295, %297 in 1 : vector<16x32xf32>, vector<16x32xf32>, vector<16x32xf32>, vector<16x32xf32> -> vector<16x128xf32>
    %cst_108 = arith.constant 5.000000e-01 : f32
    %299 = vector.broadcast %cst_108 : f32 to vector<16x128xf32>
    %300 = arith.mulf %299, %298 : vector<16x128xf32>
    %cst_109 = arith.constant 4.471500e-02 : f32
    %301 = vector.broadcast %cst_109 : f32 to vector<16x128xf32>
    %302 = arith.mulf %301, %298 : vector<16x128xf32>
    %303 = arith.mulf %302, %298 : vector<16x128xf32>
    %304 = arith.mulf %303, %298 : vector<16x128xf32>
    %305 = arith.addf %298, %304 : vector<16x128xf32>
    %cst_110 = arith.constant 0.797884583 : f32
    %306 = vector.broadcast %cst_110 : f32 to vector<16x128xf32>
    %307 = arith.mulf %306, %305 : vector<16x128xf32>
    %308 = math.tanh %307 : vector<16x128xf32>
    %cst_111 = arith.constant 1.000000e+00 : f32
    %309 = vector.broadcast %cst_111 : f32 to vector<16x128xf32>
    %310 = arith.addf %309, %308 : vector<16x128xf32>
    %311 = arith.mulf %300, %310 : vector<16x128xf32>
    %c0_112 = arith.constant 0 : index
    %c0_113 = arith.constant 0 : index
    %c0_114 = arith.constant 0 : index
    %312 = vector.load %arg7[%c0_112, %c0_113, %c0_114] : memref<2x128x128xf32, #tpu.memory_space<vmem>>, vector<1x128x128xf32>
    %313 = vector.shape_cast %312 : vector<1x128x128xf32> to vector<128x128xf32>
    %cst_115 = arith.constant dense<0.000000e+00> : vector<16x128xf32>
    %314 = tpu.matmul %311, %313, %cst_115 {dimension_numbers = #tpu.dot_dimension_numbers<[1], [0], [0], [1], [0, 0, 1, 1], [], []>} : vector<16x128xf32>, vector<128x128xf32>, vector<16x128xf32> -> vector<16x128xf32>
    %c0_116 = arith.constant 0 : index
    %c0_117 = arith.constant 0 : index
    %c0_118 = arith.constant 0 : index
    %315 = vector.load %arg8[%c0_116, %c0_117, %c0_118] : memref<2x1x128xf32, #tpu.memory_space<vmem>>, vector<1x1x128xf32>
    %316 = vector.shape_cast %315 : vector<1x1x128xf32> to vector<1x128xf32>
    %317 = vector.broadcast %316 : vector<1x128xf32> to vector<16x128xf32>
    %318 = arith.addf %314, %317 : vector<16x128xf32>
    %c0_119 = arith.constant 0 : index
    %c0_120 = arith.constant 0 : index
    %c0_121 = arith.constant 0 : index
    %319 = vector.load %arg9[%c0_119, %c0_120, %c0_121] : memref<2x1x128xf32, #tpu.memory_space<vmem>>, vector<1x1x128xf32>
    %320 = vector.shape_cast %319 : vector<1x1x128xf32> to vector<1x128xf32>
    %321 = arith.negf %320 : vector<1x128xf32>
    %322 = math.exp %321 : vector<1x128xf32>
    %cst_122 = arith.constant 1.000000e+00 : f32
    %323 = vector.broadcast %cst_122 : f32 to vector<1x128xf32>
    %324 = arith.addf %323, %322 : vector<1x128xf32>
    %325 = arith.divf %323, %324 : vector<1x128xf32>
    %326 = vector.broadcast %325 : vector<1x128xf32> to vector<16x128xf32>
    %327 = arith.mulf %326, %318 : vector<16x128xf32>
    %cst_123 = arith.constant 1.000000e+00 : f32
    %328 = vector.broadcast %cst_123 : f32 to vector<1x128xf32>
    %329 = arith.subf %328, %325 : vector<1x128xf32>
    %330 = vector.broadcast %329 : vector<1x128xf32> to vector<16x128xf32>
    %331 = arith.mulf %330, %7 : vector<16x128xf32>
    %332 = arith.addf %327, %331 : vector<16x128xf32>
    %c1_124 = arith.constant 1 : index
    %c0_125 = arith.constant 0 : index
    %c0_126 = arith.constant 0 : index
    %333 = vector.load %arg5[%c1_124, %c0_125, %c0_126] : memref<2x128x512xf32, #tpu.memory_space<vmem>>, vector<1x128x512xf32>
    %334 = vector.shape_cast %333 : vector<1x128x512xf32> to vector<128x512xf32>
    %cst_127 = arith.constant dense<0.000000e+00> : vector<16x512xf32>
    %335 = tpu.matmul %332, %334, %cst_127 {dimension_numbers = #tpu.dot_dimension_numbers<[1], [0], [0], [1], [0, 0, 1, 1], [], []>} : vector<16x128xf32>, vector<128x512xf32>, vector<16x512xf32> -> vector<16x512xf32>
    %c1_128 = arith.constant 1 : index
    %c0_129 = arith.constant 0 : index
    %c0_130 = arith.constant 0 : index
    %336 = vector.load %arg6[%c1_128, %c0_129, %c0_130] : memref<2x1x512xf32, #tpu.memory_space<vmem>>, vector<1x1x512xf32>
    %337 = vector.shape_cast %336 : vector<1x1x512xf32> to vector<1x512xf32>
    %338 = vector.broadcast %337 : vector<1x512xf32> to vector<16x512xf32>
    %339 = arith.addf %335, %338 : vector<16x512xf32>
    %340 = vector.extract_strided_slice %339 {offsets = [0, 0], sizes = [16, 128], strides = [1, 1]} : vector<16x512xf32> to vector<16x128xf32>
    %341 = vector.extract_strided_slice %339 {offsets = [0, 128], sizes = [16, 192], strides = [1, 1]} : vector<16x512xf32> to vector<16x192xf32>
    %342 = vector.extract_strided_slice %339 {offsets = [0, 320], sizes = [16, 192], strides = [1, 1]} : vector<16x512xf32> to vector<16x192xf32>
    %c0_131 = arith.constant 0 : index
    %c0_132 = arith.constant 0 : index
    %c0_133 = arith.constant 0 : index
    %343 = vector.load %arg2[%c0_131, %c0_132, %c0_133] : memref<6x16x16xf32, #tpu.memory_space<vmem>>, vector<1x16x16xf32>
    %344 = vector.shape_cast %343 : vector<1x16x16xf32> to vector<16x16xf32>
    %345 = vector.extract_strided_slice %340 {offsets = [0, 32], sizes = [16, 16], strides = [1, 1]} : vector<16x128xf32> to vector<16x16xf32>
    %346 = vector.extract_strided_slice %341 {offsets = [0, 0], sizes = [16, 16], strides = [1, 1]} : vector<16x192xf32> to vector<16x16xf32>
    %347 = vector.extract_strided_slice %342 {offsets = [0, 0], sizes = [16, 16], strides = [1, 1]} : vector<16x192xf32> to vector<16x16xf32>
    %cst_134 = arith.constant dense<0.000000e+00> : vector<16x16xf32>
    %348 = tpu.matmul %345, %346, %cst_134 {dimension_numbers = #tpu.dot_dimension_numbers<[1], [1], [0], [0], [0, 0, 1, 0], [], []>} : vector<16x16xf32>, vector<16x16xf32>, vector<16x16xf32> -> vector<16x16xf32>
    %349 = arith.addf %348, %344 : vector<16x16xf32>
    %cst_135 = arith.constant dense<0xFF800000> : vector<16xf32>
    %350 = vector.multi_reduction <maximumf>, %349, %cst_135 [1] : vector<16x16xf32> to vector<16xf32>
    %351 = vector.shape_cast %350 : vector<16xf32> to vector<16x1xf32>
    %352 = vector.broadcast %351 : vector<16x1xf32> to vector<16x16xf32>
    %353 = arith.subf %349, %352 : vector<16x16xf32>
    %354 = math.exp %353 : vector<16x16xf32>
    %cst_136 = arith.constant dense<0.000000e+00> : vector<16xf32>
    %355 = vector.multi_reduction <add>, %354, %cst_136 [1] : vector<16x16xf32> to vector<16xf32>
    %356 = vector.shape_cast %355 : vector<16xf32> to vector<16x1xf32>
    %357 = tpu.reciprocal %356 {approx = true} : vector<16x1xf32> -> vector<16x1xf32>
    %358 = vector.broadcast %357 : vector<16x1xf32> to vector<16x16xf32>
    %359 = arith.mulf %354, %358 : vector<16x16xf32>
    %cst_137 = arith.constant dense<0.000000e+00> : vector<16x16xf32>
    %360 = tpu.matmul %359, %347, %cst_137 {dimension_numbers = #tpu.dot_dimension_numbers<[1], [0], [0], [1], [0, 0, 1, 1], [], []>} : vector<16x16xf32>, vector<16x16xf32>, vector<16x16xf32> -> vector<16x16xf32>
    %361 = vector.extract_strided_slice %340 {offsets = [0, 48], sizes = [16, 16], strides = [1, 1]} : vector<16x128xf32> to vector<16x16xf32>
    %362 = vector.extract_strided_slice %341 {offsets = [0, 16], sizes = [16, 16], strides = [1, 1]} : vector<16x192xf32> to vector<16x16xf32>
    %363 = vector.extract_strided_slice %342 {offsets = [0, 16], sizes = [16, 16], strides = [1, 1]} : vector<16x192xf32> to vector<16x16xf32>
    %cst_138 = arith.constant dense<0.000000e+00> : vector<16x16xf32>
    %364 = tpu.matmul %361, %362, %cst_138 {dimension_numbers = #tpu.dot_dimension_numbers<[1], [1], [0], [0], [0, 0, 1, 0], [], []>} : vector<16x16xf32>, vector<16x16xf32>, vector<16x16xf32> -> vector<16x16xf32>
    %365 = arith.addf %364, %344 : vector<16x16xf32>
    %cst_139 = arith.constant dense<0xFF800000> : vector<16xf32>
    %366 = vector.multi_reduction <maximumf>, %365, %cst_139 [1] : vector<16x16xf32> to vector<16xf32>
    %367 = vector.shape_cast %366 : vector<16xf32> to vector<16x1xf32>
    %368 = vector.broadcast %367 : vector<16x1xf32> to vector<16x16xf32>
    %369 = arith.subf %365, %368 : vector<16x16xf32>
    %370 = math.exp %369 : vector<16x16xf32>
    %cst_140 = arith.constant dense<0.000000e+00> : vector<16xf32>
    %371 = vector.multi_reduction <add>, %370, %cst_140 [1] : vector<16x16xf32> to vector<16xf32>
    %372 = vector.shape_cast %371 : vector<16xf32> to vector<16x1xf32>
    %373 = tpu.reciprocal %372 {approx = true} : vector<16x1xf32> -> vector<16x1xf32>
    %374 = vector.broadcast %373 : vector<16x1xf32> to vector<16x16xf32>
    %375 = arith.mulf %370, %374 : vector<16x16xf32>
    %cst_141 = arith.constant dense<0.000000e+00> : vector<16x16xf32>
    %376 = tpu.matmul %375, %363, %cst_141 {dimension_numbers = #tpu.dot_dimension_numbers<[1], [0], [0], [1], [0, 0, 1, 1], [], []>} : vector<16x16xf32>, vector<16x16xf32>, vector<16x16xf32> -> vector<16x16xf32>
    %377 = tpu.concatenate %360, %376 in 1 : vector<16x16xf32>, vector<16x16xf32> -> vector<16x32xf32>
    %378 = vector.broadcast %15 : vector<16x1xf32> to vector<16x32xf32>
    %379 = arith.mulf %377, %378 : vector<16x32xf32>
    %c1_142 = arith.constant 1 : index
    %c0_143 = arith.constant 0 : index
    %c0_144 = arith.constant 0 : index
    %380 = vector.load %arg2[%c1_142, %c0_143, %c0_144] : memref<6x16x16xf32, #tpu.memory_space<vmem>>, vector<1x16x16xf32>
    %381 = vector.shape_cast %380 : vector<1x16x16xf32> to vector<16x16xf32>
    %382 = vector.extract_strided_slice %340 {offsets = [0, 0], sizes = [16, 16], strides = [1, 1]} : vector<16x128xf32> to vector<16x16xf32>
    %383 = vector.extract_strided_slice %341 {offsets = [0, 32], sizes = [16, 16], strides = [1, 1]} : vector<16x192xf32> to vector<16x16xf32>
    %384 = vector.extract_strided_slice %342 {offsets = [0, 32], sizes = [16, 16], strides = [1, 1]} : vector<16x192xf32> to vector<16x16xf32>
    %cst_145 = arith.constant dense<0.000000e+00> : vector<16x16xf32>
    %385 = tpu.matmul %382, %383, %cst_145 {dimension_numbers = #tpu.dot_dimension_numbers<[1], [1], [0], [0], [0, 0, 1, 0], [], []>} : vector<16x16xf32>, vector<16x16xf32>, vector<16x16xf32> -> vector<16x16xf32>
    %386 = arith.addf %385, %381 : vector<16x16xf32>
    %cst_146 = arith.constant dense<0xFF800000> : vector<16xf32>
    %387 = vector.multi_reduction <maximumf>, %386, %cst_146 [1] : vector<16x16xf32> to vector<16xf32>
    %388 = vector.shape_cast %387 : vector<16xf32> to vector<16x1xf32>
    %389 = vector.broadcast %388 : vector<16x1xf32> to vector<16x16xf32>
    %390 = arith.subf %386, %389 : vector<16x16xf32>
    %391 = math.exp %390 : vector<16x16xf32>
    %cst_147 = arith.constant dense<0.000000e+00> : vector<16xf32>
    %392 = vector.multi_reduction <add>, %391, %cst_147 [1] : vector<16x16xf32> to vector<16xf32>
    %393 = vector.shape_cast %392 : vector<16xf32> to vector<16x1xf32>
    %394 = tpu.reciprocal %393 {approx = true} : vector<16x1xf32> -> vector<16x1xf32>
    %395 = vector.broadcast %394 : vector<16x1xf32> to vector<16x16xf32>
    %396 = arith.mulf %391, %395 : vector<16x16xf32>
    %cst_148 = arith.constant dense<0.000000e+00> : vector<16x16xf32>
    %397 = tpu.matmul %396, %384, %cst_148 {dimension_numbers = #tpu.dot_dimension_numbers<[1], [0], [0], [1], [0, 0, 1, 1], [], []>} : vector<16x16xf32>, vector<16x16xf32>, vector<16x16xf32> -> vector<16x16xf32>
    %398 = vector.extract_strided_slice %340 {offsets = [0, 16], sizes = [16, 16], strides = [1, 1]} : vector<16x128xf32> to vector<16x16xf32>
    %399 = vector.extract_strided_slice %341 {offsets = [0, 48], sizes = [16, 16], strides = [1, 1]} : vector<16x192xf32> to vector<16x16xf32>
    %400 = vector.extract_strided_slice %342 {offsets = [0, 48], sizes = [16, 16], strides = [1, 1]} : vector<16x192xf32> to vector<16x16xf32>
    %cst_149 = arith.constant dense<0.000000e+00> : vector<16x16xf32>
    %401 = tpu.matmul %398, %399, %cst_149 {dimension_numbers = #tpu.dot_dimension_numbers<[1], [1], [0], [0], [0, 0, 1, 0], [], []>} : vector<16x16xf32>, vector<16x16xf32>, vector<16x16xf32> -> vector<16x16xf32>
    %402 = arith.addf %401, %381 : vector<16x16xf32>
    %cst_150 = arith.constant dense<0xFF800000> : vector<16xf32>
    %403 = vector.multi_reduction <maximumf>, %402, %cst_150 [1] : vector<16x16xf32> to vector<16xf32>
    %404 = vector.shape_cast %403 : vector<16xf32> to vector<16x1xf32>
    %405 = vector.broadcast %404 : vector<16x1xf32> to vector<16x16xf32>
    %406 = arith.subf %402, %405 : vector<16x16xf32>
    %407 = math.exp %406 : vector<16x16xf32>
    %cst_151 = arith.constant dense<0.000000e+00> : vector<16xf32>
    %408 = vector.multi_reduction <add>, %407, %cst_151 [1] : vector<16x16xf32> to vector<16xf32>
    %409 = vector.shape_cast %408 : vector<16xf32> to vector<16x1xf32>
    %410 = tpu.reciprocal %409 {approx = true} : vector<16x1xf32> -> vector<16x1xf32>
    %411 = vector.broadcast %410 : vector<16x1xf32> to vector<16x16xf32>
    %412 = arith.mulf %407, %411 : vector<16x16xf32>
    %cst_152 = arith.constant dense<0.000000e+00> : vector<16x16xf32>
    %413 = tpu.matmul %412, %400, %cst_152 {dimension_numbers = #tpu.dot_dimension_numbers<[1], [0], [0], [1], [0, 0, 1, 1], [], []>} : vector<16x16xf32>, vector<16x16xf32>, vector<16x16xf32> -> vector<16x16xf32>
    %414 = tpu.concatenate %397, %413 in 1 : vector<16x16xf32>, vector<16x16xf32> -> vector<16x32xf32>
    %415 = vector.broadcast %23 : vector<16x1xf32> to vector<16x32xf32>
    %416 = arith.mulf %414, %415 : vector<16x32xf32>
    %c2_153 = arith.constant 2 : index
    %c0_154 = arith.constant 0 : index
    %c0_155 = arith.constant 0 : index
    %417 = vector.load %arg2[%c2_153, %c0_154, %c0_155] : memref<6x16x16xf32, #tpu.memory_space<vmem>>, vector<1x16x16xf32>
    %418 = vector.shape_cast %417 : vector<1x16x16xf32> to vector<16x16xf32>
    %419 = vector.extract_strided_slice %340 {offsets = [0, 64], sizes = [16, 16], strides = [1, 1]} : vector<16x128xf32> to vector<16x16xf32>
    %420 = vector.extract_strided_slice %341 {offsets = [0, 64], sizes = [16, 16], strides = [1, 1]} : vector<16x192xf32> to vector<16x16xf32>
    %421 = vector.extract_strided_slice %342 {offsets = [0, 64], sizes = [16, 16], strides = [1, 1]} : vector<16x192xf32> to vector<16x16xf32>
    %cst_156 = arith.constant dense<0.000000e+00> : vector<16x16xf32>
    %422 = tpu.matmul %419, %420, %cst_156 {dimension_numbers = #tpu.dot_dimension_numbers<[1], [1], [0], [0], [0, 0, 1, 0], [], []>} : vector<16x16xf32>, vector<16x16xf32>, vector<16x16xf32> -> vector<16x16xf32>
    %423 = arith.addf %422, %418 : vector<16x16xf32>
    %cst_157 = arith.constant dense<0xFF800000> : vector<16xf32>
    %424 = vector.multi_reduction <maximumf>, %423, %cst_157 [1] : vector<16x16xf32> to vector<16xf32>
    %425 = vector.shape_cast %424 : vector<16xf32> to vector<16x1xf32>
    %426 = vector.broadcast %425 : vector<16x1xf32> to vector<16x16xf32>
    %427 = arith.subf %423, %426 : vector<16x16xf32>
    %428 = math.exp %427 : vector<16x16xf32>
    %cst_158 = arith.constant dense<0.000000e+00> : vector<16xf32>
    %429 = vector.multi_reduction <add>, %428, %cst_158 [1] : vector<16x16xf32> to vector<16xf32>
    %430 = vector.shape_cast %429 : vector<16xf32> to vector<16x1xf32>
    %431 = tpu.reciprocal %430 {approx = true} : vector<16x1xf32> -> vector<16x1xf32>
    %432 = vector.broadcast %431 : vector<16x1xf32> to vector<16x16xf32>
    %433 = arith.mulf %428, %432 : vector<16x16xf32>
    %cst_159 = arith.constant dense<0.000000e+00> : vector<16x16xf32>
    %434 = tpu.matmul %433, %421, %cst_159 {dimension_numbers = #tpu.dot_dimension_numbers<[1], [0], [0], [1], [0, 0, 1, 1], [], []>} : vector<16x16xf32>, vector<16x16xf32>, vector<16x16xf32> -> vector<16x16xf32>
    %435 = vector.extract_strided_slice %340 {offsets = [0, 80], sizes = [16, 16], strides = [1, 1]} : vector<16x128xf32> to vector<16x16xf32>
    %436 = vector.extract_strided_slice %341 {offsets = [0, 80], sizes = [16, 16], strides = [1, 1]} : vector<16x192xf32> to vector<16x16xf32>
    %437 = vector.extract_strided_slice %342 {offsets = [0, 80], sizes = [16, 16], strides = [1, 1]} : vector<16x192xf32> to vector<16x16xf32>
    %cst_160 = arith.constant dense<0.000000e+00> : vector<16x16xf32>
    %438 = tpu.matmul %435, %436, %cst_160 {dimension_numbers = #tpu.dot_dimension_numbers<[1], [1], [0], [0], [0, 0, 1, 0], [], []>} : vector<16x16xf32>, vector<16x16xf32>, vector<16x16xf32> -> vector<16x16xf32>
    %439 = arith.addf %438, %418 : vector<16x16xf32>
    %cst_161 = arith.constant dense<0xFF800000> : vector<16xf32>
    %440 = vector.multi_reduction <maximumf>, %439, %cst_161 [1] : vector<16x16xf32> to vector<16xf32>
    %441 = vector.shape_cast %440 : vector<16xf32> to vector<16x1xf32>
    %442 = vector.broadcast %441 : vector<16x1xf32> to vector<16x16xf32>
    %443 = arith.subf %439, %442 : vector<16x16xf32>
    %444 = math.exp %443 : vector<16x16xf32>
    %cst_162 = arith.constant dense<0.000000e+00> : vector<16xf32>
    %445 = vector.multi_reduction <add>, %444, %cst_162 [1] : vector<16x16xf32> to vector<16xf32>
    %446 = vector.shape_cast %445 : vector<16xf32> to vector<16x1xf32>
    %447 = tpu.reciprocal %446 {approx = true} : vector<16x1xf32> -> vector<16x1xf32>
    %448 = vector.broadcast %447 : vector<16x1xf32> to vector<16x16xf32>
    %449 = arith.mulf %444, %448 : vector<16x16xf32>
    %cst_163 = arith.constant dense<0.000000e+00> : vector<16x16xf32>
    %450 = tpu.matmul %449, %437, %cst_163 {dimension_numbers = #tpu.dot_dimension_numbers<[1], [0], [0], [1], [0, 0, 1, 1], [], []>} : vector<16x16xf32>, vector<16x16xf32>, vector<16x16xf32> -> vector<16x16xf32>
    %451 = tpu.concatenate %434, %450 in 1 : vector<16x16xf32>, vector<16x16xf32> -> vector<16x32xf32>
    %452 = vector.broadcast %31 : vector<16x1xf32> to vector<16x32xf32>
    %453 = arith.mulf %451, %452 : vector<16x32xf32>
    %c3_164 = arith.constant 3 : index
    %c0_165 = arith.constant 0 : index
    %c0_166 = arith.constant 0 : index
    %454 = vector.load %arg2[%c3_164, %c0_165, %c0_166] : memref<6x16x16xf32, #tpu.memory_space<vmem>>, vector<1x16x16xf32>
    %455 = vector.shape_cast %454 : vector<1x16x16xf32> to vector<16x16xf32>
    %456 = vector.extract_strided_slice %340 {offsets = [0, 96], sizes = [16, 16], strides = [1, 1]} : vector<16x128xf32> to vector<16x16xf32>
    %457 = vector.extract_strided_slice %341 {offsets = [0, 96], sizes = [16, 16], strides = [1, 1]} : vector<16x192xf32> to vector<16x16xf32>
    %458 = vector.extract_strided_slice %342 {offsets = [0, 96], sizes = [16, 16], strides = [1, 1]} : vector<16x192xf32> to vector<16x16xf32>
    %cst_167 = arith.constant dense<0.000000e+00> : vector<16x16xf32>
    %459 = tpu.matmul %456, %457, %cst_167 {dimension_numbers = #tpu.dot_dimension_numbers<[1], [1], [0], [0], [0, 0, 1, 0], [], []>} : vector<16x16xf32>, vector<16x16xf32>, vector<16x16xf32> -> vector<16x16xf32>
    %460 = arith.addf %459, %455 : vector<16x16xf32>
    %cst_168 = arith.constant dense<0xFF800000> : vector<16xf32>
    %461 = vector.multi_reduction <maximumf>, %460, %cst_168 [1] : vector<16x16xf32> to vector<16xf32>
    %462 = vector.shape_cast %461 : vector<16xf32> to vector<16x1xf32>
    %463 = vector.broadcast %462 : vector<16x1xf32> to vector<16x16xf32>
    %464 = arith.subf %460, %463 : vector<16x16xf32>
    %465 = math.exp %464 : vector<16x16xf32>
    %cst_169 = arith.constant dense<0.000000e+00> : vector<16xf32>
    %466 = vector.multi_reduction <add>, %465, %cst_169 [1] : vector<16x16xf32> to vector<16xf32>
    %467 = vector.shape_cast %466 : vector<16xf32> to vector<16x1xf32>
    %468 = tpu.reciprocal %467 {approx = true} : vector<16x1xf32> -> vector<16x1xf32>
    %469 = vector.broadcast %468 : vector<16x1xf32> to vector<16x16xf32>
    %470 = arith.mulf %465, %469 : vector<16x16xf32>
    %cst_170 = arith.constant dense<0.000000e+00> : vector<16x16xf32>
    %471 = tpu.matmul %470, %458, %cst_170 {dimension_numbers = #tpu.dot_dimension_numbers<[1], [0], [0], [1], [0, 0, 1, 1], [], []>} : vector<16x16xf32>, vector<16x16xf32>, vector<16x16xf32> -> vector<16x16xf32>
    %472 = vector.extract_strided_slice %340 {offsets = [0, 112], sizes = [16, 16], strides = [1, 1]} : vector<16x128xf32> to vector<16x16xf32>
    %473 = vector.extract_strided_slice %341 {offsets = [0, 112], sizes = [16, 16], strides = [1, 1]} : vector<16x192xf32> to vector<16x16xf32>
    %474 = vector.extract_strided_slice %342 {offsets = [0, 112], sizes = [16, 16], strides = [1, 1]} : vector<16x192xf32> to vector<16x16xf32>
    %cst_171 = arith.constant dense<0.000000e+00> : vector<16x16xf32>
    %475 = tpu.matmul %472, %473, %cst_171 {dimension_numbers = #tpu.dot_dimension_numbers<[1], [1], [0], [0], [0, 0, 1, 0], [], []>} : vector<16x16xf32>, vector<16x16xf32>, vector<16x16xf32> -> vector<16x16xf32>
    %476 = arith.addf %475, %455 : vector<16x16xf32>
    %cst_172 = arith.constant dense<0xFF800000> : vector<16xf32>
    %477 = vector.multi_reduction <maximumf>, %476, %cst_172 [1] : vector<16x16xf32> to vector<16xf32>
    %478 = vector.shape_cast %477 : vector<16xf32> to vector<16x1xf32>
    %479 = vector.broadcast %478 : vector<16x1xf32> to vector<16x16xf32>
    %480 = arith.subf %476, %479 : vector<16x16xf32>
    %481 = math.exp %480 : vector<16x16xf32>
    %cst_173 = arith.constant dense<0.000000e+00> : vector<16xf32>
    %482 = vector.multi_reduction <add>, %481, %cst_173 [1] : vector<16x16xf32> to vector<16xf32>
    %483 = vector.shape_cast %482 : vector<16xf32> to vector<16x1xf32>
    %484 = tpu.reciprocal %483 {approx = true} : vector<16x1xf32> -> vector<16x1xf32>
    %485 = vector.broadcast %484 : vector<16x1xf32> to vector<16x16xf32>
    %486 = arith.mulf %481, %485 : vector<16x16xf32>
    %cst_174 = arith.constant dense<0.000000e+00> : vector<16x16xf32>
    %487 = tpu.matmul %486, %474, %cst_174 {dimension_numbers = #tpu.dot_dimension_numbers<[1], [0], [0], [1], [0, 0, 1, 1], [], []>} : vector<16x16xf32>, vector<16x16xf32>, vector<16x16xf32> -> vector<16x16xf32>
    %488 = tpu.concatenate %471, %487 in 1 : vector<16x16xf32>, vector<16x16xf32> -> vector<16x32xf32>
    %489 = vector.broadcast %39 : vector<16x1xf32> to vector<16x32xf32>
    %490 = arith.mulf %488, %489 : vector<16x32xf32>
    %c4_175 = arith.constant 4 : index
    %c0_176 = arith.constant 0 : index
    %c0_177 = arith.constant 0 : index
    %491 = vector.load %arg2[%c4_175, %c0_176, %c0_177] : memref<6x16x16xf32, #tpu.memory_space<vmem>>, vector<1x16x16xf32>
    %492 = vector.shape_cast %491 : vector<1x16x16xf32> to vector<16x16xf32>
    %493 = vector.extract_strided_slice %340 {offsets = [0, 32], sizes = [16, 16], strides = [1, 1]} : vector<16x128xf32> to vector<16x16xf32>
    %494 = vector.extract_strided_slice %341 {offsets = [0, 128], sizes = [16, 16], strides = [1, 1]} : vector<16x192xf32> to vector<16x16xf32>
    %495 = vector.extract_strided_slice %342 {offsets = [0, 128], sizes = [16, 16], strides = [1, 1]} : vector<16x192xf32> to vector<16x16xf32>
    %cst_178 = arith.constant dense<0.000000e+00> : vector<16x16xf32>
    %496 = tpu.matmul %493, %494, %cst_178 {dimension_numbers = #tpu.dot_dimension_numbers<[1], [1], [0], [0], [0, 0, 1, 0], [], []>} : vector<16x16xf32>, vector<16x16xf32>, vector<16x16xf32> -> vector<16x16xf32>
    %497 = arith.addf %496, %492 : vector<16x16xf32>
    %cst_179 = arith.constant dense<0xFF800000> : vector<16xf32>
    %498 = vector.multi_reduction <maximumf>, %497, %cst_179 [1] : vector<16x16xf32> to vector<16xf32>
    %499 = vector.shape_cast %498 : vector<16xf32> to vector<16x1xf32>
    %500 = vector.broadcast %499 : vector<16x1xf32> to vector<16x16xf32>
    %501 = arith.subf %497, %500 : vector<16x16xf32>
    %502 = math.exp %501 : vector<16x16xf32>
    %cst_180 = arith.constant dense<0.000000e+00> : vector<16xf32>
    %503 = vector.multi_reduction <add>, %502, %cst_180 [1] : vector<16x16xf32> to vector<16xf32>
    %504 = vector.shape_cast %503 : vector<16xf32> to vector<16x1xf32>
    %505 = tpu.reciprocal %504 {approx = true} : vector<16x1xf32> -> vector<16x1xf32>
    %506 = vector.broadcast %505 : vector<16x1xf32> to vector<16x16xf32>
    %507 = arith.mulf %502, %506 : vector<16x16xf32>
    %cst_181 = arith.constant dense<0.000000e+00> : vector<16x16xf32>
    %508 = tpu.matmul %507, %495, %cst_181 {dimension_numbers = #tpu.dot_dimension_numbers<[1], [0], [0], [1], [0, 0, 1, 1], [], []>} : vector<16x16xf32>, vector<16x16xf32>, vector<16x16xf32> -> vector<16x16xf32>
    %509 = vector.extract_strided_slice %340 {offsets = [0, 48], sizes = [16, 16], strides = [1, 1]} : vector<16x128xf32> to vector<16x16xf32>
    %510 = vector.extract_strided_slice %341 {offsets = [0, 144], sizes = [16, 16], strides = [1, 1]} : vector<16x192xf32> to vector<16x16xf32>
    %511 = vector.extract_strided_slice %342 {offsets = [0, 144], sizes = [16, 16], strides = [1, 1]} : vector<16x192xf32> to vector<16x16xf32>
    %cst_182 = arith.constant dense<0.000000e+00> : vector<16x16xf32>
    %512 = tpu.matmul %509, %510, %cst_182 {dimension_numbers = #tpu.dot_dimension_numbers<[1], [1], [0], [0], [0, 0, 1, 0], [], []>} : vector<16x16xf32>, vector<16x16xf32>, vector<16x16xf32> -> vector<16x16xf32>
    %513 = arith.addf %512, %492 : vector<16x16xf32>
    %cst_183 = arith.constant dense<0xFF800000> : vector<16xf32>
    %514 = vector.multi_reduction <maximumf>, %513, %cst_183 [1] : vector<16x16xf32> to vector<16xf32>
    %515 = vector.shape_cast %514 : vector<16xf32> to vector<16x1xf32>
    %516 = vector.broadcast %515 : vector<16x1xf32> to vector<16x16xf32>
    %517 = arith.subf %513, %516 : vector<16x16xf32>
    %518 = math.exp %517 : vector<16x16xf32>
    %cst_184 = arith.constant dense<0.000000e+00> : vector<16xf32>
    %519 = vector.multi_reduction <add>, %518, %cst_184 [1] : vector<16x16xf32> to vector<16xf32>
    %520 = vector.shape_cast %519 : vector<16xf32> to vector<16x1xf32>
    %521 = tpu.reciprocal %520 {approx = true} : vector<16x1xf32> -> vector<16x1xf32>
    %522 = vector.broadcast %521 : vector<16x1xf32> to vector<16x16xf32>
    %523 = arith.mulf %518, %522 : vector<16x16xf32>
    %cst_185 = arith.constant dense<0.000000e+00> : vector<16x16xf32>
    %524 = tpu.matmul %523, %511, %cst_185 {dimension_numbers = #tpu.dot_dimension_numbers<[1], [0], [0], [1], [0, 0, 1, 1], [], []>} : vector<16x16xf32>, vector<16x16xf32>, vector<16x16xf32> -> vector<16x16xf32>
    %525 = tpu.concatenate %508, %524 in 1 : vector<16x16xf32>, vector<16x16xf32> -> vector<16x32xf32>
    %526 = vector.broadcast %47 : vector<16x1xf32> to vector<16x32xf32>
    %527 = arith.mulf %525, %526 : vector<16x32xf32>
    %528 = arith.addf %379, %527 : vector<16x32xf32>
    %c5_186 = arith.constant 5 : index
    %c0_187 = arith.constant 0 : index
    %c0_188 = arith.constant 0 : index
    %529 = vector.load %arg2[%c5_186, %c0_187, %c0_188] : memref<6x16x16xf32, #tpu.memory_space<vmem>>, vector<1x16x16xf32>
    %530 = vector.shape_cast %529 : vector<1x16x16xf32> to vector<16x16xf32>
    %531 = vector.extract_strided_slice %340 {offsets = [0, 32], sizes = [16, 16], strides = [1, 1]} : vector<16x128xf32> to vector<16x16xf32>
    %532 = vector.extract_strided_slice %341 {offsets = [0, 160], sizes = [16, 16], strides = [1, 1]} : vector<16x192xf32> to vector<16x16xf32>
    %533 = vector.extract_strided_slice %342 {offsets = [0, 160], sizes = [16, 16], strides = [1, 1]} : vector<16x192xf32> to vector<16x16xf32>
    %cst_189 = arith.constant dense<0.000000e+00> : vector<16x16xf32>
    %534 = tpu.matmul %531, %532, %cst_189 {dimension_numbers = #tpu.dot_dimension_numbers<[1], [1], [0], [0], [0, 0, 1, 0], [], []>} : vector<16x16xf32>, vector<16x16xf32>, vector<16x16xf32> -> vector<16x16xf32>
    %535 = arith.addf %534, %530 : vector<16x16xf32>
    %cst_190 = arith.constant dense<0xFF800000> : vector<16xf32>
    %536 = vector.multi_reduction <maximumf>, %535, %cst_190 [1] : vector<16x16xf32> to vector<16xf32>
    %537 = vector.shape_cast %536 : vector<16xf32> to vector<16x1xf32>
    %538 = vector.broadcast %537 : vector<16x1xf32> to vector<16x16xf32>
    %539 = arith.subf %535, %538 : vector<16x16xf32>
    %540 = math.exp %539 : vector<16x16xf32>
    %cst_191 = arith.constant dense<0.000000e+00> : vector<16xf32>
    %541 = vector.multi_reduction <add>, %540, %cst_191 [1] : vector<16x16xf32> to vector<16xf32>
    %542 = vector.shape_cast %541 : vector<16xf32> to vector<16x1xf32>
    %543 = tpu.reciprocal %542 {approx = true} : vector<16x1xf32> -> vector<16x1xf32>
    %544 = vector.broadcast %543 : vector<16x1xf32> to vector<16x16xf32>
    %545 = arith.mulf %540, %544 : vector<16x16xf32>
    %cst_192 = arith.constant dense<0.000000e+00> : vector<16x16xf32>
    %546 = tpu.matmul %545, %533, %cst_192 {dimension_numbers = #tpu.dot_dimension_numbers<[1], [0], [0], [1], [0, 0, 1, 1], [], []>} : vector<16x16xf32>, vector<16x16xf32>, vector<16x16xf32> -> vector<16x16xf32>
    %547 = vector.extract_strided_slice %340 {offsets = [0, 48], sizes = [16, 16], strides = [1, 1]} : vector<16x128xf32> to vector<16x16xf32>
    %548 = vector.extract_strided_slice %341 {offsets = [0, 176], sizes = [16, 16], strides = [1, 1]} : vector<16x192xf32> to vector<16x16xf32>
    %549 = vector.extract_strided_slice %342 {offsets = [0, 176], sizes = [16, 16], strides = [1, 1]} : vector<16x192xf32> to vector<16x16xf32>
    %cst_193 = arith.constant dense<0.000000e+00> : vector<16x16xf32>
    %550 = tpu.matmul %547, %548, %cst_193 {dimension_numbers = #tpu.dot_dimension_numbers<[1], [1], [0], [0], [0, 0, 1, 0], [], []>} : vector<16x16xf32>, vector<16x16xf32>, vector<16x16xf32> -> vector<16x16xf32>
    %551 = arith.addf %550, %530 : vector<16x16xf32>
    %cst_194 = arith.constant dense<0xFF800000> : vector<16xf32>
    %552 = vector.multi_reduction <maximumf>, %551, %cst_194 [1] : vector<16x16xf32> to vector<16xf32>
    %553 = vector.shape_cast %552 : vector<16xf32> to vector<16x1xf32>
    %554 = vector.broadcast %553 : vector<16x1xf32> to vector<16x16xf32>
    %555 = arith.subf %551, %554 : vector<16x16xf32>
    %556 = math.exp %555 : vector<16x16xf32>
    %cst_195 = arith.constant dense<0.000000e+00> : vector<16xf32>
    %557 = vector.multi_reduction <add>, %556, %cst_195 [1] : vector<16x16xf32> to vector<16xf32>
    %558 = vector.shape_cast %557 : vector<16xf32> to vector<16x1xf32>
    %559 = tpu.reciprocal %558 {approx = true} : vector<16x1xf32> -> vector<16x1xf32>
    %560 = vector.broadcast %559 : vector<16x1xf32> to vector<16x16xf32>
    %561 = arith.mulf %556, %560 : vector<16x16xf32>
    %cst_196 = arith.constant dense<0.000000e+00> : vector<16x16xf32>
    %562 = tpu.matmul %561, %549, %cst_196 {dimension_numbers = #tpu.dot_dimension_numbers<[1], [0], [0], [1], [0, 0, 1, 1], [], []>} : vector<16x16xf32>, vector<16x16xf32>, vector<16x16xf32> -> vector<16x16xf32>
    %563 = tpu.concatenate %546, %562 in 1 : vector<16x16xf32>, vector<16x16xf32> -> vector<16x32xf32>
    %564 = vector.broadcast %55 : vector<16x1xf32> to vector<16x32xf32>
    %565 = arith.mulf %563, %564 : vector<16x32xf32>
    %566 = arith.addf %528, %565 : vector<16x32xf32>
    %cst_197 = arith.constant 1.000000e+00 : f32
    %567 = vector.broadcast %cst_197 : f32 to vector<16x32xf32>
    %568 = arith.mulf %416, %567 : vector<16x32xf32>
    %cst_198 = arith.constant 0.333333343 : f32
    %569 = vector.broadcast %cst_198 : f32 to vector<16x32xf32>
    %570 = arith.mulf %566, %569 : vector<16x32xf32>
    %cst_199 = arith.constant 1.000000e+00 : f32
    %571 = vector.broadcast %cst_199 : f32 to vector<16x32xf32>
    %572 = arith.mulf %453, %571 : vector<16x32xf32>
    %cst_200 = arith.constant 1.000000e+00 : f32
    %573 = vector.broadcast %cst_200 : f32 to vector<16x32xf32>
    %574 = arith.mulf %490, %573 : vector<16x32xf32>
    %575 = tpu.concatenate %568, %570, %572, %574 in 1 : vector<16x32xf32>, vector<16x32xf32>, vector<16x32xf32>, vector<16x32xf32> -> vector<16x128xf32>
    %cst_201 = arith.constant 5.000000e-01 : f32
    %576 = vector.broadcast %cst_201 : f32 to vector<16x128xf32>
    %577 = arith.mulf %576, %575 : vector<16x128xf32>
    %cst_202 = arith.constant 4.471500e-02 : f32
    %578 = vector.broadcast %cst_202 : f32 to vector<16x128xf32>
    %579 = arith.mulf %578, %575 : vector<16x128xf32>
    %580 = arith.mulf %579, %575 : vector<16x128xf32>
    %581 = arith.mulf %580, %575 : vector<16x128xf32>
    %582 = arith.addf %575, %581 : vector<16x128xf32>
    %cst_203 = arith.constant 0.797884583 : f32
    %583 = vector.broadcast %cst_203 : f32 to vector<16x128xf32>
    %584 = arith.mulf %583, %582 : vector<16x128xf32>
    %585 = math.tanh %584 : vector<16x128xf32>
    %cst_204 = arith.constant 1.000000e+00 : f32
    %586 = vector.broadcast %cst_204 : f32 to vector<16x128xf32>
    %587 = arith.addf %586, %585 : vector<16x128xf32>
    %588 = arith.mulf %577, %587 : vector<16x128xf32>
    %c1_205 = arith.constant 1 : index
    %c0_206 = arith.constant 0 : index
    %c0_207 = arith.constant 0 : index
    %589 = vector.load %arg7[%c1_205, %c0_206, %c0_207] : memref<2x128x128xf32, #tpu.memory_space<vmem>>, vector<1x128x128xf32>
    %590 = vector.shape_cast %589 : vector<1x128x128xf32> to vector<128x128xf32>
    %cst_208 = arith.constant dense<0.000000e+00> : vector<16x128xf32>
    %591 = tpu.matmul %588, %590, %cst_208 {dimension_numbers = #tpu.dot_dimension_numbers<[1], [0], [0], [1], [0, 0, 1, 1], [], []>} : vector<16x128xf32>, vector<128x128xf32>, vector<16x128xf32> -> vector<16x128xf32>
    %c1_209 = arith.constant 1 : index
    %c0_210 = arith.constant 0 : index
    %c0_211 = arith.constant 0 : index
    %592 = vector.load %arg8[%c1_209, %c0_210, %c0_211] : memref<2x1x128xf32, #tpu.memory_space<vmem>>, vector<1x1x128xf32>
    %593 = vector.shape_cast %592 : vector<1x1x128xf32> to vector<1x128xf32>
    %594 = vector.broadcast %593 : vector<1x128xf32> to vector<16x128xf32>
    %595 = arith.addf %591, %594 : vector<16x128xf32>
    %c1_212 = arith.constant 1 : index
    %c0_213 = arith.constant 0 : index
    %c0_214 = arith.constant 0 : index
    %596 = vector.load %arg9[%c1_212, %c0_213, %c0_214] : memref<2x1x128xf32, #tpu.memory_space<vmem>>, vector<1x1x128xf32>
    %597 = vector.shape_cast %596 : vector<1x1x128xf32> to vector<1x128xf32>
    %598 = arith.negf %597 : vector<1x128xf32>
    %599 = math.exp %598 : vector<1x128xf32>
    %cst_215 = arith.constant 1.000000e+00 : f32
    %600 = vector.broadcast %cst_215 : f32 to vector<1x128xf32>
    %601 = arith.addf %600, %599 : vector<1x128xf32>
    %602 = arith.divf %600, %601 : vector<1x128xf32>
    %603 = vector.broadcast %602 : vector<1x128xf32> to vector<16x128xf32>
    %604 = arith.mulf %603, %595 : vector<16x128xf32>
    %cst_216 = arith.constant 1.000000e+00 : f32
    %605 = vector.broadcast %cst_216 : f32 to vector<1x128xf32>
    %606 = arith.subf %605, %602 : vector<1x128xf32>
    %607 = vector.broadcast %606 : vector<1x128xf32> to vector<16x128xf32>
    %608 = arith.mulf %607, %332 : vector<16x128xf32>
    %609 = arith.addf %604, %608 : vector<16x128xf32>
    %610 = vector.extract_strided_slice %609 {offsets = [0, 0], sizes = [16, 32], strides = [1, 1]} : vector<16x128xf32> to vector<16x32xf32>
    %c0_217 = arith.constant 0 : index
    %c0_218 = arith.constant 0 : index
    %611 = vector.load %arg10[%c0_217, %c0_218] : memref<32x128xf32, #tpu.memory_space<vmem>>, vector<32x128xf32>
    %cst_219 = arith.constant dense<0.000000e+00> : vector<16x128xf32>
    %612 = tpu.matmul %610, %611, %cst_219 {dimension_numbers = #tpu.dot_dimension_numbers<[1], [0], [0], [1], [0, 0, 1, 1], [], []>} : vector<16x32xf32>, vector<32x128xf32>, vector<16x128xf32> -> vector<16x128xf32>
    %c0_220 = arith.constant 0 : index
    %c0_221 = arith.constant 0 : index
    %613 = vector.load %arg11[%c0_220, %c0_221] : memref<1x128xf32, #tpu.memory_space<vmem>>, vector<1x128xf32>
    %614 = vector.broadcast %613 : vector<1x128xf32> to vector<16x128xf32>
    %615 = arith.addf %612, %614 : vector<16x128xf32>
    %c0_222 = arith.constant 0 : index
    %c0_223 = arith.constant 0 : index
    %616 = vector.load %arg12[%c0_222, %c0_223] : memref<16x128xf32, #tpu.memory_space<vmem>>, vector<16x128xf32>
    tpu.vector_store %arg12[%c0_222, %c0_223], %615 {strides = array<i32>} : memref<16x128xf32, #tpu.memory_space<vmem>>, vector<16x128xf32>,
    return
  }
  func.func @transform_0(%arg0: i32) -> (i32, i32) {
    %c0_i32 = arith.constant 0 : i32
    %c0_i32_0 = arith.constant 0 : i32
    %c0_i32_1 = arith.constant 0 : i32
    return %c0_i32, %c0_i32_0 : i32, i32
  }
  func.func @transform_1(%arg0: i32) -> (i32, i32, i32) {
    %c0_i32 = arith.constant 0 : i32
    %c0_i32_0 = arith.constant 0 : i32
    %c0_i32_1 = arith.constant 0 : i32
    %c0_i32_2 = arith.constant 0 : i32
    return %c0_i32, %c0_i32_0, %c0_i32_1 : i32, i32, i32
  }
  func.func @transform_2(%arg0: i32) -> (i32, i32) {
    %c0_i32 = arith.constant 0 : i32
    %c0_i32_0 = arith.constant 0 : i32
    %c0_i32_1 = arith.constant 0 : i32
    return %c0_i32, %c0_i32_0 : i32, i32
  }
  func.func @transform_3(%arg0: i32) -> (i32, i32) {
    %c0_i32 = arith.constant 0 : i32
    %c0_i32_0 = arith.constant 0 : i32
    %c0_i32_1 = arith.constant 0 : i32
    return %c0_i32, %c0_i32_0 : i32, i32
  }
  func.func @transform_4(%arg0: i32) -> (i32, i32, i32) {
    %c0_i32 = arith.constant 0 : i32
    %c0_i32_0 = arith.constant 0 : i32
    %c0_i32_1 = arith.constant 0 : i32
    %c0_i32_2 = arith.constant 0 : i32
    return %c0_i32, %c0_i32_0, %c0_i32_1 : i32, i32, i32
  }
  func.func @transform_5(%arg0: i32) -> (i32, i32, i32) {
    %c0_i32 = arith.constant 0 : i32
    %c0_i32_0 = arith.constant 0 : i32
    %c0_i32_1 = arith.constant 0 : i32
    %c0_i32_2 = arith.constant 0 : i32
    return %c0_i32, %c0_i32_0, %c0_i32_1 : i32, i32, i32
  }
  func.func @transform_6(%arg0: i32) -> (i32, i32, i32) {
    %c0_i32 = arith.constant 0 : i32
    %c0_i32_0 = arith.constant 0 : i32
    %c0_i32_1 = arith.constant 0 : i32
    %c0_i32_2 = arith.constant 0 : i32
    return %c0_i32, %c0_i32_0, %c0_i32_1 : i32, i32, i32
  }
  func.func @transform_7(%arg0: i32) -> (i32, i32, i32) {
    %c0_i32 = arith.constant 0 : i32
    %c0_i32_0 = arith.constant 0 : i32
    %c0_i32_1 = arith.constant 0 : i32
    %c0_i32_2 = arith.constant 0 : i32
    return %c0_i32, %c0_i32_0, %c0_i32_1 : i32, i32, i32
  }
  func.func @transform_8(%arg0: i32) -> (i32, i32, i32) {
    %c0_i32 = arith.constant 0 : i32
    %c0_i32_0 = arith.constant 0 : i32
    %c0_i32_1 = arith.constant 0 : i32
    %c0_i32_2 = arith.constant 0 : i32
    return %c0_i32, %c0_i32_0, %c0_i32_1 : i32, i32, i32
  }
  func.func @transform_9(%arg0: i32) -> (i32, i32) {
    %c0_i32 = arith.constant 0 : i32
    %c0_i32_0 = arith.constant 0 : i32
    %c0_i32_1 = arith.constant 0 : i32
    return %c0_i32, %c0_i32_0 : i32, i32
  }
  func.func @transform_10(%arg0: i32) -> (i32, i32) {
    %c0_i32 = arith.constant 0 : i32
    %c0_i32_0 = arith.constant 0 : i32
    %c0_i32_1 = arith.constant 0 : i32
    return %c0_i32, %c0_i32_0 : i32, i32
  }
  func.func @transform_11(%arg0: i32) -> (i32, i32) {
    %c0_i32 = arith.constant 0 : i32
    %c0_i32_0 = arith.constant 0 : i32
    %c0_i32_1 = arith.constant 0 : i32
    return %c0_i32, %c0_i32_0 : i32, i32
  }
}

</mosaic_0001>

<llo_original>
// kernel: hgt_forward.1
$region0: #{hgt_forward.1}
  #allocation0 [shape = 'u32[]', space=smem, size = 0x4, offset = 0x4, fixed_abs, tag = 'smem constant byte address 0x4 - core index']
  #allocation1 [shape = 'u32[144,128]{1,0:T(1,128)}', space=vmem, size = 0x12000, scoped, tag = 'internal scratch']
  %s0 = inlined_call_operand.vmem [shape: f32[16,32], index: 0, kind: input, shape index: {}]
  %s1 = inlined_call_operand.vmem [shape: f32[6,16,16], index: 1, kind: input, shape index: {}]
  %s2 = inlined_call_operand.vmem [shape: f32[32,128], index: 2, kind: input, shape index: {}]
  %s3 = inlined_call_operand.vmem [shape: f32[1,128], index: 3, kind: input, shape index: {}]
  %s4 = inlined_call_operand.vmem [shape: f32[2,128,512], index: 4, kind: input, shape index: {}]
  %s5 = inlined_call_operand.vmem [shape: f32[2,1,512], index: 5, kind: input, shape index: {}]
  %s6 = inlined_call_operand.vmem [shape: f32[2,128,128], index: 6, kind: input, shape index: {}]
  %s7 = inlined_call_operand.vmem [shape: f32[2,1,128], index: 7, kind: input, shape index: {}]
  %s8 = inlined_call_operand.vmem [shape: f32[2,1,128], index: 8, kind: input, shape index: {}]
  %s9 = inlined_call_operand.vmem [shape: f32[32,128], index: 9, kind: input, shape index: {}]
  %s10 = inlined_call_operand.vmem [shape: f32[1,128], index: 10, kind: input, shape index: {}]
  %s11 = inlined_call_operand.hbm [shape: f32[16,128], index: 11, kind: output, shape index: {}]
  %s12 = sld [smem:[#allocation0]]
  $region54: #{hgt_forward.1} parent=0
    _
  %s14 = ssub.s32 1, %s12
  %s15 = scalar_select 0, %s14, %s12
  $region1: #{hgt_forward.1} parent=0
    #allocation2 [shape = 'u8[8192]{0}', space=vmem, size = 0x2000, scoped, tag = 'output window, operand 0, single buffered']
    #allocation3 [shape = 's32[1]{0}', space=sflag, size = 0x4, scoped, tag = 'scoped memory for hgt_forward.1']
    %16 = vsyncpa [#allocation3], 0
    // Predicated region
    $region2: #{hgt_forward.1} parent=1 // pred_check
      _
    $region3: #{hgt_forward.1} parent=1 // pred_check_branch
      %18 = sbr.rel (0) target = $region5
    $region4: #{hgt_forward.1} parent=1 // pred_region
      _
    $region5: #{hgt_forward.1} parent=1 // pred_fallthru
      _
    // Predicated region
    $region6: #{hgt_forward.1} parent=1 // pred_check
      _
    $region7: #{hgt_forward.1} parent=1 // pred_check_branch
      %20 = sbr.rel (0) target = $region9
    $region8: #{hgt_forward.1} parent=1 // pred_region
      _
    $region9: #{hgt_forward.1} parent=1 // pred_fallthru
      _
    // Predicated region
    $region10: #{hgt_forward.1} parent=1 // pred_check
      _
    $region11: #{hgt_forward.1} parent=1 // pred_check_branch
      %22 = sbr.rel (0) target = $region13
    $region12: #{hgt_forward.1} parent=1 // pred_region
      _
    $region13: #{hgt_forward.1} parent=1 // pred_fallthru
      _
    // Predicated region
    $region14: #{hgt_forward.1} parent=1 // pred_check
      _
    $region15: #{hgt_forward.1} parent=1 // pred_check_branch
      %24 = sbr.rel (0) target = $region17
    $region16: #{hgt_forward.1} parent=1 // pred_region
      _
    $region17: #{hgt_forward.1} parent=1 // pred_fallthru
      _
    // Predicated region
    $region18: #{hgt_forward.1} parent=1 // pred_check
      _
    $region19: #{hgt_forward.1} parent=1 // pred_check_branch
      %26 = sbr.rel (0) target = $region21
    $region20: #{hgt_forward.1} parent=1 // pred_region
      _
    $region21: #{hgt_forward.1} parent=1 // pred_fallthru
      _
    // Predicated region
    $region22: #{hgt_forward.1} parent=1 // pred_check
      _
    $region23: #{hgt_forward.1} parent=1 // pred_check_branch
      %28 = sbr.rel (0) target = $region25
    $region24: #{hgt_forward.1} parent=1 // pred_region
      _
    $region25: #{hgt_forward.1} parent=1 // pred_fallthru
      _
    // Predicated region
    $region26: #{hgt_forward.1} parent=1 // pred_check
      _
    $region27: #{hgt_forward.1} parent=1 // pred_check_branch
      %30 = sbr.rel (0) target = $region29
    $region28: #{hgt_forward.1} parent=1 // pred_region
      _
    $region29: #{hgt_forward.1} parent=1 // pred_fallthru
      _
    // Predicated region
    $region30: #{hgt_forward.1} parent=1 // pred_check
      _
    $region31: #{hgt_forward.1} parent=1 // pred_check_branch
      %32 = sbr.rel (0) target = $region33
    $region32: #{hgt_forward.1} parent=1 // pred_region
      _
    $region33: #{hgt_forward.1} parent=1 // pred_fallthru
      _
    // Predicated region
    $region34: #{hgt_forward.1} parent=1 // pred_check
      _
    $region35: #{hgt_forward.1} parent=1 // pred_check_branch
      %34 = sbr.rel (0) target = $region37
    $region36: #{hgt_forward.1} parent=1 // pred_region
      _
    $region37: #{hgt_forward.1} parent=1 // pred_fallthru
      _
    // Predicated region
    $region38: #{hgt_forward.1} parent=1 // pred_check
      _
    $region39: #{hgt_forward.1} parent=1 // pred_check_branch
      %36 = sbr.rel (0) target = $region41
    $region40: #{hgt_forward.1} parent=1 // pred_region
      _
    $region41: #{hgt_forward.1} parent=1 // pred_fallthru
      _
    // Predicated region
    $region42: #{hgt_forward.1} parent=1 // pred_check
      _
    $region43: #{hgt_forward.1} parent=1 // pred_check_branch
      %38 = sbr.rel (0) target = $region45
    $region44: #{hgt_forward.1} parent=1 // pred_region
      _
    $region45: #{hgt_forward.1} parent=1 // pred_fallthru
      _
    %v39 = vld [vmem:[%s0] sm:$0xff]
    %v40 = vld [vmem:[%s0 + $0x8] sm:$0xff]
    %v41 = vld [vmem:[%s2] sm:$0xff]
    %v42 = vld [vmem:[%s2 + $0x8] sm:$0xff]
    %v43 = vld [vmem:[%s2 + $0x10] sm:$0xff]
    %v44 = vld [vmem:[%s2 + $0x18] sm:$0xff]
    %v45 = vld [vmem:[%s3] sm:$0x1]
    %v47 = vlaneseq
    %v48 = vshrl.u32 %v47, 7
    %v49 = vsub.s32 0, %v48
    %v50 = vrot.slane %v45, %v49
    %vm52 = vcmask 261120
    %v54 = vsel %vm52, %v39, 0
    %v57 = vsel %vm52, %v40, 0
    %59 = vmatprep.subr.mxu0 0.0
    %60 = vmatpush1.msra.mxu0 %v41
    %61 = vmatprep.subr.mxu0 0.0
    %62 = vmatpush1.msra.mxu0 %v42
    %63 = vmatprep.subr.mxu0 0.0
    %64 = vmatpush1.msra.mxu0 %v43
    %65 = vmatprep.subr.mxu0 0.0
    %66 = vmatpush1.msra.mxu0 %v44
    %67 = vmatprep.subr.mxu0 0.0
    %68 = vmatpush1.msra.mxu0 0.0
    %69 = vmatprep.subr.mxu0 0.0
    %70 = vmatpush1.msra.mxu0 0.0
    %71 = vmatprep.subr.mxu0 0.0
    %72 = vmatpush1.msra.mxu0 0.0
    %73 = vmatprep.subr.mxu0 0.0
    %74 = vmatpush1.msra.mxu0 0.0
    %75 = vmatprep.subr.mxu0 0.0
    %76 = vmatpush1.msra.mxu0 0.0
    %77 = vmatprep.subr.mxu0 0.0
    %78 = vmatpush1.msra.mxu0 0.0
    %79 = vmatprep.subr.mxu0 0.0
    %80 = vmatpush1.msra.mxu0 0.0
    %81 = vmatprep.subr.mxu0 0.0
    %82 = vmatpush1.msra.mxu0 0.0
    %83 = vmatprep.subr.mxu0 0.0
    %84 = vmatpush1.msra.mxu0 0.0
    %85 = vmatprep.subr.mxu0 0.0
    %86 = vmatpush1.msra.mxu0 0.0
    %87 = vmatprep.subr.mxu0 0.0
    %88 = vmatpush1.msra.mxu0 0.0
    %89 = vmatprep.subr.mxu0 0.0
    %90 = vmatpush1.msra.mxu0 0.0
    %91 = vmatprep.subr.mxu0 0.0
    %92 = vmatpush1.msra.mxu0 0.0
    %93 = vmatprep.subr.mxu0 0.0
    %94 = vmatpush1.msra.mxu0 0.0
    %95 = vmatprep.subr.mxu0 0.0
    %96 = vmatpush1.msra.mxu0 0.0
    %97 = vmatprep.subr.mxu0 0.0
    %98 = vmatpush1.msra.mxu0 0.0
    %99 = vmatprep.subr.mxu0 0.0
    %100 = vmatpush1.msra.mxu0 0.0
    %101 = vmatprep.subr.mxu0 0.0
    %102 = vmatpush1.msra.mxu0 0.0
    %103 = vmatprep.subr.mxu0 0.0
    %104 = vmatpush1.msra.mxu0 0.0
    %105 = vmatprep.subr.mxu0 0.0
    %106 = vmatpush1.msra.mxu0 0.0
    %107 = vmatprep.subr.mxu0 0.0
    %108 = vmatpush1.msra.mxu0 0.0
    %109 = vmatprep.subr.mxu0 0.0
    %110 = vmatpush1.msra.mxu0 0.0
    %111 = vmatprep.subr.mxu0 0.0
    %112 = vmatpush1.msra.mxu0 0.0
    %113 = vmatprep.subr.mxu0 0.0
    %114 = vmatpush1.msra.mxu0 0.0
    %115 = vmatprep.subr.mxu0 0.0
    %116 = vmatpush1.msra.mxu0 0.0
    %117 = vmatprep.subr.mxu0 0.0
    %118 = vmatpush1.msra.mxu0 0.0
    %119 = vmatprep.subr.mxu0 0.0
    %120 = vmatpush1.msra.mxu0 0.0
    %121 = vmatprep.subr.mxu0 0.0
    %122 = vmatpush1.msra.mxu0 0.0
    %123 = vmatprep.mubr.f32.mxu0 0.0
    %124 = vmatmul.mubr.f32.gmra.mrb[0].mxu0 %v54
    %v125 = vpop.f32.mrb[0].mxu0
    %v126 = vadd.f32 %v50, %v125
    %v127 = vpop.f32.mrb[0].mxu0
    %128 = vmatprep.mubr.f32.mxu0 0.0
    %129 = vmatmul.mubr.f32.gmra.mrb[0].mxu0 %v57
    %v130 = vpop.f32.mrb[0].mxu0
    %v131 = vadd.f32 %v50, %v130
    %v132 = vpop.f32.mrb[0].mxu0
    %133 = vdwg.mxu0
    %v134 = vmax.f32 %v126, 0.0
    %v135 = vmax.f32 %v131, 0.0
    %v136 = vld [vmem:[%s1] sm:$0xff]
    %v137 = vld [vmem:[%s1 + $0x8] sm:$0xff]
    %vm138 = vcmask 130048
    %v139 = vsel %vm138, %v136, -inf
    %140 = vmax.xlane.f32.xlu0 %v139
    %v141 = vpop.xlane.xlu0 %140
    %v142 = vsel %vm138, %v137, -inf
    %143 = vmax.xlane.f32.xlu0 %v142
    %v144 = vpop.xlane.xlu0 %143
    %vm145 = vcmp.gt.f32.partialorder %v141, -1e+20
    %vm146 = vcmp.gt.f32.partialorder %v144, -1e+20
    %v147 = vsel %vm145, 1, 0
    %v148 = vsel %vm146, 1, 0
    %v149 = vcvt.s32.f32 %v147
    %v150 = vcvt.s32.f32 %v148
    %s151 = scalar_lea.vmem %s1, 16
    %v152 = vld [vmem:[%s151] sm:$0xff]
    %v153 = vld [vmem:[%s151 + $0x8] sm:$0xff]
    %v154 = vsel %vm138, %v152, -inf
    %155 = vmax.xlane.f32.xlu0 %v154
    %v156 = vpop.xlane.xlu0 %155
    %v157 = vsel %vm138, %v153, -inf
    %158 = vmax.xlane.f32.xlu0 %v157
    %v159 = vpop.xlane.xlu0 %158
    %vm160 = vcmp.gt.f32.partialorder %v156, -1e+20
    %vm161 = vcmp.gt.f32.partialorder %v159, -1e+20
    %v162 = vsel %vm160, 1, 0
    %v163 = vsel %vm161, 1, 0
    %v164 = vcvt.s32.f32 %v162
    %v165 = vcvt.s32.f32 %v163
    %s166 = scalar_lea.vmem %s1, 32
    %v167 = vld [vmem:[%s166] sm:$0xff]
    %v168 = vld [vmem:[%s166 + $0x8] sm:$0xff]
    %v169 = vsel %vm138, %v167, -inf
    %170 = vmax.xlane.f32.xlu0 %v169
    %v171 = vpop.xlane.xlu0 %170
    %v172 = vsel %vm138, %v168, -inf
    %173 = vmax.xlane.f32.xlu0 %v172
    %v174 = vpop.xlane.xlu0 %173
    %vm175 = vcmp.gt.f32.partialorder %v171, -1e+20
    %vm176 = vcmp.gt.f32.partialorder %v174, -1e+20
    %v177 = vsel %vm175, 1, 0
    %v178 = vsel %vm176, 1, 0
    %v179 = vcvt.s32.f32 %v177
    %v180 = vcvt.s32.f32 %v178
    %s181 = scalar_lea.vmem %s1, 48
    %v182 = vld [vmem:[%s181] sm:$0xff]
    %v183 = vld [vmem:[%s181 + $0x8] sm:$0xff]
    %v184 = vsel %vm138, %v182, -inf
    %185 = vmax.xlane.f32.xlu0 %v184
    %v186 = vpop.xlane.xlu0 %185
    %v187 = vsel %vm138, %v183, -inf
    %188 = vmax.xlane.f32.xlu0 %v187
    %v189 = vpop.xlane.xlu0 %188
    %vm190 = vcmp.gt.f32.partialorder %v186, -1e+20
    %vm191 = vcmp.gt.f32.partialorder %v189, -1e+20
    %v192 = vsel %vm190, 1, 0
    %v193 = vsel %vm191, 1, 0
    %v194 = vcvt.s32.f32 %v192
    %v195 = vcvt.s32.f32 %v193
    %s196 = scalar_lea.vmem %s1, 64
    %v197 = vld [vmem:[%s196] sm:$0xff]
    %v198 = vld [vmem:[%s196 + $0x8] sm:$0xff]
    %v199 = vsel %vm138, %v197, -inf
    %200 = vmax.xlane.f32.xlu0 %v199
    %v201 = vpop.xlane.xlu0 %200
    %v202 = vsel %vm138, %v198, -inf
    %203 = vmax.xlane.f32.xlu0 %v202
    %v204 = vpop.xlane.xlu0 %203
    %vm205 = vcmp.gt.f32.partialorder %v201, -1e+20
    %vm206 = vcmp.gt.f32.partialorder %v204, -1e+20
    %v207 = vsel %vm205, 1, 0
    %v208 = vsel %vm206, 1, 0
    %v209 = vcvt.s32.f32 %v207
    %v210 = vcvt.s32.f32 %v208
    %s211 = scalar_lea.vmem %s1, 80
    %v212 = vld [vmem:[%s211] sm:$0xff]
    %v213 = vld [vmem:[%s211 + $0x8] sm:$0xff]
    %v214 = vsel %vm138, %v212, -inf
    %215 = vmax.xlane.f32.xlu0 %v214
    %v216 = vpop.xlane.xlu0 %215
    %v217 = vsel %vm138, %v213, -inf
    %218 = vmax.xlane.f32.xlu0 %v217
    %v219 = vpop.xlane.xlu0 %218
    %vm220 = vcmp.gt.f32.partialorder %v216, -1e+20
    %vm221 = vcmp.gt.f32.partialorder %v219, -1e+20
    %v222 = vsel %vm220, 1, 0
    %v223 = vsel %vm221, 1, 0
    %v224 = vcvt.s32.f32 %v222
    %v225 = vcvt.s32.f32 %v223
    %v226 = vld [vmem:[%s4] sm:$0xff]
    %v227 = vld [vmem:[%s4 + $0x8] sm:$0xff]
    %v228 = vld [vmem:[%s4 + $0x10] sm:$0xff]
    %v229 = vld [vmem:[%s4 + $0x18] sm:$0xff]
    %v230 = vld [vmem:[%s4 + $0x20] sm:$0xff]
    %v231 = vld [vmem:[%s4 + $0x28] sm:$0xff]
    %v232 = vld [vmem:[%s4 + $0x30] sm:$0xff]
    %v233 = vld [vmem:[%s4 + $0x38] sm:$0xff]
    %v234 = vld [vmem:[%s4 + $0x40] sm:$0xff]
    %v235 = vld [vmem:[%s4 + $0x48] sm:$0xff]
    %v236 = vld [vmem:[%s4 + $0x50] sm:$0xff]
    %v237 = vld [vmem:[%s4 + $0x58] sm:$0xff]
    %v238 = vld [vmem:[%s4 + $0x60] sm:$0xff]
    %v239 = vld [vmem:[%s4 + $0x68] sm:$0xff]
    %v240 = vld [vmem:[%s4 + $0x70] sm:$0xff]
    %v241 = vld [vmem:[%s4 + $0x78] sm:$0xff]
    %v242 = vld [vmem:[%s4 + $0x80] sm:$0xff]
    %v243 = vld [vmem:[%s4 + $0x88] sm:$0xff]
    %v244 = vld [vmem:[%s4 + $0x90] sm:$0xff]
    %v245 = vld [vmem:[%s4 + $0x98] sm:$0xff]
    %v246 = vld [vmem:[%s4 + $0xa0] sm:$0xff]
    %v247 = vld [vmem:[%s4 + $0xa8] sm:$0xff]
    %v248 = vld [vmem:[%s4 + $0xb0] sm:$0xff]
    %v249 = vld [vmem:[%s4 + $0xb8] sm:$0xff]
    %v250 = vld [vmem:[%s4 + $0xc0] sm:$0xff]
    %v251 = vld [vmem:[%s4 + $0xc8] sm:$0xff]
    %v252 = vld [vmem:[%s4 + $0xd0] sm:$0xff]
    %v253 = vld [vmem:[%s4 + $0xd8] sm:$0xff]
    %v254 = vld [vmem:[%s4 + $0xe0] sm:$0xff]
    %v255 = vld [vmem:[%s4 + $0xe8] sm:$0xff]
    %v256 = vld [vmem:[%s4 + $0xf0] sm:$0xff]
    %v257 = vld [vmem:[%s4 + $0xf8] sm:$0xff]
    %v258 = vld [vmem:[%s4 + $0x100] sm:$0xff]
    %v259 = vld [vmem:[%s4 + $0x108] sm:$0xff]
    %v260 = vld [vmem:[%s4 + $0x110] sm:$0xff]
    %v261 = vld [vmem:[%s4 + $0x118] sm:$0xff]
    %v262 = vld [vmem:[%s4 + $0x120] sm:$0xff]
    %v263 = vld [vmem:[%s4 + $0x128] sm:$0xff]
    %v264 = vld [vmem:[%s4 + $0x130] sm:$0xff]
    %v265 = vld [vmem:[%s4 + $0x138] sm:$0xff]
    %v266 = vld [vmem:[%s4 + $0x140] sm:$0xff]
    %v267 = vld [vmem:[%s4 + $0x148] sm:$0xff]
    %v268 = vld [vmem:[%s4 + $0x150] sm:$0xff]
    %v269 = vld [vmem:[%s4 + $0x158] sm:$0xff]
    %v270 = vld [vmem:[%s4 + $0x160] sm:$0xff]
    %v271 = vld [vmem:[%s4 + $0x168] sm:$0xff]
    %v272 = vld [vmem:[%s4 + $0x170] sm:$0xff]
    %v273 = vld [vmem:[%s4 + $0x178] sm:$0xff]
    %v274 = vld [vmem:[%s4 + $0x180] sm:$0xff]
    %v275 = vld [vmem:[%s4 + $0x188] sm:$0xff]
    %v276 = vld [vmem:[%s4 + $0x190] sm:$0xff]
    %v277 = vld [vmem:[%s4 + $0x198] sm:$0xff]
    %v278 = vld [vmem:[%s4 + $0x1a0] sm:$0xff]
    %v279 = vld [vmem:[%s4 + $0x1a8] sm:$0xff]
    %v280 = vld [vmem:[%s4 + $0x1b0] sm:$0xff]
    %v281 = vld [vmem:[%s4 + $0x1b8] sm:$0xff]
    %v282 = vld [vmem:[%s4 + $0x1c0] sm:$0xff]
    %v283 = vld [vmem:[%s4 + $0x1c8] sm:$0xff]
    %v284 = vld [vmem:[%s4 + $0x1d0] sm:$0xff]
    %v285 = vld [vmem:[%s4 + $0x1d8] sm:$0xff]
    %v286 = vld [vmem:[%s4 + $0x1e0] sm:$0xff]
    %v287 = vld [vmem:[%s4 + $0x1e8] sm:$0xff]
    %v288 = vld [vmem:[%s4 + $0x1f0] sm:$0xff]
    %v289 = vld [vmem:[%s4 + $0x1f8] sm:$0xff]
    %v290 = vld [vmem:[%s5] sm:$0xf]
    %v292 = vlaneseq
    %v293 = vshrl.u32 %v292, 7
    %v294 = vsub.s32 0, %v293
    %v295 = vrot.slane %v290, %v294
    %v296 = vlaneseq
    %v297 = vshrl.u32 %v296, 7
    %v298 = vsub.s32 1, %v297
    %v299 = vrot.slane %v290, %v298
    %v300 = vlaneseq
    %v301 = vshrl.u32 %v300, 7
    %v302 = vsub.s32 2, %v301
    %v303 = vrot.slane %v290, %v302
    %v304 = vlaneseq
    %v305 = vshrl.u32 %v304, 7
    %v306 = vsub.s32 3, %v305
    %v307 = vrot.slane %v290, %v306
    %312 = vmatprep.subr.mxu0 %v227
    %313 = vmatpush1.msra.mxu0 %v226
    %314 = vmatprep.subr.mxu0 %v231
    %315 = vmatpush1.msra.mxu0 %v230
    %316 = vmatprep.subr.mxu0 %v235
    %317 = vmatpush1.msra.mxu0 %v234
    %318 = vmatprep.subr.mxu0 %v239
    %319 = vmatpush1.msra.mxu0 %v238
    %320 = vmatprep.subr.mxu0 %v243
    %321 = vmatpush1.msra.mxu0 %v242
    %322 = vmatprep.subr.mxu0 %v247
    %323 = vmatpush1.msra.mxu0 %v246
    %324 = vmatprep.subr.mxu0 %v251
    %325 = vmatpush1.msra.mxu0 %v250
    %326 = vmatprep.subr.mxu0 %v255
    %327 = vmatpush1.msra.mxu0 %v254
    %328 = vmatprep.subr.mxu0 %v259
    %329 = vmatpush1.msra.mxu0 %v258
    %330 = vmatprep.subr.mxu0 %v263
    %331 = vmatpush1.msra.mxu0 %v262
    %332 = vmatprep.subr.mxu0 %v267
    %333 = vmatpush1.msra.mxu0 %v266
    %334 = vmatprep.subr.mxu0 %v271
    %335 = vmatpush1.msra.mxu0 %v270
    %336 = vmatprep.subr.mxu0 %v275
    %337 = vmatpush1.msra.mxu0 %v274
    %338 = vmatprep.subr.mxu0 %v279
    %339 = vmatpush1.msra.mxu0 %v278
    %340 = vmatprep.subr.mxu0 %v283
    %341 = vmatpush1.msra.mxu0 %v282
    %342 = vmatprep.subr.mxu0 %v287
    %343 = vmatpush1.msra.mxu0 %v286
    %344 = vmatprep.subr.mxu0 0.0
    %345 = vmatpush1.msra.mxu0 0.0
    %346 = vmatprep.subr.mxu0 0.0
    %347 = vmatpush1.msra.mxu0 0.0
    %348 = vmatprep.subr.mxu0 0.0
    %349 = vmatpush1.msra.mxu0 0.0
    %350 = vmatprep.subr.mxu0 0.0
    %351 = vmatpush1.msra.mxu0 0.0
    %352 = vmatprep.subr.mxu0 0.0
    %353 = vmatpush1.msra.mxu0 0.0
    %354 = vmatprep.subr.mxu0 0.0
    %355 = vmatpush1.msra.mxu0 0.0
    %356 = vmatprep.subr.mxu0 0.0
    %357 = vmatpush1.msra.mxu0 0.0
    %358 = vmatprep.subr.mxu0 0.0
    %359 = vmatpush1.msra.mxu0 0.0
    %360 = vmatprep.subr.mxu0 0.0
    %361 = vmatpush1.msra.mxu0 0.0
    %362 = vmatprep.subr.mxu0 0.0
    %363 = vmatpush1.msra.mxu0 0.0
    %364 = vmatprep.subr.mxu0 0.0
    %365 = vmatpush1.msra.mxu0 0.0
    %366 = vmatprep.subr.mxu0 0.0
    %367 = vmatpush1.msra.mxu0 0.0
    %368 = vmatprep.subr.mxu0 0.0
    %369 = vmatpush1.msra.mxu0 0.0
    %370 = vmatprep.subr.mxu0 0.0
    %371 = vmatpush1.msra.mxu0 0.0
    %372 = vmatprep.subr.mxu0 0.0
    %373 = vmatpush1.msra.mxu0 0.0
    %374 = vmatprep.subr.mxu0 0.0
    %375 = vmatpush1.msra.mxu0 0.0
    %376 = vmatprep.mubr.f32.mxu0 0.0
    %377 = vmatmul.mubr.f32.gmra.mrb[0].mxu0 %v134
    %v378 = vpop.f32.mrb[0].mxu0
    %v379 = vadd.f32 %v295, %v378
    %v380 = vpop.f32.mrb[0].mxu0
    %v381 = vadd.f32 %v299, %v380
    %382 = vmatprep.mubr.f32.mxu0 0.0
    %383 = vmatmul.mubr.f32.gmra.mrb[0].mxu0 %v135
    %v384 = vpop.f32.mrb[0].mxu0
    %v385 = vadd.f32 %v295, %v384
    %v386 = vpop.f32.mrb[0].mxu0
    %v387 = vadd.f32 %v299, %v386
    %388 = vdwg.mxu0
    %389 = vmatprep.subr.mxu0 %v229
    %390 = vmatpush1.msra.mxu0 %v228
    %391 = vmatprep.subr.mxu0 %v233
    %392 = vmatpush1.msra.mxu0 %v232
    %393 = vmatprep.subr.mxu0 %v237
    %394 = vmatpush1.msra.mxu0 %v236
    %395 = vmatprep.subr.mxu0 %v241
    %396 = vmatpush1.msra.mxu0 %v240
    %397 = vmatprep.subr.mxu0 %v245
    %398 = vmatpush1.msra.mxu0 %v244
    %399 = vmatprep.subr.mxu0 %v249
    %400 = vmatpush1.msra.mxu0 %v248
    %401 = vmatprep.subr.mxu0 %v253
    %402 = vmatpush1.msra.mxu0 %v252
    %403 = vmatprep.subr.mxu0 %v257
    %404 = vmatpush1.msra.mxu0 %v256
    %405 = vmatprep.subr.mxu0 %v261
    %406 = vmatpush1.msra.mxu0 %v260
    %407 = vmatprep.subr.mxu0 %v265
    %408 = vmatpush1.msra.mxu0 %v264
    %409 = vmatprep.subr.mxu0 %v269
    %410 = vmatpush1.msra.mxu0 %v268
    %411 = vmatprep.subr.mxu0 %v273
    %412 = vmatpush1.msra.mxu0 %v272
    %413 = vmatprep.subr.mxu0 %v277
    %414 = vmatpush1.msra.mxu0 %v276
    %415 = vmatprep.subr.mxu0 %v281
    %416 = vmatpush1.msra.mxu0 %v280
    %417 = vmatprep.subr.mxu0 %v285
    %418 = vmatpush1.msra.mxu0 %v284
    %419 = vmatprep.subr.mxu0 %v289
    %420 = vmatpush1.msra.mxu0 %v288
    %421 = vmatprep.subr.mxu0 0.0
    %422 = vmatpush1.msra.mxu0 0.0
    %423 = vmatprep.subr.mxu0 0.0
    %424 = vmatpush1.msra.mxu0 0.0
    %425 = vmatprep.subr.mxu0 0.0
    %426 = vmatpush1.msra.mxu0 0.0
    %427 = vmatprep.subr.mxu0 0.0
    %428 = vmatpush1.msra.mxu0 0.0
    %429 = vmatprep.subr.mxu0 0.0
    %430 = vmatpush1.msra.mxu0 0.0
    %431 = vmatprep.subr.mxu0 0.0
    %432 = vmatpush1.msra.mxu0 0.0
    %433 = vmatprep.subr.mxu0 0.0
    %434 = vmatpush1.msra.mxu0 0.0
    %435 = vmatprep.subr.mxu0 0.0
    %436 = vmatpush1.msra.mxu0 0.0
    %437 = vmatprep.subr.mxu0 0.0
    %438 = vmatpush1.msra.mxu0 0.0
    %439 = vmatprep.subr.mxu0 0.0
    %440 = vmatpush1.msra.mxu0 0.0
    %441 = vmatprep.subr.mxu0 0.0
    %442 = vmatpush1.msra.mxu0 0.0
    %443 = vmatprep.subr.mxu0 0.0
    %444 = vmatpush1.msra.mxu0 0.0
    %445 = vmatprep.subr.mxu0 0.0
    %446 = vmatpush1.msra.mxu0 0.0
    %447 = vmatprep.subr.mxu0 0.0
    %448 = vmatpush1.msra.mxu0 0.0
    %449 = vmatprep.subr.mxu0 0.0
    %450 = vmatpush1.msra.mxu0 0.0
    %451 = vmatprep.subr.mxu0 0.0
    %452 = vmatpush1.msra.mxu0 0.0
    %453 = vmatprep.mubr.f32.mxu0 0.0
    %454 = vmatmul.mubr.f32.gmra.mrb[0].mxu0 %v134
    %v455 = vpop.f32.mrb[0].mxu0
    %v456 = vadd.f32 %v303, %v455
    %v457 = vpop.f32.mrb[0].mxu0
    %v458 = vadd.f32 %v307, %v457
    %459 = vmatprep.mubr.f32.mxu0 0.0
    %460 = vmatmul.mubr.f32.gmra.mrb[0].mxu0 %v135
    %v461 = vpop.f32.mrb[0].mxu0
    %v462 = vadd.f32 %v303, %v461
    %v463 = vpop.f32.mrb[0].mxu0
    %v464 = vadd.f32 %v307, %v463
    %465 = vdwg.mxu0
    %468 = vrot.lane.b32.xlu0 %v379, 96
    %v469 = vpop.permute.xlu0 %468
    %470 = vrot.lane.b32.xlu0 %v385, 96
    %v471 = vpop.permute.xlu0 %470
    %v472 = vsel %vm138, %v469, 0
    %v474 = vsel %vm138, %v471, 0
    %v477 = vsel %vm138, %v381, 0
    %v480 = vsel %vm138, %v387, 0
    %482 = vmatprep.subr.mxu0 0.0
    %483 = vmatpush1.xpose.msra.mxu0 %v477
    %484 = vmatprep.subr.mxu0 0.0
    %485 = vmatpush1.xpose.msra.mxu0 %v480
    %486 = vmatprep.subr.mxu0 0.0
    %487 = vmatpush1.xpose.msra.mxu0 0.0
    %488 = vmatprep.subr.mxu0 0.0
    %489 = vmatpush1.xpose.msra.mxu0 0.0
    %490 = vmatprep.subr.mxu0 0.0
    %491 = vmatpush1.xpose.msra.mxu0 0.0
    %492 = vmatprep.subr.mxu0 0.0
    %493 = vmatpush1.xpose.msra.mxu0 0.0
    %494 = vmatprep.subr.mxu0 0.0
    %495 = vmatpush1.xpose.msra.mxu0 0.0
    %496 = vmatprep.subr.mxu0 0.0
    %497 = vmatpush1.xpose.msra.mxu0 0.0
    %498 = vmatprep.subr.mxu0 0.0
    %499 = vmatpush1.xpose.msra.mxu0 0.0
    %500 = vmatprep.subr.mxu0 0.0
    %501 = vmatpush1.xpose.msra.mxu0 0.0
    %502 = vmatprep.subr.mxu0 0.0
    %503 = vmatpush1.xpose.msra.mxu0 0.0
    %504 = vmatprep.subr.mxu0 0.0
    %505 = vmatpush1.xpose.msra.mxu0 0.0
    %506 = vmatprep.subr.mxu0 0.0
    %507 = vmatpush1.xpose.msra.mxu0 0.0
    %508 = vmatprep.subr.mxu0 0.0
    %509 = vmatpush1.xpose.msra.mxu0 0.0
    %510 = vmatprep.subr.mxu0 0.0
    %511 = vmatpush1.xpose.msra.mxu0 0.0
    %512 = vmatprep.subr.mxu0 0.0
    %513 = vmatpush1.xpose.msra.mxu0 0.0
    %514 = vmatprep.subr.mxu0 0.0
    %515 = vmatpush1.xpose.msra.mxu0 0.0
    %516 = vmatprep.subr.mxu0 0.0
    %517 = vmatpush1.xpose.msra.mxu0 0.0
    %518 = vmatprep.subr.mxu0 0.0
    %519 = vmatpush1.xpose.msra.mxu0 0.0
    %520 = vmatprep.subr.mxu0 0.0
    %521 = vmatpush1.xpose.msra.mxu0 0.0
    %522 = vmatprep.subr.mxu0 0.0
    %523 = vmatpush1.xpose.msra.mxu0 0.0
    %524 = vmatprep.subr.mxu0 0.0
    %525 = vmatpush1.xpose.msra.mxu0 0.0
    %526 = vmatprep.subr.mxu0 0.0
    %527 = vmatpush1.xpose.msra.mxu0 0.0
    %528 = vmatprep.subr.mxu0 0.0
    %529 = vmatpush1.xpose.msra.mxu0 0.0
    %530 = vmatprep.subr.mxu0 0.0
    %531 = vmatpush1.xpose.msra.mxu0 0.0
    %532 = vmatprep.subr.mxu0 0.0
    %533 = vmatpush1.xpose.msra.mxu0 0.0
    %534 = vmatprep.subr.mxu0 0.0
    %535 = vmatpush1.xpose.msra.mxu0 0.0
    %536 = vmatprep.subr.mxu0 0.0
    %537 = vmatpush1.xpose.msra.mxu0 0.0
    %538 = vmatprep.subr.mxu0 0.0
    %539 = vmatpush1.xpose.msra.mxu0 0.0
    %540 = vmatprep.subr.mxu0 0.0
    %541 = vmatpush1.xpose.msra.mxu0 0.0
    %542 = vmatprep.subr.mxu0 0.0
    %543 = vmatpush1.xpose.msra.mxu0 0.0
    %544 = vmatprep.subr.mxu0 0.0
    %545 = vmatpush1.xpose.msra.mxu0 0.0
    %546 = vmatprep.mubr.f32.mxu0 0.0
    %547 = vmatmul.mubr.f32.gmra.mrb[0].mxu0 %v472
    %v548 = vpop.f32.mrb[0].mxu0
    %v549 = vadd.f32 %v136, %v548
    %v550 = vpop.f32.mrb[0].mxu0
    %551 = vmatprep.mubr.f32.mxu0 0.0
    %552 = vmatmul.mubr.f32.gmra.mrb[0].mxu0 %v474
    %v553 = vpop.f32.mrb[0].mxu0
    %v554 = vadd.f32 %v137, %v553
    %v555 = vpop.f32.mrb[0].mxu0
    %556 = vdwg.mxu0
    %v557 = vsel %vm138, %v549, -inf
    %558 = vmax.xlane.f32.xlu0 %v557
    %v559 = vpop.xlane.xlu0 %558
    %v560 = vsel %vm138, %v554, -inf
    %561 = vmax.xlane.f32.xlu0 %v560
    %v562 = vpop.xlane.xlu0 %561
    %v563 = vsub.f32 %v549, %v559
    %v564 = vsub.f32 %v554, %v562
    %v565 = vmul.f32 %v563, 1.442695
    %v566 = vpow.pop %v565
    %v567 = vmul.f32 %v564, 1.442695
    %v568 = vpow.pop %v567
    %v569 = vsel %vm138, %v566, 0.0
    %570 = vadd.xlane.f32.xlu0 %v569
    %v571 = vpop.xlane.xlu0 %570
    %v572 = vsel %vm138, %v568, 0.0
    %573 = vadd.xlane.f32.xlu0 %v572
    %v574 = vpop.xlane.xlu0 %573
    %v575 = vrcp.pop %v571
    %v576 = vrcp.pop %v574
    %v577 = vmul.f32 %v566, %v575
    %v578 = vmul.f32 %v568, %v576
    %581 = vrot.lane.b32.xlu0 %v456, 64
    %v582 = vpop.permute.xlu0 %581
    %583 = vrot.lane.b32.xlu0 %v462, 64
    %v584 = vpop.permute.xlu0 %583
    %v588 = vsel %vm138, %v577, 0
    %v591 = vsel %vm138, %v578, 0
    %593 = vmatprep.subr.mxu0 0.0
    %594 = vmatpush1.msra.mxu0 %v582
    %595 = vmatprep.subr.mxu0 0.0
    %596 = vmatpush1.msra.mxu0 %v584
    %597 = vmatprep.subr.mxu0 0.0
    %598 = vmatpush1.msra.mxu0 0.0
    %599 = vmatprep.subr.mxu0 0.0
    %600 = vmatpush1.msra.mxu0 0.0
    %601 = vmatprep.subr.mxu0 0.0
    %602 = vmatpush1.msra.mxu0 0.0
    %603 = vmatprep.subr.mxu0 0.0
    %604 = vmatpush1.msra.mxu0 0.0
    %605 = vmatprep.subr.mxu0 0.0
    %606 = vmatpush1.msra.mxu0 0.0
    %607 = vmatprep.subr.mxu0 0.0
    %608 = vmatpush1.msra.mxu0 0.0
    %609 = vmatprep.subr.mxu0 0.0
    %610 = vmatpush1.msra.mxu0 0.0
    %611 = vmatprep.subr.mxu0 0.0
    %612 = vmatpush1.msra.mxu0 0.0
    %613 = vmatprep.subr.mxu0 0.0
    %614 = vmatpush1.msra.mxu0 0.0
    %615 = vmatprep.subr.mxu0 0.0
    %616 = vmatpush1.msra.mxu0 0.0
    %617 = vmatprep.subr.mxu0 0.0
    %618 = vmatpush1.msra.mxu0 0.0
    %619 = vmatprep.subr.mxu0 0.0
    %620 = vmatpush1.msra.mxu0 0.0
    %621 = vmatprep.subr.mxu0 0.0
    %622 = vmatpush1.msra.mxu0 0.0
    %623 = vmatprep.subr.mxu0 0.0
    %624 = vmatpush1.msra.mxu0 0.0
    %625 = vmatprep.subr.mxu0 0.0
    %626 = vmatpush1.msra.mxu0 0.0
    %627 = vmatprep.subr.mxu0 0.0
    %628 = vmatpush1.msra.mxu0 0.0
    %629 = vmatprep.subr.mxu0 0.0
    %630 = vmatpush1.msra.mxu0 0.0
    %631 = vmatprep.subr.mxu0 0.0
    %632 = vmatpush1.msra.mxu0 0.0
    %633 = vmatprep.subr.mxu0 0.0
    %634 = vmatpush1.msra.mxu0 0.0
    %635 = vmatprep.subr.mxu0 0.0
    %636 = vmatpush1.msra.mxu0 0.0
    %637 = vmatprep.subr.mxu0 0.0
    %638 = vmatpush1.msra.mxu0 0.0
    %639 = vmatprep.subr.mxu0 0.0
    %640 = vmatpush1.msra.mxu0 0.0
    %641 = vmatprep.subr.mxu0 0.0
    %642 = vmatpush1.msra.mxu0 0.0
    %643 = vmatprep.subr.mxu0 0.0
    %644 = vmatpush1.msra.mxu0 0.0
    %645 = vmatprep.subr.mxu0 0.0
    %646 = vmatpush1.msra.mxu0 0.0
    %647 = vmatprep.subr.mxu0 0.0
    %648 = vmatpush1.msra.mxu0 0.0
    %649 = vmatprep.subr.mxu0 0.0
    %650 = vmatpush1.msra.mxu0 0.0
    %651 = vmatprep.subr.mxu0 0.0
    %652 = vmatpush1.msra.mxu0 0.0
    %653 = vmatprep.subr.mxu0 0.0
    %654 = vmatpush1.msra.mxu0 0.0
    %655 = vmatprep.subr.mxu0 0.0
    %656 = vmatpush1.msra.mxu0 0.0
    %657 = vmatprep.mubr.f32.mxu0 0.0
    %658 = vmatmul.mubr.f32.gmra.mrb[0].mxu0 %v588
    %v659 = vpop.f32.mrb[0].mxu0
    %v660 = vadd.f32 0.0, %v659
    %v661 = vpop.f32.mrb[0].mxu0
    %662 = vmatprep.mubr.f32.mxu0 0.0
    %663 = vmatmul.mubr.f32.gmra.mrb[0].mxu0 %v591
    %v664 = vpop.f32.mrb[0].mxu0
    %v665 = vadd.f32 0.0, %v664
    %v666 = vpop.f32.mrb[0].mxu0
    %667 = vdwg.mxu0
    %668 = vrot.lane.b32.xlu0 %v379, 80
    %v669 = vpop.permute.xlu0 %668
    %670 = vrot.lane.b32.xlu0 %v385, 80
    %v671 = vpop.permute.xlu0 %670
    %672 = vrot.lane.b32.xlu0 %v381, 112
    %v673 = vpop.permute.xlu0 %672
    %674 = vrot.lane.b32.xlu0 %v387, 112
    %v675 = vpop.permute.xlu0 %674
    %v676 = vsel %vm138, %v669, 0
    %v678 = vsel %vm138, %v671, 0
    %v680 = vsel %vm138, %v673, 0
    %v682 = vsel %vm138, %v675, 0
    %684 = vmatprep.subr.mxu0 0.0
    %685 = vmatpush1.xpose.msra.mxu0 %v680
    %686 = vmatprep.subr.mxu0 0.0
    %687 = vmatpush1.xpose.msra.mxu0 %v682
    %688 = vmatprep.subr.mxu0 0.0
    %689 = vmatpush1.xpose.msra.mxu0 0.0
    %690 = vmatprep.subr.mxu0 0.0
    %691 = vmatpush1.xpose.msra.mxu0 0.0
    %692 = vmatprep.subr.mxu0 0.0
    %693 = vmatpush1.xpose.msra.mxu0 0.0
    %694 = vmatprep.subr.mxu0 0.0
    %695 = vmatpush1.xpose.msra.mxu0 0.0
    %696 = vmatprep.subr.mxu0 0.0
    %697 = vmatpush1.xpose.msra.mxu0 0.0
    %698 = vmatprep.subr.mxu0 0.0
    %699 = vmatpush1.xpose.msra.mxu0 0.0
    %700 = vmatprep.subr.mxu0 0.0
    %701 = vmatpush1.xpose.msra.mxu0 0.0
    %702 = vmatprep.subr.mxu0 0.0
    %703 = vmatpush1.xpose.msra.mxu0 0.0
    %704 = vmatprep.subr.mxu0 0.0
    %705 = vmatpush1.xpose.msra.mxu0 0.0
    %706 = vmatprep.subr.mxu0 0.0
    %707 = vmatpush1.xpose.msra.mxu0 0.0
    %708 = vmatprep.subr.mxu0 0.0
    %709 = vmatpush1.xpose.msra.mxu0 0.0
    %710 = vmatprep.subr.mxu0 0.0
    %711 = vmatpush1.xpose.msra.mxu0 0.0
    %712 = vmatprep.subr.mxu0 0.0
    %713 = vmatpush1.xpose.msra.mxu0 0.0
    %714 = vmatprep.subr.mxu0 0.0
    %715 = vmatpush1.xpose.msra.mxu0 0.0
    %716 = vmatprep.subr.mxu0 0.0
    %717 = vmatpush1.xpose.msra.mxu0 0.0
    %718 = vmatprep.subr.mxu0 0.0
    %719 = vmatpush1.xpose.msra.mxu0 0.0
    %720 = vmatprep.subr.mxu0 0.0
    %721 = vmatpush1.xpose.msra.mxu0 0.0
    %722 = vmatprep.subr.mxu0 0.0
    %723 = vmatpush1.xpose.msra.mxu0 0.0
    %724 = vmatprep.subr.mxu0 0.0
    %725 = vmatpush1.xpose.msra.mxu0 0.0
    %726 = vmatprep.subr.mxu0 0.0
    %727 = vmatpush1.xpose.msra.mxu0 0.0
    %728 = vmatprep.subr.mxu0 0.0
    %729 = vmatpush1.xpose.msra.mxu0 0.0
    %730 = vmatprep.subr.mxu0 0.0
    %731 = vmatpush1.xpose.msra.mxu0 0.0
    %732 = vmatprep.subr.mxu0 0.0
    %733 = vmatpush1.xpose.msra.mxu0 0.0
    %734 = vmatprep.subr.mxu0 0.0
    %735 = vmatpush1.xpose.msra.mxu0 0.0
    %736 = vmatprep.subr.mxu0 0.0
    %737 = vmatpush1.xpose.msra.mxu0 0.0
    %738 = vmatprep.subr.mxu0 0.0
    %739 = vmatpush1.xpose.msra.mxu0 0.0
    %740 = vmatprep.subr.mxu0 0.0
    %741 = vmatpush1.xpose.msra.mxu0 0.0
    %742 = vmatprep.subr.mxu0 0.0
    %743 = vmatpush1.xpose.msra.mxu0 0.0
    %744 = vmatprep.subr.mxu0 0.0
    %745 = vmatpush1.xpose.msra.mxu0 0.0
    %746 = vmatprep.subr.mxu0 0.0
    %747 = vmatpush1.xpose.msra.mxu0 0.0
    %748 = vmatprep.mubr.f32.mxu0 0.0
    %749 = vmatmul.mubr.f32.gmra.mrb[0].mxu0 %v676
    %v750 = vpop.f32.mrb[0].mxu0
    %v751 = vadd.f32 %v136, %v750
    %v752 = vpop.f32.mrb[0].mxu0
    %753 = vmatprep.mubr.f32.mxu0 0.0
    %754 = vmatmul.mubr.f32.gmra.mrb[0].mxu0 %v678
    %v755 = vpop.f32.mrb[0].mxu0
    %v756 = vadd.f32 %v137, %v755
    %v757 = vpop.f32.mrb[0].mxu0
    %758 = vdwg.mxu0
    %v759 = vsel %vm138, %v751, -inf
    %760 = vmax.xlane.f32.xlu0 %v759
    %v761 = vpop.xlane.xlu0 %760
    %v762 = vsel %vm138, %v756, -inf
    %763 = vmax.xlane.f32.xlu0 %v762
    %v764 = vpop.xlane.xlu0 %763
    %v765 = vsub.f32 %v751, %v761
    %v766 = vsub.f32 %v756, %v764
    %v767 = vmul.f32 %v765, 1.442695
    %v768 = vpow.pop %v767
    %v769 = vmul.f32 %v766, 1.442695
    %v770 = vpow.pop %v769
    %v771 = vsel %vm138, %v768, 0.0
    %772 = vadd.xlane.f32.xlu0 %v771
    %v773 = vpop.xlane.xlu0 %772
    %v774 = vsel %vm138, %v770, 0.0
    %775 = vadd.xlane.f32.xlu0 %v774
    %v776 = vpop.xlane.xlu0 %775
    %v777 = vrcp.pop %v773
    %v778 = vrcp.pop %v776
    %v779 = vmul.f32 %v768, %v777
    %v780 = vmul.f32 %v770, %v778
    %781 = vrot.lane.b32.xlu0 %v456, 48
    %v782 = vpop.permute.xlu0 %781
    %783 = vrot.lane.b32.xlu0 %v462, 48
    %v784 = vpop.permute.xlu0 %783
    %v788 = vsel %vm138, %v779, 0
    %v791 = vsel %vm138, %v780, 0
    %793 = vmatprep.subr.mxu0 0.0
    %794 = vmatpush1.msra.mxu0 %v782
    %795 = vmatprep.subr.mxu0 0.0
    %796 = vmatpush1.msra.mxu0 %v784
    %797 = vmatprep.subr.mxu0 0.0
    %798 = vmatpush1.msra.mxu0 0.0
    %799 = vmatprep.subr.mxu0 0.0
    %800 = vmatpush1.msra.mxu0 0.0
    %801 = vmatprep.subr.mxu0 0.0
    %802 = vmatpush1.msra.mxu0 0.0
    %803 = vmatprep.subr.mxu0 0.0
    %804 = vmatpush1.msra.mxu0 0.0
    %805 = vmatprep.subr.mxu0 0.0
    %806 = vmatpush1.msra.mxu0 0.0
    %807 = vmatprep.subr.mxu0 0.0
    %808 = vmatpush1.msra.mxu0 0.0
    %809 = vmatprep.subr.mxu0 0.0
    %810 = vmatpush1.msra.mxu0 0.0
    %811 = vmatprep.subr.mxu0 0.0
    %812 = vmatpush1.msra.mxu0 0.0
    %813 = vmatprep.subr.mxu0 0.0
    %814 = vmatpush1.msra.mxu0 0.0
    %815 = vmatprep.subr.mxu0 0.0
    %816 = vmatpush1.msra.mxu0 0.0
    %817 = vmatprep.subr.mxu0 0.0
    %818 = vmatpush1.msra.mxu0 0.0
    %819 = vmatprep.subr.mxu0 0.0
    %820 = vmatpush1.msra.mxu0 0.0
    %821 = vmatprep.subr.mxu0 0.0
    %822 = vmatpush1.msra.mxu0 0.0
    %823 = vmatprep.subr.mxu0 0.0
    %824 = vmatpush1.msra.mxu0 0.0
    %825 = vmatprep.subr.mxu0 0.0
    %826 = vmatpush1.msra.mxu0 0.0
    %827 = vmatprep.subr.mxu0 0.0
    %828 = vmatpush1.msra.mxu0 0.0
    %829 = vmatprep.subr.mxu0 0.0
    %830 = vmatpush1.msra.mxu0 0.0
    %831 = vmatprep.subr.mxu0 0.0
    %832 = vmatpush1.msra.mxu0 0.0
    %833 = vmatprep.subr.mxu0 0.0
    %834 = vmatpush1.msra.mxu0 0.0
    %835 = vmatprep.subr.mxu0 0.0
    %836 = vmatpush1.msra.mxu0 0.0
    %837 = vmatprep.subr.mxu0 0.0
    %838 = vmatpush1.msra.mxu0 0.0
    %839 = vmatprep.subr.mxu0 0.0
    %840 = vmatpush1.msra.mxu0 0.0
    %841 = vmatprep.subr.mxu0 0.0
    %842 = vmatpush1.msra.mxu0 0.0
    %843 = vmatprep.subr.mxu0 0.0
    %844 = vmatpush1.msra.mxu0 0.0
    %845 = vmatprep.subr.mxu0 0.0
    %846 = vmatpush1.msra.mxu0 0.0
    %847 = vmatprep.subr.mxu0 0.0
    %848 = vmatpush1.msra.mxu0 0.0
    %849 = vmatprep.subr.mxu0 0.0
    %850 = vmatpush1.msra.mxu0 0.0
    %851 = vmatprep.subr.mxu0 0.0
    %852 = vmatpush1.msra.mxu0 0.0
    %853 = vmatprep.subr.mxu0 0.0
    %854 = vmatpush1.msra.mxu0 0.0
    %855 = vmatprep.subr.mxu0 0.0
    %856 = vmatpush1.msra.mxu0 0.0
    %857 = vmatprep.mubr.f32.mxu0 0.0
    %858 = vmatmul.mubr.f32.gmra.mrb[0].mxu0 %v788
    %v859 = vpop.f32.mrb[0].mxu0
    %v860 = vadd.f32 0.0, %v859
    %v861 = vpop.f32.mrb[0].mxu0
    %862 = vmatprep.mubr.f32.mxu0 0.0
    %863 = vmatmul.mubr.f32.gmra.mrb[0].mxu0 %v791
    %v864 = vpop.f32.mrb[0].mxu0
    %v865 = vadd.f32 0.0, %v864
    %v866 = vpop.f32.mrb[0].mxu0
    %867 = vdwg.mxu0
    %870 = vrot.lane.b32.xlu0 %v860, 16
    %v871 = vpop.permute.xlu0 %870
    %872 = vrot.lane.b32.xlu0 %v865, 16
    %v873 = vpop.permute.xlu0 %872
    %v876 = vsel %vm138, %v660, %v871
    %v877 = vsel %vm138, %v665, %v873
    %v878 = vmul.f32 %v876, %v149
    %v879 = vmul.f32 %v877, %v150
    %880 = vrot.lane.b32.xlu0 %v381, 96
    %v881 = vpop.permute.xlu0 %880
    %882 = vrot.lane.b32.xlu0 %v387, 96
    %v883 = vpop.permute.xlu0 %882
    %v884 = vsel %vm138, %v379, 0
    %v886 = vsel %vm138, %v385, 0
    %v888 = vsel %vm138, %v881, 0
    %v890 = vsel %vm138, %v883, 0
    %892 = vmatprep.subr.mxu0 0.0
    %893 = vmatpush1.xpose.msra.mxu0 %v888
    %894 = vmatprep.subr.mxu0 0.0
    %895 = vmatpush1.xpose.msra.mxu0 %v890
    %896 = vmatprep.subr.mxu0 0.0
    %897 = vmatpush1.xpose.msra.mxu0 0.0
    %898 = vmatprep.subr.mxu0 0.0
    %899 = vmatpush1.xpose.msra.mxu0 0.0
    %900 = vmatprep.subr.mxu0 0.0
    %901 = vmatpush1.xpose.msra.mxu0 0.0
    %902 = vmatprep.subr.mxu0 0.0
    %903 = vmatpush1.xpose.msra.mxu0 0.0
    %904 = vmatprep.subr.mxu0 0.0
    %905 = vmatpush1.xpose.msra.mxu0 0.0
    %906 = vmatprep.subr.mxu0 0.0
    %907 = vmatpush1.xpose.msra.mxu0 0.0
    %908 = vmatprep.subr.mxu0 0.0
    %909 = vmatpush1.xpose.msra.mxu0 0.0
    %910 = vmatprep.subr.mxu0 0.0
    %911 = vmatpush1.xpose.msra.mxu0 0.0
    %912 = vmatprep.subr.mxu0 0.0
    %913 = vmatpush1.xpose.msra.mxu0 0.0
    %914 = vmatprep.subr.mxu0 0.0
    %915 = vmatpush1.xpose.msra.mxu0 0.0
    %916 = vmatprep.subr.mxu0 0.0
    %917 = vmatpush1.xpose.msra.mxu0 0.0
    %918 = vmatprep.subr.mxu0 0.0
    %919 = vmatpush1.xpose.msra.mxu0 0.0
    %920 = vmatprep.subr.mxu0 0.0
    %921 = vmatpush1.xpose.msra.mxu0 0.0
    %922 = vmatprep.subr.mxu0 0.0
    %923 = vmatpush1.xpose.msra.mxu0 0.0
    %924 = vmatprep.subr.mxu0 0.0
    %925 = vmatpush1.xpose.msra.mxu0 0.0
    %926 = vmatprep.subr.mxu0 0.0
    %927 = vmatpush1.xpose.msra.mxu0 0.0
    %928 = vmatprep.subr.mxu0 0.0
    %929 = vmatpush1.xpose.msra.mxu0 0.0
    %930 = vmatprep.subr.mxu0 0.0
    %931 = vmatpush1.xpose.msra.mxu0 0.0
    %932 = vmatprep.subr.mxu0 0.0
    %933 = vmatpush1.xpose.msra.mxu0 0.0
    %934 = vmatprep.subr.mxu0 0.0
    %935 = vmatpush1.xpose.msra.mxu0 0.0
    %936 = vmatprep.subr.mxu0 0.0
    %937 = vmatpush1.xpose.msra.mxu0 0.0
    %938 = vmatprep.subr.mxu0 0.0
    %939 = vmatpush1.xpose.msra.mxu0 0.0
    %940 = vmatprep.subr.mxu0 0.0
    %941 = vmatpush1.xpose.msra.mxu0 0.0
    %942 = vmatprep.subr.mxu0 0.0
    %943 = vmatpush1.xpose.msra.mxu0 0.0
    %944 = vmatprep.subr.mxu0 0.0
    %945 = vmatpush1.xpose.msra.mxu0 0.0
    %946 = vmatprep.subr.mxu0 0.0
    %947 = vmatpush1.xpose.msra.mxu0 0.0
    %948 = vmatprep.subr.mxu0 0.0
    %949 = vmatpush1.xpose.msra.mxu0 0.0
    %950 = vmatprep.subr.mxu0 0.0
    %951 = vmatpush1.xpose.msra.mxu0 0.0
    %952 = vmatprep.subr.mxu0 0.0
    %953 = vmatpush1.xpose.msra.mxu0 0.0
    %954 = vmatprep.subr.mxu0 0.0
    %955 = vmatpush1.xpose.msra.mxu0 0.0
    %956 = vmatprep.mubr.f32.mxu0 0.0
    %957 = vmatmul.mubr.f32.gmra.mrb[0].mxu0 %v884
    %v958 = vpop.f32.mrb[0].mxu0
    %v959 = vadd.f32 %v152, %v958
    %v960 = vpop.f32.mrb[0].mxu0
    %961 = vmatprep.mubr.f32.mxu0 0.0
    %962 = vmatmul.mubr.f32.gmra.mrb[0].mxu0 %v886
    %v963 = vpop.f32.mrb[0].mxu0
    %v964 = vadd.f32 %v153, %v963
    %v965 = vpop.f32.mrb[0].mxu0
    %966 = vdwg.mxu0
    %v967 = vsel %vm138, %v959, -inf
    %968 = vmax.xlane.f32.xlu0 %v967
    %v969 = vpop.xlane.xlu0 %968
    %v970 = vsel %vm138, %v964, -inf
    %971 = vmax.xlane.f32.xlu0 %v970
    %v972 = vpop.xlane.xlu0 %971
    %v973 = vsub.f32 %v959, %v969
    %v974 = vsub.f32 %v964, %v972
    %v975 = vmul.f32 %v973, 1.442695
    %v976 = vpow.pop %v975
    %v977 = vmul.f32 %v974, 1.442695
    %v978 = vpow.pop %v977
    %v979 = vsel %vm138, %v976, 0.0
    %980 = vadd.xlane.f32.xlu0 %v979
    %v981 = vpop.xlane.xlu0 %980
    %v982 = vsel %vm138, %v978, 0.0
    %983 = vadd.xlane.f32.xlu0 %v982
    %v984 = vpop.xlane.xlu0 %983
    %v985 = vrcp.pop %v981
    %v986 = vrcp.pop %v984
    %v987 = vmul.f32 %v976, %v985
    %v988 = vmul.f32 %v978, %v986
    %989 = vrot.lane.b32.xlu0 %v456, 32
    %v990 = vpop.permute.xlu0 %989
    %991 = vrot.lane.b32.xlu0 %v462, 32
    %v992 = vpop.permute.xlu0 %991
    %v996 = vsel %vm138, %v987, 0
    %v999 = vsel %vm138, %v988, 0
    %1001 = vmatprep.subr.mxu0 0.0
    %1002 = vmatpush1.msra.mxu0 %v990
    %1003 = vmatprep.subr.mxu0 0.0
    %1004 = vmatpush1.msra.mxu0 %v992
    %1005 = vmatprep.subr.mxu0 0.0
    %1006 = vmatpush1.msra.mxu0 0.0
    %1007 = vmatprep.subr.mxu0 0.0
    %1008 = vmatpush1.msra.mxu0 0.0
    %1009 = vmatprep.subr.mxu0 0.0
    %1010 = vmatpush1.msra.mxu0 0.0
    %1011 = vmatprep.subr.mxu0 0.0
    %1012 = vmatpush1.msra.mxu0 0.0
    %1013 = vmatprep.subr.mxu0 0.0
    %1014 = vmatpush1.msra.mxu0 0.0
    %1015 = vmatprep.subr.mxu0 0.0
    %1016 = vmatpush1.msra.mxu0 0.0
    %1017 = vmatprep.subr.mxu0 0.0
    %1018 = vmatpush1.msra.mxu0 0.0
    %1019 = vmatprep.subr.mxu0 0.0
    %1020 = vmatpush1.msra.mxu0 0.0
    %1021 = vmatprep.subr.mxu0 0.0
    %1022 = vmatpush1.msra.mxu0 0.0
    %1023 = vmatprep.subr.mxu0 0.0
    %1024 = vmatpush1.msra.mxu0 0.0
    %1025 = vmatprep.subr.mxu0 0.0
    %1026 = vmatpush1.msra.mxu0 0.0
    %1027 = vmatprep.subr.mxu0 0.0
    %1028 = vmatpush1.msra.mxu0 0.0
    %1029 = vmatprep.subr.mxu0 0.0
    %1030 = vmatpush1.msra.mxu0 0.0
    %1031 = vmatprep.subr.mxu0 0.0
    %1032 = vmatpush1.msra.mxu0 0.0
    %1033 = vmatprep.subr.mxu0 0.0
    %1034 = vmatpush1.msra.mxu0 0.0
    %1035 = vmatprep.subr.mxu0 0.0
    %1036 = vmatpush1.msra.mxu0 0.0
    %1037 = vmatprep.subr.mxu0 0.0
    %1038 = vmatpush1.msra.mxu0 0.0
    %1039 = vmatprep.subr.mxu0 0.0
    %1040 = vmatpush1.msra.mxu0 0.0
    %1041 = vmatprep.subr.mxu0 0.0
    %1042 = vmatpush1.msra.mxu0 0.0
    %1043 = vmatprep.subr.mxu0 0.0
    %1044 = vmatpush1.msra.mxu0 0.0
    %1045 = vmatprep.subr.mxu0 0.0
    %1046 = vmatpush1.msra.mxu0 0.0
    %1047 = vmatprep.subr.mxu0 0.0
    %1048 = vmatpush1.msra.mxu0 0.0
    %1049 = vmatprep.subr.mxu0 0.0
    %1050 = vmatpush1.msra.mxu0 0.0
    %1051 = vmatprep.subr.mxu0 0.0
    %1052 = vmatpush1.msra.mxu0 0.0
    %1053 = vmatprep.subr.mxu0 0.0
    %1054 = vmatpush1.msra.mxu0 0.0
    %1055 = vmatprep.subr.mxu0 0.0
    %1056 = vmatpush1.msra.mxu0 0.0
    %1057 = vmatprep.subr.mxu0 0.0
    %1058 = vmatpush1.msra.mxu0 0.0
    %1059 = vmatprep.subr.mxu0 0.0
    %1060 = vmatpush1.msra.mxu0 0.0
    %1061 = vmatprep.subr.mxu0 0.0
    %1062 = vmatpush1.msra.mxu0 0.0
    %1063 = vmatprep.subr.mxu0 0.0
    %1064 = vmatpush1.msra.mxu0 0.0
    %1065 = vmatprep.mubr.f32.mxu0 0.0
    %1066 = vmatmul.mubr.f32.gmra.mrb[0].mxu0 %v996
    %v1067 = vpop.f32.mrb[0].mxu0
    %v1068 = vadd.f32 0.0, %v1067
    %v1069 = vpop.f32.mrb[0].mxu0
    %1070 = vmatprep.mubr.f32.mxu0 0.0
    %1071 = vmatmul.mubr.f32.gmra.mrb[0].mxu0 %v999
    %v1072 = vpop.f32.mrb[0].mxu0
    %v1073 = vadd.f32 0.0, %v1072
    %v1074 = vpop.f32.mrb[0].mxu0
    %1075 = vdwg.mxu0
    %1076 = vrot.lane.b32.xlu0 %v379, 112
    %v1077 = vpop.permute.xlu0 %1076
    %1078 = vrot.lane.b32.xlu0 %v385, 112
    %v1079 = vpop.permute.xlu0 %1078
    %1080 = vrot.lane.b32.xlu0 %v381, 80
    %v1081 = vpop.permute.xlu0 %1080
    %1082 = vrot.lane.b32.xlu0 %v387, 80
    %v1083 = vpop.permute.xlu0 %1082
    %v1084 = vsel %vm138, %v1077, 0
    %v1086 = vsel %vm138, %v1079, 0
    %v1088 = vsel %vm138, %v1081, 0
    %v1090 = vsel %vm138, %v1083, 0
    %1092 = vmatprep.subr.mxu0 0.0
    %1093 = vmatpush1.xpose.msra.mxu0 %v1088
    %1094 = vmatprep.subr.mxu0 0.0
    %1095 = vmatpush1.xpose.msra.mxu0 %v1090
    %1096 = vmatprep.subr.mxu0 0.0
    %1097 = vmatpush1.xpose.msra.mxu0 0.0
    %1098 = vmatprep.subr.mxu0 0.0
    %1099 = vmatpush1.xpose.msra.mxu0 0.0
    %1100 = vmatprep.subr.mxu0 0.0
    %1101 = vmatpush1.xpose.msra.mxu0 0.0
    %1102 = vmatprep.subr.mxu0 0.0
    %1103 = vmatpush1.xpose.msra.mxu0 0.0
    %1104 = vmatprep.subr.mxu0 0.0
    %1105 = vmatpush1.xpose.msra.mxu0 0.0
    %1106 = vmatprep.subr.mxu0 0.0
    %1107 = vmatpush1.xpose.msra.mxu0 0.0
    %1108 = vmatprep.subr.mxu0 0.0
    %1109 = vmatpush1.xpose.msra.mxu0 0.0
    %1110 = vmatprep.subr.mxu0 0.0
    %1111 = vmatpush1.xpose.msra.mxu0 0.0
    %1112 = vmatprep.subr.mxu0 0.0
    %1113 = vmatpush1.xpose.msra.mxu0 0.0
    %1114 = vmatprep.subr.mxu0 0.0
    %1115 = vmatpush1.xpose.msra.mxu0 0.0
    %1116 = vmatprep.subr.mxu0 0.0
    %1117 = vmatpush1.xpose.msra.mxu0 0.0
    %1118 = vmatprep.subr.mxu0 0.0
    %1119 = vmatpush1.xpose.msra.mxu0 0.0
    %1120 = vmatprep.subr.mxu0 0.0
    %1121 = vmatpush1.xpose.msra.mxu0 0.0
    %1122 = vmatprep.subr.mxu0 0.0
    %1123 = vmatpush1.xpose.msra.mxu0 0.0
    %1124 = vmatprep.subr.mxu0 0.0
    %1125 = vmatpush1.xpose.msra.mxu0 0.0
    %1126 = vmatprep.subr.mxu0 0.0
    %1127 = vmatpush1.xpose.msra.mxu0 0.0
    %1128 = vmatprep.subr.mxu0 0.0
    %1129 = vmatpush1.xpose.msra.mxu0 0.0
    %1130 = vmatprep.subr.mxu0 0.0
    %1131 = vmatpush1.xpose.msra.mxu0 0.0
    %1132 = vmatprep.subr.mxu0 0.0
    %1133 = vmatpush1.xpose.msra.mxu0 0.0
    %1134 = vmatprep.subr.mxu0 0.0
    %1135 = vmatpush1.xpose.msra.mxu0 0.0
    %1136 = vmatprep.subr.mxu0 0.0
    %1137 = vmatpush1.xpose.msra.mxu0 0.0
    %1138 = vmatprep.subr.mxu0 0.0
    %1139 = vmatpush1.xpose.msra.mxu0 0.0
    %1140 = vmatprep.subr.mxu0 0.0
    %1141 = vmatpush1.xpose.msra.mxu0 0.0
    %1142 = vmatprep.subr.mxu0 0.0
    %1143 = vmatpush1.xpose.msra.mxu0 0.0
    %1144 = vmatprep.subr.mxu0 0.0
    %1145 = vmatpush1.xpose.msra.mxu0 0.0
    %1146 = vmatprep.subr.mxu0 0.0
    %1147 = vmatpush1.xpose.msra.mxu0 0.0
    %1148 = vmatprep.subr.mxu0 0.0
    %1149 = vmatpush1.xpose.msra.mxu0 0.0
    %1150 = vmatprep.subr.mxu0 0.0
    %1151 = vmatpush1.xpose.msra.mxu0 0.0
    %1152 = vmatprep.subr.mxu0 0.0
    %1153 = vmatpush1.xpose.msra.mxu0 0.0
    %1154 = vmatprep.subr.mxu0 0.0
    %1155 = vmatpush1.xpose.msra.mxu0 0.0
    %1156 = vmatprep.mubr.f32.mxu0 0.0
    %1157 = vmatmul.mubr.f32.gmra.mrb[0].mxu0 %v1084
    %v1158 = vpop.f32.mrb[0].mxu0
    %v1159 = vadd.f32 %v152, %v1158
    %v1160 = vpop.f32.mrb[0].mxu0
    %1161 = vmatprep.mubr.f32.mxu0 0.0
    %1162 = vmatmul.mubr.f32.gmra.mrb[0].mxu0 %v1086
    %v1163 = vpop.f32.mrb[0].mxu0
    %v1164 = vadd.f32 %v153, %v1163
    %v1165 = vpop.f32.mrb[0].mxu0
    %1166 = vdwg.mxu0
    %v1167 = vsel %vm138, %v1159, -inf
    %1168 = vmax.xlane.f32.xlu0 %v1167
    %v1169 = vpop.xlane.xlu0 %1168
    %v1170 = vsel %vm138, %v1164, -inf
    %1171 = vmax.xlane.f32.xlu0 %v1170
    %v1172 = vpop.xlane.xlu0 %1171
    %v1173 = vsub.f32 %v1159, %v1169
    %v1174 = vsub.f32 %v1164, %v1172
    %v1175 = vmul.f32 %v1173, 1.442695
    %v1176 = vpow.pop %v1175
    %v1177 = vmul.f32 %v1174, 1.442695
    %v1178 = vpow.pop %v1177
    %v1179 = vsel %vm138, %v1176, 0.0
    %1180 = vadd.xlane.f32.xlu0 %v1179
    %v1181 = vpop.xlane.xlu0 %1180
    %v1182 = vsel %vm138, %v1178, 0.0
    %1183 = vadd.xlane.f32.xlu0 %v1182
    %v1184 = vpop.xlane.xlu0 %1183
    %v1185 = vrcp.pop %v1181
    %v1186 = vrcp.pop %v1184
    %v1187 = vmul.f32 %v1176, %v1185
    %v1188 = vmul.f32 %v1178, %v1186
    %1189 = vrot.lane.b32.xlu0 %v456, 16
    %v1190 = vpop.permute.xlu0 %1189
    %1191 = vrot.lane.b32.xlu0 %v462, 16
    %v1192 = vpop.permute.xlu0 %1191
    %v1196 = vsel %vm138, %v1187, 0
    %v1199 = vsel %vm138, %v1188, 0
    %1201 = vmatprep.subr.mxu0 0.0
    %1202 = vmatpush1.msra.mxu0 %v1190
    %1203 = vmatprep.subr.mxu0 0.0
    %1204 = vmatpush1.msra.mxu0 %v1192
    %1205 = vmatprep.subr.mxu0 0.0
    %1206 = vmatpush1.msra.mxu0 0.0
    %1207 = vmatprep.subr.mxu0 0.0
    %1208 = vmatpush1.msra.mxu0 0.0
    %1209 = vmatprep.subr.mxu0 0.0
    %1210 = vmatpush1.msra.mxu0 0.0
    %1211 = vmatprep.subr.mxu0 0.0
    %1212 = vmatpush1.msra.mxu0 0.0
    %1213 = vmatprep.subr.mxu0 0.0
    %1214 = vmatpush1.msra.mxu0 0.0
    %1215 = vmatprep.subr.mxu0 0.0
    %1216 = vmatpush1.msra.mxu0 0.0
    %1217 = vmatprep.subr.mxu0 0.0
    %1218 = vmatpush1.msra.mxu0 0.0
    %1219 = vmatprep.subr.mxu0 0.0
    %1220 = vmatpush1.msra.mxu0 0.0
    %1221 = vmatprep.subr.mxu0 0.0
    %1222 = vmatpush1.msra.mxu0 0.0
    %1223 = vmatprep.subr.mxu0 0.0
    %1224 = vmatpush1.msra.mxu0 0.0
    %1225 = vmatprep.subr.mxu0 0.0
    %1226 = vmatpush1.msra.mxu0 0.0
    %1227 = vmatprep.subr.mxu0 0.0
    %1228 = vmatpush1.msra.mxu0 0.0
    %1229 = vmatprep.subr.mxu0 0.0
    %1230 = vmatpush1.msra.mxu0 0.0
    %1231 = vmatprep.subr.mxu0 0.0
    %1232 = vmatpush1.msra.mxu0 0.0
    %1233 = vmatprep.subr.mxu0 0.0
    %1234 = vmatpush1.msra.mxu0 0.0
    %1235 = vmatprep.subr.mxu0 0.0
    %1236 = vmatpush1.msra.mxu0 0.0
    %1237 = vmatprep.subr.mxu0 0.0
    %1238 = vmatpush1.msra.mxu0 0.0
    %1239 = vmatprep.subr.mxu0 0.0
    %1240 = vmatpush1.msra.mxu0 0.0
    %1241 = vmatprep.subr.mxu0 0.0
    %1242 = vmatpush1.msra.mxu0 0.0
    %1243 = vmatprep.subr.mxu0 0.0
    %1244 = vmatpush1.msra.mxu0 0.0
    %1245 = vmatprep.subr.mxu0 0.0
    %1246 = vmatpush1.msra.mxu0 0.0
    %1247 = vmatprep.subr.mxu0 0.0
    %1248 = vmatpush1.msra.mxu0 0.0
    %1249 = vmatprep.subr.mxu0 0.0
    %1250 = vmatpush1.msra.mxu0 0.0
    %1251 = vmatprep.subr.mxu0 0.0
    %1252 = vmatpush1.msra.mxu0 0.0
    %1253 = vmatprep.subr.mxu0 0.0
    %1254 = vmatpush1.msra.mxu0 0.0
    %1255 = vmatprep.subr.mxu0 0.0
    %1256 = vmatpush1.msra.mxu0 0.0
    %1257 = vmatprep.subr.mxu0 0.0
    %1258 = vmatpush1.msra.mxu0 0.0
    %1259 = vmatprep.subr.mxu0 0.0
    %1260 = vmatpush1.msra.mxu0 0.0
    %1261 = vmatprep.subr.mxu0 0.0
    %1262 = vmatpush1.msra.mxu0 0.0
    %1263 = vmatprep.subr.mxu0 0.0
    %1264 = vmatpush1.msra.mxu0 0.0
    %1265 = vmatprep.mubr.f32.mxu0 0.0
    %1266 = vmatmul.mubr.f32.gmra.mrb[0].mxu0 %v1196
    %v1267 = vpop.f32.mrb[0].mxu0
    %v1268 = vadd.f32 0.0, %v1267
    %v1269 = vpop.f32.mrb[0].mxu0
    %1270 = vmatprep.mubr.f32.mxu0 0.0
    %1271 = vmatmul.mubr.f32.gmra.mrb[0].mxu0 %v1199
    %v1272 = vpop.f32.mrb[0].mxu0
    %v1273 = vadd.f32 0.0, %v1272
    %v1274 = vpop.f32.mrb[0].mxu0
    %1275 = vdwg.mxu0
    %1278 = vrot.lane.b32.xlu0 %v1268, 16
    %v1279 = vpop.permute.xlu0 %1278
    %1280 = vrot.lane.b32.xlu0 %v1273, 16
    %v1281 = vpop.permute.xlu0 %1280
    %v1284 = vsel %vm138, %v1068, %v1279
    %v1285 = vsel %vm138, %v1073, %v1281
    %v1286 = vmul.f32 %v1284, %v164
    %v1287 = vmul.f32 %v1285, %v165
    %1288 = vrot.lane.b32.xlu0 %v379, 64
    %v1289 = vpop.permute.xlu0 %1288
    %1290 = vrot.lane.b32.xlu0 %v385, 64
    %v1291 = vpop.permute.xlu0 %1290
    %1292 = vrot.lane.b32.xlu0 %v381, 64
    %v1293 = vpop.permute.xlu0 %1292
    %1294 = vrot.lane.b32.xlu0 %v387, 64
    %v1295 = vpop.permute.xlu0 %1294
    %v1296 = vsel %vm138, %v1289, 0
    %v1298 = vsel %vm138, %v1291, 0
    %v1300 = vsel %vm138, %v1293, 0
    %v1302 = vsel %vm138, %v1295, 0
    %1304 = vmatprep.subr.mxu0 0.0
    %1305 = vmatpush1.xpose.msra.mxu0 %v1300
    %1306 = vmatprep.subr.mxu0 0.0
    %1307 = vmatpush1.xpose.msra.mxu0 %v1302
    %1308 = vmatprep.subr.mxu0 0.0
    %1309 = vmatpush1.xpose.msra.mxu0 0.0
    %1310 = vmatprep.subr.mxu0 0.0
    %1311 = vmatpush1.xpose.msra.mxu0 0.0
    %1312 = vmatprep.subr.mxu0 0.0
    %1313 = vmatpush1.xpose.msra.mxu0 0.0
    %1314 = vmatprep.subr.mxu0 0.0
    %1315 = vmatpush1.xpose.msra.mxu0 0.0
    %1316 = vmatprep.subr.mxu0 0.0
    %1317 = vmatpush1.xpose.msra.mxu0 0.0
    %1318 = vmatprep.subr.mxu0 0.0
    %1319 = vmatpush1.xpose.msra.mxu0 0.0
    %1320 = vmatprep.subr.mxu0 0.0
    %1321 = vmatpush1.xpose.msra.mxu0 0.0
    %1322 = vmatprep.subr.mxu0 0.0
    %1323 = vmatpush1.xpose.msra.mxu0 0.0
    %1324 = vmatprep.subr.mxu0 0.0
    %1325 = vmatpush1.xpose.msra.mxu0 0.0
    %1326 = vmatprep.subr.mxu0 0.0
    %1327 = vmatpush1.xpose.msra.mxu0 0.0
    %1328 = vmatprep.subr.mxu0 0.0
    %1329 = vmatpush1.xpose.msra.mxu0 0.0
    %1330 = vmatprep.subr.mxu0 0.0
    %1331 = vmatpush1.xpose.msra.mxu0 0.0
    %1332 = vmatprep.subr.mxu0 0.0
    %1333 = vmatpush1.xpose.msra.mxu0 0.0
    %1334 = vmatprep.subr.mxu0 0.0
    %1335 = vmatpush1.xpose.msra.mxu0 0.0
    %1336 = vmatprep.subr.mxu0 0.0
    %1337 = vmatpush1.xpose.msra.mxu0 0.0
    %1338 = vmatprep.subr.mxu0 0.0
    %1339 = vmatpush1.xpose.msra.mxu0 0.0
    %1340 = vmatprep.subr.mxu0 0.0
    %1341 = vmatpush1.xpose.msra.mxu0 0.0
    %1342 = vmatprep.subr.mxu0 0.0
    %1343 = vmatpush1.xpose.msra.mxu0 0.0
    %1344 = vmatprep.subr.mxu0 0.0
    %1345 = vmatpush1.xpose.msra.mxu0 0.0
    %1346 = vmatprep.subr.mxu0 0.0
    %1347 = vmatpush1.xpose.msra.mxu0 0.0
    %1348 = vmatprep.subr.mxu0 0.0
    %1349 = vmatpush1.xpose.msra.mxu0 0.0
    %1350 = vmatprep.subr.mxu0 0.0
    %1351 = vmatpush1.xpose.msra.mxu0 0.0
    %1352 = vmatprep.subr.mxu0 0.0
    %1353 = vmatpush1.xpose.msra.mxu0 0.0
    %1354 = vmatprep.subr.mxu0 0.0
    %1355 = vmatpush1.xpose.msra.mxu0 0.0
    %1356 = vmatprep.subr.mxu0 0.0
    %1357 = vmatpush1.xpose.msra.mxu0 0.0
    %1358 = vmatprep.subr.mxu0 0.0
    %1359 = vmatpush1.xpose.msra.mxu0 0.0
    %1360 = vmatprep.subr.mxu0 0.0
    %1361 = vmatpush1.xpose.msra.mxu0 0.0
    %1362 = vmatprep.subr.mxu0 0.0
    %1363 = vmatpush1.xpose.msra.mxu0 0.0
    %1364 = vmatprep.subr.mxu0 0.0
    %1365 = vmatpush1.xpose.msra.mxu0 0.0
    %1366 = vmatprep.subr.mxu0 0.0
    %1367 = vmatpush1.xpose.msra.mxu0 0.0
    %1368 = vmatprep.mubr.f32.mxu0 0.0
    %1369 = vmatmul.mubr.f32.gmra.mrb[0].mxu0 %v1296
    %v1370 = vpop.f32.mrb[0].mxu0
    %v1371 = vadd.f32 %v167, %v1370
    %v1372 = vpop.f32.mrb[0].mxu0
    %1373 = vmatprep.mubr.f32.mxu0 0.0
    %1374 = vmatmul.mubr.f32.gmra.mrb[0].mxu0 %v1298
    %v1375 = vpop.f32.mrb[0].mxu0
    %v1376 = vadd.f32 %v168, %v1375
    %v1377 = vpop.f32.mrb[0].mxu0
    %1378 = vdwg.mxu0
    %v1379 = vsel %vm138, %v1371, -inf
    %1380 = vmax.xlane.f32.xlu0 %v1379
    %v1381 = vpop.xlane.xlu0 %1380
    %v1382 = vsel %vm138, %v1376, -inf
    %1383 = vmax.xlane.f32.xlu0 %v1382
    %v1384 = vpop.xlane.xlu0 %1383
    %v1385 = vsub.f32 %v1371, %v1381
    %v1386 = vsub.f32 %v1376, %v1384
    %v1387 = vmul.f32 %v1385, 1.442695
    %v1388 = vpow.pop %v1387
    %v1389 = vmul.f32 %v1386, 1.442695
    %v1390 = vpow.pop %v1389
    %v1391 = vsel %vm138, %v1388, 0.0
    %1392 = vadd.xlane.f32.xlu0 %v1391
    %v1393 = vpop.xlane.xlu0 %1392
    %v1394 = vsel %vm138, %v1390, 0.0
    %1395 = vadd.xlane.f32.xlu0 %v1394
    %v1396 = vpop.xlane.xlu0 %1395
    %v1397 = vrcp.pop %v1393
    %v1398 = vrcp.pop %v1396
    %v1399 = vmul.f32 %v1388, %v1397
    %v1400 = vmul.f32 %v1390, %v1398
    %v1402 = vsel %vm138, %v1399, 0
    %v1405 = vsel %vm138, %v1400, 0
    %1407 = vmatprep.subr.mxu0 0.0
    %1408 = vmatpush1.msra.mxu0 %v458
    %1409 = vmatprep.subr.mxu0 0.0
    %1410 = vmatpush1.msra.mxu0 %v464
    %1411 = vmatprep.subr.mxu0 0.0
    %1412 = vmatpush1.msra.mxu0 0.0
    %1413 = vmatprep.subr.mxu0 0.0
    %1414 = vmatpush1.msra.mxu0 0.0
    %1415 = vmatprep.subr.mxu0 0.0
    %1416 = vmatpush1.msra.mxu0 0.0
    %1417 = vmatprep.subr.mxu0 0.0
    %1418 = vmatpush1.msra.mxu0 0.0
    %1419 = vmatprep.subr.mxu0 0.0
    %1420 = vmatpush1.msra.mxu0 0.0
    %1421 = vmatprep.subr.mxu0 0.0
    %1422 = vmatpush1.msra.mxu0 0.0
    %1423 = vmatprep.subr.mxu0 0.0
    %1424 = vmatpush1.msra.mxu0 0.0
    %1425 = vmatprep.subr.mxu0 0.0
    %1426 = vmatpush1.msra.mxu0 0.0
    %1427 = vmatprep.subr.mxu0 0.0
    %1428 = vmatpush1.msra.mxu0 0.0
    %1429 = vmatprep.subr.mxu0 0.0
    %1430 = vmatpush1.msra.mxu0 0.0
    %1431 = vmatprep.subr.mxu0 0.0
    %1432 = vmatpush1.msra.mxu0 0.0
    %1433 = vmatprep.subr.mxu0 0.0
    %1434 = vmatpush1.msra.mxu0 0.0
    %1435 = vmatprep.subr.mxu0 0.0
    %1436 = vmatpush1.msra.mxu0 0.0
    %1437 = vmatprep.subr.mxu0 0.0
    %1438 = vmatpush1.msra.mxu0 0.0
    %1439 = vmatprep.subr.mxu0 0.0
    %1440 = vmatpush1.msra.mxu0 0.0
    %1441 = vmatprep.subr.mxu0 0.0
    %1442 = vmatpush1.msra.mxu0 0.0
    %1443 = vmatprep.subr.mxu0 0.0
    %1444 = vmatpush1.msra.mxu0 0.0
    %1445 = vmatprep.subr.mxu0 0.0
    %1446 = vmatpush1.msra.mxu0 0.0
    %1447 = vmatprep.subr.mxu0 0.0
    %1448 = vmatpush1.msra.mxu0 0.0
    %1449 = vmatprep.subr.mxu0 0.0
    %1450 = vmatpush1.msra.mxu0 0.0
    %1451 = vmatprep.subr.mxu0 0.0
    %1452 = vmatpush1.msra.mxu0 0.0
    %1453 = vmatprep.subr.mxu0 0.0
    %1454 = vmatpush1.msra.mxu0 0.0
    %1455 = vmatprep.subr.mxu0 0.0
    %1456 = vmatpush1.msra.mxu0 0.0
    %1457 = vmatprep.subr.mxu0 0.0
    %1458 = vmatpush1.msra.mxu0 0.0
    %1459 = vmatprep.subr.mxu0 0.0
    %1460 = vmatpush1.msra.mxu0 0.0
    %1461 = vmatprep.subr.mxu0 0.0
    %1462 = vmatpush1.msra.mxu0 0.0
    %1463 = vmatprep.subr.mxu0 0.0
    %1464 = vmatpush1.msra.mxu0 0.0
    %1465 = vmatprep.subr.mxu0 0.0
    %1466 = vmatpush1.msra.mxu0 0.0
    %1467 = vmatprep.subr.mxu0 0.0
    %1468 = vmatpush1.msra.mxu0 0.0
    %1469 = vmatprep.subr.mxu0 0.0
    %1470 = vmatpush1.msra.mxu0 0.0
    %1471 = vmatprep.mubr.f32.mxu0 0.0
    %1472 = vmatmul.mubr.f32.gmra.mrb[0].mxu0 %v1402
    %v1473 = vpop.f32.mrb[0].mxu0
    %v1474 = vadd.f32 0.0, %v1473
    %v1475 = vpop.f32.mrb[0].mxu0
    %1476 = vmatprep.mubr.f32.mxu0 0.0
    %1477 = vmatmul.mubr.f32.gmra.mrb[0].mxu0 %v1405
    %v1478 = vpop.f32.mrb[0].mxu0
    %v1479 = vadd.f32 0.0, %v1478
    %v1480 = vpop.f32.mrb[0].mxu0
    %1481 = vdwg.mxu0
    %1482 = vrot.lane.b32.xlu0 %v379, 48
    %v1483 = vpop.permute.xlu0 %1482
    %1484 = vrot.lane.b32.xlu0 %v385, 48
    %v1485 = vpop.permute.xlu0 %1484
    %1486 = vrot.lane.b32.xlu0 %v381, 48
    %v1487 = vpop.permute.xlu0 %1486
    %1488 = vrot.lane.b32.xlu0 %v387, 48
    %v1489 = vpop.permute.xlu0 %1488
    %v1490 = vsel %vm138, %v1483, 0
    %v1492 = vsel %vm138, %v1485, 0
    %v1494 = vsel %vm138, %v1487, 0
    %v1496 = vsel %vm138, %v1489, 0
    %1498 = vmatprep.subr.mxu0 0.0
    %1499 = vmatpush1.xpose.msra.mxu0 %v1494
    %1500 = vmatprep.subr.mxu0 0.0
    %1501 = vmatpush1.xpose.msra.mxu0 %v1496
    %1502 = vmatprep.subr.mxu0 0.0
    %1503 = vmatpush1.xpose.msra.mxu0 0.0
    %1504 = vmatprep.subr.mxu0 0.0
    %1505 = vmatpush1.xpose.msra.mxu0 0.0
    %1506 = vmatprep.subr.mxu0 0.0
    %1507 = vmatpush1.xpose.msra.mxu0 0.0
    %1508 = vmatprep.subr.mxu0 0.0
    %1509 = vmatpush1.xpose.msra.mxu0 0.0
    %1510 = vmatprep.subr.mxu0 0.0
    %1511 = vmatpush1.xpose.msra.mxu0 0.0
    %1512 = vmatprep.subr.mxu0 0.0
    %1513 = vmatpush1.xpose.msra.mxu0 0.0
    %1514 = vmatprep.subr.mxu0 0.0
    %1515 = vmatpush1.xpose.msra.mxu0 0.0
    %1516 = vmatprep.subr.mxu0 0.0
    %1517 = vmatpush1.xpose.msra.mxu0 0.0
    %1518 = vmatprep.subr.mxu0 0.0
    %1519 = vmatpush1.xpose.msra.mxu0 0.0
    %1520 = vmatprep.subr.mxu0 0.0
    %1521 = vmatpush1.xpose.msra.mxu0 0.0
    %1522 = vmatprep.subr.mxu0 0.0
    %1523 = vmatpush1.xpose.msra.mxu0 0.0
    %1524 = vmatprep.subr.mxu0 0.0
    %1525 = vmatpush1.xpose.msra.mxu0 0.0
    %1526 = vmatprep.subr.mxu0 0.0
    %1527 = vmatpush1.xpose.msra.mxu0 0.0
    %1528 = vmatprep.subr.mxu0 0.0
    %1529 = vmatpush1.xpose.msra.mxu0 0.0
    %1530 = vmatprep.subr.mxu0 0.0
    %1531 = vmatpush1.xpose.msra.mxu0 0.0
    %1532 = vmatprep.subr.mxu0 0.0
    %1533 = vmatpush1.xpose.msra.mxu0 0.0
    %1534 = vmatprep.subr.mxu0 0.0
    %1535 = vmatpush1.xpose.msra.mxu0 0.0
    %1536 = vmatprep.subr.mxu0 0.0
    %1537 = vmatpush1.xpose.msra.mxu0 0.0
    %1538 = vmatprep.subr.mxu0 0.0
    %1539 = vmatpush1.xpose.msra.mxu0 0.0
    %1540 = vmatprep.subr.mxu0 0.0
    %1541 = vmatpush1.xpose.msra.mxu0 0.0
    %1542 = vmatprep.subr.mxu0 0.0
    %1543 = vmatpush1.xpose.msra.mxu0 0.0
    %1544 = vmatprep.subr.mxu0 0.0
    %1545 = vmatpush1.xpose.msra.mxu0 0.0
    %1546 = vmatprep.subr.mxu0 0.0
    %1547 = vmatpush1.xpose.msra.mxu0 0.0
    %1548 = vmatprep.subr.mxu0 0.0
    %1549 = vmatpush1.xpose.msra.mxu0 0.0
    %1550 = vmatprep.subr.mxu0 0.0
    %1551 = vmatpush1.xpose.msra.mxu0 0.0
    %1552 = vmatprep.subr.mxu0 0.0
    %1553 = vmatpush1.xpose.msra.mxu0 0.0
    %1554 = vmatprep.subr.mxu0 0.0
    %1555 = vmatpush1.xpose.msra.mxu0 0.0
    %1556 = vmatprep.subr.mxu0 0.0
    %1557 = vmatpush1.xpose.msra.mxu0 0.0
    %1558 = vmatprep.subr.mxu0 0.0
    %1559 = vmatpush1.xpose.msra.mxu0 0.0
    %1560 = vmatprep.subr.mxu0 0.0
    %1561 = vmatpush1.xpose.msra.mxu0 0.0
    %1562 = vmatprep.mubr.f32.mxu0 0.0
    %1563 = vmatmul.mubr.f32.gmra.mrb[0].mxu0 %v1490
    %v1564 = vpop.f32.mrb[0].mxu0
    %v1565 = vadd.f32 %v167, %v1564
    %v1566 = vpop.f32.mrb[0].mxu0
    %1567 = vmatprep.mubr.f32.mxu0 0.0
    %1568 = vmatmul.mubr.f32.gmra.mrb[0].mxu0 %v1492
    %v1569 = vpop.f32.mrb[0].mxu0
    %v1570 = vadd.f32 %v168, %v1569
    %v1571 = vpop.f32.mrb[0].mxu0
    %1572 = vdwg.mxu0
    %v1573 = vsel %vm138, %v1565, -inf
    %1574 = vmax.xlane.f32.xlu0 %v1573
    %v1575 = vpop.xlane.xlu0 %1574
    %v1576 = vsel %vm138, %v1570, -inf
    %1577 = vmax.xlane.f32.xlu0 %v1576
    %v1578 = vpop.xlane.xlu0 %1577
    %v1579 = vsub.f32 %v1565, %v1575
    %v1580 = vsub.f32 %v1570, %v1578
    %v1581 = vmul.f32 %v1579, 1.442695
    %v1582 = vpow.pop %v1581
    %v1583 = vmul.f32 %v1580, 1.442695
    %v1584 = vpow.pop %v1583
    %v1585 = vsel %vm138, %v1582, 0.0
    %1586 = vadd.xlane.f32.xlu0 %v1585
    %v1587 = vpop.xlane.xlu0 %1586
    %v1588 = vsel %vm138, %v1584, 0.0
    %1589 = vadd.xlane.f32.xlu0 %v1588
    %v1590 = vpop.xlane.xlu0 %1589
    %v1591 = vrcp.pop %v1587
    %v1592 = vrcp.pop %v1590
    %v1593 = vmul.f32 %v1582, %v1591
    %v1594 = vmul.f32 %v1584, %v1592
    %1597 = vrot.lane.b32.xlu0 %v458, 112
    %v1598 = vpop.permute.xlu0 %1597
    %1599 = vrot.lane.b32.xlu0 %v464, 112
    %v1600 = vpop.permute.xlu0 %1599
    %v1604 = vsel %vm138, %v1593, 0
    %v1607 = vsel %vm138, %v1594, 0
    %1609 = vmatprep.subr.mxu0 0.0
    %1610 = vmatpush1.msra.mxu0 %v1598
    %1611 = vmatprep.subr.mxu0 0.0
    %1612 = vmatpush1.msra.mxu0 %v1600
    %1613 = vmatprep.subr.mxu0 0.0
    %1614 = vmatpush1.msra.mxu0 0.0
    %1615 = vmatprep.subr.mxu0 0.0
    %1616 = vmatpush1.msra.mxu0 0.0
    %1617 = vmatprep.subr.mxu0 0.0
    %1618 = vmatpush1.msra.mxu0 0.0
    %1619 = vmatprep.subr.mxu0 0.0
    %1620 = vmatpush1.msra.mxu0 0.0
    %1621 = vmatprep.subr.mxu0 0.0
    %1622 = vmatpush1.msra.mxu0 0.0
    %1623 = vmatprep.subr.mxu0 0.0
    %1624 = vmatpush1.msra.mxu0 0.0
    %1625 = vmatprep.subr.mxu0 0.0
    %1626 = vmatpush1.msra.mxu0 0.0
    %1627 = vmatprep.subr.mxu0 0.0
    %1628 = vmatpush1.msra.mxu0 0.0
    %1629 = vmatprep.subr.mxu0 0.0
    %1630 = vmatpush1.msra.mxu0 0.0
    %1631 = vmatprep.subr.mxu0 0.0
    %1632 = vmatpush1.msra.mxu0 0.0
    %1633 = vmatprep.subr.mxu0 0.0
    %1634 = vmatpush1.msra.mxu0 0.0
    %1635 = vmatprep.subr.mxu0 0.0
    %1636 = vmatpush1.msra.mxu0 0.0
    %1637 = vmatprep.subr.mxu0 0.0
    %1638 = vmatpush1.msra.mxu0 0.0
    %1639 = vmatprep.subr.mxu0 0.0
    %1640 = vmatpush1.msra.mxu0 0.0
    %1641 = vmatprep.subr.mxu0 0.0
    %1642 = vmatpush1.msra.mxu0 0.0
    %1643 = vmatprep.subr.mxu0 0.0
    %1644 = vmatpush1.msra.mxu0 0.0
    %1645 = vmatprep.subr.mxu0 0.0
    %1646 = vmatpush1.msra.mxu0 0.0
    %1647 = vmatprep.subr.mxu0 0.0
    %1648 = vmatpush1.msra.mxu0 0.0
    %1649 = vmatprep.subr.mxu0 0.0
    %1650 = vmatpush1.msra.mxu0 0.0
    %1651 = vmatprep.subr.mxu0 0.0
    %1652 = vmatpush1.msra.mxu0 0.0
    %1653 = vmatprep.subr.mxu0 0.0
    %1654 = vmatpush1.msra.mxu0 0.0
    %1655 = vmatprep.subr.mxu0 0.0
    %1656 = vmatpush1.msra.mxu0 0.0
    %1657 = vmatprep.subr.mxu0 0.0
    %1658 = vmatpush1.msra.mxu0 0.0
    %1659 = vmatprep.subr.mxu0 0.0
    %1660 = vmatpush1.msra.mxu0 0.0
    %1661 = vmatprep.subr.mxu0 0.0
    %1662 = vmatpush1.msra.mxu0 0.0
    %1663 = vmatprep.subr.mxu0 0.0
    %1664 = vmatpush1.msra.mxu0 0.0
    %1665 = vmatprep.subr.mxu0 0.0
    %1666 = vmatpush1.msra.mxu0 0.0
    %1667 = vmatprep.subr.mxu0 0.0
    %1668 = vmatpush1.msra.mxu0 0.0
    %1669 = vmatprep.subr.mxu0 0.0
    %1670 = vmatpush1.msra.mxu0 0.0
    %1671 = vmatprep.subr.mxu0 0.0
    %1672 = vmatpush1.msra.mxu0 0.0
    %1673 = vmatprep.mubr.f32.mxu0 0.0
    %1674 = vmatmul.mubr.f32.gmra.mrb[0].mxu0 %v1604
    %v1675 = vpop.f32.mrb[0].mxu0
    %v1676 = vadd.f32 0.0, %v1675
    %v1677 = vpop.f32.mrb[0].mxu0
    %1678 = vmatprep.mubr.f32.mxu0 0.0
    %1679 = vmatmul.mubr.f32.gmra.mrb[0].mxu0 %v1607
    %v1680 = vpop.f32.mrb[0].mxu0
    %v1681 = vadd.f32 0.0, %v1680
    %v1682 = vpop.f32.mrb[0].mxu0
    %1683 = vdwg.mxu0
    %1686 = vrot.lane.b32.xlu0 %v1676, 16
    %v1687 = vpop.permute.xlu0 %1686
    %1688 = vrot.lane.b32.xlu0 %v1681, 16
    %v1689 = vpop.permute.xlu0 %1688
    %v1692 = vsel %vm138, %v1474, %v1687
    %v1693 = vsel %vm138, %v1479, %v1689
    %v1694 = vmul.f32 %v1692, %v179
    %v1695 = vmul.f32 %v1693, %v180
    %1696 = vrot.lane.b32.xlu0 %v379, 32
    %v1697 = vpop.permute.xlu0 %1696
    %1698 = vrot.lane.b32.xlu0 %v385, 32
    %v1699 = vpop.permute.xlu0 %1698
    %1700 = vrot.lane.b32.xlu0 %v381, 32
    %v1701 = vpop.permute.xlu0 %1700
    %1702 = vrot.lane.b32.xlu0 %v387, 32
    %v1703 = vpop.permute.xlu0 %1702
    %v1704 = vsel %vm138, %v1697, 0
    %v1706 = vsel %vm138, %v1699, 0
    %v1708 = vsel %vm138, %v1701, 0
    %v1710 = vsel %vm138, %v1703, 0
    %1712 = vmatprep.subr.mxu0 0.0
    %1713 = vmatpush1.xpose.msra.mxu0 %v1708
    %1714 = vmatprep.subr.mxu0 0.0
    %1715 = vmatpush1.xpose.msra.mxu0 %v1710
    %1716 = vmatprep.subr.mxu0 0.0
    %1717 = vmatpush1.xpose.msra.mxu0 0.0
    %1718 = vmatprep.subr.mxu0 0.0
    %1719 = vmatpush1.xpose.msra.mxu0 0.0
    %1720 = vmatprep.subr.mxu0 0.0
    %1721 = vmatpush1.xpose.msra.mxu0 0.0
    %1722 = vmatprep.subr.mxu0 0.0
    %1723 = vmatpush1.xpose.msra.mxu0 0.0
    %1724 = vmatprep.subr.mxu0 0.0
    %1725 = vmatpush1.xpose.msra.mxu0 0.0
    %1726 = vmatprep.subr.mxu0 0.0
    %1727 = vmatpush1.xpose.msra.mxu0 0.0
    %1728 = vmatprep.subr.mxu0 0.0
    %1729 = vmatpush1.xpose.msra.mxu0 0.0
    %1730 = vmatprep.subr.mxu0 0.0
    %1731 = vmatpush1.xpose.msra.mxu0 0.0
    %1732 = vmatprep.subr.mxu0 0.0
    %1733 = vmatpush1.xpose.msra.mxu0 0.0
    %1734 = vmatprep.subr.mxu0 0.0
    %1735 = vmatpush1.xpose.msra.mxu0 0.0
    %1736 = vmatprep.subr.mxu0 0.0
    %1737 = vmatpush1.xpose.msra.mxu0 0.0
    %1738 = vmatprep.subr.mxu0 0.0
    %1739 = vmatpush1.xpose.msra.mxu0 0.0
    %1740 = vmatprep.subr.mxu0 0.0
    %1741 = vmatpush1.xpose.msra.mxu0 0.0
    %1742 = vmatprep.subr.mxu0 0.0
    %1743 = vmatpush1.xpose.msra.mxu0 0.0
    %1744 = vmatprep.subr.mxu0 0.0
    %1745 = vmatpush1.xpose.msra.mxu0 0.0
    %1746 = vmatprep.subr.mxu0 0.0
    %1747 = vmatpush1.xpose.msra.mxu0 0.0
    %1748 = vmatprep.subr.mxu0 0.0
    %1749 = vmatpush1.xpose.msra.mxu0 0.0
    %1750 = vmatprep.subr.mxu0 0.0
    %1751 = vmatpush1.xpose.msra.mxu0 0.0
    %1752 = vmatprep.subr.mxu0 0.0
    %1753 = vmatpush1.xpose.msra.mxu0 0.0
    %1754 = vmatprep.subr.mxu0 0.0
    %1755 = vmatpush1.xpose.msra.mxu0 0.0
    %1756 = vmatprep.subr.mxu0 0.0
    %1757 = vmatpush1.xpose.msra.mxu0 0.0
    %1758 = vmatprep.subr.mxu0 0.0
    %1759 = vmatpush1.xpose.msra.mxu0 0.0
    %1760 = vmatprep.subr.mxu0 0.0
    %1761 = vmatpush1.xpose.msra.mxu0 0.0
    %1762 = vmatprep.subr.mxu0 0.0
    %1763 = vmatpush1.xpose.msra.mxu0 0.0
    %1764 = vmatprep.subr.mxu0 0.0
    %1765 = vmatpush1.xpose.msra.mxu0 0.0
    %1766 = vmatprep.subr.mxu0 0.0
    %1767 = vmatpush1.xpose.msra.mxu0 0.0
    %1768 = vmatprep.subr.mxu0 0.0
    %1769 = vmatpush1.xpose.msra.mxu0 0.0
    %1770 = vmatprep.subr.mxu0 0.0
    %1771 = vmatpush1.xpose.msra.mxu0 0.0
    %1772 = vmatprep.subr.mxu0 0.0
    %1773 = vmatpush1.xpose.msra.mxu0 0.0
    %1774 = vmatprep.subr.mxu0 0.0
    %1775 = vmatpush1.xpose.msra.mxu0 0.0
    %1776 = vmatprep.mubr.f32.mxu0 0.0
    %1777 = vmatmul.mubr.f32.gmra.mrb[0].mxu0 %v1704
    %v1778 = vpop.f32.mrb[0].mxu0
    %v1779 = vadd.f32 %v182, %v1778
    %v1780 = vpop.f32.mrb[0].mxu0
    %1781 = vmatprep.mubr.f32.mxu0 0.0
    %1782 = vmatmul.mubr.f32.gmra.mrb[0].mxu0 %v1706
    %v1783 = vpop.f32.mrb[0].mxu0
    %v1784 = vadd.f32 %v183, %v1783
    %v1785 = vpop.f32.mrb[0].mxu0
    %1786 = vdwg.mxu0
    %v1787 = vsel %vm138, %v1779, -inf
    %1788 = vmax.xlane.f32.xlu0 %v1787
    %v1789 = vpop.xlane.xlu0 %1788
    %v1790 = vsel %vm138, %v1784, -inf
    %1791 = vmax.xlane.f32.xlu0 %v1790
    %v1792 = vpop.xlane.xlu0 %1791
    %v1793 = vsub.f32 %v1779, %v1789
    %v1794 = vsub.f32 %v1784, %v1792
    %v1795 = vmul.f32 %v1793, 1.442695
    %v1796 = vpow.pop %v1795
    %v1797 = vmul.f32 %v1794, 1.442695
    %v1798 = vpow.pop %v1797
    %v1799 = vsel %vm138, %v1796, 0.0
    %1800 = vadd.xlane.f32.xlu0 %v1799
    %v1801 = vpop.xlane.xlu0 %1800
    %v1802 = vsel %vm138, %v1798, 0.0
    %1803 = vadd.xlane.f32.xlu0 %v1802
    %v1804 = vpop.xlane.xlu0 %1803
    %v1805 = vrcp.pop %v1801
    %v1806 = vrcp.pop %v1804
    %v1807 = vmul.f32 %v1796, %v1805
    %v1808 = vmul.f32 %v1798, %v1806
    %1809 = vrot.lane.b32.xlu0 %v458, 96
    %v1810 = vpop.permute.xlu0 %1809
    %1811 = vrot.lane.b32.xlu0 %v464, 96
    %v1812 = vpop.permute.xlu0 %1811
    %v1816 = vsel %vm138, %v1807, 0
    %v1819 = vsel %vm138, %v1808, 0
    %1821 = vmatprep.subr.mxu0 0.0
    %1822 = vmatpush1.msra.mxu0 %v1810
    %1823 = vmatprep.subr.mxu0 0.0
    %1824 = vmatpush1.msra.mxu0 %v1812
    %1825 = vmatprep.subr.mxu0 0.0
    %1826 = vmatpush1.msra.mxu0 0.0
    %1827 = vmatprep.subr.mxu0 0.0
    %1828 = vmatpush1.msra.mxu0 0.0
    %1829 = vmatprep.subr.mxu0 0.0
    %1830 = vmatpush1.msra.mxu0 0.0
    %1831 = vmatprep.subr.mxu0 0.0
    %1832 = vmatpush1.msra.mxu0 0.0
    %1833 = vmatprep.subr.mxu0 0.0
    %1834 = vmatpush1.msra.mxu0 0.0
    %1835 = vmatprep.subr.mxu0 0.0
    %1836 = vmatpush1.msra.mxu0 0.0
    %1837 = vmatprep.subr.mxu0 0.0
    %1838 = vmatpush1.msra.mxu0 0.0
    %1839 = vmatprep.subr.mxu0 0.0
    %1840 = vmatpush1.msra.mxu0 0.0
    %1841 = vmatprep.subr.mxu0 0.0
    %1842 = vmatpush1.msra.mxu0 0.0
    %1843 = vmatprep.subr.mxu0 0.0
    %1844 = vmatpush1.msra.mxu0 0.0
    %1845 = vmatprep.subr.mxu0 0.0
    %1846 = vmatpush1.msra.mxu0 0.0
    %1847 = vmatprep.subr.mxu0 0.0
    %1848 = vmatpush1.msra.mxu0 0.0
    %1849 = vmatprep.subr.mxu0 0.0
    %1850 = vmatpush1.msra.mxu0 0.0
    %1851 = vmatprep.subr.mxu0 0.0
    %1852 = vmatpush1.msra.mxu0 0.0
    %1853 = vmatprep.subr.mxu0 0.0
    %1854 = vmatpush1.msra.mxu0 0.0
    %1855 = vmatprep.subr.mxu0 0.0
    %1856 = vmatpush1.msra.mxu0 0.0
    %1857 = vmatprep.subr.mxu0 0.0
    %1858 = vmatpush1.msra.mxu0 0.0
    %1859 = vmatprep.subr.mxu0 0.0
    %1860 = vmatpush1.msra.mxu0 0.0
    %1861 = vmatprep.subr.mxu0 0.0
    %1862 = vmatpush1.msra.mxu0 0.0
    %1863 = vmatprep.subr.mxu0 0.0
    %1864 = vmatpush1.msra.mxu0 0.0
    %1865 = vmatprep.subr.mxu0 0.0
    %1866 = vmatpush1.msra.mxu0 0.0
    %1867 = vmatprep.subr.mxu0 0.0
    %1868 = vmatpush1.msra.mxu0 0.0
    %1869 = vmatprep.subr.mxu0 0.0
    %1870 = vmatpush1.msra.mxu0 0.0
    %1871 = vmatprep.subr.mxu0 0.0
    %1872 = vmatpush1.msra.mxu0 0.0
    %1873 = vmatprep.subr.mxu0 0.0
    %1874 = vmatpush1.msra.mxu0 0.0
    %1875 = vmatprep.subr.mxu0 0.0
    %1876 = vmatpush1.msra.mxu0 0.0
    %1877 = vmatprep.subr.mxu0 0.0
    %1878 = vmatpush1.msra.mxu0 0.0
    %1879 = vmatprep.subr.mxu0 0.0
    %1880 = vmatpush1.msra.mxu0 0.0
    %1881 = vmatprep.subr.mxu0 0.0
    %1882 = vmatpush1.msra.mxu0 0.0
    %1883 = vmatprep.subr.mxu0 0.0
    %1884 = vmatpush1.msra.mxu0 0.0
    %1885 = vmatprep.mubr.f32.mxu0 0.0
    %1886 = vmatmul.mubr.f32.gmra.mrb[0].mxu0 %v1816
    %v1887 = vpop.f32.mrb[0].mxu0
    %v1888 = vadd.f32 0.0, %v1887
    %v1889 = vpop.f32.mrb[0].mxu0
    %1890 = vmatprep.mubr.f32.mxu0 0.0
    %1891 = vmatmul.mubr.f32.gmra.mrb[0].mxu0 %v1819
    %v1892 = vpop.f32.mrb[0].mxu0
    %v1893 = vadd.f32 0.0, %v1892
    %v1894 = vpop.f32.mrb[0].mxu0
    %1895 = vdwg.mxu0
    %1896 = vrot.lane.b32.xlu0 %v379, 16
    %v1897 = vpop.permute.xlu0 %1896
    %1898 = vrot.lane.b32.xlu0 %v385, 16
    %v1899 = vpop.permute.xlu0 %1898
    %1900 = vrot.lane.b32.xlu0 %v381, 16
    %v1901 = vpop.permute.xlu0 %1900
    %1902 = vrot.lane.b32.xlu0 %v387, 16
    %v1903 = vpop.permute.xlu0 %1902
    %v1904 = vsel %vm138, %v1897, 0
    %v1906 = vsel %vm138, %v1899, 0
    %v1908 = vsel %vm138, %v1901, 0
    %v1910 = vsel %vm138, %v1903, 0
    %1912 = vmatprep.subr.mxu0 0.0
    %1913 = vmatpush1.xpose.msra.mxu0 %v1908
    %1914 = vmatprep.subr.mxu0 0.0
    %1915 = vmatpush1.xpose.msra.mxu0 %v1910
    %1916 = vmatprep.subr.mxu0 0.0
    %1917 = vmatpush1.xpose.msra.mxu0 0.0
    %1918 = vmatprep.subr.mxu0 0.0
    %1919 = vmatpush1.xpose.msra.mxu0 0.0
    %1920 = vmatprep.subr.mxu0 0.0
    %1921 = vmatpush1.xpose.msra.mxu0 0.0
    %1922 = vmatprep.subr.mxu0 0.0
    %1923 = vmatpush1.xpose.msra.mxu0 0.0
    %1924 = vmatprep.subr.mxu0 0.0
    %1925 = vmatpush1.xpose.msra.mxu0 0.0
    %1926 = vmatprep.subr.mxu0 0.0
    %1927 = vmatpush1.xpose.msra.mxu0 0.0
    %1928 = vmatprep.subr.mxu0 0.0
    %1929 = vmatpush1.xpose.msra.mxu0 0.0
    %1930 = vmatprep.subr.mxu0 0.0
    %1931 = vmatpush1.xpose.msra.mxu0 0.0
    %1932 = vmatprep.subr.mxu0 0.0
    %1933 = vmatpush1.xpose.msra.mxu0 0.0
    %1934 = vmatprep.subr.mxu0 0.0
    %1935 = vmatpush1.xpose.msra.mxu0 0.0
    %1936 = vmatprep.subr.mxu0 0.0
    %1937 = vmatpush1.xpose.msra.mxu0 0.0
    %1938 = vmatprep.subr.mxu0 0.0
    %1939 = vmatpush1.xpose.msra.mxu0 0.0
    %1940 = vmatprep.subr.mxu0 0.0
    %1941 = vmatpush1.xpose.msra.mxu0 0.0
    %1942 = vmatprep.subr.mxu0 0.0
    %1943 = vmatpush1.xpose.msra.mxu0 0.0
    %1944 = vmatprep.subr.mxu0 0.0
    %1945 = vmatpush1.xpose.msra.mxu0 0.0
    %1946 = vmatprep.subr.mxu0 0.0
    %1947 = vmatpush1.xpose.msra.mxu0 0.0
    %1948 = vmatprep.subr.mxu0 0.0
    %1949 = vmatpush1.xpose.msra.mxu0 0.0
    %1950 = vmatprep.subr.mxu0 0.0
    %1951 = vmatpush1.xpose.msra.mxu0 0.0
    %1952 = vmatprep.subr.mxu0 0.0
    %1953 = vmatpush1.xpose.msra.mxu0 0.0
    %1954 = vmatprep.subr.mxu0 0.0
    %1955 = vmatpush1.xpose.msra.mxu0 0.0
    %1956 = vmatprep.subr.mxu0 0.0
    %1957 = vmatpush1.xpose.msra.mxu0 0.0
    %1958 = vmatprep.subr.mxu0 0.0
    %1959 = vmatpush1.xpose.msra.mxu0 0.0
    %1960 = vmatprep.subr.mxu0 0.0
    %1961 = vmatpush1.xpose.msra.mxu0 0.0
    %1962 = vmatprep.subr.mxu0 0.0
    %1963 = vmatpush1.xpose.msra.mxu0 0.0
    %1964 = vmatprep.subr.mxu0 0.0
    %1965 = vmatpush1.xpose.msra.mxu0 0.0
    %1966 = vmatprep.subr.mxu0 0.0
    %1967 = vmatpush1.xpose.msra.mxu0 0.0
    %1968 = vmatprep.subr.mxu0 0.0
    %1969 = vmatpush1.xpose.msra.mxu0 0.0
    %1970 = vmatprep.subr.mxu0 0.0
    %1971 = vmatpush1.xpose.msra.mxu0 0.0
    %1972 = vmatprep.subr.mxu0 0.0
    %1973 = vmatpush1.xpose.msra.mxu0 0.0
    %1974 = vmatprep.subr.mxu0 0.0
    %1975 = vmatpush1.xpose.msra.mxu0 0.0
    %1976 = vmatprep.mubr.f32.mxu0 0.0
    %1977 = vmatmul.mubr.f32.gmra.mrb[0].mxu0 %v1904
    %v1978 = vpop.f32.mrb[0].mxu0
    %v1979 = vadd.f32 %v182, %v1978
    %v1980 = vpop.f32.mrb[0].mxu0
    %1981 = vmatprep.mubr.f32.mxu0 0.0
    %1982 = vmatmul.mubr.f32.gmra.mrb[0].mxu0 %v1906
    %v1983 = vpop.f32.mrb[0].mxu0
    %v1984 = vadd.f32 %v183, %v1983
    %v1985 = vpop.f32.mrb[0].mxu0
    %1986 = vdwg.mxu0
    %v1987 = vsel %vm138, %v1979, -inf
    %1988 = vmax.xlane.f32.xlu0 %v1987
    %v1989 = vpop.xlane.xlu0 %1988
    %v1990 = vsel %vm138, %v1984, -inf
    %1991 = vmax.xlane.f32.xlu0 %v1990
    %v1992 = vpop.xlane.xlu0 %1991
    %v1993 = vsub.f32 %v1979, %v1989
    %v1994 = vsub.f32 %v1984, %v1992
    %v1995 = vmul.f32 %v1993, 1.442695
    %v1996 = vpow.pop %v1995
    %v1997 = vmul.f32 %v1994, 1.442695
    %v1998 = vpow.pop %v1997
    %v1999 = vsel %vm138, %v1996, 0.0
    %2000 = vadd.xlane.f32.xlu0 %v1999
    %v2001 = vpop.xlane.xlu0 %2000
    %v2002 = vsel %vm138, %v1998, 0.0
    %2003 = vadd.xlane.f32.xlu0 %v2002
    %v2004 = vpop.xlane.xlu0 %2003
    %v2005 = vrcp.pop %v2001
    %v2006 = vrcp.pop %v2004
    %v2007 = vmul.f32 %v1996, %v2005
    %v2008 = vmul.f32 %v1998, %v2006
    %2009 = vrot.lane.b32.xlu0 %v458, 80
    %v2010 = vpop.permute.xlu0 %2009
    %2011 = vrot.lane.b32.xlu0 %v464, 80
    %v2012 = vpop.permute.xlu0 %2011
    %v2016 = vsel %vm138, %v2007, 0
    %v2019 = vsel %vm138, %v2008, 0
    %2021 = vmatprep.subr.mxu0 0.0
    %2022 = vmatpush1.msra.mxu0 %v2010
    %2023 = vmatprep.subr.mxu0 0.0
    %2024 = vmatpush1.msra.mxu0 %v2012
    %2025 = vmatprep.subr.mxu0 0.0
    %2026 = vmatpush1.msra.mxu0 0.0
    %2027 = vmatprep.subr.mxu0 0.0
    %2028 = vmatpush1.msra.mxu0 0.0
    %2029 = vmatprep.subr.mxu0 0.0
    %2030 = vmatpush1.msra.mxu0 0.0
    %2031 = vmatprep.subr.mxu0 0.0
    %2032 = vmatpush1.msra.mxu0 0.0
    %2033 = vmatprep.subr.mxu0 0.0
    %2034 = vmatpush1.msra.mxu0 0.0
    %2035 = vmatprep.subr.mxu0 0.0
    %2036 = vmatpush1.msra.mxu0 0.0
    %2037 = vmatprep.subr.mxu0 0.0
    %2038 = vmatpush1.msra.mxu0 0.0
    %2039 = vmatprep.subr.mxu0 0.0
    %2040 = vmatpush1.msra.mxu0 0.0
    %2041 = vmatprep.subr.mxu0 0.0
    %2042 = vmatpush1.msra.mxu0 0.0
    %2043 = vmatprep.subr.mxu0 0.0
    %2044 = vmatpush1.msra.mxu0 0.0
    %2045 = vmatprep.subr.mxu0 0.0
    %2046 = vmatpush1.msra.mxu0 0.0
    %2047 = vmatprep.subr.mxu0 0.0
    %2048 = vmatpush1.msra.mxu0 0.0
    %2049 = vmatprep.subr.mxu0 0.0
    %2050 = vmatpush1.msra.mxu0 0.0
    %2051 = vmatprep.subr.mxu0 0.0
    %2052 = vmatpush1.msra.mxu0 0.0
    %2053 = vmatprep.subr.mxu0 0.0
    %2054 = vmatpush1.msra.mxu0 0.0
    %2055 = vmatprep.subr.mxu0 0.0
    %2056 = vmatpush1.msra.mxu0 0.0
    %2057 = vmatprep.subr.mxu0 0.0
    %2058 = vmatpush1.msra.mxu0 0.0
    %2059 = vmatprep.subr.mxu0 0.0
    %2060 = vmatpush1.msra.mxu0 0.0
    %2061 = vmatprep.subr.mxu0 0.0
    %2062 = vmatpush1.msra.mxu0 0.0
    %2063 = vmatprep.subr.mxu0 0.0
    %2064 = vmatpush1.msra.mxu0 0.0
    %2065 = vmatprep.subr.mxu0 0.0
    %2066 = vmatpush1.msra.mxu0 0.0
    %2067 = vmatprep.subr.mxu0 0.0
    %2068 = vmatpush1.msra.mxu0 0.0
    %2069 = vmatprep.subr.mxu0 0.0
    %2070 = vmatpush1.msra.mxu0 0.0
    %2071 = vmatprep.subr.mxu0 0.0
    %2072 = vmatpush1.msra.mxu0 0.0
    %2073 = vmatprep.subr.mxu0 0.0
    %2074 = vmatpush1.msra.mxu0 0.0
    %2075 = vmatprep.subr.mxu0 0.0
    %2076 = vmatpush1.msra.mxu0 0.0
    %2077 = vmatprep.subr.mxu0 0.0
    %2078 = vmatpush1.msra.mxu0 0.0
    %2079 = vmatprep.subr.mxu0 0.0
    %2080 = vmatpush1.msra.mxu0 0.0
    %2081 = vmatprep.subr.mxu0 0.0
    %2082 = vmatpush1.msra.mxu0 0.0
    %2083 = vmatprep.subr.mxu0 0.0
    %2084 = vmatpush1.msra.mxu0 0.0
    %2085 = vmatprep.mubr.f32.mxu0 0.0
    %2086 = vmatmul.mubr.f32.gmra.mrb[0].mxu0 %v2016
    %v2087 = vpop.f32.mrb[0].mxu0
    %v2088 = vadd.f32 0.0, %v2087
    %v2089 = vpop.f32.mrb[0].mxu0
    %2090 = vmatprep.mubr.f32.mxu0 0.0
    %2091 = vmatmul.mubr.f32.gmra.mrb[0].mxu0 %v2019
    %v2092 = vpop.f32.mrb[0].mxu0
    %v2093 = vadd.f32 0.0, %v2092
    %v2094 = vpop.f32.mrb[0].mxu0
    %2095 = vdwg.mxu0
    %2098 = vrot.lane.b32.xlu0 %v2088, 16
    %v2099 = vpop.permute.xlu0 %2098
    %2100 = vrot.lane.b32.xlu0 %v2093, 16
    %v2101 = vpop.permute.xlu0 %2100
    %v2104 = vsel %vm138, %v1888, %v2099
    %v2105 = vsel %vm138, %v1893, %v2101
    %v2106 = vmul.f32 %v2104, %v194
    %v2107 = vmul.f32 %v2105, %v195
    %v2108 = vsel %vm138, %v456, 0
    %v2110 = vsel %vm138, %v462, 0
    %2112 = vmatprep.subr.mxu0 0.0
    %2113 = vmatpush1.xpose.msra.mxu0 %v2108
    %2114 = vmatprep.subr.mxu0 0.0
    %2115 = vmatpush1.xpose.msra.mxu0 %v2110
    %2116 = vmatprep.subr.mxu0 0.0
    %2117 = vmatpush1.xpose.msra.mxu0 0.0
    %2118 = vmatprep.subr.mxu0 0.0
    %2119 = vmatpush1.xpose.msra.mxu0 0.0
    %2120 = vmatprep.subr.mxu0 0.0
    %2121 = vmatpush1.xpose.msra.mxu0 0.0
    %2122 = vmatprep.subr.mxu0 0.0
    %2123 = vmatpush1.xpose.msra.mxu0 0.0
    %2124 = vmatprep.subr.mxu0 0.0
    %2125 = vmatpush1.xpose.msra.mxu0 0.0
    %2126 = vmatprep.subr.mxu0 0.0
    %2127 = vmatpush1.xpose.msra.mxu0 0.0
    %2128 = vmatprep.subr.mxu0 0.0
    %2129 = vmatpush1.xpose.msra.mxu0 0.0
    %2130 = vmatprep.subr.mxu0 0.0
    %2131 = vmatpush1.xpose.msra.mxu0 0.0
    %2132 = vmatprep.subr.mxu0 0.0
    %2133 = vmatpush1.xpose.msra.mxu0 0.0
    %2134 = vmatprep.subr.mxu0 0.0
    %2135 = vmatpush1.xpose.msra.mxu0 0.0
    %2136 = vmatprep.subr.mxu0 0.0
    %2137 = vmatpush1.xpose.msra.mxu0 0.0
    %2138 = vmatprep.subr.mxu0 0.0
    %2139 = vmatpush1.xpose.msra.mxu0 0.0
    %2140 = vmatprep.subr.mxu0 0.0
    %2141 = vmatpush1.xpose.msra.mxu0 0.0
    %2142 = vmatprep.subr.mxu0 0.0
    %2143 = vmatpush1.xpose.msra.mxu0 0.0
    %2144 = vmatprep.subr.mxu0 0.0
    %2145 = vmatpush1.xpose.msra.mxu0 0.0
    %2146 = vmatprep.subr.mxu0 0.0
    %2147 = vmatpush1.xpose.msra.mxu0 0.0
    %2148 = vmatprep.subr.mxu0 0.0
    %2149 = vmatpush1.xpose.msra.mxu0 0.0
    %2150 = vmatprep.subr.mxu0 0.0
    %2151 = vmatpush1.xpose.msra.mxu0 0.0
    %2152 = vmatprep.subr.mxu0 0.0
    %2153 = vmatpush1.xpose.msra.mxu0 0.0
    %2154 = vmatprep.subr.mxu0 0.0
    %2155 = vmatpush1.xpose.msra.mxu0 0.0
    %2156 = vmatprep.subr.mxu0 0.0
    %2157 = vmatpush1.xpose.msra.mxu0 0.0
    %2158 = vmatprep.subr.mxu0 0.0
    %2159 = vmatpush1.xpose.msra.mxu0 0.0
    %2160 = vmatprep.subr.mxu0 0.0
    %2161 = vmatpush1.xpose.msra.mxu0 0.0
    %2162 = vmatprep.subr.mxu0 0.0
    %2163 = vmatpush1.xpose.msra.mxu0 0.0
    %2164 = vmatprep.subr.mxu0 0.0
    %2165 = vmatpush1.xpose.msra.mxu0 0.0
    %2166 = vmatprep.subr.mxu0 0.0
    %2167 = vmatpush1.xpose.msra.mxu0 0.0
    %2168 = vmatprep.subr.mxu0 0.0
    %2169 = vmatpush1.xpose.msra.mxu0 0.0
    %2170 = vmatprep.subr.mxu0 0.0
    %2171 = vmatpush1.xpose.msra.mxu0 0.0
    %2172 = vmatprep.subr.mxu0 0.0
    %2173 = vmatpush1.xpose.msra.mxu0 0.0
    %2174 = vmatprep.subr.mxu0 0.0
    %2175 = vmatpush1.xpose.msra.mxu0 0.0
    %2176 = vmatprep.mubr.f32.mxu0 0.0
    %2177 = vmatmul.mubr.f32.gmra.mrb[0].mxu0 %v472
    %v2178 = vpop.f32.mrb[0].mxu0
    %v2179 = vadd.f32 %v197, %v2178
    %v2180 = vpop.f32.mrb[0].mxu0
    %2181 = vmatprep.mubr.f32.mxu0 0.0
    %2182 = vmatmul.mubr.f32.gmra.mrb[0].mxu0 %v474
    %v2183 = vpop.f32.mrb[0].mxu0
    %v2184 = vadd.f32 %v198, %v2183
    %v2185 = vpop.f32.mrb[0].mxu0
    %2186 = vdwg.mxu0
    %v2187 = vsel %vm138, %v2179, -inf
    %2188 = vmax.xlane.f32.xlu0 %v2187
    %v2189 = vpop.xlane.xlu0 %2188
    %v2190 = vsel %vm138, %v2184, -inf
    %2191 = vmax.xlane.f32.xlu0 %v2190
    %v2192 = vpop.xlane.xlu0 %2191
    %v2193 = vsub.f32 %v2179, %v2189
    %v2194 = vsub.f32 %v2184, %v2192
    %v2195 = vmul.f32 %v2193, 1.442695
    %v2196 = vpow.pop %v2195
    %v2197 = vmul.f32 %v2194, 1.442695
    %v2198 = vpow.pop %v2197
    %v2199 = vsel %vm138, %v2196, 0.0
    %2200 = vadd.xlane.f32.xlu0 %v2199
    %v2201 = vpop.xlane.xlu0 %2200
    %v2202 = vsel %vm138, %v2198, 0.0
    %2203 = vadd.xlane.f32.xlu0 %v2202
    %v2204 = vpop.xlane.xlu0 %2203
    %v2205 = vrcp.pop %v2201
    %v2206 = vrcp.pop %v2204
    %v2207 = vmul.f32 %v2196, %v2205
    %v2208 = vmul.f32 %v2198, %v2206
    %2209 = vrot.lane.b32.xlu0 %v458, 64
    %v2210 = vpop.permute.xlu0 %2209
    %2211 = vrot.lane.b32.xlu0 %v464, 64
    %v2212 = vpop.permute.xlu0 %2211
    %v2216 = vsel %vm138, %v2207, 0
    %v2219 = vsel %vm138, %v2208, 0
    %2221 = vmatprep.subr.mxu0 0.0
    %2222 = vmatpush1.msra.mxu0 %v2210
    %2223 = vmatprep.subr.mxu0 0.0
    %2224 = vmatpush1.msra.mxu0 %v2212
    %2225 = vmatprep.subr.mxu0 0.0
    %2226 = vmatpush1.msra.mxu0 0.0
    %2227 = vmatprep.subr.mxu0 0.0
    %2228 = vmatpush1.msra.mxu0 0.0
    %2229 = vmatprep.subr.mxu0 0.0
    %2230 = vmatpush1.msra.mxu0 0.0
    %2231 = vmatprep.subr.mxu0 0.0
    %2232 = vmatpush1.msra.mxu0 0.0
    %2233 = vmatprep.subr.mxu0 0.0
    %2234 = vmatpush1.msra.mxu0 0.0
    %2235 = vmatprep.subr.mxu0 0.0
    %2236 = vmatpush1.msra.mxu0 0.0
    %2237 = vmatprep.subr.mxu0 0.0
    %2238 = vmatpush1.msra.mxu0 0.0
    %2239 = vmatprep.subr.mxu0 0.0
    %2240 = vmatpush1.msra.mxu0 0.0
    %2241 = vmatprep.subr.mxu0 0.0
    %2242 = vmatpush1.msra.mxu0 0.0
    %2243 = vmatprep.subr.mxu0 0.0
    %2244 = vmatpush1.msra.mxu0 0.0
    %2245 = vmatprep.subr.mxu0 0.0
    %2246 = vmatpush1.msra.mxu0 0.0
    %2247 = vmatprep.subr.mxu0 0.0
    %2248 = vmatpush1.msra.mxu0 0.0
    %2249 = vmatprep.subr.mxu0 0.0
    %2250 = vmatpush1.msra.mxu0 0.0
    %2251 = vmatprep.subr.mxu0 0.0
    %2252 = vmatpush1.msra.mxu0 0.0
    %2253 = vmatprep.subr.mxu0 0.0
    %2254 = vmatpush1.msra.mxu0 0.0
    %2255 = vmatprep.subr.mxu0 0.0
    %2256 = vmatpush1.msra.mxu0 0.0
    %2257 = vmatprep.subr.mxu0 0.0
    %2258 = vmatpush1.msra.mxu0 0.0
    %2259 = vmatprep.subr.mxu0 0.0
    %2260 = vmatpush1.msra.mxu0 0.0
    %2261 = vmatprep.subr.mxu0 0.0
    %2262 = vmatpush1.msra.mxu0 0.0
    %2263 = vmatprep.subr.mxu0 0.0
    %2264 = vmatpush1.msra.mxu0 0.0
    %2265 = vmatprep.subr.mxu0 0.0
    %2266 = vmatpush1.msra.mxu0 0.0
    %2267 = vmatprep.subr.mxu0 0.0
    %2268 = vmatpush1.msra.mxu0 0.0
    %2269 = vmatprep.subr.mxu0 0.0
    %2270 = vmatpush1.msra.mxu0 0.0
    %2271 = vmatprep.subr.mxu0 0.0
    %2272 = vmatpush1.msra.mxu0 0.0
    %2273 = vmatprep.subr.mxu0 0.0
    %2274 = vmatpush1.msra.mxu0 0.0
    %2275 = vmatprep.subr.mxu0 0.0
    %2276 = vmatpush1.msra.mxu0 0.0
    %2277 = vmatprep.subr.mxu0 0.0
    %2278 = vmatpush1.msra.mxu0 0.0
    %2279 = vmatprep.subr.mxu0 0.0
    %2280 = vmatpush1.msra.mxu0 0.0
    %2281 = vmatprep.subr.mxu0 0.0
    %2282 = vmatpush1.msra.mxu0 0.0
    %2283 = vmatprep.subr.mxu0 0.0
    %2284 = vmatpush1.msra.mxu0 0.0
    %2285 = vmatprep.mubr.f32.mxu0 0.0
    %2286 = vmatmul.mubr.f32.gmra.mrb[0].mxu0 %v2216
    %v2287 = vpop.f32.mrb[0].mxu0
    %v2288 = vadd.f32 0.0, %v2287
    %v2289 = vpop.f32.mrb[0].mxu0
    %2290 = vmatprep.mubr.f32.mxu0 0.0
    %2291 = vmatmul.mubr.f32.gmra.mrb[0].mxu0 %v2219
    %v2292 = vpop.f32.mrb[0].mxu0
    %v2293 = vadd.f32 0.0, %v2292
    %v2294 = vpop.f32.mrb[0].mxu0
    %2295 = vdwg.mxu0
    %2296 = vrot.lane.b32.xlu0 %v456, 112
    %v2297 = vpop.permute.xlu0 %2296
    %2298 = vrot.lane.b32.xlu0 %v462, 112
    %v2299 = vpop.permute.xlu0 %2298
    %v2300 = vsel %vm138, %v2297, 0
    %v2302 = vsel %vm138, %v2299, 0
    %2304 = vmatprep.subr.mxu0 0.0
    %2305 = vmatpush1.xpose.msra.mxu0 %v2300
    %2306 = vmatprep.subr.mxu0 0.0
    %2307 = vmatpush1.xpose.msra.mxu0 %v2302
    %2308 = vmatprep.subr.mxu0 0.0
    %2309 = vmatpush1.xpose.msra.mxu0 0.0
    %2310 = vmatprep.subr.mxu0 0.0
    %2311 = vmatpush1.xpose.msra.mxu0 0.0
    %2312 = vmatprep.subr.mxu0 0.0
    %2313 = vmatpush1.xpose.msra.mxu0 0.0
    %2314 = vmatprep.subr.mxu0 0.0
    %2315 = vmatpush1.xpose.msra.mxu0 0.0
    %2316 = vmatprep.subr.mxu0 0.0
    %2317 = vmatpush1.xpose.msra.mxu0 0.0
    %2318 = vmatprep.subr.mxu0 0.0
    %2319 = vmatpush1.xpose.msra.mxu0 0.0
    %2320 = vmatprep.subr.mxu0 0.0
    %2321 = vmatpush1.xpose.msra.mxu0 0.0
    %2322 = vmatprep.subr.mxu0 0.0
    %2323 = vmatpush1.xpose.msra.mxu0 0.0
    %2324 = vmatprep.subr.mxu0 0.0
    %2325 = vmatpush1.xpose.msra.mxu0 0.0
    %2326 = vmatprep.subr.mxu0 0.0
    %2327 = vmatpush1.xpose.msra.mxu0 0.0
    %2328 = vmatprep.subr.mxu0 0.0
    %2329 = vmatpush1.xpose.msra.mxu0 0.0
    %2330 = vmatprep.subr.mxu0 0.0
    %2331 = vmatpush1.xpose.msra.mxu0 0.0
    %2332 = vmatprep.subr.mxu0 0.0
    %2333 = vmatpush1.xpose.msra.mxu0 0.0
    %2334 = vmatprep.subr.mxu0 0.0
    %2335 = vmatpush1.xpose.msra.mxu0 0.0
    %2336 = vmatprep.subr.mxu0 0.0
    %2337 = vmatpush1.xpose.msra.mxu0 0.0
    %2338 = vmatprep.subr.mxu0 0.0
    %2339 = vmatpush1.xpose.msra.mxu0 0.0
    %2340 = vmatprep.subr.mxu0 0.0
    %2341 = vmatpush1.xpose.msra.mxu0 0.0
    %2342 = vmatprep.subr.mxu0 0.0
    %2343 = vmatpush1.xpose.msra.mxu0 0.0
    %2344 = vmatprep.subr.mxu0 0.0
    %2345 = vmatpush1.xpose.msra.mxu0 0.0
    %2346 = vmatprep.subr.mxu0 0.0
    %2347 = vmatpush1.xpose.msra.mxu0 0.0
    %2348 = vmatprep.subr.mxu0 0.0
    %2349 = vmatpush1.xpose.msra.mxu0 0.0
    %2350 = vmatprep.subr.mxu0 0.0
    %2351 = vmatpush1.xpose.msra.mxu0 0.0
    %2352 = vmatprep.subr.mxu0 0.0
    %2353 = vmatpush1.xpose.msra.mxu0 0.0
    %2354 = vmatprep.subr.mxu0 0.0
    %2355 = vmatpush1.xpose.msra.mxu0 0.0
    %2356 = vmatprep.subr.mxu0 0.0
    %2357 = vmatpush1.xpose.msra.mxu0 0.0
    %2358 = vmatprep.subr.mxu0 0.0
    %2359 = vmatpush1.xpose.msra.mxu0 0.0
    %2360 = vmatprep.subr.mxu0 0.0
    %2361 = vmatpush1.xpose.msra.mxu0 0.0
    %2362 = vmatprep.subr.mxu0 0.0
    %2363 = vmatpush1.xpose.msra.mxu0 0.0
    %2364 = vmatprep.subr.mxu0 0.0
    %2365 = vmatpush1.xpose.msra.mxu0 0.0
    %2366 = vmatprep.subr.mxu0 0.0
    %2367 = vmatpush1.xpose.msra.mxu0 0.0
    %2368 = vmatprep.mubr.f32.mxu0 0.0
    %2369 = vmatmul.mubr.f32.gmra.mrb[0].mxu0 %v676
    %v2370 = vpop.f32.mrb[0].mxu0
    %v2371 = vadd.f32 %v197, %v2370
    %v2372 = vpop.f32.mrb[0].mxu0
    %2373 = vmatprep.mubr.f32.mxu0 0.0
    %2374 = vmatmul.mubr.f32.gmra.mrb[0].mxu0 %v678
    %v2375 = vpop.f32.mrb[0].mxu0
    %v2376 = vadd.f32 %v198, %v2375
    %v2377 = vpop.f32.mrb[0].mxu0
    %2378 = vdwg.mxu0
    %v2379 = vsel %vm138, %v2371, -inf
    %2380 = vmax.xlane.f32.xlu0 %v2379
    %v2381 = vpop.xlane.xlu0 %2380
    %v2382 = vsel %vm138, %v2376, -inf
    %2383 = vmax.xlane.f32.xlu0 %v2382
    %v2384 = vpop.xlane.xlu0 %2383
    %v2385 = vsub.f32 %v2371, %v2381
    %v2386 = vsub.f32 %v2376, %v2384
    %v2387 = vmul.f32 %v2385, 1.442695
    %v2388 = vpow.pop %v2387
    %v2389 = vmul.f32 %v2386, 1.442695
    %v2390 = vpow.pop %v2389
    %v2391 = vsel %vm138, %v2388, 0.0
    %2392 = vadd.xlane.f32.xlu0 %v2391
    %v2393 = vpop.xlane.xlu0 %2392
    %v2394 = vsel %vm138, %v2390, 0.0
    %2395 = vadd.xlane.f32.xlu0 %v2394
    %v2396 = vpop.xlane.xlu0 %2395
    %v2397 = vrcp.pop %v2393
    %v2398 = vrcp.pop %v2396
    %v2399 = vmul.f32 %v2388, %v2397
    %v2400 = vmul.f32 %v2390, %v2398
    %2401 = vrot.lane.b32.xlu0 %v458, 48
    %v2402 = vpop.permute.xlu0 %2401
    %2403 = vrot.lane.b32.xlu0 %v464, 48
    %v2404 = vpop.permute.xlu0 %2403
    %v2408 = vsel %vm138, %v2399, 0
    %v2411 = vsel %vm138, %v2400, 0
    %2413 = vmatprep.subr.mxu0 0.0
    %2414 = vmatpush1.msra.mxu0 %v2402
    %2415 = vmatprep.subr.mxu0 0.0
    %2416 = vmatpush1.msra.mxu0 %v2404
    %2417 = vmatprep.subr.mxu0 0.0
    %2418 = vmatpush1.msra.mxu0 0.0
    %2419 = vmatprep.subr.mxu0 0.0
    %2420 = vmatpush1.msra.mxu0 0.0
    %2421 = vmatprep.subr.mxu0 0.0
    %2422 = vmatpush1.msra.mxu0 0.0
    %2423 = vmatprep.subr.mxu0 0.0
    %2424 = vmatpush1.msra.mxu0 0.0
    %2425 = vmatprep.subr.mxu0 0.0
    %2426 = vmatpush1.msra.mxu0 0.0
    %2427 = vmatprep.subr.mxu0 0.0
    %2428 = vmatpush1.msra.mxu0 0.0
    %2429 = vmatprep.subr.mxu0 0.0
    %2430 = vmatpush1.msra.mxu0 0.0
    %2431 = vmatprep.subr.mxu0 0.0
    %2432 = vmatpush1.msra.mxu0 0.0
    %2433 = vmatprep.subr.mxu0 0.0
    %2434 = vmatpush1.msra.mxu0 0.0
    %2435 = vmatprep.subr.mxu0 0.0
    %2436 = vmatpush1.msra.mxu0 0.0
    %2437 = vmatprep.subr.mxu0 0.0
    %2438 = vmatpush1.msra.mxu0 0.0
    %2439 = vmatprep.subr.mxu0 0.0
    %2440 = vmatpush1.msra.mxu0 0.0
    %2441 = vmatprep.subr.mxu0 0.0
    %2442 = vmatpush1.msra.mxu0 0.0
    %2443 = vmatprep.subr.mxu0 0.0
    %2444 = vmatpush1.msra.mxu0 0.0
    %2445 = vmatprep.subr.mxu0 0.0
    %2446 = vmatpush1.msra.mxu0 0.0
    %2447 = vmatprep.subr.mxu0 0.0
    %2448 = vmatpush1.msra.mxu0 0.0
    %2449 = vmatprep.subr.mxu0 0.0
    %2450 = vmatpush1.msra.mxu0 0.0
    %2451 = vmatprep.subr.mxu0 0.0
    %2452 = vmatpush1.msra.mxu0 0.0
    %2453 = vmatprep.subr.mxu0 0.0
    %2454 = vmatpush1.msra.mxu0 0.0
    %2455 = vmatprep.subr.mxu0 0.0
    %2456 = vmatpush1.msra.mxu0 0.0
    %2457 = vmatprep.subr.mxu0 0.0
    %2458 = vmatpush1.msra.mxu0 0.0
    %2459 = vmatprep.subr.mxu0 0.0
    %2460 = vmatpush1.msra.mxu0 0.0
    %2461 = vmatprep.subr.mxu0 0.0
    %2462 = vmatpush1.msra.mxu0 0.0
    %2463 = vmatprep.subr.mxu0 0.0
    %2464 = vmatpush1.msra.mxu0 0.0
    %2465 = vmatprep.subr.mxu0 0.0
    %2466 = vmatpush1.msra.mxu0 0.0
    %2467 = vmatprep.subr.mxu0 0.0
    %2468 = vmatpush1.msra.mxu0 0.0
    %2469 = vmatprep.subr.mxu0 0.0
    %2470 = vmatpush1.msra.mxu0 0.0
    %2471 = vmatprep.subr.mxu0 0.0
    %2472 = vmatpush1.msra.mxu0 0.0
    %2473 = vmatprep.subr.mxu0 0.0
    %2474 = vmatpush1.msra.mxu0 0.0
    %2475 = vmatprep.subr.mxu0 0.0
    %2476 = vmatpush1.msra.mxu0 0.0
    %2477 = vmatprep.mubr.f32.mxu0 0.0
    %2478 = vmatmul.mubr.f32.gmra.mrb[0].mxu0 %v2408
    %v2479 = vpop.f32.mrb[0].mxu0
    %v2480 = vadd.f32 0.0, %v2479
    %v2481 = vpop.f32.mrb[0].mxu0
    %2482 = vmatprep.mubr.f32.mxu0 0.0
    %2483 = vmatmul.mubr.f32.gmra.mrb[0].mxu0 %v2411
    %v2484 = vpop.f32.mrb[0].mxu0
    %v2485 = vadd.f32 0.0, %v2484
    %v2486 = vpop.f32.mrb[0].mxu0
    %2487 = vdwg.mxu0
    %2490 = vrot.lane.b32.xlu0 %v2480, 16
    %v2491 = vpop.permute.xlu0 %2490
    %2492 = vrot.lane.b32.xlu0 %v2485, 16
    %v2493 = vpop.permute.xlu0 %2492
    %v2496 = vsel %vm138, %v2288, %v2491
    %v2497 = vsel %vm138, %v2293, %v2493
    %v2498 = vmul.f32 %v2496, %v209
    %v2499 = vmul.f32 %v2497, %v210
    %v2500 = vadd.f32 %v878, %v2498
    %v2501 = vadd.f32 %v879, %v2499
    %2502 = vrot.lane.b32.xlu0 %v456, 96
    %v2503 = vpop.permute.xlu0 %2502
    %2504 = vrot.lane.b32.xlu0 %v462, 96
    %v2505 = vpop.permute.xlu0 %2504
    %v2506 = vsel %vm138, %v2503, 0
    %v2508 = vsel %vm138, %v2505, 0
    %2510 = vmatprep.subr.mxu0 0.0
    %2511 = vmatpush1.xpose.msra.mxu0 %v2506
    %2512 = vmatprep.subr.mxu0 0.0
    %2513 = vmatpush1.xpose.msra.mxu0 %v2508
    %2514 = vmatprep.subr.mxu0 0.0
    %2515 = vmatpush1.xpose.msra.mxu0 0.0
    %2516 = vmatprep.subr.mxu0 0.0
    %2517 = vmatpush1.xpose.msra.mxu0 0.0
    %2518 = vmatprep.subr.mxu0 0.0
    %2519 = vmatpush1.xpose.msra.mxu0 0.0
    %2520 = vmatprep.subr.mxu0 0.0
    %2521 = vmatpush1.xpose.msra.mxu0 0.0
    %2522 = vmatprep.subr.mxu0 0.0
    %2523 = vmatpush1.xpose.msra.mxu0 0.0
    %2524 = vmatprep.subr.mxu0 0.0
    %2525 = vmatpush1.xpose.msra.mxu0 0.0
    %2526 = vmatprep.subr.mxu0 0.0
    %2527 = vmatpush1.xpose.msra.mxu0 0.0
    %2528 = vmatprep.subr.mxu0 0.0
    %2529 = vmatpush1.xpose.msra.mxu0 0.0
    %2530 = vmatprep.subr.mxu0 0.0
    %2531 = vmatpush1.xpose.msra.mxu0 0.0
    %2532 = vmatprep.subr.mxu0 0.0
    %2533 = vmatpush1.xpose.msra.mxu0 0.0
    %2534 = vmatprep.subr.mxu0 0.0
    %2535 = vmatpush1.xpose.msra.mxu0 0.0
    %2536 = vmatprep.subr.mxu0 0.0
    %2537 = vmatpush1.xpose.msra.mxu0 0.0
    %2538 = vmatprep.subr.mxu0 0.0
    %2539 = vmatpush1.xpose.msra.mxu0 0.0
    %2540 = vmatprep.subr.mxu0 0.0
    %2541 = vmatpush1.xpose.msra.mxu0 0.0
    %2542 = vmatprep.subr.mxu0 0.0
    %2543 = vmatpush1.xpose.msra.mxu0 0.0
    %2544 = vmatprep.subr.mxu0 0.0
    %2545 = vmatpush1.xpose.msra.mxu0 0.0
    %2546 = vmatprep.subr.mxu0 0.0
    %2547 = vmatpush1.xpose.msra.mxu0 0.0
    %2548 = vmatprep.subr.mxu0 0.0
    %2549 = vmatpush1.xpose.msra.mxu0 0.0
    %2550 = vmatprep.subr.mxu0 0.0
    %2551 = vmatpush1.xpose.msra.mxu0 0.0
    %2552 = vmatprep.subr.mxu0 0.0
    %2553 = vmatpush1.xpose.msra.mxu0 0.0
    %2554 = vmatprep.subr.mxu0 0.0
    %2555 = vmatpush1.xpose.msra.mxu0 0.0
    %2556 = vmatprep.subr.mxu0 0.0
    %2557 = vmatpush1.xpose.msra.mxu0 0.0
    %2558 = vmatprep.subr.mxu0 0.0
    %2559 = vmatpush1.xpose.msra.mxu0 0.0
    %2560 = vmatprep.subr.mxu0 0.0
    %2561 = vmatpush1.xpose.msra.mxu0 0.0
    %2562 = vmatprep.subr.mxu0 0.0
    %2563 = vmatpush1.xpose.msra.mxu0 0.0
    %2564 = vmatprep.subr.mxu0 0.0
    %2565 = vmatpush1.xpose.msra.mxu0 0.0
    %2566 = vmatprep.subr.mxu0 0.0
    %2567 = vmatpush1.xpose.msra.mxu0 0.0
    %2568 = vmatprep.subr.mxu0 0.0
    %2569 = vmatpush1.xpose.msra.mxu0 0.0
    %2570 = vmatprep.subr.mxu0 0.0
    %2571 = vmatpush1.xpose.msra.mxu0 0.0
    %2572 = vmatprep.subr.mxu0 0.0
    %2573 = vmatpush1.xpose.msra.mxu0 0.0
    %2574 = vmatprep.mubr.f32.mxu0 0.0
    %2575 = vmatmul.mubr.f32.gmra.mrb[0].mxu0 %v472
    %v2576 = vpop.f32.mrb[0].mxu0
    %v2577 = vadd.f32 %v212, %v2576
    %v2578 = vpop.f32.mrb[0].mxu0
    %2579 = vmatprep.mubr.f32.mxu0 0.0
    %2580 = vmatmul.mubr.f32.gmra.mrb[0].mxu0 %v474
    %v2581 = vpop.f32.mrb[0].mxu0
    %v2582 = vadd.f32 %v213, %v2581
    %v2583 = vpop.f32.mrb[0].mxu0
    %2584 = vdwg.mxu0
    %v2585 = vsel %vm138, %v2577, -inf
    %2586 = vmax.xlane.f32.xlu0 %v2585
    %v2587 = vpop.xlane.xlu0 %2586
    %v2588 = vsel %vm138, %v2582, -inf
    %2589 = vmax.xlane.f32.xlu0 %v2588
    %v2590 = vpop.xlane.xlu0 %2589
    %v2591 = vsub.f32 %v2577, %v2587
    %v2592 = vsub.f32 %v2582, %v2590
    %v2593 = vmul.f32 %v2591, 1.442695
    %v2594 = vpow.pop %v2593
    %v2595 = vmul.f32 %v2592, 1.442695
    %v2596 = vpow.pop %v2595
    %v2597 = vsel %vm138, %v2594, 0.0
    %2598 = vadd.xlane.f32.xlu0 %v2597
    %v2599 = vpop.xlane.xlu0 %2598
    %v2600 = vsel %vm138, %v2596, 0.0
    %2601 = vadd.xlane.f32.xlu0 %v2600
    %v2602 = vpop.xlane.xlu0 %2601
    %v2603 = vrcp.pop %v2599
    %v2604 = vrcp.pop %v2602
    %v2605 = vmul.f32 %v2594, %v2603
    %v2606 = vmul.f32 %v2596, %v2604
    %2607 = vrot.lane.b32.xlu0 %v458, 32
    %v2608 = vpop.permute.xlu0 %2607
    %2609 = vrot.lane.b32.xlu0 %v464, 32
    %v2610 = vpop.permute.xlu0 %2609
    %v2614 = vsel %vm138, %v2605, 0
    %v2617 = vsel %vm138, %v2606, 0
    %2619 = vmatprep.subr.mxu0 0.0
    %2620 = vmatpush1.msra.mxu0 %v2608
    %2621 = vmatprep.subr.mxu0 0.0
    %2622 = vmatpush1.msra.mxu0 %v2610
    %2623 = vmatprep.subr.mxu0 0.0
    %2624 = vmatpush1.msra.mxu0 0.0
    %2625 = vmatprep.subr.mxu0 0.0
    %2626 = vmatpush1.msra.mxu0 0.0
    %2627 = vmatprep.subr.mxu0 0.0
    %2628 = vmatpush1.msra.mxu0 0.0
    %2629 = vmatprep.subr.mxu0 0.0
    %2630 = vmatpush1.msra.mxu0 0.0
    %2631 = vmatprep.subr.mxu0 0.0
    %2632 = vmatpush1.msra.mxu0 0.0
    %2633 = vmatprep.subr.mxu0 0.0
    %2634 = vmatpush1.msra.mxu0 0.0
    %2635 = vmatprep.subr.mxu0 0.0
    %2636 = vmatpush1.msra.mxu0 0.0
    %2637 = vmatprep.subr.mxu0 0.0
    %2638 = vmatpush1.msra.mxu0 0.0
    %2639 = vmatprep.subr.mxu0 0.0
    %2640 = vmatpush1.msra.mxu0 0.0
    %2641 = vmatprep.subr.mxu0 0.0
    %2642 = vmatpush1.msra.mxu0 0.0
    %2643 = vmatprep.subr.mxu0 0.0
    %2644 = vmatpush1.msra.mxu0 0.0
    %2645 = vmatprep.subr.mxu0 0.0
    %2646 = vmatpush1.msra.mxu0 0.0
    %2647 = vmatprep.subr.mxu0 0.0
    %2648 = vmatpush1.msra.mxu0 0.0
    %2649 = vmatprep.subr.mxu0 0.0
    %2650 = vmatpush1.msra.mxu0 0.0
    %2651 = vmatprep.subr.mxu0 0.0
    %2652 = vmatpush1.msra.mxu0 0.0
    %2653 = vmatprep.subr.mxu0 0.0
    %2654 = vmatpush1.msra.mxu0 0.0
    %2655 = vmatprep.subr.mxu0 0.0
    %2656 = vmatpush1.msra.mxu0 0.0
    %2657 = vmatprep.subr.mxu0 0.0
    %2658 = vmatpush1.msra.mxu0 0.0
    %2659 = vmatprep.subr.mxu0 0.0
    %2660 = vmatpush1.msra.mxu0 0.0
    %2661 = vmatprep.subr.mxu0 0.0
    %2662 = vmatpush1.msra.mxu0 0.0
    %2663 = vmatprep.subr.mxu0 0.0
    %2664 = vmatpush1.msra.mxu0 0.0
    %2665 = vmatprep.subr.mxu0 0.0
    %2666 = vmatpush1.msra.mxu0 0.0
    %2667 = vmatprep.subr.mxu0 0.0
    %2668 = vmatpush1.msra.mxu0 0.0
    %2669 = vmatprep.subr.mxu0 0.0
    %2670 = vmatpush1.msra.mxu0 0.0
    %2671 = vmatprep.subr.mxu0 0.0
    %2672 = vmatpush1.msra.mxu0 0.0
    %2673 = vmatprep.subr.mxu0 0.0
    %2674 = vmatpush1.msra.mxu0 0.0
    %2675 = vmatprep.subr.mxu0 0.0
    %2676 = vmatpush1.msra.mxu0 0.0
    %2677 = vmatprep.subr.mxu0 0.0
    %2678 = vmatpush1.msra.mxu0 0.0
    %2679 = vmatprep.subr.mxu0 0.0
    %2680 = vmatpush1.msra.mxu0 0.0
    %2681 = vmatprep.subr.mxu0 0.0
    %2682 = vmatpush1.msra.mxu0 0.0
    %2683 = vmatprep.mubr.f32.mxu0 0.0
    %2684 = vmatmul.mubr.f32.gmra.mrb[0].mxu0 %v2614
    %v2685 = vpop.f32.mrb[0].mxu0
    %v2686 = vadd.f32 0.0, %v2685
    %v2687 = vpop.f32.mrb[0].mxu0
    %2688 = vmatprep.mubr.f32.mxu0 0.0
    %2689 = vmatmul.mubr.f32.gmra.mrb[0].mxu0 %v2617
    %v2690 = vpop.f32.mrb[0].mxu0
    %v2691 = vadd.f32 0.0, %v2690
    %v2692 = vpop.f32.mrb[0].mxu0
    %2693 = vdwg.mxu0
    %2694 = vrot.lane.b32.xlu0 %v456, 80
    %v2695 = vpop.permute.xlu0 %2694
    %2696 = vrot.lane.b32.xlu0 %v462, 80
    %v2697 = vpop.permute.xlu0 %2696
    %v2698 = vsel %vm138, %v2695, 0
    %v2700 = vsel %vm138, %v2697, 0
    %2702 = vmatprep.subr.mxu0 0.0
    %2703 = vmatpush1.xpose.msra.mxu0 %v2698
    %2704 = vmatprep.subr.mxu0 0.0
    %2705 = vmatpush1.xpose.msra.mxu0 %v2700
    %2706 = vmatprep.subr.mxu0 0.0
    %2707 = vmatpush1.xpose.msra.mxu0 0.0
    %2708 = vmatprep.subr.mxu0 0.0
    %2709 = vmatpush1.xpose.msra.mxu0 0.0
    %2710 = vmatprep.subr.mxu0 0.0
    %2711 = vmatpush1.xpose.msra.mxu0 0.0
    %2712 = vmatprep.subr.mxu0 0.0
    %2713 = vmatpush1.xpose.msra.mxu0 0.0
    %2714 = vmatprep.subr.mxu0 0.0
    %2715 = vmatpush1.xpose.msra.mxu0 0.0
    %2716 = vmatprep.subr.mxu0 0.0
    %2717 = vmatpush1.xpose.msra.mxu0 0.0
    %2718 = vmatprep.subr.mxu0 0.0
    %2719 = vmatpush1.xpose.msra.mxu0 0.0
    %2720 = vmatprep.subr.mxu0 0.0
    %2721 = vmatpush1.xpose.msra.mxu0 0.0
    %2722 = vmatprep.subr.mxu0 0.0
    %2723 = vmatpush1.xpose.msra.mxu0 0.0
    %2724 = vmatprep.subr.mxu0 0.0
    %2725 = vmatpush1.xpose.msra.mxu0 0.0
    %2726 = vmatprep.subr.mxu0 0.0
    %2727 = vmatpush1.xpose.msra.mxu0 0.0
    %2728 = vmatprep.subr.mxu0 0.0
    %2729 = vmatpush1.xpose.msra.mxu0 0.0
    %2730 = vmatprep.subr.mxu0 0.0
    %2731 = vmatpush1.xpose.msra.mxu0 0.0
    %2732 = vmatprep.subr.mxu0 0.0
    %2733 = vmatpush1.xpose.msra.mxu0 0.0
    %2734 = vmatprep.subr.mxu0 0.0
    %2735 = vmatpush1.xpose.msra.mxu0 0.0
    %2736 = vmatprep.subr.mxu0 0.0
    %2737 = vmatpush1.xpose.msra.mxu0 0.0
    %2738 = vmatprep.subr.mxu0 0.0
    %2739 = vmatpush1.xpose.msra.mxu0 0.0
    %2740 = vmatprep.subr.mxu0 0.0
    %2741 = vmatpush1.xpose.msra.mxu0 0.0
    %2742 = vmatprep.subr.mxu0 0.0
    %2743 = vmatpush1.xpose.msra.mxu0 0.0
    %2744 = vmatprep.subr.mxu0 0.0
    %2745 = vmatpush1.xpose.msra.mxu0 0.0
    %2746 = vmatprep.subr.mxu0 0.0
    %2747 = vmatpush1.xpose.msra.mxu0 0.0
    %2748 = vmatprep.subr.mxu0 0.0
    %2749 = vmatpush1.xpose.msra.mxu0 0.0
    %2750 = vmatprep.subr.mxu0 0.0
    %2751 = vmatpush1.xpose.msra.mxu0 0.0
    %2752 = vmatprep.subr.mxu0 0.0
    %2753 = vmatpush1.xpose.msra.mxu0 0.0
    %2754 = vmatprep.subr.mxu0 0.0
    %2755 = vmatpush1.xpose.msra.mxu0 0.0
    %2756 = vmatprep.subr.mxu0 0.0
    %2757 = vmatpush1.xpose.msra.mxu0 0.0
    %2758 = vmatprep.subr.mxu0 0.0
    %2759 = vmatpush1.xpose.msra.mxu0 0.0
    %2760 = vmatprep.subr.mxu0 0.0
    %2761 = vmatpush1.xpose.msra.mxu0 0.0
    %2762 = vmatprep.subr.mxu0 0.0
    %2763 = vmatpush1.xpose.msra.mxu0 0.0
    %2764 = vmatprep.subr.mxu0 0.0
    %2765 = vmatpush1.xpose.msra.mxu0 0.0
    %2766 = vmatprep.mubr.f32.mxu0 0.0
    %2767 = vmatmul.mubr.f32.gmra.mrb[0].mxu0 %v676
    %v2768 = vpop.f32.mrb[0].mxu0
    %v2769 = vadd.f32 %v212, %v2768
    %v2770 = vpop.f32.mrb[0].mxu0
    %2771 = vmatprep.mubr.f32.mxu0 0.0
    %2772 = vmatmul.mubr.f32.gmra.mrb[0].mxu0 %v678
    %v2773 = vpop.f32.mrb[0].mxu0
    %v2774 = vadd.f32 %v213, %v2773
    %v2775 = vpop.f32.mrb[0].mxu0
    %2776 = vdwg.mxu0
    %v2777 = vsel %vm138, %v2769, -inf
    %2778 = vmax.xlane.f32.xlu0 %v2777
    %v2779 = vpop.xlane.xlu0 %2778
    %v2780 = vsel %vm138, %v2774, -inf
    %2781 = vmax.xlane.f32.xlu0 %v2780
    %v2782 = vpop.xlane.xlu0 %2781
    %v2783 = vsub.f32 %v2769, %v2779
    %v2784 = vsub.f32 %v2774, %v2782
    %v2785 = vmul.f32 %v2783, 1.442695
    %v2786 = vpow.pop %v2785
    %v2787 = vmul.f32 %v2784, 1.442695
    %v2788 = vpow.pop %v2787
    %v2789 = vsel %vm138, %v2786, 0.0
    %2790 = vadd.xlane.f32.xlu0 %v2789
    %v2791 = vpop.xlane.xlu0 %2790
    %v2792 = vsel %vm138, %v2788, 0.0
    %2793 = vadd.xlane.f32.xlu0 %v2792
    %v2794 = vpop.xlane.xlu0 %2793
    %v2795 = vrcp.pop %v2791
    %v2796 = vrcp.pop %v2794
    %v2797 = vmul.f32 %v2786, %v2795
    %v2798 = vmul.f32 %v2788, %v2796
    %2799 = vrot.lane.b32.xlu0 %v458, 16
    %v2800 = vpop.permute.xlu0 %2799
    %2801 = vrot.lane.b32.xlu0 %v464, 16
    %v2802 = vpop.permute.xlu0 %2801
    %v2806 = vsel %vm138, %v2797, 0
    %v2809 = vsel %vm138, %v2798, 0
    %2811 = vmatprep.subr.mxu0 0.0
    %2812 = vmatpush1.msra.mxu0 %v2800
    %2813 = vmatprep.subr.mxu0 0.0
    %2814 = vmatpush1.msra.mxu0 %v2802
    %2815 = vmatprep.subr.mxu0 0.0
    %2816 = vmatpush1.msra.mxu0 0.0
    %2817 = vmatprep.subr.mxu0 0.0
    %2818 = vmatpush1.msra.mxu0 0.0
    %2819 = vmatprep.subr.mxu0 0.0
    %2820 = vmatpush1.msra.mxu0 0.0
    %2821 = vmatprep.subr.mxu0 0.0
    %2822 = vmatpush1.msra.mxu0 0.0
    %2823 = vmatprep.subr.mxu0 0.0
    %2824 = vmatpush1.msra.mxu0 0.0
    %2825 = vmatprep.subr.mxu0 0.0
    %2826 = vmatpush1.msra.mxu0 0.0
    %2827 = vmatprep.subr.mxu0 0.0
    %2828 = vmatpush1.msra.mxu0 0.0
    %2829 = vmatprep.subr.mxu0 0.0
    %2830 = vmatpush1.msra.mxu0 0.0
    %2831 = vmatprep.subr.mxu0 0.0
    %2832 = vmatpush1.msra.mxu0 0.0
    %2833 = vmatprep.subr.mxu0 0.0
    %2834 = vmatpush1.msra.mxu0 0.0
    %2835 = vmatprep.subr.mxu0 0.0
    %2836 = vmatpush1.msra.mxu0 0.0
    %2837 = vmatprep.subr.mxu0 0.0
    %2838 = vmatpush1.msra.mxu0 0.0
    %2839 = vmatprep.subr.mxu0 0.0
    %2840 = vmatpush1.msra.mxu0 0.0
    %2841 = vmatprep.subr.mxu0 0.0
    %2842 = vmatpush1.msra.mxu0 0.0
    %2843 = vmatprep.subr.mxu0 0.0
    %2844 = vmatpush1.msra.mxu0 0.0
    %2845 = vmatprep.subr.mxu0 0.0
    %2846 = vmatpush1.msra.mxu0 0.0
    %2847 = vmatprep.subr.mxu0 0.0
    %2848 = vmatpush1.msra.mxu0 0.0
    %2849 = vmatprep.subr.mxu0 0.0
    %2850 = vmatpush1.msra.mxu0 0.0
    %2851 = vmatprep.subr.mxu0 0.0
    %2852 = vmatpush1.msra.mxu0 0.0
    %2853 = vmatprep.subr.mxu0 0.0
    %2854 = vmatpush1.msra.mxu0 0.0
    %2855 = vmatprep.subr.mxu0 0.0
    %2856 = vmatpush1.msra.mxu0 0.0
    %2857 = vmatprep.subr.mxu0 0.0
    %2858 = vmatpush1.msra.mxu0 0.0
    %2859 = vmatprep.subr.mxu0 0.0
    %2860 = vmatpush1.msra.mxu0 0.0
    %2861 = vmatprep.subr.mxu0 0.0
    %2862 = vmatpush1.msra.mxu0 0.0
    %2863 = vmatprep.subr.mxu0 0.0
    %2864 = vmatpush1.msra.mxu0 0.0
    %2865 = vmatprep.subr.mxu0 0.0
    %2866 = vmatpush1.msra.mxu0 0.0
    %2867 = vmatprep.subr.mxu0 0.0
    %2868 = vmatpush1.msra.mxu0 0.0
    %2869 = vmatprep.subr.mxu0 0.0
    %2870 = vmatpush1.msra.mxu0 0.0
    %2871 = vmatprep.subr.mxu0 0.0
    %2872 = vmatpush1.msra.mxu0 0.0
    %2873 = vmatprep.subr.mxu0 0.0
    %2874 = vmatpush1.msra.mxu0 0.0
    %2875 = vmatprep.mubr.f32.mxu0 0.0
    %2876 = vmatmul.mubr.f32.gmra.mrb[0].mxu0 %v2806
    %v2877 = vpop.f32.mrb[0].mxu0
    %v2878 = vadd.f32 0.0, %v2877
    %v2879 = vpop.f32.mrb[0].mxu0
    %2880 = vmatprep.mubr.f32.mxu0 0.0
    %2881 = vmatmul.mubr.f32.gmra.mrb[0].mxu0 %v2809
    %v2882 = vpop.f32.mrb[0].mxu0
    %v2883 = vadd.f32 0.0, %v2882
    %v2884 = vpop.f32.mrb[0].mxu0
    %2885 = vdwg.mxu0
    %2888 = vrot.lane.b32.xlu0 %v2878, 16
    %v2889 = vpop.permute.xlu0 %2888
    %2890 = vrot.lane.b32.xlu0 %v2883, 16
    %v2891 = vpop.permute.xlu0 %2890
    %v2894 = vsel %vm138, %v2686, %v2889
    %v2895 = vsel %vm138, %v2691, %v2891
    %v2896 = vmul.f32 %v2894, %v224
    %v2897 = vmul.f32 %v2895, %v225
    %v2898 = vadd.f32 %v2500, %v2896
    %v2899 = vadd.f32 %v2501, %v2897
    %v2900 = vmul.f32 %v2898, 0.33333334
    %v2901 = vmul.f32 %v2899, 0.33333334
    %2904 = vrot.lane.b32.xlu0 %v2900, 32
    %v2905 = vpop.permute.xlu0 %2904
    %2906 = vrot.lane.b32.xlu0 %v2901, 32
    %v2907 = vpop.permute.xlu0 %2906
    %2912 = vrot.lane.b32.xlu0 %v1694, 64
    %v2913 = vpop.permute.xlu0 %2912
    %2914 = vrot.lane.b32.xlu0 %v1695, 64
    %v2915 = vpop.permute.xlu0 %2914
    %2920 = vrot.lane.b32.xlu0 %v2106, 96
    %v2921 = vpop.permute.xlu0 %2920
    %2922 = vrot.lane.b32.xlu0 %v2107, 96
    %v2923 = vpop.permute.xlu0 %2922
    %v2926 = vsel %vm52, %v1286, %v2905
    %v2927 = vsel %vm52, %v1287, %v2907
    %vm2928 = vcmask 523264
    %v2929 = vsel %vm2928, %v2926, %v2913
    %v2930 = vsel %vm2928, %v2927, %v2915
    %vm2931 = vcmask 785408
    %v2932 = vsel %vm2931, %v2929, %v2921
    %v2933 = vsel %vm2931, %v2930, %v2923
    %v2934 = vmul.f32 %v2932, 0.5
    %v2935 = vmul.f32 %v2933, 0.5
    %v2936 = vmul.f32 %v2932, 0.044715
    %v2937 = vmul.f32 %v2933, 0.044715
    %v2938 = vmul.f32 %v2936, %v2932
    %v2939 = vmul.f32 %v2937, %v2933
    %v2940 = vmul.f32 %v2938, %v2932
    %v2941 = vmul.f32 %v2939, %v2933
    %v2942 = vadd.f32 %v2932, %v2940
    %v2943 = vadd.f32 %v2933, %v2941
    %v2944 = vmul.f32 %v2942, 0.7978846
    %v2945 = vmul.f32 %v2943, 0.7978846
    %v2946 = vtanh.pop %v2944
    %v2947 = vtanh.pop %v2945
    %v2948 = vadd.f32 %v2946, 1.0
    %v2949 = vadd.f32 %v2947, 1.0
    %v2950 = vmul.f32 %v2934, %v2948
    %v2951 = vmul.f32 %v2935, %v2949
    %v2952 = vld [vmem:[%s6] sm:$0xff]
    %v2953 = vld [vmem:[%s6 + $0x8] sm:$0xff]
    %v2954 = vld [vmem:[%s6 + $0x10] sm:$0xff]
    %v2955 = vld [vmem:[%s6 + $0x18] sm:$0xff]
    %v2956 = vld [vmem:[%s6 + $0x20] sm:$0xff]
    %v2957 = vld [vmem:[%s6 + $0x28] sm:$0xff]
    %v2958 = vld [vmem:[%s6 + $0x30] sm:$0xff]
    %v2959 = vld [vmem:[%s6 + $0x38] sm:$0xff]
    %v2960 = vld [vmem:[%s6 + $0x40] sm:$0xff]
    %v2961 = vld [vmem:[%s6 + $0x48] sm:$0xff]
    %v2962 = vld [vmem:[%s6 + $0x50] sm:$0xff]
    %v2963 = vld [vmem:[%s6 + $0x58] sm:$0xff]
    %v2964 = vld [vmem:[%s6 + $0x60] sm:$0xff]
    %v2965 = vld [vmem:[%s6 + $0x68] sm:$0xff]
    %v2966 = vld [vmem:[%s6 + $0x70] sm:$0xff]
    %v2967 = vld [vmem:[%s6 + $0x78] sm:$0xff]
    %v2968 = vld [vmem:[%s7] sm:$0x1]
    %v2970 = vlaneseq
    %v2971 = vshrl.u32 %v2970, 7
    %v2972 = vsub.s32 0, %v2971
    %v2973 = vrot.slane %v2968, %v2972
    %2975 = vmatprep.subr.mxu0 0.0
    %2976 = vmatpush1.msra.mxu0 %v2952
    %2977 = vmatprep.subr.mxu0 0.0
    %2978 = vmatpush1.msra.mxu0 %v2953
    %2979 = vmatprep.subr.mxu0 0.0
    %2980 = vmatpush1.msra.mxu0 %v2954
    %2981 = vmatprep.subr.mxu0 0.0
    %2982 = vmatpush1.msra.mxu0 %v2955
    %2983 = vmatprep.subr.mxu0 0.0
    %2984 = vmatpush1.msra.mxu0 %v2956
    %2985 = vmatprep.subr.mxu0 0.0
    %2986 = vmatpush1.msra.mxu0 %v2957
    %2987 = vmatprep.subr.mxu0 0.0
    %2988 = vmatpush1.msra.mxu0 %v2958
    %2989 = vmatprep.subr.mxu0 0.0
    %2990 = vmatpush1.msra.mxu0 %v2959
    %2991 = vmatprep.subr.mxu0 0.0
    %2992 = vmatpush1.msra.mxu0 %v2960
    %2993 = vmatprep.subr.mxu0 0.0
    %2994 = vmatpush1.msra.mxu0 %v2961
    %2995 = vmatprep.subr.mxu0 0.0
    %2996 = vmatpush1.msra.mxu0 %v2962
    %2997 = vmatprep.subr.mxu0 0.0
    %2998 = vmatpush1.msra.mxu0 %v2963
    %2999 = vmatprep.subr.mxu0 0.0
    %3000 = vmatpush1.msra.mxu0 %v2964
    %3001 = vmatprep.subr.mxu0 0.0
    %3002 = vmatpush1.msra.mxu0 %v2965
    %3003 = vmatprep.subr.mxu0 0.0
    %3004 = vmatpush1.msra.mxu0 %v2966
    %3005 = vmatprep.subr.mxu0 0.0
    %3006 = vmatpush1.msra.mxu0 %v2967
    %3007 = vmatprep.subr.mxu0 0.0
    %3008 = vmatpush1.msra.mxu0 0.0
    %3009 = vmatprep.subr.mxu0 0.0
    %3010 = vmatpush1.msra.mxu0 0.0
    %3011 = vmatprep.subr.mxu0 0.0
    %3012 = vmatpush1.msra.mxu0 0.0
    %3013 = vmatprep.subr.mxu0 0.0
    %3014 = vmatpush1.msra.mxu0 0.0
    %3015 = vmatprep.subr.mxu0 0.0
    %3016 = vmatpush1.msra.mxu0 0.0
    %3017 = vmatprep.subr.mxu0 0.0
    %3018 = vmatpush1.msra.mxu0 0.0
    %3019 = vmatprep.subr.mxu0 0.0
    %3020 = vmatpush1.msra.mxu0 0.0
    %3021 = vmatprep.subr.mxu0 0.0
    %3022 = vmatpush1.msra.mxu0 0.0
    %3023 = vmatprep.subr.mxu0 0.0
    %3024 = vmatpush1.msra.mxu0 0.0
    %3025 = vmatprep.subr.mxu0 0.0
    %3026 = vmatpush1.msra.mxu0 0.0
    %3027 = vmatprep.subr.mxu0 0.0
    %3028 = vmatpush1.msra.mxu0 0.0
    %3029 = vmatprep.subr.mxu0 0.0
    %3030 = vmatpush1.msra.mxu0 0.0
    %3031 = vmatprep.subr.mxu0 0.0
    %3032 = vmatpush1.msra.mxu0 0.0
    %3033 = vmatprep.subr.mxu0 0.0
    %3034 = vmatpush1.msra.mxu0 0.0
    %3035 = vmatprep.subr.mxu0 0.0
    %3036 = vmatpush1.msra.mxu0 0.0
    %3037 = vmatprep.subr.mxu0 0.0
    %3038 = vmatpush1.msra.mxu0 0.0
    %3039 = vmatprep.mubr.f32.mxu0 0.0
    %3040 = vmatmul.mubr.f32.gmra.mrb[0].mxu0 %v2950
    %v3041 = vpop.f32.mrb[0].mxu0
    %v3042 = vadd.f32 %v2973, %v3041
    %v3043 = vpop.f32.mrb[0].mxu0
    %3044 = vmatprep.mubr.f32.mxu0 0.0
    %3045 = vmatmul.mubr.f32.gmra.mrb[0].mxu0 %v2951
    %v3046 = vpop.f32.mrb[0].mxu0
    %v3047 = vadd.f32 %v2973, %v3046
    %v3048 = vpop.f32.mrb[0].mxu0
    %3049 = vdwg.mxu0
    %v3050 = vld [vmem:[%s8] sm:$0x1]
    %v3051 = vxor.u32 %v3050, 2147483648
    %v3052 = vmul.f32 %v3051, 1.442695
    %v3053 = vpow.pop %v3052
    %v3054 = vadd.f32 %v3053, 1.0
    %v3055 = vrcp.pop %v3054
    %v3056 = vmul.f32 1.0, %v3055
    %v3058 = vlaneseq
    %v3059 = vshrl.u32 %v3058, 7
    %v3060 = vsub.s32 0, %v3059
    %v3061 = vrot.slane %v3056, %v3060
    %v3063 = vmul.f32 %v3061, %v3042
    %v3064 = vmul.f32 %v3061, %v3047
    %v3065 = vsub.f32 1.0, %v3056
    %v3067 = vlaneseq
    %v3068 = vshrl.u32 %v3067, 7
    %v3069 = vsub.s32 0, %v3068
    %v3070 = vrot.slane %v3065, %v3069
    %v3072 = vmul.f32 %v3070, %v134
    %v3073 = vmul.f32 %v3070, %v135
    %v3074 = vadd.f32 %v3063, %v3072
    %v3075 = vadd.f32 %v3064, %v3073
    %s3076 = scalar_lea.vmem %s4, 512
    %v3077 = vld [vmem:[%s3076] sm:$0xff]
    %v3078 = vld [vmem:[%s3076 + $0x8] sm:$0xff]
    %v3079 = vld [vmem:[%s3076 + $0x10] sm:$0xff]
    %v3080 = vld [vmem:[%s3076 + $0x18] sm:$0xff]
    %v3081 = vld [vmem:[%s3076 + $0x20] sm:$0xff]
    %v3082 = vld [vmem:[%s3076 + $0x28] sm:$0xff]
    %v3083 = vld [vmem:[%s3076 + $0x30] sm:$0xff]
    %v3084 = vld [vmem:[%s3076 + $0x38] sm:$0xff]
    %v3085 = vld [vmem:[%s3076 + $0x40] sm:$0xff]
    %v3086 = vld [vmem:[%s3076 + $0x48] sm:$0xff]
    %v3087 = vld [vmem:[%s3076 + $0x50] sm:$0xff]
    %v3088 = vld [vmem:[%s3076 + $0x58] sm:$0xff]
    %v3089 = vld [vmem:[%s3076 + $0x60] sm:$0xff]
    %v3090 = vld [vmem:[%s3076 + $0x68] sm:$0xff]
    %v3091 = vld [vmem:[%s3076 + $0x70] sm:$0xff]
    %v3092 = vld [vmem:[%s3076 + $0x78] sm:$0xff]
    %v3093 = vld [vmem:[%s3076 + $0x80] sm:$0xff]
    %v3094 = vld [vmem:[%s3076 + $0x88] sm:$0xff]
    %v3095 = vld [vmem:[%s3076 + $0x90] sm:$0xff]
    %v3096 = vld [vmem:[%s3076 + $0x98] sm:$0xff]
    %v3097 = vld [vmem:[%s3076 + $0xa0] sm:$0xff]
    %v3098 = vld [vmem:[%s3076 + $0xa8] sm:$0xff]
    %v3099 = vld [vmem:[%s3076 + $0xb0] sm:$0xff]
    %v3100 = vld [vmem:[%s3076 + $0xb8] sm:$0xff]
    %v3101 = vld [vmem:[%s3076 + $0xc0] sm:$0xff]
    %v3102 = vld [vmem:[%s3076 + $0xc8] sm:$0xff]
    %v3103 = vld [vmem:[%s3076 + $0xd0] sm:$0xff]
    %v3104 = vld [vmem:[%s3076 + $0xd8] sm:$0xff]
    %v3105 = vld [vmem:[%s3076 + $0xe0] sm:$0xff]
    %v3106 = vld [vmem:[%s3076 + $0xe8] sm:$0xff]
    %v3107 = vld [vmem:[%s3076 + $0xf0] sm:$0xff]
    %v3108 = vld [vmem:[%s3076 + $0xf8] sm:$0xff]
    %v3109 = vld [vmem:[%s3076 + $0x100] sm:$0xff]
    %v3110 = vld [vmem:[%s3076 + $0x108] sm:$0xff]
    %v3111 = vld [vmem:[%s3076 + $0x110] sm:$0xff]
    %v3112 = vld [vmem:[%s3076 + $0x118] sm:$0xff]
    %v3113 = vld [vmem:[%s3076 + $0x120] sm:$0xff]
    %v3114 = vld [vmem:[%s3076 + $0x128] sm:$0xff]
    %v3115 = vld [vmem:[%s3076 + $0x130] sm:$0xff]
    %v3116 = vld [vmem:[%s3076 + $0x138] sm:$0xff]
    %v3117 = vld [vmem:[%s3076 + $0x140] sm:$0xff]
    %v3118 = vld [vmem:[%s3076 + $0x148] sm:$0xff]
    %v3119 = vld [vmem:[%s3076 + $0x150] sm:$0xff]
    %v3120 = vld [vmem:[%s3076 + $0x158] sm:$0xff]
    %v3121 = vld [vmem:[%s3076 + $0x160] sm:$0xff]
    %v3122 = vld [vmem:[%s3076 + $0x168] sm:$0xff]
    %v3123 = vld [vmem:[%s3076 + $0x170] sm:$0xff]
    %v3124 = vld [vmem:[%s3076 + $0x178] sm:$0xff]
    %v3125 = vld [vmem:[%s3076 + $0x180] sm:$0xff]
    %v3126 = vld [vmem:[%s3076 + $0x188] sm:$0xff]
    %v3127 = vld [vmem:[%s3076 + $0x190] sm:$0xff]
    %v3128 = vld [vmem:[%s3076 + $0x198] sm:$0xff]
    %v3129 = vld [vmem:[%s3076 + $0x1a0] sm:$0xff]
    %v3130 = vld [vmem:[%s3076 + $0x1a8] sm:$0xff]
    %v3131 = vld [vmem:[%s3076 + $0x1b0] sm:$0xff]
    %v3132 = vld [vmem:[%s3076 + $0x1b8] sm:$0xff]
    %v3133 = vld [vmem:[%s3076 + $0x1c0] sm:$0xff]
    %v3134 = vld [vmem:[%s3076 + $0x1c8] sm:$0xff]
    %v3135 = vld [vmem:[%s3076 + $0x1d0] sm:$0xff]
    %v3136 = vld [vmem:[%s3076 + $0x1d8] sm:$0xff]
    %v3137 = vld [vmem:[%s3076 + $0x1e0] sm:$0xff]
    %v3138 = vld [vmem:[%s3076 + $0x1e8] sm:$0xff]
    %v3139 = vld [vmem:[%s3076 + $0x1f0] sm:$0xff]
    %v3140 = vld [vmem:[%s3076 + $0x1f8] sm:$0xff]
    %s3141 = scalar_lea.vmem %s5, 4
    %v3142 = vld [vmem:[%s3141] sm:$0xf]
    %v3144 = vlaneseq
    %v3145 = vshrl.u32 %v3144, 7
    %v3146 = vsub.s32 0, %v3145
    %v3147 = vrot.slane %v3142, %v3146
    %v3148 = vlaneseq
    %v3149 = vshrl.u32 %v3148, 7
    %v3150 = vsub.s32 1, %v3149
    %v3151 = vrot.slane %v3142, %v3150
    %v3152 = vlaneseq
    %v3153 = vshrl.u32 %v3152, 7
    %v3154 = vsub.s32 2, %v3153
    %v3155 = vrot.slane %v3142, %v3154
    %v3156 = vlaneseq
    %v3157 = vshrl.u32 %v3156, 7
    %v3158 = vsub.s32 3, %v3157
    %v3159 = vrot.slane %v3142, %v3158
    %3164 = vmatprep.subr.mxu0 %v3078
    %3165 = vmatpush1.msra.mxu0 %v3077
    %3166 = vmatprep.subr.mxu0 %v3082
    %3167 = vmatpush1.msra.mxu0 %v3081
    %3168 = vmatprep.subr.mxu0 %v3086
    %3169 = vmatpush1.msra.mxu0 %v3085
    %3170 = vmatprep.subr.mxu0 %v3090
    %3171 = vmatpush1.msra.mxu0 %v3089
    %3172 = vmatprep.subr.mxu0 %v3094
    %3173 = vmatpush1.msra.mxu0 %v3093
    %3174 = vmatprep.subr.mxu0 %v3098
    %3175 = vmatpush1.msra.mxu0 %v3097
    %3176 = vmatprep.subr.mxu0 %v3102
    %3177 = vmatpush1.msra.mxu0 %v3101
    %3178 = vmatprep.subr.mxu0 %v3106
    %3179 = vmatpush1.msra.mxu0 %v3105
    %3180 = vmatprep.subr.mxu0 %v3110
    %3181 = vmatpush1.msra.mxu0 %v3109
    %3182 = vmatprep.subr.mxu0 %v3114
    %3183 = vmatpush1.msra.mxu0 %v3113
    %3184 = vmatprep.subr.mxu0 %v3118
    %3185 = vmatpush1.msra.mxu0 %v3117
    %3186 = vmatprep.subr.mxu0 %v3122
    %3187 = vmatpush1.msra.mxu0 %v3121
    %3188 = vmatprep.subr.mxu0 %v3126
    %3189 = vmatpush1.msra.mxu0 %v3125
    %3190 = vmatprep.subr.mxu0 %v3130
    %3191 = vmatpush1.msra.mxu0 %v3129
    %3192 = vmatprep.subr.mxu0 %v3134
    %3193 = vmatpush1.msra.mxu0 %v3133
    %3194 = vmatprep.subr.mxu0 %v3138
    %3195 = vmatpush1.msra.mxu0 %v3137
    %3196 = vmatprep.subr.mxu0 0.0
    %3197 = vmatpush1.msra.mxu0 0.0
    %3198 = vmatprep.subr.mxu0 0.0
    %3199 = vmatpush1.msra.mxu0 0.0
    %3200 = vmatprep.subr.mxu0 0.0
    %3201 = vmatpush1.msra.mxu0 0.0
    %3202 = vmatprep.subr.mxu0 0.0
    %3203 = vmatpush1.msra.mxu0 0.0
    %3204 = vmatprep.subr.mxu0 0.0
    %3205 = vmatpush1.msra.mxu0 0.0
    %3206 = vmatprep.subr.mxu0 0.0
    %3207 = vmatpush1.msra.mxu0 0.0
    %3208 = vmatprep.subr.mxu0 0.0
    %3209 = vmatpush1.msra.mxu0 0.0
    %3210 = vmatprep.subr.mxu0 0.0
    %3211 = vmatpush1.msra.mxu0 0.0
    %3212 = vmatprep.subr.mxu0 0.0
    %3213 = vmatpush1.msra.mxu0 0.0
    %3214 = vmatprep.subr.mxu0 0.0
    %3215 = vmatpush1.msra.mxu0 0.0
    %3216 = vmatprep.subr.mxu0 0.0
    %3217 = vmatpush1.msra.mxu0 0.0
    %3218 = vmatprep.subr.mxu0 0.0
    %3219 = vmatpush1.msra.mxu0 0.0
    %3220 = vmatprep.subr.mxu0 0.0
    %3221 = vmatpush1.msra.mxu0 0.0
    %3222 = vmatprep.subr.mxu0 0.0
    %3223 = vmatpush1.msra.mxu0 0.0
    %3224 = vmatprep.subr.mxu0 0.0
    %3225 = vmatpush1.msra.mxu0 0.0
    %3226 = vmatprep.subr.mxu0 0.0
    %3227 = vmatpush1.msra.mxu0 0.0
    %3228 = vmatprep.mubr.f32.mxu0 0.0
    %3229 = vmatmul.mubr.f32.gmra.mrb[0].mxu0 %v3074
    %v3230 = vpop.f32.mrb[0].mxu0
    %v3231 = vadd.f32 %v3147, %v3230
    %v3232 = vpop.f32.mrb[0].mxu0
    %v3233 = vadd.f32 %v3151, %v3232
    %3234 = vmatprep.mubr.f32.mxu0 0.0
    %3235 = vmatmul.mubr.f32.gmra.mrb[0].mxu0 %v3075
    %v3236 = vpop.f32.mrb[0].mxu0
    %v3237 = vadd.f32 %v3147, %v3236
    %v3238 = vpop.f32.mrb[0].mxu0
    %v3239 = vadd.f32 %v3151, %v3238
    %3240 = vdwg.mxu0
    %3241 = vmatprep.subr.mxu0 %v3080
    %3242 = vmatpush1.msra.mxu0 %v3079
    %3243 = vmatprep.subr.mxu0 %v3084
    %3244 = vmatpush1.msra.mxu0 %v3083
    %3245 = vmatprep.subr.mxu0 %v3088
    %3246 = vmatpush1.msra.mxu0 %v3087
    %3247 = vmatprep.subr.mxu0 %v3092
    %3248 = vmatpush1.msra.mxu0 %v3091
    %3249 = vmatprep.subr.mxu0 %v3096
    %3250 = vmatpush1.msra.mxu0 %v3095
    %3251 = vmatprep.subr.mxu0 %v3100
    %3252 = vmatpush1.msra.mxu0 %v3099
    %3253 = vmatprep.subr.mxu0 %v3104
    %3254 = vmatpush1.msra.mxu0 %v3103
    %3255 = vmatprep.subr.mxu0 %v3108
    %3256 = vmatpush1.msra.mxu0 %v3107
    %3257 = vmatprep.subr.mxu0 %v3112
    %3258 = vmatpush1.msra.mxu0 %v3111
    %3259 = vmatprep.subr.mxu0 %v3116
    %3260 = vmatpush1.msra.mxu0 %v3115
    %3261 = vmatprep.subr.mxu0 %v3120
    %3262 = vmatpush1.msra.mxu0 %v3119
    %3263 = vmatprep.subr.mxu0 %v3124
    %3264 = vmatpush1.msra.mxu0 %v3123
    %3265 = vmatprep.subr.mxu0 %v3128
    %3266 = vmatpush1.msra.mxu0 %v3127
    %3267 = vmatprep.subr.mxu0 %v3132
    %3268 = vmatpush1.msra.mxu0 %v3131
    %3269 = vmatprep.subr.mxu0 %v3136
    %3270 = vmatpush1.msra.mxu0 %v3135
    %3271 = vmatprep.subr.mxu0 %v3140
    %3272 = vmatpush1.msra.mxu0 %v3139
    %3273 = vmatprep.subr.mxu0 0.0
    %3274 = vmatpush1.msra.mxu0 0.0
    %3275 = vmatprep.subr.mxu0 0.0
    %3276 = vmatpush1.msra.mxu0 0.0
    %3277 = vmatprep.subr.mxu0 0.0
    %3278 = vmatpush1.msra.mxu0 0.0
    %3279 = vmatprep.subr.mxu0 0.0
    %3280 = vmatpush1.msra.mxu0 0.0
    %3281 = vmatprep.subr.mxu0 0.0
    %3282 = vmatpush1.msra.mxu0 0.0
    %3283 = vmatprep.subr.mxu0 0.0
    %3284 = vmatpush1.msra.mxu0 0.0
    %3285 = vmatprep.subr.mxu0 0.0
    %3286 = vmatpush1.msra.mxu0 0.0
    %3287 = vmatprep.subr.mxu0 0.0
    %3288 = vmatpush1.msra.mxu0 0.0
    %3289 = vmatprep.subr.mxu0 0.0
    %3290 = vmatpush1.msra.mxu0 0.0
    %3291 = vmatprep.subr.mxu0 0.0
    %3292 = vmatpush1.msra.mxu0 0.0
    %3293 = vmatprep.subr.mxu0 0.0
    %3294 = vmatpush1.msra.mxu0 0.0
    %3295 = vmatprep.subr.mxu0 0.0
    %3296 = vmatpush1.msra.mxu0 0.0
    %3297 = vmatprep.subr.mxu0 0.0
    %3298 = vmatpush1.msra.mxu0 0.0
    %3299 = vmatprep.subr.mxu0 0.0
    %3300 = vmatpush1.msra.mxu0 0.0
    %3301 = vmatprep.subr.mxu0 0.0
    %3302 = vmatpush1.msra.mxu0 0.0
    %3303 = vmatprep.subr.mxu0 0.0
    %3304 = vmatpush1.msra.mxu0 0.0
    %3305 = vmatprep.mubr.f32.mxu0 0.0
    %3306 = vmatmul.mubr.f32.gmra.mrb[0].mxu0 %v3074
    %v3307 = vpop.f32.mrb[0].mxu0
    %v3308 = vadd.f32 %v3155, %v3307
    %v3309 = vpop.f32.mrb[0].mxu0
    %v3310 = vadd.f32 %v3159, %v3309
    %3311 = vmatprep.mubr.f32.mxu0 0.0
    %3312 = vmatmul.mubr.f32.gmra.mrb[0].mxu0 %v3075
    %v3313 = vpop.f32.mrb[0].mxu0
    %v3314 = vadd.f32 %v3155, %v3313
    %v3315 = vpop.f32.mrb[0].mxu0
    %v3316 = vadd.f32 %v3159, %v3315
    %3317 = vdwg.mxu0
    %3320 = vrot.lane.b32.xlu0 %v3231, 96
    %v3321 = vpop.permute.xlu0 %3320
    %3322 = vrot.lane.b32.xlu0 %v3237, 96
    %v3323 = vpop.permute.xlu0 %3322
    %v3324 = vsel %vm138, %v3321, 0
    %v3326 = vsel %vm138, %v3323, 0
    %v3329 = vsel %vm138, %v3233, 0
    %v3332 = vsel %vm138, %v3239, 0
    %3334 = vmatprep.subr.mxu0 0.0
    %3335 = vmatpush1.xpose.msra.mxu0 %v3329
    %3336 = vmatprep.subr.mxu0 0.0
    %3337 = vmatpush1.xpose.msra.mxu0 %v3332
    %3338 = vmatprep.subr.mxu0 0.0
    %3339 = vmatpush1.xpose.msra.mxu0 0.0
    %3340 = vmatprep.subr.mxu0 0.0
    %3341 = vmatpush1.xpose.msra.mxu0 0.0
    %3342 = vmatprep.subr.mxu0 0.0
    %3343 = vmatpush1.xpose.msra.mxu0 0.0
    %3344 = vmatprep.subr.mxu0 0.0
    %3345 = vmatpush1.xpose.msra.mxu0 0.0
    %3346 = vmatprep.subr.mxu0 0.0
    %3347 = vmatpush1.xpose.msra.mxu0 0.0
    %3348 = vmatprep.subr.mxu0 0.0
    %3349 = vmatpush1.xpose.msra.mxu0 0.0
    %3350 = vmatprep.subr.mxu0 0.0
    %3351 = vmatpush1.xpose.msra.mxu0 0.0
    %3352 = vmatprep.subr.mxu0 0.0
    %3353 = vmatpush1.xpose.msra.mxu0 0.0
    %3354 = vmatprep.subr.mxu0 0.0
    %3355 = vmatpush1.xpose.msra.mxu0 0.0
    %3356 = vmatprep.subr.mxu0 0.0
    %3357 = vmatpush1.xpose.msra.mxu0 0.0
    %3358 = vmatprep.subr.mxu0 0.0
    %3359 = vmatpush1.xpose.msra.mxu0 0.0
    %3360 = vmatprep.subr.mxu0 0.0
    %3361 = vmatpush1.xpose.msra.mxu0 0.0
    %3362 = vmatprep.subr.mxu0 0.0
    %3363 = vmatpush1.xpose.msra.mxu0 0.0
    %3364 = vmatprep.subr.mxu0 0.0
    %3365 = vmatpush1.xpose.msra.mxu0 0.0
    %3366 = vmatprep.subr.mxu0 0.0
    %3367 = vmatpush1.xpose.msra.mxu0 0.0
    %3368 = vmatprep.subr.mxu0 0.0
    %3369 = vmatpush1.xpose.msra.mxu0 0.0
    %3370 = vmatprep.subr.mxu0 0.0
    %3371 = vmatpush1.xpose.msra.mxu0 0.0
    %3372 = vmatprep.subr.mxu0 0.0
    %3373 = vmatpush1.xpose.msra.mxu0 0.0
    %3374 = vmatprep.subr.mxu0 0.0
    %3375 = vmatpush1.xpose.msra.mxu0 0.0
    %3376 = vmatprep.subr.mxu0 0.0
    %3377 = vmatpush1.xpose.msra.mxu0 0.0
    %3378 = vmatprep.subr.mxu0 0.0
    %3379 = vmatpush1.xpose.msra.mxu0 0.0
    %3380 = vmatprep.subr.mxu0 0.0
    %3381 = vmatpush1.xpose.msra.mxu0 0.0
    %3382 = vmatprep.subr.mxu0 0.0
    %3383 = vmatpush1.xpose.msra.mxu0 0.0
    %3384 = vmatprep.subr.mxu0 0.0
    %3385 = vmatpush1.xpose.msra.mxu0 0.0
    %3386 = vmatprep.subr.mxu0 0.0
    %3387 = vmatpush1.xpose.msra.mxu0 0.0
    %3388 = vmatprep.subr.mxu0 0.0
    %3389 = vmatpush1.xpose.msra.mxu0 0.0
    %3390 = vmatprep.subr.mxu0 0.0
    %3391 = vmatpush1.xpose.msra.mxu0 0.0
    %3392 = vmatprep.subr.mxu0 0.0
    %3393 = vmatpush1.xpose.msra.mxu0 0.0
    %3394 = vmatprep.subr.mxu0 0.0
    %3395 = vmatpush1.xpose.msra.mxu0 0.0
    %3396 = vmatprep.subr.mxu0 0.0
    %3397 = vmatpush1.xpose.msra.mxu0 0.0
    %3398 = vmatprep.mubr.f32.mxu0 0.0
    %3399 = vmatmul.mubr.f32.gmra.mrb[0].mxu0 %v3324
    %v3400 = vpop.f32.mrb[0].mxu0
    %v3401 = vadd.f32 %v136, %v3400
    %v3402 = vpop.f32.mrb[0].mxu0
    %3403 = vmatprep.mubr.f32.mxu0 0.0
    %3404 = vmatmul.mubr.f32.gmra.mrb[0].mxu0 %v3326
    %v3405 = vpop.f32.mrb[0].mxu0
    %v3406 = vadd.f32 %v137, %v3405
    %v3407 = vpop.f32.mrb[0].mxu0
    %3408 = vdwg.mxu0
    %v3409 = vsel %vm138, %v3401, -inf
    %3410 = vmax.xlane.f32.xlu0 %v3409
    %v3411 = vpop.xlane.xlu0 %3410
    %v3412 = vsel %vm138, %v3406, -inf
    %3413 = vmax.xlane.f32.xlu0 %v3412
    %v3414 = vpop.xlane.xlu0 %3413
    %v3415 = vsub.f32 %v3401, %v3411
    %v3416 = vsub.f32 %v3406, %v3414
    %v3417 = vmul.f32 %v3415, 1.442695
    %v3418 = vpow.pop %v3417
    %v3419 = vmul.f32 %v3416, 1.442695
    %v3420 = vpow.pop %v3419
    %v3421 = vsel %vm138, %v3418, 0.0
    %3422 = vadd.xlane.f32.xlu0 %v3421
    %v3423 = vpop.xlane.xlu0 %3422
    %v3424 = vsel %vm138, %v3420, 0.0
    %3425 = vadd.xlane.f32.xlu0 %v3424
    %v3426 = vpop.xlane.xlu0 %3425
    %v3427 = vrcp.pop %v3423
    %v3428 = vrcp.pop %v3426
    %v3429 = vmul.f32 %v3418, %v3427
    %v3430 = vmul.f32 %v3420, %v3428
    %3433 = vrot.lane.b32.xlu0 %v3308, 64
    %v3434 = vpop.permute.xlu0 %3433
    %3435 = vrot.lane.b32.xlu0 %v3314, 64
    %v3436 = vpop.permute.xlu0 %3435
    %v3440 = vsel %vm138, %v3429, 0
    %v3443 = vsel %vm138, %v3430, 0
    %3445 = vmatprep.subr.mxu0 0.0
    %3446 = vmatpush1.msra.mxu0 %v3434
    %3447 = vmatprep.subr.mxu0 0.0
    %3448 = vmatpush1.msra.mxu0 %v3436
    %3449 = vmatprep.subr.mxu0 0.0
    %3450 = vmatpush1.msra.mxu0 0.0
    %3451 = vmatprep.subr.mxu0 0.0
    %3452 = vmatpush1.msra.mxu0 0.0
    %3453 = vmatprep.subr.mxu0 0.0
    %3454 = vmatpush1.msra.mxu0 0.0
    %3455 = vmatprep.subr.mxu0 0.0
    %3456 = vmatpush1.msra.mxu0 0.0
    %3457 = vmatprep.subr.mxu0 0.0
    %3458 = vmatpush1.msra.mxu0 0.0
    %3459 = vmatprep.subr.mxu0 0.0
    %3460 = vmatpush1.msra.mxu0 0.0
    %3461 = vmatprep.subr.mxu0 0.0
    %3462 = vmatpush1.msra.mxu0 0.0
    %3463 = vmatprep.subr.mxu0 0.0
    %3464 = vmatpush1.msra.mxu0 0.0
    %3465 = vmatprep.subr.mxu0 0.0
    %3466 = vmatpush1.msra.mxu0 0.0
    %3467 = vmatprep.subr.mxu0 0.0
    %3468 = vmatpush1.msra.mxu0 0.0
    %3469 = vmatprep.subr.mxu0 0.0
    %3470 = vmatpush1.msra.mxu0 0.0
    %3471 = vmatprep.subr.mxu0 0.0
    %3472 = vmatpush1.msra.mxu0 0.0
    %3473 = vmatprep.subr.mxu0 0.0
    %3474 = vmatpush1.msra.mxu0 0.0
    %3475 = vmatprep.subr.mxu0 0.0
    %3476 = vmatpush1.msra.mxu0 0.0
    %3477 = vmatprep.subr.mxu0 0.0
    %3478 = vmatpush1.msra.mxu0 0.0
    %3479 = vmatprep.subr.mxu0 0.0
    %3480 = vmatpush1.msra.mxu0 0.0
    %3481 = vmatprep.subr.mxu0 0.0
    %3482 = vmatpush1.msra.mxu0 0.0
    %3483 = vmatprep.subr.mxu0 0.0
    %3484 = vmatpush1.msra.mxu0 0.0
    %3485 = vmatprep.subr.mxu0 0.0
    %3486 = vmatpush1.msra.mxu0 0.0
    %3487 = vmatprep.subr.mxu0 0.0
    %3488 = vmatpush1.msra.mxu0 0.0
    %3489 = vmatprep.subr.mxu0 0.0
    %3490 = vmatpush1.msra.mxu0 0.0
    %3491 = vmatprep.subr.mxu0 0.0
    %3492 = vmatpush1.msra.mxu0 0.0
    %3493 = vmatprep.subr.mxu0 0.0
    %3494 = vmatpush1.msra.mxu0 0.0
    %3495 = vmatprep.subr.mxu0 0.0
    %3496 = vmatpush1.msra.mxu0 0.0
    %3497 = vmatprep.subr.mxu0 0.0
    %3498 = vmatpush1.msra.mxu0 0.0
    %3499 = vmatprep.subr.mxu0 0.0
    %3500 = vmatpush1.msra.mxu0 0.0
    %3501 = vmatprep.subr.mxu0 0.0
    %3502 = vmatpush1.msra.mxu0 0.0
    %3503 = vmatprep.subr.mxu0 0.0
    %3504 = vmatpush1.msra.mxu0 0.0
    %3505 = vmatprep.subr.mxu0 0.0
    %3506 = vmatpush1.msra.mxu0 0.0
    %3507 = vmatprep.subr.mxu0 0.0
    %3508 = vmatpush1.msra.mxu0 0.0
    %3509 = vmatprep.mubr.f32.mxu0 0.0
    %3510 = vmatmul.mubr.f32.gmra.mrb[0].mxu0 %v3440
    %v3511 = vpop.f32.mrb[0].mxu0
    %v3512 = vadd.f32 0.0, %v3511
    %v3513 = vpop.f32.mrb[0].mxu0
    %3514 = vmatprep.mubr.f32.mxu0 0.0
    %3515 = vmatmul.mubr.f32.gmra.mrb[0].mxu0 %v3443
    %v3516 = vpop.f32.mrb[0].mxu0
    %v3517 = vadd.f32 0.0, %v3516
    %v3518 = vpop.f32.mrb[0].mxu0
    %3519 = vdwg.mxu0
    %3520 = vrot.lane.b32.xlu0 %v3231, 80
    %v3521 = vpop.permute.xlu0 %3520
    %3522 = vrot.lane.b32.xlu0 %v3237, 80
    %v3523 = vpop.permute.xlu0 %3522
    %3524 = vrot.lane.b32.xlu0 %v3233, 112
    %v3525 = vpop.permute.xlu0 %3524
    %3526 = vrot.lane.b32.xlu0 %v3239, 112
    %v3527 = vpop.permute.xlu0 %3526
    %v3528 = vsel %vm138, %v3521, 0
    %v3530 = vsel %vm138, %v3523, 0
    %v3532 = vsel %vm138, %v3525, 0
    %v3534 = vsel %vm138, %v3527, 0
    %3536 = vmatprep.subr.mxu0 0.0
    %3537 = vmatpush1.xpose.msra.mxu0 %v3532
    %3538 = vmatprep.subr.mxu0 0.0
    %3539 = vmatpush1.xpose.msra.mxu0 %v3534
    %3540 = vmatprep.subr.mxu0 0.0
    %3541 = vmatpush1.xpose.msra.mxu0 0.0
    %3542 = vmatprep.subr.mxu0 0.0
    %3543 = vmatpush1.xpose.msra.mxu0 0.0
    %3544 = vmatprep.subr.mxu0 0.0
    %3545 = vmatpush1.xpose.msra.mxu0 0.0
    %3546 = vmatprep.subr.mxu0 0.0
    %3547 = vmatpush1.xpose.msra.mxu0 0.0
    %3548 = vmatprep.subr.mxu0 0.0
    %3549 = vmatpush1.xpose.msra.mxu0 0.0
    %3550 = vmatprep.subr.mxu0 0.0
    %3551 = vmatpush1.xpose.msra.mxu0 0.0
    %3552 = vmatprep.subr.mxu0 0.0
    %3553 = vmatpush1.xpose.msra.mxu0 0.0
    %3554 = vmatprep.subr.mxu0 0.0
    %3555 = vmatpush1.xpose.msra.mxu0 0.0
    %3556 = vmatprep.subr.mxu0 0.0
    %3557 = vmatpush1.xpose.msra.mxu0 0.0
    %3558 = vmatprep.subr.mxu0 0.0
    %3559 = vmatpush1.xpose.msra.mxu0 0.0
    %3560 = vmatprep.subr.mxu0 0.0
    %3561 = vmatpush1.xpose.msra.mxu0 0.0
    %3562 = vmatprep.subr.mxu0 0.0
    %3563 = vmatpush1.xpose.msra.mxu0 0.0
    %3564 = vmatprep.subr.mxu0 0.0
    %3565 = vmatpush1.xpose.msra.mxu0 0.0
    %3566 = vmatprep.subr.mxu0 0.0
    %3567 = vmatpush1.xpose.msra.mxu0 0.0
    %3568 = vmatprep.subr.mxu0 0.0
    %3569 = vmatpush1.xpose.msra.mxu0 0.0
    %3570 = vmatprep.subr.mxu0 0.0
    %3571 = vmatpush1.xpose.msra.mxu0 0.0
    %3572 = vmatprep.subr.mxu0 0.0
    %3573 = vmatpush1.xpose.msra.mxu0 0.0
    %3574 = vmatprep.subr.mxu0 0.0
    %3575 = vmatpush1.xpose.msra.mxu0 0.0
    %3576 = vmatprep.subr.mxu0 0.0
    %3577 = vmatpush1.xpose.msra.mxu0 0.0
    %3578 = vmatprep.subr.mxu0 0.0
    %3579 = vmatpush1.xpose.msra.mxu0 0.0
    %3580 = vmatprep.subr.mxu0 0.0
    %3581 = vmatpush1.xpose.msra.mxu0 0.0
    %3582 = vmatprep.subr.mxu0 0.0
    %3583 = vmatpush1.xpose.msra.mxu0 0.0
    %3584 = vmatprep.subr.mxu0 0.0
    %3585 = vmatpush1.xpose.msra.mxu0 0.0
    %3586 = vmatprep.subr.mxu0 0.0
    %3587 = vmatpush1.xpose.msra.mxu0 0.0
    %3588 = vmatprep.subr.mxu0 0.0
    %3589 = vmatpush1.xpose.msra.mxu0 0.0
    %3590 = vmatprep.subr.mxu0 0.0
    %3591 = vmatpush1.xpose.msra.mxu0 0.0
    %3592 = vmatprep.subr.mxu0 0.0
    %3593 = vmatpush1.xpose.msra.mxu0 0.0
    %3594 = vmatprep.subr.mxu0 0.0
    %3595 = vmatpush1.xpose.msra.mxu0 0.0
    %3596 = vmatprep.subr.mxu0 0.0
    %3597 = vmatpush1.xpose.msra.mxu0 0.0
    %3598 = vmatprep.subr.mxu0 0.0
    %3599 = vmatpush1.xpose.msra.mxu0 0.0
    %3600 = vmatprep.mubr.f32.mxu0 0.0
    %3601 = vmatmul.mubr.f32.gmra.mrb[0].mxu0 %v3528
    %v3602 = vpop.f32.mrb[0].mxu0
    %v3603 = vadd.f32 %v136, %v3602
    %v3604 = vpop.f32.mrb[0].mxu0
    %3605 = vmatprep.mubr.f32.mxu0 0.0
    %3606 = vmatmul.mubr.f32.gmra.mrb[0].mxu0 %v3530
    %v3607 = vpop.f32.mrb[0].mxu0
    %v3608 = vadd.f32 %v137, %v3607
    %v3609 = vpop.f32.mrb[0].mxu0
    %3610 = vdwg.mxu0
    %v3611 = vsel %vm138, %v3603, -inf
    %3612 = vmax.xlane.f32.xlu0 %v3611
    %v3613 = vpop.xlane.xlu0 %3612
    %v3614 = vsel %vm138, %v3608, -inf
    %3615 = vmax.xlane.f32.xlu0 %v3614
    %v3616 = vpop.xlane.xlu0 %3615
    %v3617 = vsub.f32 %v3603, %v3613
    %v3618 = vsub.f32 %v3608, %v3616
    %v3619 = vmul.f32 %v3617, 1.442695
    %v3620 = vpow.pop %v3619
    %v3621 = vmul.f32 %v3618, 1.442695
    %v3622 = vpow.pop %v3621
    %v3623 = vsel %vm138, %v3620, 0.0
    %3624 = vadd.xlane.f32.xlu0 %v3623
    %v3625 = vpop.xlane.xlu0 %3624
    %v3626 = vsel %vm138, %v3622, 0.0
    %3627 = vadd.xlane.f32.xlu0 %v3626
    %v3628 = vpop.xlane.xlu0 %3627
    %v3629 = vrcp.pop %v3625
    %v3630 = vrcp.pop %v3628
    %v3631 = vmul.f32 %v3620, %v3629
    %v3632 = vmul.f32 %v3622, %v3630
    %3633 = vrot.lane.b32.xlu0 %v3308, 48
    %v3634 = vpop.permute.xlu0 %3633
    %3635 = vrot.lane.b32.xlu0 %v3314, 48
    %v3636 = vpop.permute.xlu0 %3635
    %v3640 = vsel %vm138, %v3631, 0
    %v3643 = vsel %vm138, %v3632, 0
    %3645 = vmatprep.subr.mxu0 0.0
    %3646 = vmatpush1.msra.mxu0 %v3634
    %3647 = vmatprep.subr.mxu0 0.0
    %3648 = vmatpush1.msra.mxu0 %v3636
    %3649 = vmatprep.subr.mxu0 0.0
    %3650 = vmatpush1.msra.mxu0 0.0
    %3651 = vmatprep.subr.mxu0 0.0
    %3652 = vmatpush1.msra.mxu0 0.0
    %3653 = vmatprep.subr.mxu0 0.0
    %3654 = vmatpush1.msra.mxu0 0.0
    %3655 = vmatprep.subr.mxu0 0.0
    %3656 = vmatpush1.msra.mxu0 0.0
    %3657 = vmatprep.subr.mxu0 0.0
    %3658 = vmatpush1.msra.mxu0 0.0
    %3659 = vmatprep.subr.mxu0 0.0
    %3660 = vmatpush1.msra.mxu0 0.0
    %3661 = vmatprep.subr.mxu0 0.0
    %3662 = vmatpush1.msra.mxu0 0.0
    %3663 = vmatprep.subr.mxu0 0.0
    %3664 = vmatpush1.msra.mxu0 0.0
    %3665 = vmatprep.subr.mxu0 0.0
    %3666 = vmatpush1.msra.mxu0 0.0
    %3667 = vmatprep.subr.mxu0 0.0
    %3668 = vmatpush1.msra.mxu0 0.0
    %3669 = vmatprep.subr.mxu0 0.0
    %3670 = vmatpush1.msra.mxu0 0.0
    %3671 = vmatprep.subr.mxu0 0.0
    %3672 = vmatpush1.msra.mxu0 0.0
    %3673 = vmatprep.subr.mxu0 0.0
    %3674 = vmatpush1.msra.mxu0 0.0
    %3675 = vmatprep.subr.mxu0 0.0
    %3676 = vmatpush1.msra.mxu0 0.0
    %3677 = vmatprep.subr.mxu0 0.0
    %3678 = vmatpush1.msra.mxu0 0.0
    %3679 = vmatprep.subr.mxu0 0.0
    %3680 = vmatpush1.msra.mxu0 0.0
    %3681 = vmatprep.subr.mxu0 0.0
    %3682 = vmatpush1.msra.mxu0 0.0
    %3683 = vmatprep.subr.mxu0 0.0
    %3684 = vmatpush1.msra.mxu0 0.0
    %3685 = vmatprep.subr.mxu0 0.0
    %3686 = vmatpush1.msra.mxu0 0.0
    %3687 = vmatprep.subr.mxu0 0.0
    %3688 = vmatpush1.msra.mxu0 0.0
    %3689 = vmatprep.subr.mxu0 0.0
    %3690 = vmatpush1.msra.mxu0 0.0
    %3691 = vmatprep.subr.mxu0 0.0
    %3692 = vmatpush1.msra.mxu0 0.0
    %3693 = vmatprep.subr.mxu0 0.0
    %3694 = vmatpush1.msra.mxu0 0.0
    %3695 = vmatprep.subr.mxu0 0.0
    %3696 = vmatpush1.msra.mxu0 0.0
    %3697 = vmatprep.subr.mxu0 0.0
    %3698 = vmatpush1.msra.mxu0 0.0
    %3699 = vmatprep.subr.mxu0 0.0
    %3700 = vmatpush1.msra.mxu0 0.0
    %3701 = vmatprep.subr.mxu0 0.0
    %3702 = vmatpush1.msra.mxu0 0.0
    %3703 = vmatprep.subr.mxu0 0.0
    %3704 = vmatpush1.msra.mxu0 0.0
    %3705 = vmatprep.subr.mxu0 0.0
    %3706 = vmatpush1.msra.mxu0 0.0
    %3707 = vmatprep.subr.mxu0 0.0
    %3708 = vmatpush1.msra.mxu0 0.0
    %3709 = vmatprep.mubr.f32.mxu0 0.0
    %3710 = vmatmul.mubr.f32.gmra.mrb[0].mxu0 %v3640
    %v3711 = vpop.f32.mrb[0].mxu0
    %v3712 = vadd.f32 0.0, %v3711
    %v3713 = vpop.f32.mrb[0].mxu0
    %3714 = vmatprep.mubr.f32.mxu0 0.0
    %3715 = vmatmul.mubr.f32.gmra.mrb[0].mxu0 %v3643
    %v3716 = vpop.f32.mrb[0].mxu0
    %v3717 = vadd.f32 0.0, %v3716
    %v3718 = vpop.f32.mrb[0].mxu0
    %3719 = vdwg.mxu0
    %3722 = vrot.lane.b32.xlu0 %v3712, 16
    %v3723 = vpop.permute.xlu0 %3722
    %3724 = vrot.lane.b32.xlu0 %v3717, 16
    %v3725 = vpop.permute.xlu0 %3724
    %v3728 = vsel %vm138, %v3512, %v3723
    %v3729 = vsel %vm138, %v3517, %v3725
    %v3730 = vmul.f32 %v3728, %v149
    %v3731 = vmul.f32 %v3729, %v150
    %3732 = vrot.lane.b32.xlu0 %v3233, 96
    %v3733 = vpop.permute.xlu0 %3732
    %3734 = vrot.lane.b32.xlu0 %v3239, 96
    %v3735 = vpop.permute.xlu0 %3734
    %v3736 = vsel %vm138, %v3231, 0
    %v3738 = vsel %vm138, %v3237, 0
    %v3740 = vsel %vm138, %v3733, 0
    %v3742 = vsel %vm138, %v3735, 0
    %3744 = vmatprep.subr.mxu0 0.0
    %3745 = vmatpush1.xpose.msra.mxu0 %v3740
    %3746 = vmatprep.subr.mxu0 0.0
    %3747 = vmatpush1.xpose.msra.mxu0 %v3742
    %3748 = vmatprep.subr.mxu0 0.0
    %3749 = vmatpush1.xpose.msra.mxu0 0.0
    %3750 = vmatprep.subr.mxu0 0.0
    %3751 = vmatpush1.xpose.msra.mxu0 0.0
    %3752 = vmatprep.subr.mxu0 0.0
    %3753 = vmatpush1.xpose.msra.mxu0 0.0
    %3754 = vmatprep.subr.mxu0 0.0
    %3755 = vmatpush1.xpose.msra.mxu0 0.0
    %3756 = vmatprep.subr.mxu0 0.0
    %3757 = vmatpush1.xpose.msra.mxu0 0.0
    %3758 = vmatprep.subr.mxu0 0.0
    %3759 = vmatpush1.xpose.msra.mxu0 0.0
    %3760 = vmatprep.subr.mxu0 0.0
    %3761 = vmatpush1.xpose.msra.mxu0 0.0
    %3762 = vmatprep.subr.mxu0 0.0
    %3763 = vmatpush1.xpose.msra.mxu0 0.0
    %3764 = vmatprep.subr.mxu0 0.0
    %3765 = vmatpush1.xpose.msra.mxu0 0.0
    %3766 = vmatprep.subr.mxu0 0.0
    %3767 = vmatpush1.xpose.msra.mxu0 0.0
    %3768 = vmatprep.subr.mxu0 0.0
    %3769 = vmatpush1.xpose.msra.mxu0 0.0
    %3770 = vmatprep.subr.mxu0 0.0
    %3771 = vmatpush1.xpose.msra.mxu0 0.0
    %3772 = vmatprep.subr.mxu0 0.0
    %3773 = vmatpush1.xpose.msra.mxu0 0.0
    %3774 = vmatprep.subr.mxu0 0.0
    %3775 = vmatpush1.xpose.msra.mxu0 0.0
    %3776 = vmatprep.subr.mxu0 0.0
    %3777 = vmatpush1.xpose.msra.mxu0 0.0
    %3778 = vmatprep.subr.mxu0 0.0
    %3779 = vmatpush1.xpose.msra.mxu0 0.0
    %3780 = vmatprep.subr.mxu0 0.0
    %3781 = vmatpush1.xpose.msra.mxu0 0.0
    %3782 = vmatprep.subr.mxu0 0.0
    %3783 = vmatpush1.xpose.msra.mxu0 0.0
    %3784 = vmatprep.subr.mxu0 0.0
    %3785 = vmatpush1.xpose.msra.mxu0 0.0
    %3786 = vmatprep.subr.mxu0 0.0
    %3787 = vmatpush1.xpose.msra.mxu0 0.0
    %3788 = vmatprep.subr.mxu0 0.0
    %3789 = vmatpush1.xpose.msra.mxu0 0.0
    %3790 = vmatprep.subr.mxu0 0.0
    %3791 = vmatpush1.xpose.msra.mxu0 0.0
    %3792 = vmatprep.subr.mxu0 0.0
    %3793 = vmatpush1.xpose.msra.mxu0 0.0
    %3794 = vmatprep.subr.mxu0 0.0
    %3795 = vmatpush1.xpose.msra.mxu0 0.0
    %3796 = vmatprep.subr.mxu0 0.0
    %3797 = vmatpush1.xpose.msra.mxu0 0.0
    %3798 = vmatprep.subr.mxu0 0.0
    %3799 = vmatpush1.xpose.msra.mxu0 0.0
    %3800 = vmatprep.subr.mxu0 0.0
    %3801 = vmatpush1.xpose.msra.mxu0 0.0
    %3802 = vmatprep.subr.mxu0 0.0
    %3803 = vmatpush1.xpose.msra.mxu0 0.0
    %3804 = vmatprep.subr.mxu0 0.0
    %3805 = vmatpush1.xpose.msra.mxu0 0.0
    %3806 = vmatprep.subr.mxu0 0.0
    %3807 = vmatpush1.xpose.msra.mxu0 0.0
    %3808 = vmatprep.mubr.f32.mxu0 0.0
    %3809 = vmatmul.mubr.f32.gmra.mrb[0].mxu0 %v3736
    %v3810 = vpop.f32.mrb[0].mxu0
    %v3811 = vadd.f32 %v152, %v3810
    %v3812 = vpop.f32.mrb[0].mxu0
    %3813 = vmatprep.mubr.f32.mxu0 0.0
    %3814 = vmatmul.mubr.f32.gmra.mrb[0].mxu0 %v3738
    %v3815 = vpop.f32.mrb[0].mxu0
    %v3816 = vadd.f32 %v153, %v3815
    %v3817 = vpop.f32.mrb[0].mxu0
    %3818 = vdwg.mxu0
    %v3819 = vsel %vm138, %v3811, -inf
    %3820 = vmax.xlane.f32.xlu0 %v3819
    %v3821 = vpop.xlane.xlu0 %3820
    %v3822 = vsel %vm138, %v3816, -inf
    %3823 = vmax.xlane.f32.xlu0 %v3822
    %v3824 = vpop.xlane.xlu0 %3823
    %v3825 = vsub.f32 %v3811, %v3821
    %v3826 = vsub.f32 %v3816, %v3824
    %v3827 = vmul.f32 %v3825, 1.442695
    %v3828 = vpow.pop %v3827
    %v3829 = vmul.f32 %v3826, 1.442695
    %v3830 = vpow.pop %v3829
    %v3831 = vsel %vm138, %v3828, 0.0
    %3832 = vadd.xlane.f32.xlu0 %v3831
    %v3833 = vpop.xlane.xlu0 %3832
    %v3834 = vsel %vm138, %v3830, 0.0
    %3835 = vadd.xlane.f32.xlu0 %v3834
    %v3836 = vpop.xlane.xlu0 %3835
    %v3837 = vrcp.pop %v3833
    %v3838 = vrcp.pop %v3836
    %v3839 = vmul.f32 %v3828, %v3837
    %v3840 = vmul.f32 %v3830, %v3838
    %3841 = vrot.lane.b32.xlu0 %v3308, 32
    %v3842 = vpop.permute.xlu0 %3841
    %3843 = vrot.lane.b32.xlu0 %v3314, 32
    %v3844 = vpop.permute.xlu0 %3843
    %v3848 = vsel %vm138, %v3839, 0
    %v3851 = vsel %vm138, %v3840, 0
    %3853 = vmatprep.subr.mxu0 0.0
    %3854 = vmatpush1.msra.mxu0 %v3842
    %3855 = vmatprep.subr.mxu0 0.0
    %3856 = vmatpush1.msra.mxu0 %v3844
    %3857 = vmatprep.subr.mxu0 0.0
    %3858 = vmatpush1.msra.mxu0 0.0
    %3859 = vmatprep.subr.mxu0 0.0
    %3860 = vmatpush1.msra.mxu0 0.0
    %3861 = vmatprep.subr.mxu0 0.0
    %3862 = vmatpush1.msra.mxu0 0.0
    %3863 = vmatprep.subr.mxu0 0.0
    %3864 = vmatpush1.msra.mxu0 0.0
    %3865 = vmatprep.subr.mxu0 0.0
    %3866 = vmatpush1.msra.mxu0 0.0
    %3867 = vmatprep.subr.mxu0 0.0
    %3868 = vmatpush1.msra.mxu0 0.0
    %3869 = vmatprep.subr.mxu0 0.0
    %3870 = vmatpush1.msra.mxu0 0.0
    %3871 = vmatprep.subr.mxu0 0.0
    %3872 = vmatpush1.msra.mxu0 0.0
    %3873 = vmatprep.subr.mxu0 0.0
    %3874 = vmatpush1.msra.mxu0 0.0
    %3875 = vmatprep.subr.mxu0 0.0
    %3876 = vmatpush1.msra.mxu0 0.0
    %3877 = vmatprep.subr.mxu0 0.0
    %3878 = vmatpush1.msra.mxu0 0.0
    %3879 = vmatprep.subr.mxu0 0.0
    %3880 = vmatpush1.msra.mxu0 0.0
    %3881 = vmatprep.subr.mxu0 0.0
    %3882 = vmatpush1.msra.mxu0 0.0
    %3883 = vmatprep.subr.mxu0 0.0
    %3884 = vmatpush1.msra.mxu0 0.0
    %3885 = vmatprep.subr.mxu0 0.0
    %3886 = vmatpush1.msra.mxu0 0.0
    %3887 = vmatprep.subr.mxu0 0.0
    %3888 = vmatpush1.msra.mxu0 0.0
    %3889 = vmatprep.subr.mxu0 0.0
    %3890 = vmatpush1.msra.mxu0 0.0
    %3891 = vmatprep.subr.mxu0 0.0
    %3892 = vmatpush1.msra.mxu0 0.0
    %3893 = vmatprep.subr.mxu0 0.0
    %3894 = vmatpush1.msra.mxu0 0.0
    %3895 = vmatprep.subr.mxu0 0.0
    %3896 = vmatpush1.msra.mxu0 0.0
    %3897 = vmatprep.subr.mxu0 0.0
    %3898 = vmatpush1.msra.mxu0 0.0
    %3899 = vmatprep.subr.mxu0 0.0
    %3900 = vmatpush1.msra.mxu0 0.0
    %3901 = vmatprep.subr.mxu0 0.0
    %3902 = vmatpush1.msra.mxu0 0.0
    %3903 = vmatprep.subr.mxu0 0.0
    %3904 = vmatpush1.msra.mxu0 0.0
    %3905 = vmatprep.subr.mxu0 0.0
    %3906 = vmatpush1.msra.mxu0 0.0
    %3907 = vmatprep.subr.mxu0 0.0
    %3908 = vmatpush1.msra.mxu0 0.0
    %3909 = vmatprep.subr.mxu0 0.0
    %3910 = vmatpush1.msra.mxu0 0.0
    %3911 = vmatprep.subr.mxu0 0.0
    %3912 = vmatpush1.msra.mxu0 0.0
    %3913 = vmatprep.subr.mxu0 0.0
    %3914 = vmatpush1.msra.mxu0 0.0
    %3915 = vmatprep.subr.mxu0 0.0
    %3916 = vmatpush1.msra.mxu0 0.0
    %3917 = vmatprep.mubr.f32.mxu0 0.0
    %3918 = vmatmul.mubr.f32.gmra.mrb[0].mxu0 %v3848
    %v3919 = vpop.f32.mrb[0].mxu0
    %v3920 = vadd.f32 0.0, %v3919
    %v3921 = vpop.f32.mrb[0].mxu0
    %3922 = vmatprep.mubr.f32.mxu0 0.0
    %3923 = vmatmul.mubr.f32.gmra.mrb[0].mxu0 %v3851
    %v3924 = vpop.f32.mrb[0].mxu0
    %v3925 = vadd.f32 0.0, %v3924
    %v3926 = vpop.f32.mrb[0].mxu0
    %3927 = vdwg.mxu0
    %3928 = vrot.lane.b32.xlu0 %v3231, 112
    %v3929 = vpop.permute.xlu0 %3928
    %3930 = vrot.lane.b32.xlu0 %v3237, 112
    %v3931 = vpop.permute.xlu0 %3930
    %3932 = vrot.lane.b32.xlu0 %v3233, 80
    %v3933 = vpop.permute.xlu0 %3932
    %3934 = vrot.lane.b32.xlu0 %v3239, 80
    %v3935 = vpop.permute.xlu0 %3934
    %v3936 = vsel %vm138, %v3929, 0
    %v3938 = vsel %vm138, %v3931, 0
    %v3940 = vsel %vm138, %v3933, 0
    %v3942 = vsel %vm138, %v3935, 0
    %3944 = vmatprep.subr.mxu0 0.0
    %3945 = vmatpush1.xpose.msra.mxu0 %v3940
    %3946 = vmatprep.subr.mxu0 0.0
    %3947 = vmatpush1.xpose.msra.mxu0 %v3942
    %3948 = vmatprep.subr.mxu0 0.0
    %3949 = vmatpush1.xpose.msra.mxu0 0.0
    %3950 = vmatprep.subr.mxu0 0.0
    %3951 = vmatpush1.xpose.msra.mxu0 0.0
    %3952 = vmatprep.subr.mxu0 0.0
    %3953 = vmatpush1.xpose.msra.mxu0 0.0
    %3954 = vmatprep.subr.mxu0 0.0
    %3955 = vmatpush1.xpose.msra.mxu0 0.0
    %3956 = vmatprep.subr.mxu0 0.0
    %3957 = vmatpush1.xpose.msra.mxu0 0.0
    %3958 = vmatprep.subr.mxu0 0.0
    %3959 = vmatpush1.xpose.msra.mxu0 0.0
    %3960 = vmatprep.subr.mxu0 0.0
    %3961 = vmatpush1.xpose.msra.mxu0 0.0
    %3962 = vmatprep.subr.mxu0 0.0
    %3963 = vmatpush1.xpose.msra.mxu0 0.0
    %3964 = vmatprep.subr.mxu0 0.0
    %3965 = vmatpush1.xpose.msra.mxu0 0.0
    %3966 = vmatprep.subr.mxu0 0.0
    %3967 = vmatpush1.xpose.msra.mxu0 0.0
    %3968 = vmatprep.subr.mxu0 0.0
    %3969 = vmatpush1.xpose.msra.mxu0 0.0
    %3970 = vmatprep.subr.mxu0 0.0
    %3971 = vmatpush1.xpose.msra.mxu0 0.0
    %3972 = vmatprep.subr.mxu0 0.0
    %3973 = vmatpush1.xpose.msra.mxu0 0.0
    %3974 = vmatprep.subr.mxu0 0.0
    %3975 = vmatpush1.xpose.msra.mxu0 0.0
    %3976 = vmatprep.subr.mxu0 0.0
    %3977 = vmatpush1.xpose.msra.mxu0 0.0
    %3978 = vmatprep.subr.mxu0 0.0
    %3979 = vmatpush1.xpose.msra.mxu0 0.0
    %3980 = vmatprep.subr.mxu0 0.0
    %3981 = vmatpush1.xpose.msra.mxu0 0.0
    %3982 = vmatprep.subr.mxu0 0.0
    %3983 = vmatpush1.xpose.msra.mxu0 0.0
    %3984 = vmatprep.subr.mxu0 0.0
    %3985 = vmatpush1.xpose.msra.mxu0 0.0
    %3986 = vmatprep.subr.mxu0 0.0
    %3987 = vmatpush1.xpose.msra.mxu0 0.0
    %3988 = vmatprep.subr.mxu0 0.0
    %3989 = vmatpush1.xpose.msra.mxu0 0.0
    %3990 = vmatprep.subr.mxu0 0.0
    %3991 = vmatpush1.xpose.msra.mxu0 0.0
    %3992 = vmatprep.subr.mxu0 0.0
    %3993 = vmatpush1.xpose.msra.mxu0 0.0
    %3994 = vmatprep.subr.mxu0 0.0
    %3995 = vmatpush1.xpose.msra.mxu0 0.0
    %3996 = vmatprep.subr.mxu0 0.0
    %3997 = vmatpush1.xpose.msra.mxu0 0.0
    %3998 = vmatprep.subr.mxu0 0.0
    %3999 = vmatpush1.xpose.msra.mxu0 0.0
    %4000 = vmatprep.subr.mxu0 0.0
    %4001 = vmatpush1.xpose.msra.mxu0 0.0
    %4002 = vmatprep.subr.mxu0 0.0
    %4003 = vmatpush1.xpose.msra.mxu0 0.0
    %4004 = vmatprep.subr.mxu0 0.0
    %4005 = vmatpush1.xpose.msra.mxu0 0.0
    %4006 = vmatprep.subr.mxu0 0.0
    %4007 = vmatpush1.xpose.msra.mxu0 0.0
    %4008 = vmatprep.mubr.f32.mxu0 0.0
    %4009 = vmatmul.mubr.f32.gmra.mrb[0].mxu0 %v3936
    %v4010 = vpop.f32.mrb[0].mxu0
    %v4011 = vadd.f32 %v152, %v4010
    %v4012 = vpop.f32.mrb[0].mxu0
    %4013 = vmatprep.mubr.f32.mxu0 0.0
    %4014 = vmatmul.mubr.f32.gmra.mrb[0].mxu0 %v3938
    %v4015 = vpop.f32.mrb[0].mxu0
    %v4016 = vadd.f32 %v153, %v4015
    %v4017 = vpop.f32.mrb[0].mxu0
    %4018 = vdwg.mxu0
    %v4019 = vsel %vm138, %v4011, -inf
    %4020 = vmax.xlane.f32.xlu0 %v4019
    %v4021 = vpop.xlane.xlu0 %4020
    %v4022 = vsel %vm138, %v4016, -inf
    %4023 = vmax.xlane.f32.xlu0 %v4022
    %v4024 = vpop.xlane.xlu0 %4023
    %v4025 = vsub.f32 %v4011, %v4021
    %v4026 = vsub.f32 %v4016, %v4024
    %v4027 = vmul.f32 %v4025, 1.442695
    %v4028 = vpow.pop %v4027
    %v4029 = vmul.f32 %v4026, 1.442695
    %v4030 = vpow.pop %v4029
    %v4031 = vsel %vm138, %v4028, 0.0
    %4032 = vadd.xlane.f32.xlu0 %v4031
    %v4033 = vpop.xlane.xlu0 %4032
    %v4034 = vsel %vm138, %v4030, 0.0
    %4035 = vadd.xlane.f32.xlu0 %v4034
    %v4036 = vpop.xlane.xlu0 %4035
    %v4037 = vrcp.pop %v4033
    %v4038 = vrcp.pop %v4036
    %v4039 = vmul.f32 %v4028, %v4037
    %v4040 = vmul.f32 %v4030, %v4038
    %4041 = vrot.lane.b32.xlu0 %v3308, 16
    %v4042 = vpop.permute.xlu0 %4041
    %4043 = vrot.lane.b32.xlu0 %v3314, 16
    %v4044 = vpop.permute.xlu0 %4043
    %v4048 = vsel %vm138, %v4039, 0
    %v4051 = vsel %vm138, %v4040, 0
    %4053 = vmatprep.subr.mxu0 0.0
    %4054 = vmatpush1.msra.mxu0 %v4042
    %4055 = vmatprep.subr.mxu0 0.0
    %4056 = vmatpush1.msra.mxu0 %v4044
    %4057 = vmatprep.subr.mxu0 0.0
    %4058 = vmatpush1.msra.mxu0 0.0
    %4059 = vmatprep.subr.mxu0 0.0
    %4060 = vmatpush1.msra.mxu0 0.0
    %4061 = vmatprep.subr.mxu0 0.0
    %4062 = vmatpush1.msra.mxu0 0.0
    %4063 = vmatprep.subr.mxu0 0.0
    %4064 = vmatpush1.msra.mxu0 0.0
    %4065 = vmatprep.subr.mxu0 0.0
    %4066 = vmatpush1.msra.mxu0 0.0
    %4067 = vmatprep.subr.mxu0 0.0
    %4068 = vmatpush1.msra.mxu0 0.0
    %4069 = vmatprep.subr.mxu0 0.0
    %4070 = vmatpush1.msra.mxu0 0.0
    %4071 = vmatprep.subr.mxu0 0.0
    %4072 = vmatpush1.msra.mxu0 0.0
    %4073 = vmatprep.subr.mxu0 0.0
    %4074 = vmatpush1.msra.mxu0 0.0
    %4075 = vmatprep.subr.mxu0 0.0
    %4076 = vmatpush1.msra.mxu0 0.0
    %4077 = vmatprep.subr.mxu0 0.0
    %4078 = vmatpush1.msra.mxu0 0.0
    %4079 = vmatprep.subr.mxu0 0.0
    %4080 = vmatpush1.msra.mxu0 0.0
    %4081 = vmatprep.subr.mxu0 0.0
    %4082 = vmatpush1.msra.mxu0 0.0
    %4083 = vmatprep.subr.mxu0 0.0
    %4084 = vmatpush1.msra.mxu0 0.0
    %4085 = vmatprep.subr.mxu0 0.0
    %4086 = vmatpush1.msra.mxu0 0.0
    %4087 = vmatprep.subr.mxu0 0.0
    %4088 = vmatpush1.msra.mxu0 0.0
    %4089 = vmatprep.subr.mxu0 0.0
    %4090 = vmatpush1.msra.mxu0 0.0
    %4091 = vmatprep.subr.mxu0 0.0
    %4092 = vmatpush1.msra.mxu0 0.0
    %4093 = vmatprep.subr.mxu0 0.0
    %4094 = vmatpush1.msra.mxu0 0.0
    %4095 = vmatprep.subr.mxu0 0.0
    %4096 = vmatpush1.msra.mxu0 0.0
    %4097 = vmatprep.subr.mxu0 0.0
    %4098 = vmatpush1.msra.mxu0 0.0
    %4099 = vmatprep.subr.mxu0 0.0
    %4100 = vmatpush1.msra.mxu0 0.0
    %4101 = vmatprep.subr.mxu0 0.0
    %4102 = vmatpush1.msra.mxu0 0.0
    %4103 = vmatprep.subr.mxu0 0.0
    %4104 = vmatpush1.msra.mxu0 0.0
    %4105 = vmatprep.subr.mxu0 0.0
    %4106 = vmatpush1.msra.mxu0 0.0
    %4107 = vmatprep.subr.mxu0 0.0
    %4108 = vmatpush1.msra.mxu0 0.0
    %4109 = vmatprep.subr.mxu0 0.0
    %4110 = vmatpush1.msra.mxu0 0.0
    %4111 = vmatprep.subr.mxu0 0.0
    %4112 = vmatpush1.msra.mxu0 0.0
    %4113 = vmatprep.subr.mxu0 0.0
    %4114 = vmatpush1.msra.mxu0 0.0
    %4115 = vmatprep.subr.mxu0 0.0
    %4116 = vmatpush1.msra.mxu0 0.0
    %4117 = vmatprep.mubr.f32.mxu0 0.0
    %4118 = vmatmul.mubr.f32.gmra.mrb[0].mxu0 %v4048
    %v4119 = vpop.f32.mrb[0].mxu0
    %v4120 = vadd.f32 0.0, %v4119
    %v4121 = vpop.f32.mrb[0].mxu0
    %4122 = vmatprep.mubr.f32.mxu0 0.0
    %4123 = vmatmul.mubr.f32.gmra.mrb[0].mxu0 %v4051
    %v4124 = vpop.f32.mrb[0].mxu0
    %v4125 = vadd.f32 0.0, %v4124
    %v4126 = vpop.f32.mrb[0].mxu0
    %4127 = vdwg.mxu0
    %4130 = vrot.lane.b32.xlu0 %v4120, 16
    %v4131 = vpop.permute.xlu0 %4130
    %4132 = vrot.lane.b32.xlu0 %v4125, 16
    %v4133 = vpop.permute.xlu0 %4132
    %v4136 = vsel %vm138, %v3920, %v4131
    %v4137 = vsel %vm138, %v3925, %v4133
    %v4138 = vmul.f32 %v4136, %v164
    %v4139 = vmul.f32 %v4137, %v165
    %4140 = vrot.lane.b32.xlu0 %v3231, 64
    %v4141 = vpop.permute.xlu0 %4140
    %4142 = vrot.lane.b32.xlu0 %v3237, 64
    %v4143 = vpop.permute.xlu0 %4142
    %4144 = vrot.lane.b32.xlu0 %v3233, 64
    %v4145 = vpop.permute.xlu0 %4144
    %4146 = vrot.lane.b32.xlu0 %v3239, 64
    %v4147 = vpop.permute.xlu0 %4146
    %v4148 = vsel %vm138, %v4141, 0
    %v4150 = vsel %vm138, %v4143, 0
    %v4152 = vsel %vm138, %v4145, 0
    %v4154 = vsel %vm138, %v4147, 0
    %4156 = vmatprep.subr.mxu0 0.0
    %4157 = vmatpush1.xpose.msra.mxu0 %v4152
    %4158 = vmatprep.subr.mxu0 0.0
    %4159 = vmatpush1.xpose.msra.mxu0 %v4154
    %4160 = vmatprep.subr.mxu0 0.0
    %4161 = vmatpush1.xpose.msra.mxu0 0.0
    %4162 = vmatprep.subr.mxu0 0.0
    %4163 = vmatpush1.xpose.msra.mxu0 0.0
    %4164 = vmatprep.subr.mxu0 0.0
    %4165 = vmatpush1.xpose.msra.mxu0 0.0
    %4166 = vmatprep.subr.mxu0 0.0
    %4167 = vmatpush1.xpose.msra.mxu0 0.0
    %4168 = vmatprep.subr.mxu0 0.0
    %4169 = vmatpush1.xpose.msra.mxu0 0.0
    %4170 = vmatprep.subr.mxu0 0.0
    %4171 = vmatpush1.xpose.msra.mxu0 0.0
    %4172 = vmatprep.subr.mxu0 0.0
    %4173 = vmatpush1.xpose.msra.mxu0 0.0
    %4174 = vmatprep.subr.mxu0 0.0
    %4175 = vmatpush1.xpose.msra.mxu0 0.0
    %4176 = vmatprep.subr.mxu0 0.0
    %4177 = vmatpush1.xpose.msra.mxu0 0.0
    %4178 = vmatprep.subr.mxu0 0.0
    %4179 = vmatpush1.xpose.msra.mxu0 0.0
    %4180 = vmatprep.subr.mxu0 0.0
    %4181 = vmatpush1.xpose.msra.mxu0 0.0
    %4182 = vmatprep.subr.mxu0 0.0
    %4183 = vmatpush1.xpose.msra.mxu0 0.0
    %4184 = vmatprep.subr.mxu0 0.0
    %4185 = vmatpush1.xpose.msra.mxu0 0.0
    %4186 = vmatprep.subr.mxu0 0.0
    %4187 = vmatpush1.xpose.msra.mxu0 0.0
    %4188 = vmatprep.subr.mxu0 0.0
    %4189 = vmatpush1.xpose.msra.mxu0 0.0
    %4190 = vmatprep.subr.mxu0 0.0
    %4191 = vmatpush1.xpose.msra.mxu0 0.0
    %4192 = vmatprep.subr.mxu0 0.0
    %4193 = vmatpush1.xpose.msra.mxu0 0.0
    %4194 = vmatprep.subr.mxu0 0.0
    %4195 = vmatpush1.xpose.msra.mxu0 0.0
    %4196 = vmatprep.subr.mxu0 0.0
    %4197 = vmatpush1.xpose.msra.mxu0 0.0
    %4198 = vmatprep.subr.mxu0 0.0
    %4199 = vmatpush1.xpose.msra.mxu0 0.0
    %4200 = vmatprep.subr.mxu0 0.0
    %4201 = vmatpush1.xpose.msra.mxu0 0.0
    %4202 = vmatprep.subr.mxu0 0.0
    %4203 = vmatpush1.xpose.msra.mxu0 0.0
    %4204 = vmatprep.subr.mxu0 0.0
    %4205 = vmatpush1.xpose.msra.mxu0 0.0
    %4206 = vmatprep.subr.mxu0 0.0
    %4207 = vmatpush1.xpose.msra.mxu0 0.0
    %4208 = vmatprep.subr.mxu0 0.0
    %4209 = vmatpush1.xpose.msra.mxu0 0.0
    %4210 = vmatprep.subr.mxu0 0.0
    %4211 = vmatpush1.xpose.msra.mxu0 0.0
    %4212 = vmatprep.subr.mxu0 0.0
    %4213 = vmatpush1.xpose.msra.mxu0 0.0
    %4214 = vmatprep.subr.mxu0 0.0
    %4215 = vmatpush1.xpose.msra.mxu0 0.0
    %4216 = vmatprep.subr.mxu0 0.0
    %4217 = vmatpush1.xpose.msra.mxu0 0.0
    %4218 = vmatprep.subr.mxu0 0.0
    %4219 = vmatpush1.xpose.msra.mxu0 0.0
    %4220 = vmatprep.mubr.f32.mxu0 0.0
    %4221 = vmatmul.mubr.f32.gmra.mrb[0].mxu0 %v4148
    %v4222 = vpop.f32.mrb[0].mxu0
    %v4223 = vadd.f32 %v167, %v4222
    %v4224 = vpop.f32.mrb[0].mxu0
    %4225 = vmatprep.mubr.f32.mxu0 0.0
    %4226 = vmatmul.mubr.f32.gmra.mrb[0].mxu0 %v4150
    %v4227 = vpop.f32.mrb[0].mxu0
    %v4228 = vadd.f32 %v168, %v4227
    %v4229 = vpop.f32.mrb[0].mxu0
    %4230 = vdwg.mxu0
    %v4231 = vsel %vm138, %v4223, -inf
    %4232 = vmax.xlane.f32.xlu0 %v4231
    %v4233 = vpop.xlane.xlu0 %4232
    %v4234 = vsel %vm138, %v4228, -inf
    %4235 = vmax.xlane.f32.xlu0 %v4234
    %v4236 = vpop.xlane.xlu0 %4235
    %v4237 = vsub.f32 %v4223, %v4233
    %v4238 = vsub.f32 %v4228, %v4236
    %v4239 = vmul.f32 %v4237, 1.442695
    %v4240 = vpow.pop %v4239
    %v4241 = vmul.f32 %v4238, 1.442695
    %v4242 = vpow.pop %v4241
    %v4243 = vsel %vm138, %v4240, 0.0
    %4244 = vadd.xlane.f32.xlu0 %v4243
    %v4245 = vpop.xlane.xlu0 %4244
    %v4246 = vsel %vm138, %v4242, 0.0
    %4247 = vadd.xlane.f32.xlu0 %v4246
    %v4248 = vpop.xlane.xlu0 %4247
    %v4249 = vrcp.pop %v4245
    %v4250 = vrcp.pop %v4248
    %v4251 = vmul.f32 %v4240, %v4249
    %v4252 = vmul.f32 %v4242, %v4250
    %v4254 = vsel %vm138, %v4251, 0
    %v4257 = vsel %vm138, %v4252, 0
    %4259 = vmatprep.subr.mxu0 0.0
    %4260 = vmatpush1.msra.mxu0 %v3310
    %4261 = vmatprep.subr.mxu0 0.0
    %4262 = vmatpush1.msra.mxu0 %v3316
    %4263 = vmatprep.subr.mxu0 0.0
    %4264 = vmatpush1.msra.mxu0 0.0
    %4265 = vmatprep.subr.mxu0 0.0
    %4266 = vmatpush1.msra.mxu0 0.0
    %4267 = vmatprep.subr.mxu0 0.0
    %4268 = vmatpush1.msra.mxu0 0.0
    %4269 = vmatprep.subr.mxu0 0.0
    %4270 = vmatpush1.msra.mxu0 0.0
    %4271 = vmatprep.subr.mxu0 0.0
    %4272 = vmatpush1.msra.mxu0 0.0
    %4273 = vmatprep.subr.mxu0 0.0
    %4274 = vmatpush1.msra.mxu0 0.0
    %4275 = vmatprep.subr.mxu0 0.0
    %4276 = vmatpush1.msra.mxu0 0.0
    %4277 = vmatprep.subr.mxu0 0.0
    %4278 = vmatpush1.msra.mxu0 0.0
    %4279 = vmatprep.subr.mxu0 0.0
    %4280 = vmatpush1.msra.mxu0 0.0
    %4281 = vmatprep.subr.mxu0 0.0
    %4282 = vmatpush1.msra.mxu0 0.0
    %4283 = vmatprep.subr.mxu0 0.0
    %4284 = vmatpush1.msra.mxu0 0.0
    %4285 = vmatprep.subr.mxu0 0.0
    %4286 = vmatpush1.msra.mxu0 0.0
    %4287 = vmatprep.subr.mxu0 0.0
    %4288 = vmatpush1.msra.mxu0 0.0
    %4289 = vmatprep.subr.mxu0 0.0
    %4290 = vmatpush1.msra.mxu0 0.0
    %4291 = vmatprep.subr.mxu0 0.0
    %4292 = vmatpush1.msra.mxu0 0.0
    %4293 = vmatprep.subr.mxu0 0.0
    %4294 = vmatpush1.msra.mxu0 0.0
    %4295 = vmatprep.subr.mxu0 0.0
    %4296 = vmatpush1.msra.mxu0 0.0
    %4297 = vmatprep.subr.mxu0 0.0
    %4298 = vmatpush1.msra.mxu0 0.0
    %4299 = vmatprep.subr.mxu0 0.0
    %4300 = vmatpush1.msra.mxu0 0.0
    %4301 = vmatprep.subr.mxu0 0.0
    %4302 = vmatpush1.msra.mxu0 0.0
    %4303 = vmatprep.subr.mxu0 0.0
    %4304 = vmatpush1.msra.mxu0 0.0
    %4305 = vmatprep.subr.mxu0 0.0
    %4306 = vmatpush1.msra.mxu0 0.0
    %4307 = vmatprep.subr.mxu0 0.0
    %4308 = vmatpush1.msra.mxu0 0.0
    %4309 = vmatprep.subr.mxu0 0.0
    %4310 = vmatpush1.msra.mxu0 0.0
    %4311 = vmatprep.subr.mxu0 0.0
    %4312 = vmatpush1.msra.mxu0 0.0
    %4313 = vmatprep.subr.mxu0 0.0
    %4314 = vmatpush1.msra.mxu0 0.0
    %4315 = vmatprep.subr.mxu0 0.0
    %4316 = vmatpush1.msra.mxu0 0.0
    %4317 = vmatprep.subr.mxu0 0.0
    %4318 = vmatpush1.msra.mxu0 0.0
    %4319 = vmatprep.subr.mxu0 0.0
    %4320 = vmatpush1.msra.mxu0 0.0
    %4321 = vmatprep.subr.mxu0 0.0
    %4322 = vmatpush1.msra.mxu0 0.0
    %4323 = vmatprep.mubr.f32.mxu0 0.0
    %4324 = vmatmul.mubr.f32.gmra.mrb[0].mxu0 %v4254
    %v4325 = vpop.f32.mrb[0].mxu0
    %v4326 = vadd.f32 0.0, %v4325
    %v4327 = vpop.f32.mrb[0].mxu0
    %4328 = vmatprep.mubr.f32.mxu0 0.0
    %4329 = vmatmul.mubr.f32.gmra.mrb[0].mxu0 %v4257
    %v4330 = vpop.f32.mrb[0].mxu0
    %v4331 = vadd.f32 0.0, %v4330
    %v4332 = vpop.f32.mrb[0].mxu0
    %4333 = vdwg.mxu0
    %4334 = vrot.lane.b32.xlu0 %v3231, 48
    %v4335 = vpop.permute.xlu0 %4334
    %4336 = vrot.lane.b32.xlu0 %v3237, 48
    %v4337 = vpop.permute.xlu0 %4336
    %4338 = vrot.lane.b32.xlu0 %v3233, 48
    %v4339 = vpop.permute.xlu0 %4338
    %4340 = vrot.lane.b32.xlu0 %v3239, 48
    %v4341 = vpop.permute.xlu0 %4340
    %v4342 = vsel %vm138, %v4335, 0
    %v4344 = vsel %vm138, %v4337, 0
    %v4346 = vsel %vm138, %v4339, 0
    %v4348 = vsel %vm138, %v4341, 0
    %4350 = vmatprep.subr.mxu0 0.0
    %4351 = vmatpush1.xpose.msra.mxu0 %v4346
    %4352 = vmatprep.subr.mxu0 0.0
    %4353 = vmatpush1.xpose.msra.mxu0 %v4348
    %4354 = vmatprep.subr.mxu0 0.0
    %4355 = vmatpush1.xpose.msra.mxu0 0.0
    %4356 = vmatprep.subr.mxu0 0.0
    %4357 = vmatpush1.xpose.msra.mxu0 0.0
    %4358 = vmatprep.subr.mxu0 0.0
    %4359 = vmatpush1.xpose.msra.mxu0 0.0
    %4360 = vmatprep.subr.mxu0 0.0
    %4361 = vmatpush1.xpose.msra.mxu0 0.0
    %4362 = vmatprep.subr.mxu0 0.0
    %4363 = vmatpush1.xpose.msra.mxu0 0.0
    %4364 = vmatprep.subr.mxu0 0.0
    %4365 = vmatpush1.xpose.msra.mxu0 0.0
    %4366 = vmatprep.subr.mxu0 0.0
    %4367 = vmatpush1.xpose.msra.mxu0 0.0
    %4368 = vmatprep.subr.mxu0 0.0
    %4369 = vmatpush1.xpose.msra.mxu0 0.0
    %4370 = vmatprep.subr.mxu0 0.0
    %4371 = vmatpush1.xpose.msra.mxu0 0.0
    %4372 = vmatprep.subr.mxu0 0.0
    %4373 = vmatpush1.xpose.msra.mxu0 0.0
    %4374 = vmatprep.subr.mxu0 0.0
    %4375 = vmatpush1.xpose.msra.mxu0 0.0
    %4376 = vmatprep.subr.mxu0 0.0
    %4377 = vmatpush1.xpose.msra.mxu0 0.0
    %4378 = vmatprep.subr.mxu0 0.0
    %4379 = vmatpush1.xpose.msra.mxu0 0.0
    %4380 = vmatprep.subr.mxu0 0.0
    %4381 = vmatpush1.xpose.msra.mxu0 0.0
    %4382 = vmatprep.subr.mxu0 0.0
    %4383 = vmatpush1.xpose.msra.mxu0 0.0
    %4384 = vmatprep.subr.mxu0 0.0
    %4385 = vmatpush1.xpose.msra.mxu0 0.0
    %4386 = vmatprep.subr.mxu0 0.0
    %4387 = vmatpush1.xpose.msra.mxu0 0.0
    %4388 = vmatprep.subr.mxu0 0.0
    %4389 = vmatpush1.xpose.msra.mxu0 0.0
    %4390 = vmatprep.subr.mxu0 0.0
    %4391 = vmatpush1.xpose.msra.mxu0 0.0
    %4392 = vmatprep.subr.mxu0 0.0
    %4393 = vmatpush1.xpose.msra.mxu0 0.0
    %4394 = vmatprep.subr.mxu0 0.0
    %4395 = vmatpush1.xpose.msra.mxu0 0.0
    %4396 = vmatprep.subr.mxu0 0.0
    %4397 = vmatpush1.xpose.msra.mxu0 0.0
    %4398 = vmatprep.subr.mxu0 0.0
    %4399 = vmatpush1.xpose.msra.mxu0 0.0
    %4400 = vmatprep.subr.mxu0 0.0
    %4401 = vmatpush1.xpose.msra.mxu0 0.0
    %4402 = vmatprep.subr.mxu0 0.0
    %4403 = vmatpush1.xpose.msra.mxu0 0.0
    %4404 = vmatprep.subr.mxu0 0.0
    %4405 = vmatpush1.xpose.msra.mxu0 0.0
    %4406 = vmatprep.subr.mxu0 0.0
    %4407 = vmatpush1.xpose.msra.mxu0 0.0
    %4408 = vmatprep.subr.mxu0 0.0
    %4409 = vmatpush1.xpose.msra.mxu0 0.0
    %4410 = vmatprep.subr.mxu0 0.0
    %4411 = vmatpush1.xpose.msra.mxu0 0.0
    %4412 = vmatprep.subr.mxu0 0.0
    %4413 = vmatpush1.xpose.msra.mxu0 0.0
    %4414 = vmatprep.mubr.f32.mxu0 0.0
    %4415 = vmatmul.mubr.f32.gmra.mrb[0].mxu0 %v4342
    %v4416 = vpop.f32.mrb[0].mxu0
    %v4417 = vadd.f32 %v167, %v4416
    %v4418 = vpop.f32.mrb[0].mxu0
    %4419 = vmatprep.mubr.f32.mxu0 0.0
    %4420 = vmatmul.mubr.f32.gmra.mrb[0].mxu0 %v4344
    %v4421 = vpop.f32.mrb[0].mxu0
    %v4422 = vadd.f32 %v168, %v4421
    %v4423 = vpop.f32.mrb[0].mxu0
    %4424 = vdwg.mxu0
    %v4425 = vsel %vm138, %v4417, -inf
    %4426 = vmax.xlane.f32.xlu0 %v4425
    %v4427 = vpop.xlane.xlu0 %4426
    %v4428 = vsel %vm138, %v4422, -inf
    %4429 = vmax.xlane.f32.xlu0 %v4428
    %v4430 = vpop.xlane.xlu0 %4429
    %v4431 = vsub.f32 %v4417, %v4427
    %v4432 = vsub.f32 %v4422, %v4430
    %v4433 = vmul.f32 %v4431, 1.442695
    %v4434 = vpow.pop %v4433
    %v4435 = vmul.f32 %v4432, 1.442695
    %v4436 = vpow.pop %v4435
    %v4437 = vsel %vm138, %v4434, 0.0
    %4438 = vadd.xlane.f32.xlu0 %v4437
    %v4439 = vpop.xlane.xlu0 %4438
    %v4440 = vsel %vm138, %v4436, 0.0
    %4441 = vadd.xlane.f32.xlu0 %v4440
    %v4442 = vpop.xlane.xlu0 %4441
    %v4443 = vrcp.pop %v4439
    %v4444 = vrcp.pop %v4442
    %v4445 = vmul.f32 %v4434, %v4443
    %v4446 = vmul.f32 %v4436, %v4444
    %4449 = vrot.lane.b32.xlu0 %v3310, 112
    %v4450 = vpop.permute.xlu0 %4449
    %4451 = vrot.lane.b32.xlu0 %v3316, 112
    %v4452 = vpop.permute.xlu0 %4451
    %v4456 = vsel %vm138, %v4445, 0
    %v4459 = vsel %vm138, %v4446, 0
    %4461 = vmatprep.subr.mxu0 0.0
    %4462 = vmatpush1.msra.mxu0 %v4450
    %4463 = vmatprep.subr.mxu0 0.0
    %4464 = vmatpush1.msra.mxu0 %v4452
    %4465 = vmatprep.subr.mxu0 0.0
    %4466 = vmatpush1.msra.mxu0 0.0
    %4467 = vmatprep.subr.mxu0 0.0
    %4468 = vmatpush1.msra.mxu0 0.0
    %4469 = vmatprep.subr.mxu0 0.0
    %4470 = vmatpush1.msra.mxu0 0.0
    %4471 = vmatprep.subr.mxu0 0.0
    %4472 = vmatpush1.msra.mxu0 0.0
    %4473 = vmatprep.subr.mxu0 0.0
    %4474 = vmatpush1.msra.mxu0 0.0
    %4475 = vmatprep.subr.mxu0 0.0
    %4476 = vmatpush1.msra.mxu0 0.0
    %4477 = vmatprep.subr.mxu0 0.0
    %4478 = vmatpush1.msra.mxu0 0.0
    %4479 = vmatprep.subr.mxu0 0.0
    %4480 = vmatpush1.msra.mxu0 0.0
    %4481 = vmatprep.subr.mxu0 0.0
    %4482 = vmatpush1.msra.mxu0 0.0
    %4483 = vmatprep.subr.mxu0 0.0
    %4484 = vmatpush1.msra.mxu0 0.0
    %4485 = vmatprep.subr.mxu0 0.0
    %4486 = vmatpush1.msra.mxu0 0.0
    %4487 = vmatprep.subr.mxu0 0.0
    %4488 = vmatpush1.msra.mxu0 0.0
    %4489 = vmatprep.subr.mxu0 0.0
    %4490 = vmatpush1.msra.mxu0 0.0
    %4491 = vmatprep.subr.mxu0 0.0
    %4492 = vmatpush1.msra.mxu0 0.0
    %4493 = vmatprep.subr.mxu0 0.0
    %4494 = vmatpush1.msra.mxu0 0.0
    %4495 = vmatprep.subr.mxu0 0.0
    %4496 = vmatpush1.msra.mxu0 0.0
    %4497 = vmatprep.subr.mxu0 0.0
    %4498 = vmatpush1.msra.mxu0 0.0
    %4499 = vmatprep.subr.mxu0 0.0
    %4500 = vmatpush1.msra.mxu0 0.0
    %4501 = vmatprep.subr.mxu0 0.0
    %4502 = vmatpush1.msra.mxu0 0.0
    %4503 = vmatprep.subr.mxu0 0.0
    %4504 = vmatpush1.msra.mxu0 0.0
    %4505 = vmatprep.subr.mxu0 0.0
    %4506 = vmatpush1.msra.mxu0 0.0
    %4507 = vmatprep.subr.mxu0 0.0
    %4508 = vmatpush1.msra.mxu0 0.0
    %4509 = vmatprep.subr.mxu0 0.0
    %4510 = vmatpush1.msra.mxu0 0.0
    %4511 = vmatprep.subr.mxu0 0.0
    %4512 = vmatpush1.msra.mxu0 0.0
    %4513 = vmatprep.subr.mxu0 0.0
    %4514 = vmatpush1.msra.mxu0 0.0
    %4515 = vmatprep.subr.mxu0 0.0
    %4516 = vmatpush1.msra.mxu0 0.0
    %4517 = vmatprep.subr.mxu0 0.0
    %4518 = vmatpush1.msra.mxu0 0.0
    %4519 = vmatprep.subr.mxu0 0.0
    %4520 = vmatpush1.msra.mxu0 0.0
    %4521 = vmatprep.subr.mxu0 0.0
    %4522 = vmatpush1.msra.mxu0 0.0
    %4523 = vmatprep.subr.mxu0 0.0
    %4524 = vmatpush1.msra.mxu0 0.0
    %4525 = vmatprep.mubr.f32.mxu0 0.0
    %4526 = vmatmul.mubr.f32.gmra.mrb[0].mxu0 %v4456
    %v4527 = vpop.f32.mrb[0].mxu0
    %v4528 = vadd.f32 0.0, %v4527
    %v4529 = vpop.f32.mrb[0].mxu0
    %4530 = vmatprep.mubr.f32.mxu0 0.0
    %4531 = vmatmul.mubr.f32.gmra.mrb[0].mxu0 %v4459
    %v4532 = vpop.f32.mrb[0].mxu0
    %v4533 = vadd.f32 0.0, %v4532
    %v4534 = vpop.f32.mrb[0].mxu0
    %4535 = vdwg.mxu0
    %4538 = vrot.lane.b32.xlu0 %v4528, 16
    %v4539 = vpop.permute.xlu0 %4538
    %4540 = vrot.lane.b32.xlu0 %v4533, 16
    %v4541 = vpop.permute.xlu0 %4540
    %v4544 = vsel %vm138, %v4326, %v4539
    %v4545 = vsel %vm138, %v4331, %v4541
    %v4546 = vmul.f32 %v4544, %v179
    %v4547 = vmul.f32 %v4545, %v180
    %4548 = vrot.lane.b32.xlu0 %v3231, 32
    %v4549 = vpop.permute.xlu0 %4548
    %4550 = vrot.lane.b32.xlu0 %v3237, 32
    %v4551 = vpop.permute.xlu0 %4550
    %4552 = vrot.lane.b32.xlu0 %v3233, 32
    %v4553 = vpop.permute.xlu0 %4552
    %4554 = vrot.lane.b32.xlu0 %v3239, 32
    %v4555 = vpop.permute.xlu0 %4554
    %v4556 = vsel %vm138, %v4549, 0
    %v4558 = vsel %vm138, %v4551, 0
    %v4560 = vsel %vm138, %v4553, 0
    %v4562 = vsel %vm138, %v4555, 0
    %4564 = vmatprep.subr.mxu0 0.0
    %4565 = vmatpush1.xpose.msra.mxu0 %v4560
    %4566 = vmatprep.subr.mxu0 0.0
    %4567 = vmatpush1.xpose.msra.mxu0 %v4562
    %4568 = vmatprep.subr.mxu0 0.0
    %4569 = vmatpush1.xpose.msra.mxu0 0.0
    %4570 = vmatprep.subr.mxu0 0.0
    %4571 = vmatpush1.xpose.msra.mxu0 0.0
    %4572 = vmatprep.subr.mxu0 0.0
    %4573 = vmatpush1.xpose.msra.mxu0 0.0
    %4574 = vmatprep.subr.mxu0 0.0
    %4575 = vmatpush1.xpose.msra.mxu0 0.0
    %4576 = vmatprep.subr.mxu0 0.0
    %4577 = vmatpush1.xpose.msra.mxu0 0.0
    %4578 = vmatprep.subr.mxu0 0.0
    %4579 = vmatpush1.xpose.msra.mxu0 0.0
    %4580 = vmatprep.subr.mxu0 0.0
    %4581 = vmatpush1.xpose.msra.mxu0 0.0
    %4582 = vmatprep.subr.mxu0 0.0
    %4583 = vmatpush1.xpose.msra.mxu0 0.0
    %4584 = vmatprep.subr.mxu0 0.0
    %4585 = vmatpush1.xpose.msra.mxu0 0.0
    %4586 = vmatprep.subr.mxu0 0.0
    %4587 = vmatpush1.xpose.msra.mxu0 0.0
    %4588 = vmatprep.subr.mxu0 0.0
    %4589 = vmatpush1.xpose.msra.mxu0 0.0
    %4590 = vmatprep.subr.mxu0 0.0
    %4591 = vmatpush1.xpose.msra.mxu0 0.0
    %4592 = vmatprep.subr.mxu0 0.0
    %4593 = vmatpush1.xpose.msra.mxu0 0.0
    %4594 = vmatprep.subr.mxu0 0.0
    %4595 = vmatpush1.xpose.msra.mxu0 0.0
    %4596 = vmatprep.subr.mxu0 0.0
    %4597 = vmatpush1.xpose.msra.mxu0 0.0
    %4598 = vmatprep.subr.mxu0 0.0
    %4599 = vmatpush1.xpose.msra.mxu0 0.0
    %4600 = vmatprep.subr.mxu0 0.0
    %4601 = vmatpush1.xpose.msra.mxu0 0.0
    %4602 = vmatprep.subr.mxu0 0.0
    %4603 = vmatpush1.xpose.msra.mxu0 0.0
    %4604 = vmatprep.subr.mxu0 0.0
    %4605 = vmatpush1.xpose.msra.mxu0 0.0
    %4606 = vmatprep.subr.mxu0 0.0
    %4607 = vmatpush1.xpose.msra.mxu0 0.0
    %4608 = vmatprep.subr.mxu0 0.0
    %4609 = vmatpush1.xpose.msra.mxu0 0.0
    %4610 = vmatprep.subr.mxu0 0.0
    %4611 = vmatpush1.xpose.msra.mxu0 0.0
    %4612 = vmatprep.subr.mxu0 0.0
    %4613 = vmatpush1.xpose.msra.mxu0 0.0
    %4614 = vmatprep.subr.mxu0 0.0
    %4615 = vmatpush1.xpose.msra.mxu0 0.0
    %4616 = vmatprep.subr.mxu0 0.0
    %4617 = vmatpush1.xpose.msra.mxu0 0.0
    %4618 = vmatprep.subr.mxu0 0.0
    %4619 = vmatpush1.xpose.msra.mxu0 0.0
    %4620 = vmatprep.subr.mxu0 0.0
    %4621 = vmatpush1.xpose.msra.mxu0 0.0
    %4622 = vmatprep.subr.mxu0 0.0
    %4623 = vmatpush1.xpose.msra.mxu0 0.0
    %4624 = vmatprep.subr.mxu0 0.0
    %4625 = vmatpush1.xpose.msra.mxu0 0.0
    %4626 = vmatprep.subr.mxu0 0.0
    %4627 = vmatpush1.xpose.msra.mxu0 0.0
    %4628 = vmatprep.mubr.f32.mxu0 0.0
    %4629 = vmatmul.mubr.f32.gmra.mrb[0].mxu0 %v4556
    %v4630 = vpop.f32.mrb[0].mxu0
    %v4631 = vadd.f32 %v182, %v4630
    %v4632 = vpop.f32.mrb[0].mxu0
    %4633 = vmatprep.mubr.f32.mxu0 0.0
    %4634 = vmatmul.mubr.f32.gmra.mrb[0].mxu0 %v4558
    %v4635 = vpop.f32.mrb[0].mxu0
    %v4636 = vadd.f32 %v183, %v4635
    %v4637 = vpop.f32.mrb[0].mxu0
    %4638 = vdwg.mxu0
    %v4639 = vsel %vm138, %v4631, -inf
    %4640 = vmax.xlane.f32.xlu0 %v4639
    %v4641 = vpop.xlane.xlu0 %4640
    %v4642 = vsel %vm138, %v4636, -inf
    %4643 = vmax.xlane.f32.xlu0 %v4642
    %v4644 = vpop.xlane.xlu0 %4643
    %v4645 = vsub.f32 %v4631, %v4641
    %v4646 = vsub.f32 %v4636, %v4644
    %v4647 = vmul.f32 %v4645, 1.442695
    %v4648 = vpow.pop %v4647
    %v4649 = vmul.f32 %v4646, 1.442695
    %v4650 = vpow.pop %v4649
    %v4651 = vsel %vm138, %v4648, 0.0
    %4652 = vadd.xlane.f32.xlu0 %v4651
    %v4653 = vpop.xlane.xlu0 %4652
    %v4654 = vsel %vm138, %v4650, 0.0
    %4655 = vadd.xlane.f32.xlu0 %v4654
    %v4656 = vpop.xlane.xlu0 %4655
    %v4657 = vrcp.pop %v4653
    %v4658 = vrcp.pop %v4656
    %v4659 = vmul.f32 %v4648, %v4657
    %v4660 = vmul.f32 %v4650, %v4658
    %4661 = vrot.lane.b32.xlu0 %v3310, 96
    %v4662 = vpop.permute.xlu0 %4661
    %4663 = vrot.lane.b32.xlu0 %v3316, 96
    %v4664 = vpop.permute.xlu0 %4663
    %v4668 = vsel %vm138, %v4659, 0
    %v4671 = vsel %vm138, %v4660, 0
    %4673 = vmatprep.subr.mxu0 0.0
    %4674 = vmatpush1.msra.mxu0 %v4662
    %4675 = vmatprep.subr.mxu0 0.0
    %4676 = vmatpush1.msra.mxu0 %v4664
    %4677 = vmatprep.subr.mxu0 0.0
    %4678 = vmatpush1.msra.mxu0 0.0
    %4679 = vmatprep.subr.mxu0 0.0
    %4680 = vmatpush1.msra.mxu0 0.0
    %4681 = vmatprep.subr.mxu0 0.0
    %4682 = vmatpush1.msra.mxu0 0.0
    %4683 = vmatprep.subr.mxu0 0.0
    %4684 = vmatpush1.msra.mxu0 0.0
    %4685 = vmatprep.subr.mxu0 0.0
    %4686 = vmatpush1.msra.mxu0 0.0
    %4687 = vmatprep.subr.mxu0 0.0
    %4688 = vmatpush1.msra.mxu0 0.0
    %4689 = vmatprep.subr.mxu0 0.0
    %4690 = vmatpush1.msra.mxu0 0.0
    %4691 = vmatprep.subr.mxu0 0.0
    %4692 = vmatpush1.msra.mxu0 0.0
    %4693 = vmatprep.subr.mxu0 0.0
    %4694 = vmatpush1.msra.mxu0 0.0
    %4695 = vmatprep.subr.mxu0 0.0
    %4696 = vmatpush1.msra.mxu0 0.0
    %4697 = vmatprep.subr.mxu0 0.0
    %4698 = vmatpush1.msra.mxu0 0.0
    %4699 = vmatprep.subr.mxu0 0.0
    %4700 = vmatpush1.msra.mxu0 0.0
    %4701 = vmatprep.subr.mxu0 0.0
    %4702 = vmatpush1.msra.mxu0 0.0
    %4703 = vmatprep.subr.mxu0 0.0
    %4704 = vmatpush1.msra.mxu0 0.0
    %4705 = vmatprep.subr.mxu0 0.0
    %4706 = vmatpush1.msra.mxu0 0.0
    %4707 = vmatprep.subr.mxu0 0.0
    %4708 = vmatpush1.msra.mxu0 0.0
    %4709 = vmatprep.subr.mxu0 0.0
    %4710 = vmatpush1.msra.mxu0 0.0
    %4711 = vmatprep.subr.mxu0 0.0
    %4712 = vmatpush1.msra.mxu0 0.0
    %4713 = vmatprep.subr.mxu0 0.0
    %4714 = vmatpush1.msra.mxu0 0.0
    %4715 = vmatprep.subr.mxu0 0.0
    %4716 = vmatpush1.msra.mxu0 0.0
    %4717 = vmatprep.subr.mxu0 0.0
    %4718 = vmatpush1.msra.mxu0 0.0
    %4719 = vmatprep.subr.mxu0 0.0
    %4720 = vmatpush1.msra.mxu0 0.0
    %4721 = vmatprep.subr.mxu0 0.0
    %4722 = vmatpush1.msra.mxu0 0.0
    %4723 = vmatprep.subr.mxu0 0.0
    %4724 = vmatpush1.msra.mxu0 0.0
    %4725 = vmatprep.subr.mxu0 0.0
    %4726 = vmatpush1.msra.mxu0 0.0
    %4727 = vmatprep.subr.mxu0 0.0
    %4728 = vmatpush1.msra.mxu0 0.0
    %4729 = vmatprep.subr.mxu0 0.0
    %4730 = vmatpush1.msra.mxu0 0.0
    %4731 = vmatprep.subr.mxu0 0.0
    %4732 = vmatpush1.msra.mxu0 0.0
    %4733 = vmatprep.subr.mxu0 0.0
    %4734 = vmatpush1.msra.mxu0 0.0
    %4735 = vmatprep.subr.mxu0 0.0
    %4736 = vmatpush1.msra.mxu0 0.0
    %4737 = vmatprep.mubr.f32.mxu0 0.0
    %4738 = vmatmul.mubr.f32.gmra.mrb[0].mxu0 %v4668
    %v4739 = vpop.f32.mrb[0].mxu0
    %v4740 = vadd.f32 0.0, %v4739
    %v4741 = vpop.f32.mrb[0].mxu0
    %4742 = vmatprep.mubr.f32.mxu0 0.0
    %4743 = vmatmul.mubr.f32.gmra.mrb[0].mxu0 %v4671
    %v4744 = vpop.f32.mrb[0].mxu0
    %v4745 = vadd.f32 0.0, %v4744
    %v4746 = vpop.f32.mrb[0].mxu0
    %4747 = vdwg.mxu0
    %4748 = vrot.lane.b32.xlu0 %v3231, 16
    %v4749 = vpop.permute.xlu0 %4748
    %4750 = vrot.lane.b32.xlu0 %v3237, 16
    %v4751 = vpop.permute.xlu0 %4750
    %4752 = vrot.lane.b32.xlu0 %v3233, 16
    %v4753 = vpop.permute.xlu0 %4752
    %4754 = vrot.lane.b32.xlu0 %v3239, 16
    %v4755 = vpop.permute.xlu0 %4754
    %v4756 = vsel %vm138, %v4749, 0
    %v4758 = vsel %vm138, %v4751, 0
    %v4760 = vsel %vm138, %v4753, 0
    %v4762 = vsel %vm138, %v4755, 0
    %4764 = vmatprep.subr.mxu0 0.0
    %4765 = vmatpush1.xpose.msra.mxu0 %v4760
    %4766 = vmatprep.subr.mxu0 0.0
    %4767 = vmatpush1.xpose.msra.mxu0 %v4762
    %4768 = vmatprep.subr.mxu0 0.0
    %4769 = vmatpush1.xpose.msra.mxu0 0.0
    %4770 = vmatprep.subr.mxu0 0.0
    %4771 = vmatpush1.xpose.msra.mxu0 0.0
    %4772 = vmatprep.subr.mxu0 0.0
    %4773 = vmatpush1.xpose.msra.mxu0 0.0
    %4774 = vmatprep.subr.mxu0 0.0
    %4775 = vmatpush1.xpose.msra.mxu0 0.0
    %4776 = vmatprep.subr.mxu0 0.0
    %4777 = vmatpush1.xpose.msra.mxu0 0.0
    %4778 = vmatprep.subr.mxu0 0.0
    %4779 = vmatpush1.xpose.msra.mxu0 0.0
    %4780 = vmatprep.subr.mxu0 0.0
    %4781 = vmatpush1.xpose.msra.mxu0 0.0
    %4782 = vmatprep.subr.mxu0 0.0
    %4783 = vmatpush1.xpose.msra.mxu0 0.0
    %4784 = vmatprep.subr.mxu0 0.0
    %4785 = vmatpush1.xpose.msra.mxu0 0.0
    %4786 = vmatprep.subr.mxu0 0.0
    %4787 = vmatpush1.xpose.msra.mxu0 0.0
    %4788 = vmatprep.subr.mxu0 0.0
    %4789 = vmatpush1.xpose.msra.mxu0 0.0
    %4790 = vmatprep.subr.mxu0 0.0
    %4791 = vmatpush1.xpose.msra.mxu0 0.0
    %4792 = vmatprep.subr.mxu0 0.0
    %4793 = vmatpush1.xpose.msra.mxu0 0.0
    %4794 = vmatprep.subr.mxu0 0.0
    %4795 = vmatpush1.xpose.msra.mxu0 0.0
    %4796 = vmatprep.subr.mxu0 0.0
    %4797 = vmatpush1.xpose.msra.mxu0 0.0
    %4798 = vmatprep.subr.mxu0 0.0
    %4799 = vmatpush1.xpose.msra.mxu0 0.0
    %4800 = vmatprep.subr.mxu0 0.0
    %4801 = vmatpush1.xpose.msra.mxu0 0.0
    %4802 = vmatprep.subr.mxu0 0.0
    %4803 = vmatpush1.xpose.msra.mxu0 0.0
    %4804 = vmatprep.subr.mxu0 0.0
    %4805 = vmatpush1.xpose.msra.mxu0 0.0
    %4806 = vmatprep.subr.mxu0 0.0
    %4807 = vmatpush1.xpose.msra.mxu0 0.0
    %4808 = vmatprep.subr.mxu0 0.0
    %4809 = vmatpush1.xpose.msra.mxu0 0.0
    %4810 = vmatprep.subr.mxu0 0.0
    %4811 = vmatpush1.xpose.msra.mxu0 0.0
    %4812 = vmatprep.subr.mxu0 0.0
    %4813 = vmatpush1.xpose.msra.mxu0 0.0
    %4814 = vmatprep.subr.mxu0 0.0
    %4815 = vmatpush1.xpose.msra.mxu0 0.0
    %4816 = vmatprep.subr.mxu0 0.0
    %4817 = vmatpush1.xpose.msra.mxu0 0.0
    %4818 = vmatprep.subr.mxu0 0.0
    %4819 = vmatpush1.xpose.msra.mxu0 0.0
    %4820 = vmatprep.subr.mxu0 0.0
    %4821 = vmatpush1.xpose.msra.mxu0 0.0
    %4822 = vmatprep.subr.mxu0 0.0
    %4823 = vmatpush1.xpose.msra.mxu0 0.0
    %4824 = vmatprep.subr.mxu0 0.0
    %4825 = vmatpush1.xpose.msra.mxu0 0.0
    %4826 = vmatprep.subr.mxu0 0.0
    %4827 = vmatpush1.xpose.msra.mxu0 0.0
    %4828 = vmatprep.mubr.f32.mxu0 0.0
    %4829 = vmatmul.mubr.f32.gmra.mrb[0].mxu0 %v4756
    %v4830 = vpop.f32.mrb[0].mxu0
    %v4831 = vadd.f32 %v182, %v4830
    %v4832 = vpop.f32.mrb[0].mxu0
    %4833 = vmatprep.mubr.f32.mxu0 0.0
    %4834 = vmatmul.mubr.f32.gmra.mrb[0].mxu0 %v4758
    %v4835 = vpop.f32.mrb[0].mxu0
    %v4836 = vadd.f32 %v183, %v4835
    %v4837 = vpop.f32.mrb[0].mxu0
    %4838 = vdwg.mxu0
    %v4839 = vsel %vm138, %v4831, -inf
    %4840 = vmax.xlane.f32.xlu0 %v4839
    %v4841 = vpop.xlane.xlu0 %4840
    %v4842 = vsel %vm138, %v4836, -inf
    %4843 = vmax.xlane.f32.xlu0 %v4842
    %v4844 = vpop.xlane.xlu0 %4843
    %v4845 = vsub.f32 %v4831, %v4841
    %v4846 = vsub.f32 %v4836, %v4844
    %v4847 = vmul.f32 %v4845, 1.442695
    %v4848 = vpow.pop %v4847
    %v4849 = vmul.f32 %v4846, 1.442695
    %v4850 = vpow.pop %v4849
    %v4851 = vsel %vm138, %v4848, 0.0
    %4852 = vadd.xlane.f32.xlu0 %v4851
    %v4853 = vpop.xlane.xlu0 %4852
    %v4854 = vsel %vm138, %v4850, 0.0
    %4855 = vadd.xlane.f32.xlu0 %v4854
    %v4856 = vpop.xlane.xlu0 %4855
    %v4857 = vrcp.pop %v4853
    %v4858 = vrcp.pop %v4856
    %v4859 = vmul.f32 %v4848, %v4857
    %v4860 = vmul.f32 %v4850, %v4858
    %4861 = vrot.lane.b32.xlu0 %v3310, 80
    %v4862 = vpop.permute.xlu0 %4861
    %4863 = vrot.lane.b32.xlu0 %v3316, 80
    %v4864 = vpop.permute.xlu0 %4863
    %v4868 = vsel %vm138, %v4859, 0
    %v4871 = vsel %vm138, %v4860, 0
    %4873 = vmatprep.subr.mxu0 0.0
    %4874 = vmatpush1.msra.mxu0 %v4862
    %4875 = vmatprep.subr.mxu0 0.0
    %4876 = vmatpush1.msra.mxu0 %v4864
    %4877 = vmatprep.subr.mxu0 0.0
    %4878 = vmatpush1.msra.mxu0 0.0
    %4879 = vmatprep.subr.mxu0 0.0
    %4880 = vmatpush1.msra.mxu0 0.0
    %4881 = vmatprep.subr.mxu0 0.0
    %4882 = vmatpush1.msra.mxu0 0.0
    %4883 = vmatprep.subr.mxu0 0.0
    %4884 = vmatpush1.msra.mxu0 0.0
    %4885 = vmatprep.subr.mxu0 0.0
    %4886 = vmatpush1.msra.mxu0 0.0
    %4887 = vmatprep.subr.mxu0 0.0
    %4888 = vmatpush1.msra.mxu0 0.0
    %4889 = vmatprep.subr.mxu0 0.0
    %4890 = vmatpush1.msra.mxu0 0.0
    %4891 = vmatprep.subr.mxu0 0.0
    %4892 = vmatpush1.msra.mxu0 0.0
    %4893 = vmatprep.subr.mxu0 0.0
    %4894 = vmatpush1.msra.mxu0 0.0
    %4895 = vmatprep.subr.mxu0 0.0
    %4896 = vmatpush1.msra.mxu0 0.0
    %4897 = vmatprep.subr.mxu0 0.0
    %4898 = vmatpush1.msra.mxu0 0.0
    %4899 = vmatprep.subr.mxu0 0.0
    %4900 = vmatpush1.msra.mxu0 0.0
    %4901 = vmatprep.subr.mxu0 0.0
    %4902 = vmatpush1.msra.mxu0 0.0
    %4903 = vmatprep.subr.mxu0 0.0
    %4904 = vmatpush1.msra.mxu0 0.0
    %4905 = vmatprep.subr.mxu0 0.0
    %4906 = vmatpush1.msra.mxu0 0.0
    %4907 = vmatprep.subr.mxu0 0.0
    %4908 = vmatpush1.msra.mxu0 0.0
    %4909 = vmatprep.subr.mxu0 0.0
    %4910 = vmatpush1.msra.mxu0 0.0
    %4911 = vmatprep.subr.mxu0 0.0
    %4912 = vmatpush1.msra.mxu0 0.0
    %4913 = vmatprep.subr.mxu0 0.0
    %4914 = vmatpush1.msra.mxu0 0.0
    %4915 = vmatprep.subr.mxu0 0.0
    %4916 = vmatpush1.msra.mxu0 0.0
    %4917 = vmatprep.subr.mxu0 0.0
    %4918 = vmatpush1.msra.mxu0 0.0
    %4919 = vmatprep.subr.mxu0 0.0
    %4920 = vmatpush1.msra.mxu0 0.0
    %4921 = vmatprep.subr.mxu0 0.0
    %4922 = vmatpush1.msra.mxu0 0.0
    %4923 = vmatprep.subr.mxu0 0.0
    %4924 = vmatpush1.msra.mxu0 0.0
    %4925 = vmatprep.subr.mxu0 0.0
    %4926 = vmatpush1.msra.mxu0 0.0
    %4927 = vmatprep.subr.mxu0 0.0
    %4928 = vmatpush1.msra.mxu0 0.0
    %4929 = vmatprep.subr.mxu0 0.0
    %4930 = vmatpush1.msra.mxu0 0.0
    %4931 = vmatprep.subr.mxu0 0.0
    %4932 = vmatpush1.msra.mxu0 0.0
    %4933 = vmatprep.subr.mxu0 0.0
    %4934 = vmatpush1.msra.mxu0 0.0
    %4935 = vmatprep.subr.mxu0 0.0
    %4936 = vmatpush1.msra.mxu0 0.0
    %4937 = vmatprep.mubr.f32.mxu0 0.0
    %4938 = vmatmul.mubr.f32.gmra.mrb[0].mxu0 %v4868
    %v4939 = vpop.f32.mrb[0].mxu0
    %v4940 = vadd.f32 0.0, %v4939
    %v4941 = vpop.f32.mrb[0].mxu0
    %4942 = vmatprep.mubr.f32.mxu0 0.0
    %4943 = vmatmul.mubr.f32.gmra.mrb[0].mxu0 %v4871
    %v4944 = vpop.f32.mrb[0].mxu0
    %v4945 = vadd.f32 0.0, %v4944
    %v4946 = vpop.f32.mrb[0].mxu0
    %4947 = vdwg.mxu0
    %4950 = vrot.lane.b32.xlu0 %v4940, 16
    %v4951 = vpop.permute.xlu0 %4950
    %4952 = vrot.lane.b32.xlu0 %v4945, 16
    %v4953 = vpop.permute.xlu0 %4952
    %v4956 = vsel %vm138, %v4740, %v4951
    %v4957 = vsel %vm138, %v4745, %v4953
    %v4958 = vmul.f32 %v4956, %v194
    %v4959 = vmul.f32 %v4957, %v195
    %v4960 = vsel %vm138, %v3308, 0
    %v4962 = vsel %vm138, %v3314, 0
    %4964 = vmatprep.subr.mxu0 0.0
    %4965 = vmatpush1.xpose.msra.mxu0 %v4960
    %4966 = vmatprep.subr.mxu0 0.0
    %4967 = vmatpush1.xpose.msra.mxu0 %v4962
    %4968 = vmatprep.subr.mxu0 0.0
    %4969 = vmatpush1.xpose.msra.mxu0 0.0
    %4970 = vmatprep.subr.mxu0 0.0
    %4971 = vmatpush1.xpose.msra.mxu0 0.0
    %4972 = vmatprep.subr.mxu0 0.0
    %4973 = vmatpush1.xpose.msra.mxu0 0.0
    %4974 = vmatprep.subr.mxu0 0.0
    %4975 = vmatpush1.xpose.msra.mxu0 0.0
    %4976 = vmatprep.subr.mxu0 0.0
    %4977 = vmatpush1.xpose.msra.mxu0 0.0
    %4978 = vmatprep.subr.mxu0 0.0
    %4979 = vmatpush1.xpose.msra.mxu0 0.0
    %4980 = vmatprep.subr.mxu0 0.0
    %4981 = vmatpush1.xpose.msra.mxu0 0.0
    %4982 = vmatprep.subr.mxu0 0.0
    %4983 = vmatpush1.xpose.msra.mxu0 0.0
    %4984 = vmatprep.subr.mxu0 0.0
    %4985 = vmatpush1.xpose.msra.mxu0 0.0
    %4986 = vmatprep.subr.mxu0 0.0
    %4987 = vmatpush1.xpose.msra.mxu0 0.0
    %4988 = vmatprep.subr.mxu0 0.0
    %4989 = vmatpush1.xpose.msra.mxu0 0.0
    %4990 = vmatprep.subr.mxu0 0.0
    %4991 = vmatpush1.xpose.msra.mxu0 0.0
    %4992 = vmatprep.subr.mxu0 0.0
    %4993 = vmatpush1.xpose.msra.mxu0 0.0
    %4994 = vmatprep.subr.mxu0 0.0
    %4995 = vmatpush1.xpose.msra.mxu0 0.0
    %4996 = vmatprep.subr.mxu0 0.0
    %4997 = vmatpush1.xpose.msra.mxu0 0.0
    %4998 = vmatprep.subr.mxu0 0.0
    %4999 = vmatpush1.xpose.msra.mxu0 0.0
    %5000 = vmatprep.subr.mxu0 0.0
    %5001 = vmatpush1.xpose.msra.mxu0 0.0
    %5002 = vmatprep.subr.mxu0 0.0
    %5003 = vmatpush1.xpose.msra.mxu0 0.0
    %5004 = vmatprep.subr.mxu0 0.0
    %5005 = vmatpush1.xpose.msra.mxu0 0.0
    %5006 = vmatprep.subr.mxu0 0.0
    %5007 = vmatpush1.xpose.msra.mxu0 0.0
    %5008 = vmatprep.subr.mxu0 0.0
    %5009 = vmatpush1.xpose.msra.mxu0 0.0
    %5010 = vmatprep.subr.mxu0 0.0
    %5011 = vmatpush1.xpose.msra.mxu0 0.0
    %5012 = vmatprep.subr.mxu0 0.0
    %5013 = vmatpush1.xpose.msra.mxu0 0.0
    %5014 = vmatprep.subr.mxu0 0.0
    %5015 = vmatpush1.xpose.msra.mxu0 0.0
    %5016 = vmatprep.subr.mxu0 0.0
    %5017 = vmatpush1.xpose.msra.mxu0 0.0
    %5018 = vmatprep.subr.mxu0 0.0
    %5019 = vmatpush1.xpose.msra.mxu0 0.0
    %5020 = vmatprep.subr.mxu0 0.0
    %5021 = vmatpush1.xpose.msra.mxu0 0.0
    %5022 = vmatprep.subr.mxu0 0.0
    %5023 = vmatpush1.xpose.msra.mxu0 0.0
    %5024 = vmatprep.subr.mxu0 0.0
    %5025 = vmatpush1.xpose.msra.mxu0 0.0
    %5026 = vmatprep.subr.mxu0 0.0
    %5027 = vmatpush1.xpose.msra.mxu0 0.0
    %5028 = vmatprep.mubr.f32.mxu0 0.0
    %5029 = vmatmul.mubr.f32.gmra.mrb[0].mxu0 %v3324
    %v5030 = vpop.f32.mrb[0].mxu0
    %v5031 = vadd.f32 %v197, %v5030
    %v5032 = vpop.f32.mrb[0].mxu0
    %5033 = vmatprep.mubr.f32.mxu0 0.0
    %5034 = vmatmul.mubr.f32.gmra.mrb[0].mxu0 %v3326
    %v5035 = vpop.f32.mrb[0].mxu0
    %v5036 = vadd.f32 %v198, %v5035
    %v5037 = vpop.f32.mrb[0].mxu0
    %5038 = vdwg.mxu0
    %v5039 = vsel %vm138, %v5031, -inf
    %5040 = vmax.xlane.f32.xlu0 %v5039
    %v5041 = vpop.xlane.xlu0 %5040
    %v5042 = vsel %vm138, %v5036, -inf
    %5043 = vmax.xlane.f32.xlu0 %v5042
    %v5044 = vpop.xlane.xlu0 %5043
    %v5045 = vsub.f32 %v5031, %v5041
    %v5046 = vsub.f32 %v5036, %v5044
    %v5047 = vmul.f32 %v5045, 1.442695
    %v5048 = vpow.pop %v5047
    %v5049 = vmul.f32 %v5046, 1.442695
    %v5050 = vpow.pop %v5049
    %v5051 = vsel %vm138, %v5048, 0.0
    %5052 = vadd.xlane.f32.xlu0 %v5051
    %v5053 = vpop.xlane.xlu0 %5052
    %v5054 = vsel %vm138, %v5050, 0.0
    %5055 = vadd.xlane.f32.xlu0 %v5054
    %v5056 = vpop.xlane.xlu0 %5055
    %v5057 = vrcp.pop %v5053
    %v5058 = vrcp.pop %v5056
    %v5059 = vmul.f32 %v5048, %v5057
    %v5060 = vmul.f32 %v5050, %v5058
    %5061 = vrot.lane.b32.xlu0 %v3310, 64
    %v5062 = vpop.permute.xlu0 %5061
    %5063 = vrot.lane.b32.xlu0 %v3316, 64
    %v5064 = vpop.permute.xlu0 %5063
    %v5068 = vsel %vm138, %v5059, 0
    %v5071 = vsel %vm138, %v5060, 0
    %5073 = vmatprep.subr.mxu0 0.0
    %5074 = vmatpush1.msra.mxu0 %v5062
    %5075 = vmatprep.subr.mxu0 0.0
    %5076 = vmatpush1.msra.mxu0 %v5064
    %5077 = vmatprep.subr.mxu0 0.0
    %5078 = vmatpush1.msra.mxu0 0.0
    %5079 = vmatprep.subr.mxu0 0.0
    %5080 = vmatpush1.msra.mxu0 0.0
    %5081 = vmatprep.subr.mxu0 0.0
    %5082 = vmatpush1.msra.mxu0 0.0
    %5083 = vmatprep.subr.mxu0 0.0
    %5084 = vmatpush1.msra.mxu0 0.0
    %5085 = vmatprep.subr.mxu0 0.0
    %5086 = vmatpush1.msra.mxu0 0.0
    %5087 = vmatprep.subr.mxu0 0.0
    %5088 = vmatpush1.msra.mxu0 0.0
    %5089 = vmatprep.subr.mxu0 0.0
    %5090 = vmatpush1.msra.mxu0 0.0
    %5091 = vmatprep.subr.mxu0 0.0
    %5092 = vmatpush1.msra.mxu0 0.0
    %5093 = vmatprep.subr.mxu0 0.0
    %5094 = vmatpush1.msra.mxu0 0.0
    %5095 = vmatprep.subr.mxu0 0.0
    %5096 = vmatpush1.msra.mxu0 0.0
    %5097 = vmatprep.subr.mxu0 0.0
    %5098 = vmatpush1.msra.mxu0 0.0
    %5099 = vmatprep.subr.mxu0 0.0
    %5100 = vmatpush1.msra.mxu0 0.0
    %5101 = vmatprep.subr.mxu0 0.0
    %5102 = vmatpush1.msra.mxu0 0.0
    %5103 = vmatprep.subr.mxu0 0.0
    %5104 = vmatpush1.msra.mxu0 0.0
    %5105 = vmatprep.subr.mxu0 0.0
    %5106 = vmatpush1.msra.mxu0 0.0
    %5107 = vmatprep.subr.mxu0 0.0
    %5108 = vmatpush1.msra.mxu0 0.0
    %5109 = vmatprep.subr.mxu0 0.0
    %5110 = vmatpush1.msra.mxu0 0.0
    %5111 = vmatprep.subr.mxu0 0.0
    %5112 = vmatpush1.msra.mxu0 0.0
    %5113 = vmatprep.subr.mxu0 0.0
    %5114 = vmatpush1.msra.mxu0 0.0
    %5115 = vmatprep.subr.mxu0 0.0
    %5116 = vmatpush1.msra.mxu0 0.0
    %5117 = vmatprep.subr.mxu0 0.0
    %5118 = vmatpush1.msra.mxu0 0.0
    %5119 = vmatprep.subr.mxu0 0.0
    %5120 = vmatpush1.msra.mxu0 0.0
    %5121 = vmatprep.subr.mxu0 0.0
    %5122 = vmatpush1.msra.mxu0 0.0
    %5123 = vmatprep.subr.mxu0 0.0
    %5124 = vmatpush1.msra.mxu0 0.0
    %5125 = vmatprep.subr.mxu0 0.0
    %5126 = vmatpush1.msra.mxu0 0.0
    %5127 = vmatprep.subr.mxu0 0.0
    %5128 = vmatpush1.msra.mxu0 0.0
    %5129 = vmatprep.subr.mxu0 0.0
    %5130 = vmatpush1.msra.mxu0 0.0
    %5131 = vmatprep.subr.mxu0 0.0
    %5132 = vmatpush1.msra.mxu0 0.0
    %5133 = vmatprep.subr.mxu0 0.0
    %5134 = vmatpush1.msra.mxu0 0.0
    %5135 = vmatprep.subr.mxu0 0.0
    %5136 = vmatpush1.msra.mxu0 0.0
    %5137 = vmatprep.mubr.f32.mxu0 0.0
    %5138 = vmatmul.mubr.f32.gmra.mrb[0].mxu0 %v5068
    %v5139 = vpop.f32.mrb[0].mxu0
    %v5140 = vadd.f32 0.0, %v5139
    %v5141 = vpop.f32.mrb[0].mxu0
    %5142 = vmatprep.mubr.f32.mxu0 0.0
    %5143 = vmatmul.mubr.f32.gmra.mrb[0].mxu0 %v5071
    %v5144 = vpop.f32.mrb[0].mxu0
    %v5145 = vadd.f32 0.0, %v5144
    %v5146 = vpop.f32.mrb[0].mxu0
    %5147 = vdwg.mxu0
    %5148 = vrot.lane.b32.xlu0 %v3308, 112
    %v5149 = vpop.permute.xlu0 %5148
    %5150 = vrot.lane.b32.xlu0 %v3314, 112
    %v5151 = vpop.permute.xlu0 %5150
    %v5152 = vsel %vm138, %v5149, 0
    %v5154 = vsel %vm138, %v5151, 0
    %5156 = vmatprep.subr.mxu0 0.0
    %5157 = vmatpush1.xpose.msra.mxu0 %v5152
    %5158 = vmatprep.subr.mxu0 0.0
    %5159 = vmatpush1.xpose.msra.mxu0 %v5154
    %5160 = vmatprep.subr.mxu0 0.0
    %5161 = vmatpush1.xpose.msra.mxu0 0.0
    %5162 = vmatprep.subr.mxu0 0.0
    %5163 = vmatpush1.xpose.msra.mxu0 0.0
    %5164 = vmatprep.subr.mxu0 0.0
    %5165 = vmatpush1.xpose.msra.mxu0 0.0
    %5166 = vmatprep.subr.mxu0 0.0
    %5167 = vmatpush1.xpose.msra.mxu0 0.0
    %5168 = vmatprep.subr.mxu0 0.0
    %5169 = vmatpush1.xpose.msra.mxu0 0.0
    %5170 = vmatprep.subr.mxu0 0.0
    %5171 = vmatpush1.xpose.msra.mxu0 0.0
    %5172 = vmatprep.subr.mxu0 0.0
    %5173 = vmatpush1.xpose.msra.mxu0 0.0
    %5174 = vmatprep.subr.mxu0 0.0
    %5175 = vmatpush1.xpose.msra.mxu0 0.0
    %5176 = vmatprep.subr.mxu0 0.0
    %5177 = vmatpush1.xpose.msra.mxu0 0.0
    %5178 = vmatprep.subr.mxu0 0.0
    %5179 = vmatpush1.xpose.msra.mxu0 0.0
    %5180 = vmatprep.subr.mxu0 0.0
    %5181 = vmatpush1.xpose.msra.mxu0 0.0
    %5182 = vmatprep.subr.mxu0 0.0
    %5183 = vmatpush1.xpose.msra.mxu0 0.0
    %5184 = vmatprep.subr.mxu0 0.0
    %5185 = vmatpush1.xpose.msra.mxu0 0.0
    %5186 = vmatprep.subr.mxu0 0.0
    %5187 = vmatpush1.xpose.msra.mxu0 0.0
    %5188 = vmatprep.subr.mxu0 0.0
    %5189 = vmatpush1.xpose.msra.mxu0 0.0
    %5190 = vmatprep.subr.mxu0 0.0
    %5191 = vmatpush1.xpose.msra.mxu0 0.0
    %5192 = vmatprep.subr.mxu0 0.0
    %5193 = vmatpush1.xpose.msra.mxu0 0.0
    %5194 = vmatprep.subr.mxu0 0.0
    %5195 = vmatpush1.xpose.msra.mxu0 0.0
    %5196 = vmatprep.subr.mxu0 0.0
    %5197 = vmatpush1.xpose.msra.mxu0 0.0
    %5198 = vmatprep.subr.mxu0 0.0
    %5199 = vmatpush1.xpose.msra.mxu0 0.0
    %5200 = vmatprep.subr.mxu0 0.0
    %5201 = vmatpush1.xpose.msra.mxu0 0.0
    %5202 = vmatprep.subr.mxu0 0.0
    %5203 = vmatpush1.xpose.msra.mxu0 0.0
    %5204 = vmatprep.subr.mxu0 0.0
    %5205 = vmatpush1.xpose.msra.mxu0 0.0
    %5206 = vmatprep.subr.mxu0 0.0
    %5207 = vmatpush1.xpose.msra.mxu0 0.0
    %5208 = vmatprep.subr.mxu0 0.0
    %5209 = vmatpush1.xpose.msra.mxu0 0.0
    %5210 = vmatprep.subr.mxu0 0.0
    %5211 = vmatpush1.xpose.msra.mxu0 0.0
    %5212 = vmatprep.subr.mxu0 0.0
    %5213 = vmatpush1.xpose.msra.mxu0 0.0
    %5214 = vmatprep.subr.mxu0 0.0
    %5215 = vmatpush1.xpose.msra.mxu0 0.0
    %5216 = vmatprep.subr.mxu0 0.0
    %5217 = vmatpush1.xpose.msra.mxu0 0.0
    %5218 = vmatprep.subr.mxu0 0.0
    %5219 = vmatpush1.xpose.msra.mxu0 0.0
    %5220 = vmatprep.mubr.f32.mxu0 0.0
    %5221 = vmatmul.mubr.f32.gmra.mrb[0].mxu0 %v3528
    %v5222 = vpop.f32.mrb[0].mxu0
    %v5223 = vadd.f32 %v197, %v5222
    %v5224 = vpop.f32.mrb[0].mxu0
    %5225 = vmatprep.mubr.f32.mxu0 0.0
    %5226 = vmatmul.mubr.f32.gmra.mrb[0].mxu0 %v3530
    %v5227 = vpop.f32.mrb[0].mxu0
    %v5228 = vadd.f32 %v198, %v5227
    %v5229 = vpop.f32.mrb[0].mxu0
    %5230 = vdwg.mxu0
    %v5231 = vsel %vm138, %v5223, -inf
    %5232 = vmax.xlane.f32.xlu0 %v5231
    %v5233 = vpop.xlane.xlu0 %5232
    %v5234 = vsel %vm138, %v5228, -inf
    %5235 = vmax.xlane.f32.xlu0 %v5234
    %v5236 = vpop.xlane.xlu0 %5235
    %v5237 = vsub.f32 %v5223, %v5233
    %v5238 = vsub.f32 %v5228, %v5236
    %v5239 = vmul.f32 %v5237, 1.442695
    %v5240 = vpow.pop %v5239
    %v5241 = vmul.f32 %v5238, 1.442695
    %v5242 = vpow.pop %v5241
    %v5243 = vsel %vm138, %v5240, 0.0
    %5244 = vadd.xlane.f32.xlu0 %v5243
    %v5245 = vpop.xlane.xlu0 %5244
    %v5246 = vsel %vm138, %v5242, 0.0
    %5247 = vadd.xlane.f32.xlu0 %v5246
    %v5248 = vpop.xlane.xlu0 %5247
    %v5249 = vrcp.pop %v5245
    %v5250 = vrcp.pop %v5248
    %v5251 = vmul.f32 %v5240, %v5249
    %v5252 = vmul.f32 %v5242, %v5250
    %5253 = vrot.lane.b32.xlu0 %v3310, 48
    %v5254 = vpop.permute.xlu0 %5253
    %5255 = vrot.lane.b32.xlu0 %v3316, 48
    %v5256 = vpop.permute.xlu0 %5255
    %v5260 = vsel %vm138, %v5251, 0
    %v5263 = vsel %vm138, %v5252, 0
    %5265 = vmatprep.subr.mxu0 0.0
    %5266 = vmatpush1.msra.mxu0 %v5254
    %5267 = vmatprep.subr.mxu0 0.0
    %5268 = vmatpush1.msra.mxu0 %v5256
    %5269 = vmatprep.subr.mxu0 0.0
    %5270 = vmatpush1.msra.mxu0 0.0
    %5271 = vmatprep.subr.mxu0 0.0
    %5272 = vmatpush1.msra.mxu0 0.0
    %5273 = vmatprep.subr.mxu0 0.0
    %5274 = vmatpush1.msra.mxu0 0.0
    %5275 = vmatprep.subr.mxu0 0.0
    %5276 = vmatpush1.msra.mxu0 0.0
    %5277 = vmatprep.subr.mxu0 0.0
    %5278 = vmatpush1.msra.mxu0 0.0
    %5279 = vmatprep.subr.mxu0 0.0
    %5280 = vmatpush1.msra.mxu0 0.0
    %5281 = vmatprep.subr.mxu0 0.0
    %5282 = vmatpush1.msra.mxu0 0.0
    %5283 = vmatprep.subr.mxu0 0.0
    %5284 = vmatpush1.msra.mxu0 0.0
    %5285 = vmatprep.subr.mxu0 0.0
    %5286 = vmatpush1.msra.mxu0 0.0
    %5287 = vmatprep.subr.mxu0 0.0
    %5288 = vmatpush1.msra.mxu0 0.0
    %5289 = vmatprep.subr.mxu0 0.0
    %5290 = vmatpush1.msra.mxu0 0.0
    %5291 = vmatprep.subr.mxu0 0.0
    %5292 = vmatpush1.msra.mxu0 0.0
    %5293 = vmatprep.subr.mxu0 0.0
    %5294 = vmatpush1.msra.mxu0 0.0
    %5295 = vmatprep.subr.mxu0 0.0
    %5296 = vmatpush1.msra.mxu0 0.0
    %5297 = vmatprep.subr.mxu0 0.0
    %5298 = vmatpush1.msra.mxu0 0.0
    %5299 = vmatprep.subr.mxu0 0.0
    %5300 = vmatpush1.msra.mxu0 0.0
    %5301 = vmatprep.subr.mxu0 0.0
    %5302 = vmatpush1.msra.mxu0 0.0
    %5303 = vmatprep.subr.mxu0 0.0
    %5304 = vmatpush1.msra.mxu0 0.0
    %5305 = vmatprep.subr.mxu0 0.0
    %5306 = vmatpush1.msra.mxu0 0.0
    %5307 = vmatprep.subr.mxu0 0.0
    %5308 = vmatpush1.msra.mxu0 0.0
    %5309 = vmatprep.subr.mxu0 0.0
    %5310 = vmatpush1.msra.mxu0 0.0
    %5311 = vmatprep.subr.mxu0 0.0
    %5312 = vmatpush1.msra.mxu0 0.0
    %5313 = vmatprep.subr.mxu0 0.0
    %5314 = vmatpush1.msra.mxu0 0.0
    %5315 = vmatprep.subr.mxu0 0.0
    %5316 = vmatpush1.msra.mxu0 0.0
    %5317 = vmatprep.subr.mxu0 0.0
    %5318 = vmatpush1.msra.mxu0 0.0
    %5319 = vmatprep.subr.mxu0 0.0
    %5320 = vmatpush1.msra.mxu0 0.0
    %5321 = vmatprep.subr.mxu0 0.0
    %5322 = vmatpush1.msra.mxu0 0.0
    %5323 = vmatprep.subr.mxu0 0.0
    %5324 = vmatpush1.msra.mxu0 0.0
    %5325 = vmatprep.subr.mxu0 0.0
    %5326 = vmatpush1.msra.mxu0 0.0
    %5327 = vmatprep.subr.mxu0 0.0
    %5328 = vmatpush1.msra.mxu0 0.0
    %5329 = vmatprep.mubr.f32.mxu0 0.0
    %5330 = vmatmul.mubr.f32.gmra.mrb[0].mxu0 %v5260
    %v5331 = vpop.f32.mrb[0].mxu0
    %v5332 = vadd.f32 0.0, %v5331
    %v5333 = vpop.f32.mrb[0].mxu0
    %5334 = vmatprep.mubr.f32.mxu0 0.0
    %5335 = vmatmul.mubr.f32.gmra.mrb[0].mxu0 %v5263
    %v5336 = vpop.f32.mrb[0].mxu0
    %v5337 = vadd.f32 0.0, %v5336
    %v5338 = vpop.f32.mrb[0].mxu0
    %5339 = vdwg.mxu0
    %5342 = vrot.lane.b32.xlu0 %v5332, 16
    %v5343 = vpop.permute.xlu0 %5342
    %5344 = vrot.lane.b32.xlu0 %v5337, 16
    %v5345 = vpop.permute.xlu0 %5344
    %v5348 = vsel %vm138, %v5140, %v5343
    %v5349 = vsel %vm138, %v5145, %v5345
    %v5350 = vmul.f32 %v5348, %v209
    %v5351 = vmul.f32 %v5349, %v210
    %v5352 = vadd.f32 %v3730, %v5350
    %v5353 = vadd.f32 %v3731, %v5351
    %5354 = vrot.lane.b32.xlu0 %v3308, 96
    %v5355 = vpop.permute.xlu0 %5354
    %5356 = vrot.lane.b32.xlu0 %v3314, 96
    %v5357 = vpop.permute.xlu0 %5356
    %v5358 = vsel %vm138, %v5355, 0
    %v5360 = vsel %vm138, %v5357, 0
    %5362 = vmatprep.subr.mxu0 0.0
    %5363 = vmatpush1.xpose.msra.mxu0 %v5358
    %5364 = vmatprep.subr.mxu0 0.0
    %5365 = vmatpush1.xpose.msra.mxu0 %v5360
    %5366 = vmatprep.subr.mxu0 0.0
    %5367 = vmatpush1.xpose.msra.mxu0 0.0
    %5368 = vmatprep.subr.mxu0 0.0
    %5369 = vmatpush1.xpose.msra.mxu0 0.0
    %5370 = vmatprep.subr.mxu0 0.0
    %5371 = vmatpush1.xpose.msra.mxu0 0.0
    %5372 = vmatprep.subr.mxu0 0.0
    %5373 = vmatpush1.xpose.msra.mxu0 0.0
    %5374 = vmatprep.subr.mxu0 0.0
    %5375 = vmatpush1.xpose.msra.mxu0 0.0
    %5376 = vmatprep.subr.mxu0 0.0
    %5377 = vmatpush1.xpose.msra.mxu0 0.0
    %5378 = vmatprep.subr.mxu0 0.0
    %5379 = vmatpush1.xpose.msra.mxu0 0.0
    %5380 = vmatprep.subr.mxu0 0.0
    %5381 = vmatpush1.xpose.msra.mxu0 0.0
    %5382 = vmatprep.subr.mxu0 0.0
    %5383 = vmatpush1.xpose.msra.mxu0 0.0
    %5384 = vmatprep.subr.mxu0 0.0
    %5385 = vmatpush1.xpose.msra.mxu0 0.0
    %5386 = vmatprep.subr.mxu0 0.0
    %5387 = vmatpush1.xpose.msra.mxu0 0.0
    %5388 = vmatprep.subr.mxu0 0.0
    %5389 = vmatpush1.xpose.msra.mxu0 0.0
    %5390 = vmatprep.subr.mxu0 0.0
    %5391 = vmatpush1.xpose.msra.mxu0 0.0
    %5392 = vmatprep.subr.mxu0 0.0
    %5393 = vmatpush1.xpose.msra.mxu0 0.0
    %5394 = vmatprep.subr.mxu0 0.0
    %5395 = vmatpush1.xpose.msra.mxu0 0.0
    %5396 = vmatprep.subr.mxu0 0.0
    %5397 = vmatpush1.xpose.msra.mxu0 0.0
    %5398 = vmatprep.subr.mxu0 0.0
    %5399 = vmatpush1.xpose.msra.mxu0 0.0
    %5400 = vmatprep.subr.mxu0 0.0
    %5401 = vmatpush1.xpose.msra.mxu0 0.0
    %5402 = vmatprep.subr.mxu0 0.0
    %5403 = vmatpush1.xpose.msra.mxu0 0.0
    %5404 = vmatprep.subr.mxu0 0.0
    %5405 = vmatpush1.xpose.msra.mxu0 0.0
    %5406 = vmatprep.subr.mxu0 0.0
    %5407 = vmatpush1.xpose.msra.mxu0 0.0
    %5408 = vmatprep.subr.mxu0 0.0
    %5409 = vmatpush1.xpose.msra.mxu0 0.0
    %5410 = vmatprep.subr.mxu0 0.0
    %5411 = vmatpush1.xpose.msra.mxu0 0.0
    %5412 = vmatprep.subr.mxu0 0.0
    %5413 = vmatpush1.xpose.msra.mxu0 0.0
    %5414 = vmatprep.subr.mxu0 0.0
    %5415 = vmatpush1.xpose.msra.mxu0 0.0
    %5416 = vmatprep.subr.mxu0 0.0
    %5417 = vmatpush1.xpose.msra.mxu0 0.0
    %5418 = vmatprep.subr.mxu0 0.0
    %5419 = vmatpush1.xpose.msra.mxu0 0.0
    %5420 = vmatprep.subr.mxu0 0.0
    %5421 = vmatpush1.xpose.msra.mxu0 0.0
    %5422 = vmatprep.subr.mxu0 0.0
    %5423 = vmatpush1.xpose.msra.mxu0 0.0
    %5424 = vmatprep.subr.mxu0 0.0
    %5425 = vmatpush1.xpose.msra.mxu0 0.0
    %5426 = vmatprep.mubr.f32.mxu0 0.0
    %5427 = vmatmul.mubr.f32.gmra.mrb[0].mxu0 %v3324
    %v5428 = vpop.f32.mrb[0].mxu0
    %v5429 = vadd.f32 %v212, %v5428
    %v5430 = vpop.f32.mrb[0].mxu0
    %5431 = vmatprep.mubr.f32.mxu0 0.0
    %5432 = vmatmul.mubr.f32.gmra.mrb[0].mxu0 %v3326
    %v5433 = vpop.f32.mrb[0].mxu0
    %v5434 = vadd.f32 %v213, %v5433
    %v5435 = vpop.f32.mrb[0].mxu0
    %5436 = vdwg.mxu0
    %v5437 = vsel %vm138, %v5429, -inf
    %5438 = vmax.xlane.f32.xlu0 %v5437
    %v5439 = vpop.xlane.xlu0 %5438
    %v5440 = vsel %vm138, %v5434, -inf
    %5441 = vmax.xlane.f32.xlu0 %v5440
    %v5442 = vpop.xlane.xlu0 %5441
    %v5443 = vsub.f32 %v5429, %v5439
    %v5444 = vsub.f32 %v5434, %v5442
    %v5445 = vmul.f32 %v5443, 1.442695
    %v5446 = vpow.pop %v5445
    %v5447 = vmul.f32 %v5444, 1.442695
    %v5448 = vpow.pop %v5447
    %v5449 = vsel %vm138, %v5446, 0.0
    %5450 = vadd.xlane.f32.xlu0 %v5449
    %v5451 = vpop.xlane.xlu0 %5450
    %v5452 = vsel %vm138, %v5448, 0.0
    %5453 = vadd.xlane.f32.xlu0 %v5452
    %v5454 = vpop.xlane.xlu0 %5453
    %v5455 = vrcp.pop %v5451
    %v5456 = vrcp.pop %v5454
    %v5457 = vmul.f32 %v5446, %v5455
    %v5458 = vmul.f32 %v5448, %v5456
    %5459 = vrot.lane.b32.xlu0 %v3310, 32
    %v5460 = vpop.permute.xlu0 %5459
    %5461 = vrot.lane.b32.xlu0 %v3316, 32
    %v5462 = vpop.permute.xlu0 %5461
    %v5466 = vsel %vm138, %v5457, 0
    %v5469 = vsel %vm138, %v5458, 0
    %5471 = vmatprep.subr.mxu0 0.0
    %5472 = vmatpush1.msra.mxu0 %v5460
    %5473 = vmatprep.subr.mxu0 0.0
    %5474 = vmatpush1.msra.mxu0 %v5462
    %5475 = vmatprep.subr.mxu0 0.0
    %5476 = vmatpush1.msra.mxu0 0.0
    %5477 = vmatprep.subr.mxu0 0.0
    %5478 = vmatpush1.msra.mxu0 0.0
    %5479 = vmatprep.subr.mxu0 0.0
    %5480 = vmatpush1.msra.mxu0 0.0
    %5481 = vmatprep.subr.mxu0 0.0
    %5482 = vmatpush1.msra.mxu0 0.0
    %5483 = vmatprep.subr.mxu0 0.0
    %5484 = vmatpush1.msra.mxu0 0.0
    %5485 = vmatprep.subr.mxu0 0.0
    %5486 = vmatpush1.msra.mxu0 0.0
    %5487 = vmatprep.subr.mxu0 0.0
    %5488 = vmatpush1.msra.mxu0 0.0
    %5489 = vmatprep.subr.mxu0 0.0
    %5490 = vmatpush1.msra.mxu0 0.0
    %5491 = vmatprep.subr.mxu0 0.0
    %5492 = vmatpush1.msra.mxu0 0.0
    %5493 = vmatprep.subr.mxu0 0.0
    %5494 = vmatpush1.msra.mxu0 0.0
    %5495 = vmatprep.subr.mxu0 0.0
    %5496 = vmatpush1.msra.mxu0 0.0
    %5497 = vmatprep.subr.mxu0 0.0
    %5498 = vmatpush1.msra.mxu0 0.0
    %5499 = vmatprep.subr.mxu0 0.0
    %5500 = vmatpush1.msra.mxu0 0.0
    %5501 = vmatprep.subr.mxu0 0.0
    %5502 = vmatpush1.msra.mxu0 0.0
    %5503 = vmatprep.subr.mxu0 0.0
    %5504 = vmatpush1.msra.mxu0 0.0
    %5505 = vmatprep.subr.mxu0 0.0
    %5506 = vmatpush1.msra.mxu0 0.0
    %5507 = vmatprep.subr.mxu0 0.0
    %5508 = vmatpush1.msra.mxu0 0.0
    %5509 = vmatprep.subr.mxu0 0.0
    %5510 = vmatpush1.msra.mxu0 0.0
    %5511 = vmatprep.subr.mxu0 0.0
    %5512 = vmatpush1.msra.mxu0 0.0
    %5513 = vmatprep.subr.mxu0 0.0
    %5514 = vmatpush1.msra.mxu0 0.0
    %5515 = vmatprep.subr.mxu0 0.0
    %5516 = vmatpush1.msra.mxu0 0.0
    %5517 = vmatprep.subr.mxu0 0.0
    %5518 = vmatpush1.msra.mxu0 0.0
    %5519 = vmatprep.subr.mxu0 0.0
    %5520 = vmatpush1.msra.mxu0 0.0
    %5521 = vmatprep.subr.mxu0 0.0
    %5522 = vmatpush1.msra.mxu0 0.0
    %5523 = vmatprep.subr.mxu0 0.0
    %5524 = vmatpush1.msra.mxu0 0.0
    %5525 = vmatprep.subr.mxu0 0.0
    %5526 = vmatpush1.msra.mxu0 0.0
    %5527 = vmatprep.subr.mxu0 0.0
    %5528 = vmatpush1.msra.mxu0 0.0
    %5529 = vmatprep.subr.mxu0 0.0
    %5530 = vmatpush1.msra.mxu0 0.0
    %5531 = vmatprep.subr.mxu0 0.0
    %5532 = vmatpush1.msra.mxu0 0.0
    %5533 = vmatprep.subr.mxu0 0.0
    %5534 = vmatpush1.msra.mxu0 0.0
    %5535 = vmatprep.mubr.f32.mxu0 0.0
    %5536 = vmatmul.mubr.f32.gmra.mrb[0].mxu0 %v5466
    %v5537 = vpop.f32.mrb[0].mxu0
    %v5538 = vadd.f32 0.0, %v5537
    %v5539 = vpop.f32.mrb[0].mxu0
    %5540 = vmatprep.mubr.f32.mxu0 0.0
    %5541 = vmatmul.mubr.f32.gmra.mrb[0].mxu0 %v5469
    %v5542 = vpop.f32.mrb[0].mxu0
    %v5543 = vadd.f32 0.0, %v5542
    %v5544 = vpop.f32.mrb[0].mxu0
    %5545 = vdwg.mxu0
    %5546 = vrot.lane.b32.xlu0 %v3308, 80
    %v5547 = vpop.permute.xlu0 %5546
    %5548 = vrot.lane.b32.xlu0 %v3314, 80
    %v5549 = vpop.permute.xlu0 %5548
    %v5550 = vsel %vm138, %v5547, 0
    %v5552 = vsel %vm138, %v5549, 0
    %5554 = vmatprep.subr.mxu0 0.0
    %5555 = vmatpush1.xpose.msra.mxu0 %v5550
    %5556 = vmatprep.subr.mxu0 0.0
    %5557 = vmatpush1.xpose.msra.mxu0 %v5552
    %5558 = vmatprep.subr.mxu0 0.0
    %5559 = vmatpush1.xpose.msra.mxu0 0.0
    %5560 = vmatprep.subr.mxu0 0.0
    %5561 = vmatpush1.xpose.msra.mxu0 0.0
    %5562 = vmatprep.subr.mxu0 0.0
    %5563 = vmatpush1.xpose.msra.mxu0 0.0
    %5564 = vmatprep.subr.mxu0 0.0
    %5565 = vmatpush1.xpose.msra.mxu0 0.0
    %5566 = vmatprep.subr.mxu0 0.0
    %5567 = vmatpush1.xpose.msra.mxu0 0.0
    %5568 = vmatprep.subr.mxu0 0.0
    %5569 = vmatpush1.xpose.msra.mxu0 0.0
    %5570 = vmatprep.subr.mxu0 0.0
    %5571 = vmatpush1.xpose.msra.mxu0 0.0
    %5572 = vmatprep.subr.mxu0 0.0
    %5573 = vmatpush1.xpose.msra.mxu0 0.0
    %5574 = vmatprep.subr.mxu0 0.0
    %5575 = vmatpush1.xpose.msra.mxu0 0.0
    %5576 = vmatprep.subr.mxu0 0.0
    %5577 = vmatpush1.xpose.msra.mxu0 0.0
    %5578 = vmatprep.subr.mxu0 0.0
    %5579 = vmatpush1.xpose.msra.mxu0 0.0
    %5580 = vmatprep.subr.mxu0 0.0
    %5581 = vmatpush1.xpose.msra.mxu0 0.0
    %5582 = vmatprep.subr.mxu0 0.0
    %5583 = vmatpush1.xpose.msra.mxu0 0.0
    %5584 = vmatprep.subr.mxu0 0.0
    %5585 = vmatpush1.xpose.msra.mxu0 0.0
    %5586 = vmatprep.subr.mxu0 0.0
    %5587 = vmatpush1.xpose.msra.mxu0 0.0
    %5588 = vmatprep.subr.mxu0 0.0
    %5589 = vmatpush1.xpose.msra.mxu0 0.0
    %5590 = vmatprep.subr.mxu0 0.0
    %5591 = vmatpush1.xpose.msra.mxu0 0.0
    %5592 = vmatprep.subr.mxu0 0.0
    %5593 = vmatpush1.xpose.msra.mxu0 0.0
    %5594 = vmatprep.subr.mxu0 0.0
    %5595 = vmatpush1.xpose.msra.mxu0 0.0
    %5596 = vmatprep.subr.mxu0 0.0
    %5597 = vmatpush1.xpose.msra.mxu0 0.0
    %5598 = vmatprep.subr.mxu0 0.0
    %5599 = vmatpush1.xpose.msra.mxu0 0.0
    %5600 = vmatprep.subr.mxu0 0.0
    %5601 = vmatpush1.xpose.msra.mxu0 0.0
    %5602 = vmatprep.subr.mxu0 0.0
    %5603 = vmatpush1.xpose.msra.mxu0 0.0
    %5604 = vmatprep.subr.mxu0 0.0
    %5605 = vmatpush1.xpose.msra.mxu0 0.0
    %5606 = vmatprep.subr.mxu0 0.0
    %5607 = vmatpush1.xpose.msra.mxu0 0.0
    %5608 = vmatprep.subr.mxu0 0.0
    %5609 = vmatpush1.xpose.msra.mxu0 0.0
    %5610 = vmatprep.subr.mxu0 0.0
    %5611 = vmatpush1.xpose.msra.mxu0 0.0
    %5612 = vmatprep.subr.mxu0 0.0
    %5613 = vmatpush1.xpose.msra.mxu0 0.0
    %5614 = vmatprep.subr.mxu0 0.0
    %5615 = vmatpush1.xpose.msra.mxu0 0.0
    %5616 = vmatprep.subr.mxu0 0.0
    %5617 = vmatpush1.xpose.msra.mxu0 0.0
    %5618 = vmatprep.mubr.f32.mxu0 0.0
    %5619 = vmatmul.mubr.f32.gmra.mrb[0].mxu0 %v3528
    %v5620 = vpop.f32.mrb[0].mxu0
    %v5621 = vadd.f32 %v212, %v5620
    %v5622 = vpop.f32.mrb[0].mxu0
    %5623 = vmatprep.mubr.f32.mxu0 0.0
    %5624 = vmatmul.mubr.f32.gmra.mrb[0].mxu0 %v3530
    %v5625 = vpop.f32.mrb[0].mxu0
    %v5626 = vadd.f32 %v213, %v5625
    %v5627 = vpop.f32.mrb[0].mxu0
    %5628 = vdwg.mxu0
    %v5629 = vsel %vm138, %v5621, -inf
    %5630 = vmax.xlane.f32.xlu0 %v5629
    %v5631 = vpop.xlane.xlu0 %5630
    %v5632 = vsel %vm138, %v5626, -inf
    %5633 = vmax.xlane.f32.xlu0 %v5632
    %v5634 = vpop.xlane.xlu0 %5633
    %v5635 = vsub.f32 %v5621, %v5631
    %v5636 = vsub.f32 %v5626, %v5634
    %v5637 = vmul.f32 %v5635, 1.442695
    %v5638 = vpow.pop %v5637
    %v5639 = vmul.f32 %v5636, 1.442695
    %v5640 = vpow.pop %v5639
    %v5641 = vsel %vm138, %v5638, 0.0
    %5642 = vadd.xlane.f32.xlu0 %v5641
    %v5643 = vpop.xlane.xlu0 %5642
    %v5644 = vsel %vm138, %v5640, 0.0
    %5645 = vadd.xlane.f32.xlu0 %v5644
    %v5646 = vpop.xlane.xlu0 %5645
    %v5647 = vrcp.pop %v5643
    %v5648 = vrcp.pop %v5646
    %v5649 = vmul.f32 %v5638, %v5647
    %v5650 = vmul.f32 %v5640, %v5648
    %5651 = vrot.lane.b32.xlu0 %v3310, 16
    %v5652 = vpop.permute.xlu0 %5651
    %5653 = vrot.lane.b32.xlu0 %v3316, 16
    %v5654 = vpop.permute.xlu0 %5653
    %v5658 = vsel %vm138, %v5649, 0
    %v5661 = vsel %vm138, %v5650, 0
    %5663 = vmatprep.subr.mxu0 0.0
    %5664 = vmatpush1.msra.mxu0 %v5652
    %5665 = vmatprep.subr.mxu0 0.0
    %5666 = vmatpush1.msra.mxu0 %v5654
    %5667 = vmatprep.subr.mxu0 0.0
    %5668 = vmatpush1.msra.mxu0 0.0
    %5669 = vmatprep.subr.mxu0 0.0
    %5670 = vmatpush1.msra.mxu0 0.0
    %5671 = vmatprep.subr.mxu0 0.0
    %5672 = vmatpush1.msra.mxu0 0.0
    %5673 = vmatprep.subr.mxu0 0.0
    %5674 = vmatpush1.msra.mxu0 0.0
    %5675 = vmatprep.subr.mxu0 0.0
    %5676 = vmatpush1.msra.mxu0 0.0
    %5677 = vmatprep.subr.mxu0 0.0
    %5678 = vmatpush1.msra.mxu0 0.0
    %5679 = vmatprep.subr.mxu0 0.0
    %5680 = vmatpush1.msra.mxu0 0.0
    %5681 = vmatprep.subr.mxu0 0.0
    %5682 = vmatpush1.msra.mxu0 0.0
    %5683 = vmatprep.subr.mxu0 0.0
    %5684 = vmatpush1.msra.mxu0 0.0
    %5685 = vmatprep.subr.mxu0 0.0
    %5686 = vmatpush1.msra.mxu0 0.0
    %5687 = vmatprep.subr.mxu0 0.0
    %5688 = vmatpush1.msra.mxu0 0.0
    %5689 = vmatprep.subr.mxu0 0.0
    %5690 = vmatpush1.msra.mxu0 0.0
    %5691 = vmatprep.subr.mxu0 0.0
    %5692 = vmatpush1.msra.mxu0 0.0
    %5693 = vmatprep.subr.mxu0 0.0
    %5694 = vmatpush1.msra.mxu0 0.0
    %5695 = vmatprep.subr.mxu0 0.0
    %5696 = vmatpush1.msra.mxu0 0.0
    %5697 = vmatprep.subr.mxu0 0.0
    %5698 = vmatpush1.msra.mxu0 0.0
    %5699 = vmatprep.subr.mxu0 0.0
    %5700 = vmatpush1.msra.mxu0 0.0
    %5701 = vmatprep.subr.mxu0 0.0
    %5702 = vmatpush1.msra.mxu0 0.0
    %5703 = vmatprep.subr.mxu0 0.0
    %5704 = vmatpush1.msra.mxu0 0.0
    %5705 = vmatprep.subr.mxu0 0.0
    %5706 = vmatpush1.msra.mxu0 0.0
    %5707 = vmatprep.subr.mxu0 0.0
    %5708 = vmatpush1.msra.mxu0 0.0
    %5709 = vmatprep.subr.mxu0 0.0
    %5710 = vmatpush1.msra.mxu0 0.0
    %5711 = vmatprep.subr.mxu0 0.0
    %5712 = vmatpush1.msra.mxu0 0.0
    %5713 = vmatprep.subr.mxu0 0.0
    %5714 = vmatpush1.msra.mxu0 0.0
    %5715 = vmatprep.subr.mxu0 0.0
    %5716 = vmatpush1.msra.mxu0 0.0
    %5717 = vmatprep.subr.mxu0 0.0
    %5718 = vmatpush1.msra.mxu0 0.0
    %5719 = vmatprep.subr.mxu0 0.0
    %5720 = vmatpush1.msra.mxu0 0.0
    %5721 = vmatprep.subr.mxu0 0.0
    %5722 = vmatpush1.msra.mxu0 0.0
    %5723 = vmatprep.subr.mxu0 0.0
    %5724 = vmatpush1.msra.mxu0 0.0
    %5725 = vmatprep.subr.mxu0 0.0
    %5726 = vmatpush1.msra.mxu0 0.0
    %5727 = vmatprep.mubr.f32.mxu0 0.0
    %5728 = vmatmul.mubr.f32.gmra.mrb[0].mxu0 %v5658
    %v5729 = vpop.f32.mrb[0].mxu0
    %v5730 = vadd.f32 0.0, %v5729
    %v5731 = vpop.f32.mrb[0].mxu0
    %5732 = vmatprep.mubr.f32.mxu0 0.0
    %5733 = vmatmul.mubr.f32.gmra.mrb[0].mxu0 %v5661
    %v5734 = vpop.f32.mrb[0].mxu0
    %v5735 = vadd.f32 0.0, %v5734
    %v5736 = vpop.f32.mrb[0].mxu0
    %5737 = vdwg.mxu0
    %5740 = vrot.lane.b32.xlu0 %v5730, 16
    %v5741 = vpop.permute.xlu0 %5740
    %5742 = vrot.lane.b32.xlu0 %v5735, 16
    %v5743 = vpop.permute.xlu0 %5742
    %v5746 = vsel %vm138, %v5538, %v5741
    %v5747 = vsel %vm138, %v5543, %v5743
    %v5748 = vmul.f32 %v5746, %v224
    %v5749 = vmul.f32 %v5747, %v225
    %v5750 = vadd.f32 %v5352, %v5748
    %v5751 = vadd.f32 %v5353, %v5749
    %v5752 = vmul.f32 %v5750, 0.33333334
    %v5753 = vmul.f32 %v5751, 0.33333334
    %5756 = vrot.lane.b32.xlu0 %v5752, 32
    %v5757 = vpop.permute.xlu0 %5756
    %5758 = vrot.lane.b32.xlu0 %v5753, 32
    %v5759 = vpop.permute.xlu0 %5758
    %5764 = vrot.lane.b32.xlu0 %v4546, 64
    %v5765 = vpop.permute.xlu0 %5764
    %5766 = vrot.lane.b32.xlu0 %v4547, 64
    %v5767 = vpop.permute.xlu0 %5766
    %5772 = vrot.lane.b32.xlu0 %v4958, 96
    %v5773 = vpop.permute.xlu0 %5772
    %5774 = vrot.lane.b32.xlu0 %v4959, 96
    %v5775 = vpop.permute.xlu0 %5774
    %v5778 = vsel %vm52, %v4138, %v5757
    %v5779 = vsel %vm52, %v4139, %v5759
    %v5780 = vsel %vm2928, %v5778, %v5765
    %v5781 = vsel %vm2928, %v5779, %v5767
    %v5782 = vsel %vm2931, %v5780, %v5773
    %v5783 = vsel %vm2931, %v5781, %v5775
    %v5784 = vmul.f32 %v5782, 0.5
    %v5785 = vmul.f32 %v5783, 0.5
    %v5786 = vmul.f32 %v5782, 0.044715
    %v5787 = vmul.f32 %v5783, 0.044715
    %v5788 = vmul.f32 %v5786, %v5782
    %v5789 = vmul.f32 %v5787, %v5783
    %v5790 = vmul.f32 %v5788, %v5782
    %v5791 = vmul.f32 %v5789, %v5783
    %v5792 = vadd.f32 %v5782, %v5790
    %v5793 = vadd.f32 %v5783, %v5791
    %v5794 = vmul.f32 %v5792, 0.7978846
    %v5795 = vmul.f32 %v5793, 0.7978846
    %v5796 = vtanh.pop %v5794
    %v5797 = vtanh.pop %v5795
    %v5798 = vadd.f32 %v5796, 1.0
    %v5799 = vadd.f32 %v5797, 1.0
    %v5800 = vmul.f32 %v5784, %v5798
    %v5801 = vmul.f32 %v5785, %v5799
    %s5802 = scalar_lea.vmem %s6, 128
    %v5803 = vld [vmem:[%s5802] sm:$0xff]
    %v5804 = vld [vmem:[%s5802 + $0x8] sm:$0xff]
    %v5805 = vld [vmem:[%s5802 + $0x10] sm:$0xff]
    %v5806 = vld [vmem:[%s5802 + $0x18] sm:$0xff]
    %v5807 = vld [vmem:[%s5802 + $0x20] sm:$0xff]
    %v5808 = vld [vmem:[%s5802 + $0x28] sm:$0xff]
    %v5809 = vld [vmem:[%s5802 + $0x30] sm:$0xff]
    %v5810 = vld [vmem:[%s5802 + $0x38] sm:$0xff]
    %v5811 = vld [vmem:[%s5802 + $0x40] sm:$0xff]
    %v5812 = vld [vmem:[%s5802 + $0x48] sm:$0xff]
    %v5813 = vld [vmem:[%s5802 + $0x50] sm:$0xff]
    %v5814 = vld [vmem:[%s5802 + $0x58] sm:$0xff]
    %v5815 = vld [vmem:[%s5802 + $0x60] sm:$0xff]
    %v5816 = vld [vmem:[%s5802 + $0x68] sm:$0xff]
    %v5817 = vld [vmem:[%s5802 + $0x70] sm:$0xff]
    %v5818 = vld [vmem:[%s5802 + $0x78] sm:$0xff]
    %s5819 = scalar_lea.vmem %s7, 1
    %v5820 = vld [vmem:[%s5819] sm:$0x1]
    %v5822 = vlaneseq
    %v5823 = vshrl.u32 %v5822, 7
    %v5824 = vsub.s32 0, %v5823
    %v5825 = vrot.slane %v5820, %v5824
    %5827 = vmatprep.subr.mxu0 0.0
    %5828 = vmatpush1.msra.mxu0 %v5803
    %5829 = vmatprep.subr.mxu0 0.0
    %5830 = vmatpush1.msra.mxu0 %v5804
    %5831 = vmatprep.subr.mxu0 0.0
    %5832 = vmatpush1.msra.mxu0 %v5805
    %5833 = vmatprep.subr.mxu0 0.0
    %5834 = vmatpush1.msra.mxu0 %v5806
    %5835 = vmatprep.subr.mxu0 0.0
    %5836 = vmatpush1.msra.mxu0 %v5807
    %5837 = vmatprep.subr.mxu0 0.0
    %5838 = vmatpush1.msra.mxu0 %v5808
    %5839 = vmatprep.subr.mxu0 0.0
    %5840 = vmatpush1.msra.mxu0 %v5809
    %5841 = vmatprep.subr.mxu0 0.0
    %5842 = vmatpush1.msra.mxu0 %v5810
    %5843 = vmatprep.subr.mxu0 0.0
    %5844 = vmatpush1.msra.mxu0 %v5811
    %5845 = vmatprep.subr.mxu0 0.0
    %5846 = vmatpush1.msra.mxu0 %v5812
    %5847 = vmatprep.subr.mxu0 0.0
    %5848 = vmatpush1.msra.mxu0 %v5813
    %5849 = vmatprep.subr.mxu0 0.0
    %5850 = vmatpush1.msra.mxu0 %v5814
    %5851 = vmatprep.subr.mxu0 0.0
    %5852 = vmatpush1.msra.mxu0 %v5815
    %5853 = vmatprep.subr.mxu0 0.0
    %5854 = vmatpush1.msra.mxu0 %v5816
    %5855 = vmatprep.subr.mxu0 0.0
    %5856 = vmatpush1.msra.mxu0 %v5817
    %5857 = vmatprep.subr.mxu0 0.0
    %5858 = vmatpush1.msra.mxu0 %v5818
    %5859 = vmatprep.subr.mxu0 0.0
    %5860 = vmatpush1.msra.mxu0 0.0
    %5861 = vmatprep.subr.mxu0 0.0
    %5862 = vmatpush1.msra.mxu0 0.0
    %5863 = vmatprep.subr.mxu0 0.0
    %5864 = vmatpush1.msra.mxu0 0.0
    %5865 = vmatprep.subr.mxu0 0.0
    %5866 = vmatpush1.msra.mxu0 0.0
    %5867 = vmatprep.subr.mxu0 0.0
    %5868 = vmatpush1.msra.mxu0 0.0
    %5869 = vmatprep.subr.mxu0 0.0
    %5870 = vmatpush1.msra.mxu0 0.0
    %5871 = vmatprep.subr.mxu0 0.0
    %5872 = vmatpush1.msra.mxu0 0.0
    %5873 = vmatprep.subr.mxu0 0.0
    %5874 = vmatpush1.msra.mxu0 0.0
    %5875 = vmatprep.subr.mxu0 0.0
    %5876 = vmatpush1.msra.mxu0 0.0
    %5877 = vmatprep.subr.mxu0 0.0
    %5878 = vmatpush1.msra.mxu0 0.0
    %5879 = vmatprep.subr.mxu0 0.0
    %5880 = vmatpush1.msra.mxu0 0.0
    %5881 = vmatprep.subr.mxu0 0.0
    %5882 = vmatpush1.msra.mxu0 0.0
    %5883 = vmatprep.subr.mxu0 0.0
    %5884 = vmatpush1.msra.mxu0 0.0
    %5885 = vmatprep.subr.mxu0 0.0
    %5886 = vmatpush1.msra.mxu0 0.0
    %5887 = vmatprep.subr.mxu0 0.0
    %5888 = vmatpush1.msra.mxu0 0.0
    %5889 = vmatprep.subr.mxu0 0.0
    %5890 = vmatpush1.msra.mxu0 0.0
    %5891 = vmatprep.mubr.f32.mxu0 0.0
    %5892 = vmatmul.mubr.f32.gmra.mrb[0].mxu0 %v5800
    %v5893 = vpop.f32.mrb[0].mxu0
    %v5894 = vadd.f32 %v5825, %v5893
    %v5895 = vpop.f32.mrb[0].mxu0
    %5896 = vmatprep.mubr.f32.mxu0 0.0
    %5897 = vmatmul.mubr.f32.gmra.mrb[0].mxu0 %v5801
    %v5898 = vpop.f32.mrb[0].mxu0
    %v5899 = vadd.f32 %v5825, %v5898
    %v5900 = vpop.f32.mrb[0].mxu0
    %5901 = vdwg.mxu0
    %s5902 = scalar_lea.vmem %s8, 1
    %v5903 = vld [vmem:[%s5902] sm:$0x1]
    %v5904 = vxor.u32 %v5903, 2147483648
    %v5905 = vmul.f32 %v5904, 1.442695
    %v5906 = vpow.pop %v5905
    %v5907 = vadd.f32 %v5906, 1.0
    %v5908 = vrcp.pop %v5907
    %v5909 = vmul.f32 1.0, %v5908
    %v5911 = vlaneseq
    %v5912 = vshrl.u32 %v5911, 7
    %v5913 = vsub.s32 0, %v5912
    %v5914 = vrot.slane %v5909, %v5913
    %v5916 = vmul.f32 %v5914, %v5894
    %v5917 = vmul.f32 %v5914, %v5899
    %v5918 = vsub.f32 1.0, %v5909
    %v5920 = vlaneseq
    %v5921 = vshrl.u32 %v5920, 7
    %v5922 = vsub.s32 0, %v5921
    %v5923 = vrot.slane %v5918, %v5922
    %v5925 = vmul.f32 %v5923, %v3074
    %v5926 = vmul.f32 %v5923, %v3075
    %v5927 = vadd.f32 %v5916, %v5925
    %v5928 = vadd.f32 %v5917, %v5926
    %v5929 = vld [vmem:[%s9] sm:$0xff]
    %v5930 = vld [vmem:[%s9 + $0x8] sm:$0xff]
    %v5931 = vld [vmem:[%s9 + $0x10] sm:$0xff]
    %v5932 = vld [vmem:[%s9 + $0x18] sm:$0xff]
    %v5933 = vld [vmem:[%s10] sm:$0x1]
    %v5935 = vlaneseq
    %v5936 = vshrl.u32 %v5935, 7
    %v5937 = vsub.s32 0, %v5936
    %v5938 = vrot.slane %v5933, %v5937
    %v5941 = vsel %vm52, %v5927, 0
    %v5944 = vsel %vm52, %v5928, 0
    %5946 = vmatprep.subr.mxu0 0.0
    %5947 = vmatpush1.msra.mxu0 %v5929
    %5948 = vmatprep.subr.mxu0 0.0
    %5949 = vmatpush1.msra.mxu0 %v5930
    %5950 = vmatprep.subr.mxu0 0.0
    %5951 = vmatpush1.msra.mxu0 %v5931
    %5952 = vmatprep.subr.mxu0 0.0
    %5953 = vmatpush1.msra.mxu0 %v5932
    %5954 = vmatprep.subr.mxu0 0.0
    %5955 = vmatpush1.msra.mxu0 0.0
    %5956 = vmatprep.subr.mxu0 0.0
    %5957 = vmatpush1.msra.mxu0 0.0
    %5958 = vmatprep.subr.mxu0 0.0
    %5959 = vmatpush1.msra.mxu0 0.0
    %5960 = vmatprep.subr.mxu0 0.0
    %5961 = vmatpush1.msra.mxu0 0.0
    %5962 = vmatprep.subr.mxu0 0.0
    %5963 = vmatpush1.msra.mxu0 0.0
    %5964 = vmatprep.subr.mxu0 0.0
    %5965 = vmatpush1.msra.mxu0 0.0
    %5966 = vmatprep.subr.mxu0 0.0
    %5967 = vmatpush1.msra.mxu0 0.0
    %5968 = vmatprep.subr.mxu0 0.0
    %5969 = vmatpush1.msra.mxu0 0.0
    %5970 = vmatprep.subr.mxu0 0.0
    %5971 = vmatpush1.msra.mxu0 0.0
    %5972 = vmatprep.subr.mxu0 0.0
    %5973 = vmatpush1.msra.mxu0 0.0
    %5974 = vmatprep.subr.mxu0 0.0
    %5975 = vmatpush1.msra.mxu0 0.0
    %5976 = vmatprep.subr.mxu0 0.0
    %5977 = vmatpush1.msra.mxu0 0.0
    %5978 = vmatprep.subr.mxu0 0.0
    %5979 = vmatpush1.msra.mxu0 0.0
    %5980 = vmatprep.subr.mxu0 0.0
    %5981 = vmatpush1.msra.mxu0 0.0
    %5982 = vmatprep.subr.mxu0 0.0
    %5983 = vmatpush1.msra.mxu0 0.0
    %5984 = vmatprep.subr.mxu0 0.0
    %5985 = vmatpush1.msra.mxu0 0.0
    %5986 = vmatprep.subr.mxu0 0.0
    %5987 = vmatpush1.msra.mxu0 0.0
    %5988 = vmatprep.subr.mxu0 0.0
    %5989 = vmatpush1.msra.mxu0 0.0
    %5990 = vmatprep.subr.mxu0 0.0
    %5991 = vmatpush1.msra.mxu0 0.0
    %5992 = vmatprep.subr.mxu0 0.0
    %5993 = vmatpush1.msra.mxu0 0.0
    %5994 = vmatprep.subr.mxu0 0.0
    %5995 = vmatpush1.msra.mxu0 0.0
    %5996 = vmatprep.subr.mxu0 0.0
    %5997 = vmatpush1.msra.mxu0 0.0
    %5998 = vmatprep.subr.mxu0 0.0
    %5999 = vmatpush1.msra.mxu0 0.0
    %6000 = vmatprep.subr.mxu0 0.0
    %6001 = vmatpush1.msra.mxu0 0.0
    %6002 = vmatprep.subr.mxu0 0.0
    %6003 = vmatpush1.msra.mxu0 0.0
    %6004 = vmatprep.subr.mxu0 0.0
    %6005 = vmatpush1.msra.mxu0 0.0
    %6006 = vmatprep.subr.mxu0 0.0
    %6007 = vmatpush1.msra.mxu0 0.0
    %6008 = vmatprep.subr.mxu0 0.0
    %6009 = vmatpush1.msra.mxu0 0.0
    %6010 = vmatprep.mubr.f32.mxu0 0.0
    %6011 = vmatmul.mubr.f32.gmra.mrb[0].mxu0 %v5941
    %v6012 = vpop.f32.mrb[0].mxu0
    %v6013 = vadd.f32 %v5938, %v6012
    %v6014 = vpop.f32.mrb[0].mxu0
    %6015 = vmatprep.mubr.f32.mxu0 0.0
    %6016 = vmatmul.mubr.f32.gmra.mrb[0].mxu0 %v5944
    %v6017 = vpop.f32.mrb[0].mxu0
    %v6018 = vadd.f32 %v5938, %v6017
    %v6019 = vpop.f32.mrb[0].mxu0
    %6020 = vdwg.mxu0
    %6021 = vst [vmem:[#allocation2] sm:$0xff] %v6013
    %6022 = vst [vmem:[#allocation2 + $0x8] sm:$0xff] %v6018
    // Predicated region
    $region46: #{hgt_forward.1} parent=1 // pred_check
      _
    $region47: #{hgt_forward.1} parent=1 // pred_check_branch
      %6024 = sbr.rel (0) target = $region49
    $region48: #{hgt_forward.1} parent=1 // pred_region
      %s6026 = ssub.s32 256, 256
      %6027 = vsyncadd [#allocation3], %s6026
      %s6028 = sshll.u32 [#allocation2], 4
      %s6029 = int_to_ptr.vmem [resolvable:$true] %s6028
      %6034 = dma.vmem_to_hbm [thread:$0]  %s6029, 256, %s11, [#allocation3], 128, 128, 8
    $region49: #{hgt_forward.1} parent=1 // pred_fallthru
      _
    // Predicated region
    $region50: #{hgt_forward.1} parent=1 // pred_check
      _
    $region51: #{hgt_forward.1} parent=1 // pred_check_branch
      %6036 = sbr.rel (0) target = $region53
    $region52: #{hgt_forward.1} parent=1 // pred_region
      %6037 = dma.done [#allocation3], 256
    $region53: #{hgt_forward.1} parent=1 // pred_fallthru
      _
    %6038 = vsyncpa [#allocation3], 1

</llo_original>
